<compile_context>
chip_gen: v5e
topology: v5e:2x2
jax: 0.10.0
libtpu: 0.0.40
codegen_flags: <defaults>
</compile_context>

<pallas_src>
import jax
import jax.numpy as jnp
from functools import partial
from jax import lax
from jax.experimental import pallas as pl
from jax.experimental.pallas import tpu as pltpu


# ------------------------------ Pallas kernel ------------------------------- #

def _cause_detector_kernel(tlast_ref,                      # (Bp, 1) int32 = clamp(lens-1)
                           x_ref,                          # (T*Bp, Ep) bf16 time-major
                           wih0_ref, whh0f_ref, whh0r_ref, b0_ref,
                           wih1_ref, whh1f_ref, whh1r_ref, b1_ref,
                           clsw_ref, clsb_ref,
                           out_ref,                        # (Bp, Op) f32 log-probs
                           h0_sc):                         # (T*Bp, 2Hp) f32 VMEM scratch
    Bp, Op = out_ref.shape
    TB = x_ref.shape[0]
    T = TB // Bp
    Hp = whh0f_ref.shape[0]                                # lane-padded hidden size

    # hoisted once: lens-1 broadcast used by the in-loop last-step select
    tlast_b = jnp.broadcast_to(tlast_ref[...], (Bp, Hp))   # (Bp, Hp) int32

    def cell(pre, h, c, whh):
        # pre: (Bp, 4Hp) hoisted x-projection (bias already folded in), f32
        gates = pre + jnp.dot(h.astype(whh.dtype), whh,
                              preferred_element_type=jnp.float32)
        i = jax.nn.sigmoid(gates[:, 0 * Hp:1 * Hp])
        f = jax.nn.sigmoid(gates[:, 1 * Hp:2 * Hp])
        g = jnp.tanh(gates[:, 2 * Hp:3 * Hp])
        o = jax.nn.sigmoid(gates[:, 3 * Hp:4 * Hp])
        c_new = f * c + i * g
        h_new = o * jnp.tanh(c_new)
        return h_new, c_new

    def bilstm(x2d_bf16, wih_ref_, whhf_ref_, whhr_ref_, b_ref_,
               out_sc=None, select_last=False):
        # Hoisted input projection for BOTH directions (one big bf16 MXU matmul
        # instead of T tiny ones on the serial critical path), bias folded in.
        xp = (jnp.dot(x2d_bf16, wih_ref_[...], preferred_element_type=jnp.float32)
              + b_ref_[...])                               # (T*Bp, 8Hp) f32
        whh_f = whhf_ref_[...]                             # (Hp, 4Hp) bf16
        whh_r = whhr_ref_[...]
        z = jnp.zeros((Bp, Hp), jnp.float32)
        h_f, c_f, h_r, c_r = z, z, z, z
        last_f, last_r = z, z
        # T is small & static -> full unroll; (h, c) stay in vregs.
        for t in range(T):
            tr = T - 1 - t
            h_f, c_f = cell(xp[t * Bp:(t + 1) * Bp, 0:4 * Hp], h_f, c_f, whh_f)
            h_r, c_r = cell(xp[tr * Bp:(tr + 1) * Bp, 4 * Hp:8 * Hp], h_r, c_r, whh_r)
            if select_last:
                # in-loop masked select replaces scratch stores + dynamic gather
                last_f = jnp.where(tlast_b == t, h_f, last_f)
                last_r = jnp.where(tlast_b == tr, h_r, last_r)
            else:
                out_sc[t * Bp:(t + 1) * Bp, 0:Hp] = h_f          # full-tile stores
                out_sc[tr * Bp:(tr + 1) * Bp, Hp:2 * Hp] = h_r
        return last_f, last_r

    # layer 0: embedded input -> h0_sc (VMEM); layer 1: h0_sc -> last-step select
    bilstm(x_ref[...], wih0_ref, whh0f_ref, whh0r_ref, b0_ref, out_sc=h0_sc)
    last_f, last_r = bilstm(h0_sc[...].astype(jnp.bfloat16),
                            wih1_ref, whh1f_ref, whh1r_ref, b1_ref,
                            select_last=True)
    last = jnp.concatenate([last_f, last_r], axis=1)       # (Bp, 2Hp)

    # classifier + numerically-stable log-softmax (pad lanes carry -1e30 bias,
    # so exp(pad) == 0 and the real-lane log-probs are exact)
    clsw = clsw_ref[...]
    logits = (jnp.dot(last.astype(clsw.dtype), clsw,
                      preferred_element_type=jnp.float32)
              + clsb_ref[...])                             # (Bp, Op) f32
    m = jnp.max(logits, axis=-1, keepdims=True)
    shifted = logits - m
    lse = jnp.log(jnp.sum(jnp.exp(shifted), axis=-1, keepdims=True))
    out_ref[...] = shifted - lse


# ------------------------------ JAX wrapper --------------------------------- #

def _round_up(x, m):
    return ((x + m - 1) // m) * m


@partial(jax.jit, static_argnums=(2, 3))
def cause_detector_forward(padded, symbols, pad_idx, output_size):
    """symbols: (B, T) int32 -> log-probs (B, 1, output_size)."""
    emb = padded["embeddings"][symbols]                    # (B, T, E) XLA gather
    lens = jnp.sum((symbols != pad_idx).astype(jnp.int32), axis=1)   # (B,)

    B, T = symbols.shape
    E = emb.shape[-1]
    Bp = _round_up(B, 8)                                   # sublane-pad batch
    Ep = padded["wih0"].shape[0]                           # lane-padded embed dim
    Hp = padded["whh0_f"].shape[0]
    Op = padded["cls_b"].shape[1]

    # time-major rows t*Bp + b, batch padded to Bp (zero rows), embed padded to
    # Ep (zero cols), bf16 MXU operands
    x = jnp.transpose(emb, (1, 0, 2))                      # (T, B, E)
    x = jnp.pad(x, ((0, 0), (0, Bp - B), (0, Ep - E)))
    x2d = x.reshape(T * Bp, Ep).astype(jnp.bfloat16)

    # clamp all-pad rows (lens==0) to index 0, same as previous version
    tlast = jnp.pad(jnp.maximum(lens - 1, 0), (0, Bp - B)).astype(jnp.int32)
    tlast = tlast[:, None]                                 # (Bp, 1)

    vspec = pl.BlockSpec(memory_space=pltpu.MemorySpace.VMEM)

    out = pl.pallas_call(
        _cause_detector_kernel,
        out_shape=jax.ShapeDtypeStruct((Bp, Op), jnp.float32),
        in_specs=[vspec] * 12,
        out_specs=vspec,
        scratch_shapes=[pltpu.VMEM((T * Bp, 2 * Hp), jnp.float32)],  # layer-0 h
        compiler_params=pltpu.CompilerParams(vmem_limit_bytes=32 * 1024 * 1024),
    )(tlast, x2d,
      padded["wih0"], padded["whh0_f"], padded["whh0_r"], padded["b0"],
      padded["wih1"], padded["whh1_f"], padded["whh1_r"], padded["b1"],
      padded["cls_w"], padded["cls_b"])

    return out[:B, :output_size][:, None, :]               # (B, 1, O)


# ------------------------- lane-padded weight packing ------------------------ #

def pad_params_for_kernel(params, hidden_dim, output_size):
    """Lane-pad H->Hp, O->Op, E->Ep (all to 128) and cast MXU weights to bf16.

    Exactness of the padding: padded weight rows/cols are zero and padded LSTM
    biases are zero (classifier pad bias = -1e30), so the real lanes compute
    exactly the unpadded LSTM / classifier; the bf16 cast of the matmul
    operands is the only precision change (accumulation stays f32).
    """
    H = hidden_dim
    Hp = _round_up(H, 128)
    Op = _round_up(output_size, 128)
    E = params["l0"][0].shape[0]
    Ep = _round_up(E, 128)

    def pad_gate_cols(w):                                  # (rows, 4H) -> (rows, 4Hp)
        out = jnp.zeros((w.shape[0], 4 * Hp), jnp.float32)
        for g in range(4):
            out = out.at[:, g * Hp:g * Hp + H].set(w[:, g * H:(g + 1) * H])
        return out

    def pad_rows(w, rows_to):                              # zero-pad leading rows
        out = jnp.zeros((rows_to, w.shape[1]), jnp.float32)
        return out.at[:w.shape[0], :].set(w)

    def pad_bidir_rows(w):                                 # (2H, cols) -> (2Hp, cols)
        out = jnp.zeros((2 * Hp, w.shape[1]), jnp.float32)
        out = out.at[0:H, :].set(w[0:H, :])
        out = out.at[Hp:Hp + H, :].set(w[H:2 * H, :])
        return out

    def pad_whh(w):                                        # (H, 4H) -> (Hp, 4Hp)
        out = jnp.zeros((Hp, 4 * Hp), jnp.float32)
        return out.at[0:H, :].set(pad_gate_cols(w))

    def pack_layer(layer, bidir_input_rows):
        wih_f, whh_f, b_f, wih_r, whh_r, b_r = layer
        if bidir_input_rows:                               # layer-1 input is (fwd|rev)
            wih_f = pad_bidir_rows(wih_f)
            wih_r = pad_bidir_rows(wih_r)
        else:                                              # layer-0 input: pad E -> Ep
            wih_f = pad_rows(wih_f, Ep)
            wih_r = pad_rows(wih_r, Ep)
        wih = jnp.concatenate([pad_gate_cols(wih_f), pad_gate_cols(wih_r)], axis=1)
        b = jnp.concatenate([pad_gate_cols(b_f), pad_gate_cols(b_r)], axis=1)
        return (wih.astype(jnp.bfloat16),
                pad_whh(whh_f).astype(jnp.bfloat16),
                pad_whh(whh_r).astype(jnp.bfloat16),
                b)                                         # biases stay f32

    wih0, whh0_f, whh0_r, b0 = pack_layer(params["l0"], bidir_input_rows=False)
    wih1, whh1_f, whh1_r, b1 = pack_layer(params["l1"], bidir_input_rows=True)

    cls_w = jnp.zeros((2 * Hp, Op), jnp.float32).at[:, 0:output_size].set(
        pad_bidir_rows(params["cls_w"])).astype(jnp.bfloat16)
    cls_b = jnp.full((1, Op), -1e30, jnp.float32).at[:, 0:output_size].set(
        params["cls_b"])

    return {"embeddings": params["embeddings"],
            "wih0": wih0, "whh0_f": whh0_f, "whh0_r": whh0_r, "b0": b0,
            "wih1": wih1, "whh1_f": whh1_f, "whh1_r": whh1_r, "b1": b1,
            "cls_w": cls_w, "cls_b": cls_b}


# --------------------------- deterministic init ------------------------------ #

def make_params(key, vocab_size, input_dim, hidden_dim, output_size):
    scale = 1.0 / jnp.sqrt(jnp.float32(hidden_dim))

    def uni(k, shape):
        return jax.random.uniform(k, shape, jnp.float32, -scale, scale)

    def dir_params(k, d_in):
        k1, k2, k3, k4 = jax.random.split(k, 4)
        wih = uni(k1, (d_in, 4 * hidden_dim))              # (Din, 4H)
        whh = uni(k2, (hidden_dim, 4 * hidden_dim))        # (H, 4H)
        b = uni(k3, (1, 4 * hidden_dim)) + uni(k4, (1, 4 * hidden_dim))  # b_ih+b_hh
        return (wih, whh, b)

    ks = jax.random.split(key, 8)
    emb = jax.random.normal(ks[0], (vocab_size, input_dim), jnp.float32) * 0.1
    l0 = dir_params(ks[1], input_dim) + dir_params(ks[2], input_dim)
    l1 = dir_params(ks[3], 2 * hidden_dim) + dir_params(ks[4], 2 * hidden_dim)
    cls_w = uni(ks[5], (2 * hidden_dim, output_size))
    cls_b = uni(ks[6], (1, output_size))
    return {"embeddings": emb, "l0": l0, "l1": l1,
            "cls_w": cls_w, "cls_b": cls_b}


# --------------------------- pure-JAX reference ------------------------------ #

def reference_forward(params, symbols, pad_idx):
    HIGH = lax.Precision.HIGHEST
    emb = params["embeddings"][symbols]
    lens = jnp.sum((symbols != pad_idx).astype(jnp.int32), axis=1)

    def lstm_dir(x_tm, wih, whh, b):
        H = whh.shape[0]
        Bq = x_tm.shape[1]

        def step(carry, x_t):
            h, c = carry
            gates = (jnp.dot(x_t, wih, precision=HIGH)
                     + jnp.dot(h, whh, precision=HIGH) + b)
            i = jax.nn.sigmoid(gates[:, 0 * H:1 * H])
            f = jax.nn.sigmoid(gates[:, 1 * H:2 * H])
            g = jnp.tanh(gates[:, 2 * H:3 * H])
            o = jax.nn.sigmoid(gates[:, 3 * H:4 * H])
            c = f * c + i * g
            h = o * jnp.tanh(c)
            return (h, c), h

        z = jnp.zeros((Bq, H), jnp.float32)
        _, hs = lax.scan(step, (z, z), x_tm)
        return hs                                          # (T, B, H)

    def bilayer(x_bt, p):
        wih_f, whh_f, b_f, wih_r, whh_r, b_r = p
        x_tm = jnp.transpose(x_bt, (1, 0, 2))
        hf = lstm_dir(x_tm, wih_f, whh_f, b_f)
        hr = lstm_dir(x_tm[::-1], wih_r, whh_r, b_r)[::-1]
        return jnp.transpose(jnp.concatenate([hf, hr], axis=-1), (1, 0, 2))

    h1 = bilayer(bilayer(emb, params["l0"]), params["l1"])
    idx = jnp.broadcast_to((lens - 1)[:, None, None], (h1.shape[0], 1, h1.shape[2]))
    last = jnp.take_along_axis(h1, idx, axis=1)[:, 0, :]
    logits = jnp.dot(last, params["cls_w"], precision=HIGH) + params["cls_b"]
    return jax.nn.log_softmax(logits, axis=-1)[:, None, :]


# ---------------------------------- main ------------------------------------- #

if __name__ == "__main__":
    VOCAB = 16
    INPUT_DIM = 32      # embedding dim
    HIDDEN_DIM = 32
    OUTPUT_SIZE = 4
    PAD_IDX = 0
    B, T = 2, 8

    key = jax.random.PRNGKey(0)
    k_params, k_sym = jax.random.split(key)

    params = make_params(k_params, VOCAB, INPUT_DIM, HIDDEN_DIM, OUTPUT_SIZE)
    padded = pad_params_for_kernel(params, HIDDEN_DIM, OUTPUT_SIZE)

    # deterministic token ids in [1, VOCAB), with trailing padding on row 1
    symbols = jax.random.randint(k_sym, (B, T), 1, VOCAB, dtype=jnp.int32)
    symbols = symbols.at[1, 5:].set(PAD_IDX)               # row 1 has length 5

    out = cause_detector_forward(padded, symbols, PAD_IDX, OUTPUT_SIZE)
    out = jax.block_until_ready(out)

    assert out.shape == (B, 1, OUTPUT_SIZE), out.shape
    # log-softmax rows should sum (in prob space) to ~1
    assert jnp.allclose(jnp.sum(jnp.exp(out), axis=-1), 1.0, atol=1e-4)

    # validate against a pure-JAX f32 (HIGHEST) reference; bf16 MXU operands in
    # the kernel account for the tolerance
    ref = jax.block_until_ready(reference_forward(params, symbols, PAD_IDX))
    max_err = float(jnp.max(jnp.abs(out - ref)))
    assert max_err < 5e-2, f"mismatch vs pure-JAX reference: {max_err}"

    print("KERNEL_OK")
</pallas_src>

<mosaic_0001>
module attributes {stable_mosaic.version = 11 : i64} {
  func.func @_cause_detector_kernel(%arg0: memref<8x1xi32, #tpu.memory_space<vmem>>, %arg1: memref<64x128xbf16, #tpu.memory_space<vmem>>, %arg2: memref<128x1024xbf16, #tpu.memory_space<vmem>>, %arg3: memref<128x512xbf16, #tpu.memory_space<vmem>>, %arg4: memref<128x512xbf16, #tpu.memory_space<vmem>>, %arg5: memref<1x1024xf32, #tpu.memory_space<vmem>>, %arg6: memref<256x1024xbf16, #tpu.memory_space<vmem>>, %arg7: memref<128x512xbf16, #tpu.memory_space<vmem>>, %arg8: memref<128x512xbf16, #tpu.memory_space<vmem>>, %arg9: memref<1x1024xf32, #tpu.memory_space<vmem>>, %arg10: memref<256x128xbf16, #tpu.memory_space<vmem>>, %arg11: memref<1x128xf32, #tpu.memory_space<vmem>>, %arg12: memref<8x128xf32, #tpu.memory_space<vmem>>, %arg13: memref<64x256xf32, #tpu.memory_space<vmem>>) attributes {dimension_semantics = [], scalar_prefetch = 0 : i64, scratch_operands = 1 : i64, tpu.core_type = #tpu.core_type<tc>} {
    %c0 = arith.constant 0 : index
    %c0_0 = arith.constant 0 : index
    %0 = vector.load %arg0[%c0, %c0_0] : memref<8x1xi32, #tpu.memory_space<vmem>>, vector<8x1xi32>
    %1 = vector.shape_cast %0 : vector<8x1xi32> to vector<8x1xi32>
    %2 = vector.broadcast %1 : vector<8x1xi32> to vector<8x128xi32>
    %c0_1 = arith.constant 0 : index
    %c0_2 = arith.constant 0 : index
    %3 = vector.load %arg1[%c0_1, %c0_2] : memref<64x128xbf16, #tpu.memory_space<vmem>>, vector<64x128xbf16>
    %c0_3 = arith.constant 0 : index
    %c0_4 = arith.constant 0 : index
    %4 = vector.load %arg2[%c0_3, %c0_4] : memref<128x1024xbf16, #tpu.memory_space<vmem>>, vector<128x1024xbf16>
    %cst = arith.constant dense<0.000000e+00> : vector<64x1024xf32>
    %5 = tpu.matmul %3, %4, %cst {dimension_numbers = #tpu.dot_dimension_numbers<[1], [0], [0], [1], [0, 0, 1, 1], [], []>} : vector<64x128xbf16>, vector<128x1024xbf16>, vector<64x1024xf32> -> vector<64x1024xf32>
    %c0_5 = arith.constant 0 : index
    %c0_6 = arith.constant 0 : index
    %6 = vector.load %arg5[%c0_5, %c0_6] : memref<1x1024xf32, #tpu.memory_space<vmem>>, vector<1x1024xf32>
    %7 = vector.broadcast %6 : vector<1x1024xf32> to vector<64x1024xf32>
    %8 = arith.addf %5, %7 : vector<64x1024xf32>
    %c0_7 = arith.constant 0 : index
    %c0_8 = arith.constant 0 : index
    %9 = vector.load %arg3[%c0_7, %c0_8] : memref<128x512xbf16, #tpu.memory_space<vmem>>, vector<128x512xbf16>
    %c0_9 = arith.constant 0 : index
    %c0_10 = arith.constant 0 : index
    %10 = vector.load %arg4[%c0_9, %c0_10] : memref<128x512xbf16, #tpu.memory_space<vmem>>, vector<128x512xbf16>
    %cst_11 = arith.constant 0.000000e+00 : f32
    %11 = vector.broadcast %cst_11 : f32 to vector<8x128xf32>
    %12 = vector.extract_strided_slice %8 {offsets = [0, 0], sizes = [8, 512], strides = [1, 1]} : vector<64x1024xf32> to vector<8x512xf32>
    %13 = arith.truncf %11 : vector<8x128xf32> to vector<8x128xbf16>
    %cst_12 = arith.constant dense<0.000000e+00> : vector<8x512xf32>
    %14 = tpu.matmul %13, %9, %cst_12 {dimension_numbers = #tpu.dot_dimension_numbers<[1], [0], [0], [1], [0, 0, 1, 1], [], []>} : vector<8x128xbf16>, vector<128x512xbf16>, vector<8x512xf32> -> vector<8x512xf32>
    %15 = arith.addf %12, %14 : vector<8x512xf32>
    %16 = vector.extract_strided_slice %15 {offsets = [0, 0], sizes = [8, 128], strides = [1, 1]} : vector<8x512xf32> to vector<8x128xf32>
    %17 = arith.negf %16 : vector<8x128xf32>
    %18 = math.exp %17 : vector<8x128xf32>
    %cst_13 = arith.constant 1.000000e+00 : f32
    %19 = vector.broadcast %cst_13 : f32 to vector<8x128xf32>
    %20 = arith.addf %19, %18 : vector<8x128xf32>
    %21 = arith.divf %19, %20 : vector<8x128xf32>
    %22 = vector.extract_strided_slice %15 {offsets = [0, 128], sizes = [8, 128], strides = [1, 1]} : vector<8x512xf32> to vector<8x128xf32>
    %23 = arith.negf %22 : vector<8x128xf32>
    %24 = math.exp %23 : vector<8x128xf32>
    %cst_14 = arith.constant 1.000000e+00 : f32
    %25 = vector.broadcast %cst_14 : f32 to vector<8x128xf32>
    %26 = arith.addf %25, %24 : vector<8x128xf32>
    %27 = arith.divf %25, %26 : vector<8x128xf32>
    %28 = vector.extract_strided_slice %15 {offsets = [0, 256], sizes = [8, 128], strides = [1, 1]} : vector<8x512xf32> to vector<8x128xf32>
    %29 = math.tanh %28 : vector<8x128xf32>
    %30 = vector.extract_strided_slice %15 {offsets = [0, 384], sizes = [8, 128], strides = [1, 1]} : vector<8x512xf32> to vector<8x128xf32>
    %31 = arith.negf %30 : vector<8x128xf32>
    %32 = math.exp %31 : vector<8x128xf32>
    %cst_15 = arith.constant 1.000000e+00 : f32
    %33 = vector.broadcast %cst_15 : f32 to vector<8x128xf32>
    %34 = arith.addf %33, %32 : vector<8x128xf32>
    %35 = arith.divf %33, %34 : vector<8x128xf32>
    %36 = arith.mulf %27, %11 : vector<8x128xf32>
    %37 = arith.mulf %21, %29 : vector<8x128xf32>
    %38 = arith.addf %36, %37 : vector<8x128xf32>
    %39 = math.tanh %38 : vector<8x128xf32>
    %40 = arith.mulf %35, %39 : vector<8x128xf32>
    %41 = vector.extract_strided_slice %8 {offsets = [56, 512], sizes = [8, 512], strides = [1, 1]} : vector<64x1024xf32> to vector<8x512xf32>
    %42 = arith.truncf %11 : vector<8x128xf32> to vector<8x128xbf16>
    %cst_16 = arith.constant dense<0.000000e+00> : vector<8x512xf32>
    %43 = tpu.matmul %42, %10, %cst_16 {dimension_numbers = #tpu.dot_dimension_numbers<[1], [0], [0], [1], [0, 0, 1, 1], [], []>} : vector<8x128xbf16>, vector<128x512xbf16>, vector<8x512xf32> -> vector<8x512xf32>
    %44 = arith.addf %41, %43 : vector<8x512xf32>
    %45 = vector.extract_strided_slice %44 {offsets = [0, 0], sizes = [8, 128], strides = [1, 1]} : vector<8x512xf32> to vector<8x128xf32>
    %46 = arith.negf %45 : vector<8x128xf32>
    %47 = math.exp %46 : vector<8x128xf32>
    %cst_17 = arith.constant 1.000000e+00 : f32
    %48 = vector.broadcast %cst_17 : f32 to vector<8x128xf32>
    %49 = arith.addf %48, %47 : vector<8x128xf32>
    %50 = arith.divf %48, %49 : vector<8x128xf32>
    %51 = vector.extract_strided_slice %44 {offsets = [0, 128], sizes = [8, 128], strides = [1, 1]} : vector<8x512xf32> to vector<8x128xf32>
    %52 = arith.negf %51 : vector<8x128xf32>
    %53 = math.exp %52 : vector<8x128xf32>
    %cst_18 = arith.constant 1.000000e+00 : f32
    %54 = vector.broadcast %cst_18 : f32 to vector<8x128xf32>
    %55 = arith.addf %54, %53 : vector<8x128xf32>
    %56 = arith.divf %54, %55 : vector<8x128xf32>
    %57 = vector.extract_strided_slice %44 {offsets = [0, 256], sizes = [8, 128], strides = [1, 1]} : vector<8x512xf32> to vector<8x128xf32>
    %58 = math.tanh %57 : vector<8x128xf32>
    %59 = vector.extract_strided_slice %44 {offsets = [0, 384], sizes = [8, 128], strides = [1, 1]} : vector<8x512xf32> to vector<8x128xf32>
    %60 = arith.negf %59 : vector<8x128xf32>
    %61 = math.exp %60 : vector<8x128xf32>
    %cst_19 = arith.constant 1.000000e+00 : f32
    %62 = vector.broadcast %cst_19 : f32 to vector<8x128xf32>
    %63 = arith.addf %62, %61 : vector<8x128xf32>
    %64 = arith.divf %62, %63 : vector<8x128xf32>
    %65 = arith.mulf %56, %11 : vector<8x128xf32>
    %66 = arith.mulf %50, %58 : vector<8x128xf32>
    %67 = arith.addf %65, %66 : vector<8x128xf32>
    %68 = math.tanh %67 : vector<8x128xf32>
    %69 = arith.mulf %64, %68 : vector<8x128xf32>
    %c0_20 = arith.constant 0 : index
    %c0_21 = arith.constant 0 : index
    %70 = vector.load %arg13[%c0_20, %c0_21] : memref<64x256xf32, #tpu.memory_space<vmem>>, vector<8x128xf32>
    tpu.vector_store %arg13[%c0_20, %c0_21], %40 {strides = array<i32>} : memref<64x256xf32, #tpu.memory_space<vmem>>, vector<8x128xf32>,
    %c56 = arith.constant 56 : index
    %c128 = arith.constant 128 : index
    %71 = vector.load %arg13[%c56, %c128] : memref<64x256xf32, #tpu.memory_space<vmem>>, vector<8x128xf32>
    tpu.vector_store %arg13[%c56, %c128], %69 {strides = array<i32>} : memref<64x256xf32, #tpu.memory_space<vmem>>, vector<8x128xf32>,
    %72 = vector.extract_strided_slice %8 {offsets = [8, 0], sizes = [8, 512], strides = [1, 1]} : vector<64x1024xf32> to vector<8x512xf32>
    %73 = arith.truncf %40 : vector<8x128xf32> to vector<8x128xbf16>
    %cst_22 = arith.constant dense<0.000000e+00> : vector<8x512xf32>
    %74 = tpu.matmul %73, %9, %cst_22 {dimension_numbers = #tpu.dot_dimension_numbers<[1], [0], [0], [1], [0, 0, 1, 1], [], []>} : vector<8x128xbf16>, vector<128x512xbf16>, vector<8x512xf32> -> vector<8x512xf32>
    %75 = arith.addf %72, %74 : vector<8x512xf32>
    %76 = vector.extract_strided_slice %75 {offsets = [0, 0], sizes = [8, 128], strides = [1, 1]} : vector<8x512xf32> to vector<8x128xf32>
    %77 = arith.negf %76 : vector<8x128xf32>
    %78 = math.exp %77 : vector<8x128xf32>
    %cst_23 = arith.constant 1.000000e+00 : f32
    %79 = vector.broadcast %cst_23 : f32 to vector<8x128xf32>
    %80 = arith.addf %79, %78 : vector<8x128xf32>
    %81 = arith.divf %79, %80 : vector<8x128xf32>
    %82 = vector.extract_strided_slice %75 {offsets = [0, 128], sizes = [8, 128], strides = [1, 1]} : vector<8x512xf32> to vector<8x128xf32>
    %83 = arith.negf %82 : vector<8x128xf32>
    %84 = math.exp %83 : vector<8x128xf32>
    %cst_24 = arith.constant 1.000000e+00 : f32
    %85 = vector.broadcast %cst_24 : f32 to vector<8x128xf32>
    %86 = arith.addf %85, %84 : vector<8x128xf32>
    %87 = arith.divf %85, %86 : vector<8x128xf32>
    %88 = vector.extract_strided_slice %75 {offsets = [0, 256], sizes = [8, 128], strides = [1, 1]} : vector<8x512xf32> to vector<8x128xf32>
    %89 = math.tanh %88 : vector<8x128xf32>
    %90 = vector.extract_strided_slice %75 {offsets = [0, 384], sizes = [8, 128], strides = [1, 1]} : vector<8x512xf32> to vector<8x128xf32>
    %91 = arith.negf %90 : vector<8x128xf32>
    %92 = math.exp %91 : vector<8x128xf32>
    %cst_25 = arith.constant 1.000000e+00 : f32
    %93 = vector.broadcast %cst_25 : f32 to vector<8x128xf32>
    %94 = arith.addf %93, %92 : vector<8x128xf32>
    %95 = arith.divf %93, %94 : vector<8x128xf32>
    %96 = arith.mulf %87, %38 : vector<8x128xf32>
    %97 = arith.mulf %81, %89 : vector<8x128xf32>
    %98 = arith.addf %96, %97 : vector<8x128xf32>
    %99 = math.tanh %98 : vector<8x128xf32>
    %100 = arith.mulf %95, %99 : vector<8x128xf32>
    %101 = vector.extract_strided_slice %8 {offsets = [48, 512], sizes = [8, 512], strides = [1, 1]} : vector<64x1024xf32> to vector<8x512xf32>
    %102 = arith.truncf %69 : vector<8x128xf32> to vector<8x128xbf16>
    %cst_26 = arith.constant dense<0.000000e+00> : vector<8x512xf32>
    %103 = tpu.matmul %102, %10, %cst_26 {dimension_numbers = #tpu.dot_dimension_numbers<[1], [0], [0], [1], [0, 0, 1, 1], [], []>} : vector<8x128xbf16>, vector<128x512xbf16>, vector<8x512xf32> -> vector<8x512xf32>
    %104 = arith.addf %101, %103 : vector<8x512xf32>
    %105 = vector.extract_strided_slice %104 {offsets = [0, 0], sizes = [8, 128], strides = [1, 1]} : vector<8x512xf32> to vector<8x128xf32>
    %106 = arith.negf %105 : vector<8x128xf32>
    %107 = math.exp %106 : vector<8x128xf32>
    %cst_27 = arith.constant 1.000000e+00 : f32
    %108 = vector.broadcast %cst_27 : f32 to vector<8x128xf32>
    %109 = arith.addf %108, %107 : vector<8x128xf32>
    %110 = arith.divf %108, %109 : vector<8x128xf32>
    %111 = vector.extract_strided_slice %104 {offsets = [0, 128], sizes = [8, 128], strides = [1, 1]} : vector<8x512xf32> to vector<8x128xf32>
    %112 = arith.negf %111 : vector<8x128xf32>
    %113 = math.exp %112 : vector<8x128xf32>
    %cst_28 = arith.constant 1.000000e+00 : f32
    %114 = vector.broadcast %cst_28 : f32 to vector<8x128xf32>
    %115 = arith.addf %114, %113 : vector<8x128xf32>
    %116 = arith.divf %114, %115 : vector<8x128xf32>
    %117 = vector.extract_strided_slice %104 {offsets = [0, 256], sizes = [8, 128], strides = [1, 1]} : vector<8x512xf32> to vector<8x128xf32>
    %118 = math.tanh %117 : vector<8x128xf32>
    %119 = vector.extract_strided_slice %104 {offsets = [0, 384], sizes = [8, 128], strides = [1, 1]} : vector<8x512xf32> to vector<8x128xf32>
    %120 = arith.negf %119 : vector<8x128xf32>
    %121 = math.exp %120 : vector<8x128xf32>
    %cst_29 = arith.constant 1.000000e+00 : f32
    %122 = vector.broadcast %cst_29 : f32 to vector<8x128xf32>
    %123 = arith.addf %122, %121 : vector<8x128xf32>
    %124 = arith.divf %122, %123 : vector<8x128xf32>
    %125 = arith.mulf %116, %67 : vector<8x128xf32>
    %126 = arith.mulf %110, %118 : vector<8x128xf32>
    %127 = arith.addf %125, %126 : vector<8x128xf32>
    %128 = math.tanh %127 : vector<8x128xf32>
    %129 = arith.mulf %124, %128 : vector<8x128xf32>
    %c8 = arith.constant 8 : index
    %c0_30 = arith.constant 0 : index
    %130 = vector.load %arg13[%c8, %c0_30] : memref<64x256xf32, #tpu.memory_space<vmem>>, vector<8x128xf32>
    tpu.vector_store %arg13[%c8, %c0_30], %100 {strides = array<i32>} : memref<64x256xf32, #tpu.memory_space<vmem>>, vector<8x128xf32>,
    %c48 = arith.constant 48 : index
    %c128_31 = arith.constant 128 : index
    %131 = vector.load %arg13[%c48, %c128_31] : memref<64x256xf32, #tpu.memory_space<vmem>>, vector<8x128xf32>
    tpu.vector_store %arg13[%c48, %c128_31], %129 {strides = array<i32>} : memref<64x256xf32, #tpu.memory_space<vmem>>, vector<8x128xf32>,
    %132 = vector.extract_strided_slice %8 {offsets = [16, 0], sizes = [8, 512], strides = [1, 1]} : vector<64x1024xf32> to vector<8x512xf32>
    %133 = arith.truncf %100 : vector<8x128xf32> to vector<8x128xbf16>
    %cst_32 = arith.constant dense<0.000000e+00> : vector<8x512xf32>
    %134 = tpu.matmul %133, %9, %cst_32 {dimension_numbers = #tpu.dot_dimension_numbers<[1], [0], [0], [1], [0, 0, 1, 1], [], []>} : vector<8x128xbf16>, vector<128x512xbf16>, vector<8x512xf32> -> vector<8x512xf32>
    %135 = arith.addf %132, %134 : vector<8x512xf32>
    %136 = vector.extract_strided_slice %135 {offsets = [0, 0], sizes = [8, 128], strides = [1, 1]} : vector<8x512xf32> to vector<8x128xf32>
    %137 = arith.negf %136 : vector<8x128xf32>
    %138 = math.exp %137 : vector<8x128xf32>
    %cst_33 = arith.constant 1.000000e+00 : f32
    %139 = vector.broadcast %cst_33 : f32 to vector<8x128xf32>
    %140 = arith.addf %139, %138 : vector<8x128xf32>
    %141 = arith.divf %139, %140 : vector<8x128xf32>
    %142 = vector.extract_strided_slice %135 {offsets = [0, 128], sizes = [8, 128], strides = [1, 1]} : vector<8x512xf32> to vector<8x128xf32>
    %143 = arith.negf %142 : vector<8x128xf32>
    %144 = math.exp %143 : vector<8x128xf32>
    %cst_34 = arith.constant 1.000000e+00 : f32
    %145 = vector.broadcast %cst_34 : f32 to vector<8x128xf32>
    %146 = arith.addf %145, %144 : vector<8x128xf32>
    %147 = arith.divf %145, %146 : vector<8x128xf32>
    %148 = vector.extract_strided_slice %135 {offsets = [0, 256], sizes = [8, 128], strides = [1, 1]} : vector<8x512xf32> to vector<8x128xf32>
    %149 = math.tanh %148 : vector<8x128xf32>
    %150 = vector.extract_strided_slice %135 {offsets = [0, 384], sizes = [8, 128], strides = [1, 1]} : vector<8x512xf32> to vector<8x128xf32>
    %151 = arith.negf %150 : vector<8x128xf32>
    %152 = math.exp %151 : vector<8x128xf32>
    %cst_35 = arith.constant 1.000000e+00 : f32
    %153 = vector.broadcast %cst_35 : f32 to vector<8x128xf32>
    %154 = arith.addf %153, %152 : vector<8x128xf32>
    %155 = arith.divf %153, %154 : vector<8x128xf32>
    %156 = arith.mulf %147, %98 : vector<8x128xf32>
    %157 = arith.mulf %141, %149 : vector<8x128xf32>
    %158 = arith.addf %156, %157 : vector<8x128xf32>
    %159 = math.tanh %158 : vector<8x128xf32>
    %160 = arith.mulf %155, %159 : vector<8x128xf32>
    %161 = vector.extract_strided_slice %8 {offsets = [40, 512], sizes = [8, 512], strides = [1, 1]} : vector<64x1024xf32> to vector<8x512xf32>
    %162 = arith.truncf %129 : vector<8x128xf32> to vector<8x128xbf16>
    %cst_36 = arith.constant dense<0.000000e+00> : vector<8x512xf32>
    %163 = tpu.matmul %162, %10, %cst_36 {dimension_numbers = #tpu.dot_dimension_numbers<[1], [0], [0], [1], [0, 0, 1, 1], [], []>} : vector<8x128xbf16>, vector<128x512xbf16>, vector<8x512xf32> -> vector<8x512xf32>
    %164 = arith.addf %161, %163 : vector<8x512xf32>
    %165 = vector.extract_strided_slice %164 {offsets = [0, 0], sizes = [8, 128], strides = [1, 1]} : vector<8x512xf32> to vector<8x128xf32>
    %166 = arith.negf %165 : vector<8x128xf32>
    %167 = math.exp %166 : vector<8x128xf32>
    %cst_37 = arith.constant 1.000000e+00 : f32
    %168 = vector.broadcast %cst_37 : f32 to vector<8x128xf32>
    %169 = arith.addf %168, %167 : vector<8x128xf32>
    %170 = arith.divf %168, %169 : vector<8x128xf32>
    %171 = vector.extract_strided_slice %164 {offsets = [0, 128], sizes = [8, 128], strides = [1, 1]} : vector<8x512xf32> to vector<8x128xf32>
    %172 = arith.negf %171 : vector<8x128xf32>
    %173 = math.exp %172 : vector<8x128xf32>
    %cst_38 = arith.constant 1.000000e+00 : f32
    %174 = vector.broadcast %cst_38 : f32 to vector<8x128xf32>
    %175 = arith.addf %174, %173 : vector<8x128xf32>
    %176 = arith.divf %174, %175 : vector<8x128xf32>
    %177 = vector.extract_strided_slice %164 {offsets = [0, 256], sizes = [8, 128], strides = [1, 1]} : vector<8x512xf32> to vector<8x128xf32>
    %178 = math.tanh %177 : vector<8x128xf32>
    %179 = vector.extract_strided_slice %164 {offsets = [0, 384], sizes = [8, 128], strides = [1, 1]} : vector<8x512xf32> to vector<8x128xf32>
    %180 = arith.negf %179 : vector<8x128xf32>
    %181 = math.exp %180 : vector<8x128xf32>
    %cst_39 = arith.constant 1.000000e+00 : f32
    %182 = vector.broadcast %cst_39 : f32 to vector<8x128xf32>
    %183 = arith.addf %182, %181 : vector<8x128xf32>
    %184 = arith.divf %182, %183 : vector<8x128xf32>
    %185 = arith.mulf %176, %127 : vector<8x128xf32>
    %186 = arith.mulf %170, %178 : vector<8x128xf32>
    %187 = arith.addf %185, %186 : vector<8x128xf32>
    %188 = math.tanh %187 : vector<8x128xf32>
    %189 = arith.mulf %184, %188 : vector<8x128xf32>
    %c16 = arith.constant 16 : index
    %c0_40 = arith.constant 0 : index
    %190 = vector.load %arg13[%c16, %c0_40] : memref<64x256xf32, #tpu.memory_space<vmem>>, vector<8x128xf32>
    tpu.vector_store %arg13[%c16, %c0_40], %160 {strides = array<i32>} : memref<64x256xf32, #tpu.memory_space<vmem>>, vector<8x128xf32>,
    %c40 = arith.constant 40 : index
    %c128_41 = arith.constant 128 : index
    %191 = vector.load %arg13[%c40, %c128_41] : memref<64x256xf32, #tpu.memory_space<vmem>>, vector<8x128xf32>
    tpu.vector_store %arg13[%c40, %c128_41], %189 {strides = array<i32>} : memref<64x256xf32, #tpu.memory_space<vmem>>, vector<8x128xf32>,
    %192 = vector.extract_strided_slice %8 {offsets = [24, 0], sizes = [8, 512], strides = [1, 1]} : vector<64x1024xf32> to vector<8x512xf32>
    %193 = arith.truncf %160 : vector<8x128xf32> to vector<8x128xbf16>
    %cst_42 = arith.constant dense<0.000000e+00> : vector<8x512xf32>
    %194 = tpu.matmul %193, %9, %cst_42 {dimension_numbers = #tpu.dot_dimension_numbers<[1], [0], [0], [1], [0, 0, 1, 1], [], []>} : vector<8x128xbf16>, vector<128x512xbf16>, vector<8x512xf32> -> vector<8x512xf32>
    %195 = arith.addf %192, %194 : vector<8x512xf32>
    %196 = vector.extract_strided_slice %195 {offsets = [0, 0], sizes = [8, 128], strides = [1, 1]} : vector<8x512xf32> to vector<8x128xf32>
    %197 = arith.negf %196 : vector<8x128xf32>
    %198 = math.exp %197 : vector<8x128xf32>
    %cst_43 = arith.constant 1.000000e+00 : f32
    %199 = vector.broadcast %cst_43 : f32 to vector<8x128xf32>
    %200 = arith.addf %199, %198 : vector<8x128xf32>
    %201 = arith.divf %199, %200 : vector<8x128xf32>
    %202 = vector.extract_strided_slice %195 {offsets = [0, 128], sizes = [8, 128], strides = [1, 1]} : vector<8x512xf32> to vector<8x128xf32>
    %203 = arith.negf %202 : vector<8x128xf32>
    %204 = math.exp %203 : vector<8x128xf32>
    %cst_44 = arith.constant 1.000000e+00 : f32
    %205 = vector.broadcast %cst_44 : f32 to vector<8x128xf32>
    %206 = arith.addf %205, %204 : vector<8x128xf32>
    %207 = arith.divf %205, %206 : vector<8x128xf32>
    %208 = vector.extract_strided_slice %195 {offsets = [0, 256], sizes = [8, 128], strides = [1, 1]} : vector<8x512xf32> to vector<8x128xf32>
    %209 = math.tanh %208 : vector<8x128xf32>
    %210 = vector.extract_strided_slice %195 {offsets = [0, 384], sizes = [8, 128], strides = [1, 1]} : vector<8x512xf32> to vector<8x128xf32>
    %211 = arith.negf %210 : vector<8x128xf32>
    %212 = math.exp %211 : vector<8x128xf32>
    %cst_45 = arith.constant 1.000000e+00 : f32
    %213 = vector.broadcast %cst_45 : f32 to vector<8x128xf32>
    %214 = arith.addf %213, %212 : vector<8x128xf32>
    %215 = arith.divf %213, %214 : vector<8x128xf32>
    %216 = arith.mulf %207, %158 : vector<8x128xf32>
    %217 = arith.mulf %201, %209 : vector<8x128xf32>
    %218 = arith.addf %216, %217 : vector<8x128xf32>
    %219 = math.tanh %218 : vector<8x128xf32>
    %220 = arith.mulf %215, %219 : vector<8x128xf32>
    %221 = vector.extract_strided_slice %8 {offsets = [32, 512], sizes = [8, 512], strides = [1, 1]} : vector<64x1024xf32> to vector<8x512xf32>
    %222 = arith.truncf %189 : vector<8x128xf32> to vector<8x128xbf16>
    %cst_46 = arith.constant dense<0.000000e+00> : vector<8x512xf32>
    %223 = tpu.matmul %222, %10, %cst_46 {dimension_numbers = #tpu.dot_dimension_numbers<[1], [0], [0], [1], [0, 0, 1, 1], [], []>} : vector<8x128xbf16>, vector<128x512xbf16>, vector<8x512xf32> -> vector<8x512xf32>
    %224 = arith.addf %221, %223 : vector<8x512xf32>
    %225 = vector.extract_strided_slice %224 {offsets = [0, 0], sizes = [8, 128], strides = [1, 1]} : vector<8x512xf32> to vector<8x128xf32>
    %226 = arith.negf %225 : vector<8x128xf32>
    %227 = math.exp %226 : vector<8x128xf32>
    %cst_47 = arith.constant 1.000000e+00 : f32
    %228 = vector.broadcast %cst_47 : f32 to vector<8x128xf32>
    %229 = arith.addf %228, %227 : vector<8x128xf32>
    %230 = arith.divf %228, %229 : vector<8x128xf32>
    %231 = vector.extract_strided_slice %224 {offsets = [0, 128], sizes = [8, 128], strides = [1, 1]} : vector<8x512xf32> to vector<8x128xf32>
    %232 = arith.negf %231 : vector<8x128xf32>
    %233 = math.exp %232 : vector<8x128xf32>
    %cst_48 = arith.constant 1.000000e+00 : f32
    %234 = vector.broadcast %cst_48 : f32 to vector<8x128xf32>
    %235 = arith.addf %234, %233 : vector<8x128xf32>
    %236 = arith.divf %234, %235 : vector<8x128xf32>
    %237 = vector.extract_strided_slice %224 {offsets = [0, 256], sizes = [8, 128], strides = [1, 1]} : vector<8x512xf32> to vector<8x128xf32>
    %238 = math.tanh %237 : vector<8x128xf32>
    %239 = vector.extract_strided_slice %224 {offsets = [0, 384], sizes = [8, 128], strides = [1, 1]} : vector<8x512xf32> to vector<8x128xf32>
    %240 = arith.negf %239 : vector<8x128xf32>
    %241 = math.exp %240 : vector<8x128xf32>
    %cst_49 = arith.constant 1.000000e+00 : f32
    %242 = vector.broadcast %cst_49 : f32 to vector<8x128xf32>
    %243 = arith.addf %242, %241 : vector<8x128xf32>
    %244 = arith.divf %242, %243 : vector<8x128xf32>
    %245 = arith.mulf %236, %187 : vector<8x128xf32>
    %246 = arith.mulf %230, %238 : vector<8x128xf32>
    %247 = arith.addf %245, %246 : vector<8x128xf32>
    %248 = math.tanh %247 : vector<8x128xf32>
    %249 = arith.mulf %244, %248 : vector<8x128xf32>
    %c24 = arith.constant 24 : index
    %c0_50 = arith.constant 0 : index
    %250 = vector.load %arg13[%c24, %c0_50] : memref<64x256xf32, #tpu.memory_space<vmem>>, vector<8x128xf32>
    tpu.vector_store %arg13[%c24, %c0_50], %220 {strides = array<i32>} : memref<64x256xf32, #tpu.memory_space<vmem>>, vector<8x128xf32>,
    %c32 = arith.constant 32 : index
    %c128_51 = arith.constant 128 : index
    %251 = vector.load %arg13[%c32, %c128_51] : memref<64x256xf32, #tpu.memory_space<vmem>>, vector<8x128xf32>
    tpu.vector_store %arg13[%c32, %c128_51], %249 {strides = array<i32>} : memref<64x256xf32, #tpu.memory_space<vmem>>, vector<8x128xf32>,
    %252 = vector.extract_strided_slice %8 {offsets = [32, 0], sizes = [8, 512], strides = [1, 1]} : vector<64x1024xf32> to vector<8x512xf32>
    %253 = arith.truncf %220 : vector<8x128xf32> to vector<8x128xbf16>
    %cst_52 = arith.constant dense<0.000000e+00> : vector<8x512xf32>
    %254 = tpu.matmul %253, %9, %cst_52 {dimension_numbers = #tpu.dot_dimension_numbers<[1], [0], [0], [1], [0, 0, 1, 1], [], []>} : vector<8x128xbf16>, vector<128x512xbf16>, vector<8x512xf32> -> vector<8x512xf32>
    %255 = arith.addf %252, %254 : vector<8x512xf32>
    %256 = vector.extract_strided_slice %255 {offsets = [0, 0], sizes = [8, 128], strides = [1, 1]} : vector<8x512xf32> to vector<8x128xf32>
    %257 = arith.negf %256 : vector<8x128xf32>
    %258 = math.exp %257 : vector<8x128xf32>
    %cst_53 = arith.constant 1.000000e+00 : f32
    %259 = vector.broadcast %cst_53 : f32 to vector<8x128xf32>
    %260 = arith.addf %259, %258 : vector<8x128xf32>
    %261 = arith.divf %259, %260 : vector<8x128xf32>
    %262 = vector.extract_strided_slice %255 {offsets = [0, 128], sizes = [8, 128], strides = [1, 1]} : vector<8x512xf32> to vector<8x128xf32>
    %263 = arith.negf %262 : vector<8x128xf32>
    %264 = math.exp %263 : vector<8x128xf32>
    %cst_54 = arith.constant 1.000000e+00 : f32
    %265 = vector.broadcast %cst_54 : f32 to vector<8x128xf32>
    %266 = arith.addf %265, %264 : vector<8x128xf32>
    %267 = arith.divf %265, %266 : vector<8x128xf32>
    %268 = vector.extract_strided_slice %255 {offsets = [0, 256], sizes = [8, 128], strides = [1, 1]} : vector<8x512xf32> to vector<8x128xf32>
    %269 = math.tanh %268 : vector<8x128xf32>
    %270 = vector.extract_strided_slice %255 {offsets = [0, 384], sizes = [8, 128], strides = [1, 1]} : vector<8x512xf32> to vector<8x128xf32>
    %271 = arith.negf %270 : vector<8x128xf32>
    %272 = math.exp %271 : vector<8x128xf32>
    %cst_55 = arith.constant 1.000000e+00 : f32
    %273 = vector.broadcast %cst_55 : f32 to vector<8x128xf32>
    %274 = arith.addf %273, %272 : vector<8x128xf32>
    %275 = arith.divf %273, %274 : vector<8x128xf32>
    %276 = arith.mulf %267, %218 : vector<8x128xf32>
    %277 = arith.mulf %261, %269 : vector<8x128xf32>
    %278 = arith.addf %276, %277 : vector<8x128xf32>
    %279 = math.tanh %278 : vector<8x128xf32>
    %280 = arith.mulf %275, %279 : vector<8x128xf32>
    %281 = vector.extract_strided_slice %8 {offsets = [24, 512], sizes = [8, 512], strides = [1, 1]} : vector<64x1024xf32> to vector<8x512xf32>
    %282 = arith.truncf %249 : vector<8x128xf32> to vector<8x128xbf16>
    %cst_56 = arith.constant dense<0.000000e+00> : vector<8x512xf32>
    %283 = tpu.matmul %282, %10, %cst_56 {dimension_numbers = #tpu.dot_dimension_numbers<[1], [0], [0], [1], [0, 0, 1, 1], [], []>} : vector<8x128xbf16>, vector<128x512xbf16>, vector<8x512xf32> -> vector<8x512xf32>
    %284 = arith.addf %281, %283 : vector<8x512xf32>
    %285 = vector.extract_strided_slice %284 {offsets = [0, 0], sizes = [8, 128], strides = [1, 1]} : vector<8x512xf32> to vector<8x128xf32>
    %286 = arith.negf %285 : vector<8x128xf32>
    %287 = math.exp %286 : vector<8x128xf32>
    %cst_57 = arith.constant 1.000000e+00 : f32
    %288 = vector.broadcast %cst_57 : f32 to vector<8x128xf32>
    %289 = arith.addf %288, %287 : vector<8x128xf32>
    %290 = arith.divf %288, %289 : vector<8x128xf32>
    %291 = vector.extract_strided_slice %284 {offsets = [0, 128], sizes = [8, 128], strides = [1, 1]} : vector<8x512xf32> to vector<8x128xf32>
    %292 = arith.negf %291 : vector<8x128xf32>
    %293 = math.exp %292 : vector<8x128xf32>
    %cst_58 = arith.constant 1.000000e+00 : f32
    %294 = vector.broadcast %cst_58 : f32 to vector<8x128xf32>
    %295 = arith.addf %294, %293 : vector<8x128xf32>
    %296 = arith.divf %294, %295 : vector<8x128xf32>
    %297 = vector.extract_strided_slice %284 {offsets = [0, 256], sizes = [8, 128], strides = [1, 1]} : vector<8x512xf32> to vector<8x128xf32>
    %298 = math.tanh %297 : vector<8x128xf32>
    %299 = vector.extract_strided_slice %284 {offsets = [0, 384], sizes = [8, 128], strides = [1, 1]} : vector<8x512xf32> to vector<8x128xf32>
    %300 = arith.negf %299 : vector<8x128xf32>
    %301 = math.exp %300 : vector<8x128xf32>
    %cst_59 = arith.constant 1.000000e+00 : f32
    %302 = vector.broadcast %cst_59 : f32 to vector<8x128xf32>
    %303 = arith.addf %302, %301 : vector<8x128xf32>
    %304 = arith.divf %302, %303 : vector<8x128xf32>
    %305 = arith.mulf %296, %247 : vector<8x128xf32>
    %306 = arith.mulf %290, %298 : vector<8x128xf32>
    %307 = arith.addf %305, %306 : vector<8x128xf32>
    %308 = math.tanh %307 : vector<8x128xf32>
    %309 = arith.mulf %304, %308 : vector<8x128xf32>
    %c32_60 = arith.constant 32 : index
    %c0_61 = arith.constant 0 : index
    %310 = vector.load %arg13[%c32_60, %c0_61] : memref<64x256xf32, #tpu.memory_space<vmem>>, vector<8x128xf32>
    tpu.vector_store %arg13[%c32_60, %c0_61], %280 {strides = array<i32>} : memref<64x256xf32, #tpu.memory_space<vmem>>, vector<8x128xf32>,
    %c24_62 = arith.constant 24 : index
    %c128_63 = arith.constant 128 : index
    %311 = vector.load %arg13[%c24_62, %c128_63] : memref<64x256xf32, #tpu.memory_space<vmem>>, vector<8x128xf32>
    tpu.vector_store %arg13[%c24_62, %c128_63], %309 {strides = array<i32>} : memref<64x256xf32, #tpu.memory_space<vmem>>, vector<8x128xf32>,
    %312 = vector.extract_strided_slice %8 {offsets = [40, 0], sizes = [8, 512], strides = [1, 1]} : vector<64x1024xf32> to vector<8x512xf32>
    %313 = arith.truncf %280 : vector<8x128xf32> to vector<8x128xbf16>
    %cst_64 = arith.constant dense<0.000000e+00> : vector<8x512xf32>
    %314 = tpu.matmul %313, %9, %cst_64 {dimension_numbers = #tpu.dot_dimension_numbers<[1], [0], [0], [1], [0, 0, 1, 1], [], []>} : vector<8x128xbf16>, vector<128x512xbf16>, vector<8x512xf32> -> vector<8x512xf32>
    %315 = arith.addf %312, %314 : vector<8x512xf32>
    %316 = vector.extract_strided_slice %315 {offsets = [0, 0], sizes = [8, 128], strides = [1, 1]} : vector<8x512xf32> to vector<8x128xf32>
    %317 = arith.negf %316 : vector<8x128xf32>
    %318 = math.exp %317 : vector<8x128xf32>
    %cst_65 = arith.constant 1.000000e+00 : f32
    %319 = vector.broadcast %cst_65 : f32 to vector<8x128xf32>
    %320 = arith.addf %319, %318 : vector<8x128xf32>
    %321 = arith.divf %319, %320 : vector<8x128xf32>
    %322 = vector.extract_strided_slice %315 {offsets = [0, 128], sizes = [8, 128], strides = [1, 1]} : vector<8x512xf32> to vector<8x128xf32>
    %323 = arith.negf %322 : vector<8x128xf32>
    %324 = math.exp %323 : vector<8x128xf32>
    %cst_66 = arith.constant 1.000000e+00 : f32
    %325 = vector.broadcast %cst_66 : f32 to vector<8x128xf32>
    %326 = arith.addf %325, %324 : vector<8x128xf32>
    %327 = arith.divf %325, %326 : vector<8x128xf32>
    %328 = vector.extract_strided_slice %315 {offsets = [0, 256], sizes = [8, 128], strides = [1, 1]} : vector<8x512xf32> to vector<8x128xf32>
    %329 = math.tanh %328 : vector<8x128xf32>
    %330 = vector.extract_strided_slice %315 {offsets = [0, 384], sizes = [8, 128], strides = [1, 1]} : vector<8x512xf32> to vector<8x128xf32>
    %331 = arith.negf %330 : vector<8x128xf32>
    %332 = math.exp %331 : vector<8x128xf32>
    %cst_67 = arith.constant 1.000000e+00 : f32
    %333 = vector.broadcast %cst_67 : f32 to vector<8x128xf32>
    %334 = arith.addf %333, %332 : vector<8x128xf32>
    %335 = arith.divf %333, %334 : vector<8x128xf32>
    %336 = arith.mulf %327, %278 : vector<8x128xf32>
    %337 = arith.mulf %321, %329 : vector<8x128xf32>
    %338 = arith.addf %336, %337 : vector<8x128xf32>
    %339 = math.tanh %338 : vector<8x128xf32>
    %340 = arith.mulf %335, %339 : vector<8x128xf32>
    %341 = vector.extract_strided_slice %8 {offsets = [16, 512], sizes = [8, 512], strides = [1, 1]} : vector<64x1024xf32> to vector<8x512xf32>
    %342 = arith.truncf %309 : vector<8x128xf32> to vector<8x128xbf16>
    %cst_68 = arith.constant dense<0.000000e+00> : vector<8x512xf32>
    %343 = tpu.matmul %342, %10, %cst_68 {dimension_numbers = #tpu.dot_dimension_numbers<[1], [0], [0], [1], [0, 0, 1, 1], [], []>} : vector<8x128xbf16>, vector<128x512xbf16>, vector<8x512xf32> -> vector<8x512xf32>
    %344 = arith.addf %341, %343 : vector<8x512xf32>
    %345 = vector.extract_strided_slice %344 {offsets = [0, 0], sizes = [8, 128], strides = [1, 1]} : vector<8x512xf32> to vector<8x128xf32>
    %346 = arith.negf %345 : vector<8x128xf32>
    %347 = math.exp %346 : vector<8x128xf32>
    %cst_69 = arith.constant 1.000000e+00 : f32
    %348 = vector.broadcast %cst_69 : f32 to vector<8x128xf32>
    %349 = arith.addf %348, %347 : vector<8x128xf32>
    %350 = arith.divf %348, %349 : vector<8x128xf32>
    %351 = vector.extract_strided_slice %344 {offsets = [0, 128], sizes = [8, 128], strides = [1, 1]} : vector<8x512xf32> to vector<8x128xf32>
    %352 = arith.negf %351 : vector<8x128xf32>
    %353 = math.exp %352 : vector<8x128xf32>
    %cst_70 = arith.constant 1.000000e+00 : f32
    %354 = vector.broadcast %cst_70 : f32 to vector<8x128xf32>
    %355 = arith.addf %354, %353 : vector<8x128xf32>
    %356 = arith.divf %354, %355 : vector<8x128xf32>
    %357 = vector.extract_strided_slice %344 {offsets = [0, 256], sizes = [8, 128], strides = [1, 1]} : vector<8x512xf32> to vector<8x128xf32>
    %358 = math.tanh %357 : vector<8x128xf32>
    %359 = vector.extract_strided_slice %344 {offsets = [0, 384], sizes = [8, 128], strides = [1, 1]} : vector<8x512xf32> to vector<8x128xf32>
    %360 = arith.negf %359 : vector<8x128xf32>
    %361 = math.exp %360 : vector<8x128xf32>
    %cst_71 = arith.constant 1.000000e+00 : f32
    %362 = vector.broadcast %cst_71 : f32 to vector<8x128xf32>
    %363 = arith.addf %362, %361 : vector<8x128xf32>
    %364 = arith.divf %362, %363 : vector<8x128xf32>
    %365 = arith.mulf %356, %307 : vector<8x128xf32>
    %366 = arith.mulf %350, %358 : vector<8x128xf32>
    %367 = arith.addf %365, %366 : vector<8x128xf32>
    %368 = math.tanh %367 : vector<8x128xf32>
    %369 = arith.mulf %364, %368 : vector<8x128xf32>
    %c40_72 = arith.constant 40 : index
    %c0_73 = arith.constant 0 : index
    %370 = vector.load %arg13[%c40_72, %c0_73] : memref<64x256xf32, #tpu.memory_space<vmem>>, vector<8x128xf32>
    tpu.vector_store %arg13[%c40_72, %c0_73], %340 {strides = array<i32>} : memref<64x256xf32, #tpu.memory_space<vmem>>, vector<8x128xf32>,
    %c16_74 = arith.constant 16 : index
    %c128_75 = arith.constant 128 : index
    %371 = vector.load %arg13[%c16_74, %c128_75] : memref<64x256xf32, #tpu.memory_space<vmem>>, vector<8x128xf32>
    tpu.vector_store %arg13[%c16_74, %c128_75], %369 {strides = array<i32>} : memref<64x256xf32, #tpu.memory_space<vmem>>, vector<8x128xf32>,
    %372 = vector.extract_strided_slice %8 {offsets = [48, 0], sizes = [8, 512], strides = [1, 1]} : vector<64x1024xf32> to vector<8x512xf32>
    %373 = arith.truncf %340 : vector<8x128xf32> to vector<8x128xbf16>
    %cst_76 = arith.constant dense<0.000000e+00> : vector<8x512xf32>
    %374 = tpu.matmul %373, %9, %cst_76 {dimension_numbers = #tpu.dot_dimension_numbers<[1], [0], [0], [1], [0, 0, 1, 1], [], []>} : vector<8x128xbf16>, vector<128x512xbf16>, vector<8x512xf32> -> vector<8x512xf32>
    %375 = arith.addf %372, %374 : vector<8x512xf32>
    %376 = vector.extract_strided_slice %375 {offsets = [0, 0], sizes = [8, 128], strides = [1, 1]} : vector<8x512xf32> to vector<8x128xf32>
    %377 = arith.negf %376 : vector<8x128xf32>
    %378 = math.exp %377 : vector<8x128xf32>
    %cst_77 = arith.constant 1.000000e+00 : f32
    %379 = vector.broadcast %cst_77 : f32 to vector<8x128xf32>
    %380 = arith.addf %379, %378 : vector<8x128xf32>
    %381 = arith.divf %379, %380 : vector<8x128xf32>
    %382 = vector.extract_strided_slice %375 {offsets = [0, 128], sizes = [8, 128], strides = [1, 1]} : vector<8x512xf32> to vector<8x128xf32>
    %383 = arith.negf %382 : vector<8x128xf32>
    %384 = math.exp %383 : vector<8x128xf32>
    %cst_78 = arith.constant 1.000000e+00 : f32
    %385 = vector.broadcast %cst_78 : f32 to vector<8x128xf32>
    %386 = arith.addf %385, %384 : vector<8x128xf32>
    %387 = arith.divf %385, %386 : vector<8x128xf32>
    %388 = vector.extract_strided_slice %375 {offsets = [0, 256], sizes = [8, 128], strides = [1, 1]} : vector<8x512xf32> to vector<8x128xf32>
    %389 = math.tanh %388 : vector<8x128xf32>
    %390 = vector.extract_strided_slice %375 {offsets = [0, 384], sizes = [8, 128], strides = [1, 1]} : vector<8x512xf32> to vector<8x128xf32>
    %391 = arith.negf %390 : vector<8x128xf32>
    %392 = math.exp %391 : vector<8x128xf32>
    %cst_79 = arith.constant 1.000000e+00 : f32
    %393 = vector.broadcast %cst_79 : f32 to vector<8x128xf32>
    %394 = arith.addf %393, %392 : vector<8x128xf32>
    %395 = arith.divf %393, %394 : vector<8x128xf32>
    %396 = arith.mulf %387, %338 : vector<8x128xf32>
    %397 = arith.mulf %381, %389 : vector<8x128xf32>
    %398 = arith.addf %396, %397 : vector<8x128xf32>
    %399 = math.tanh %398 : vector<8x128xf32>
    %400 = arith.mulf %395, %399 : vector<8x128xf32>
    %401 = vector.extract_strided_slice %8 {offsets = [8, 512], sizes = [8, 512], strides = [1, 1]} : vector<64x1024xf32> to vector<8x512xf32>
    %402 = arith.truncf %369 : vector<8x128xf32> to vector<8x128xbf16>
    %cst_80 = arith.constant dense<0.000000e+00> : vector<8x512xf32>
    %403 = tpu.matmul %402, %10, %cst_80 {dimension_numbers = #tpu.dot_dimension_numbers<[1], [0], [0], [1], [0, 0, 1, 1], [], []>} : vector<8x128xbf16>, vector<128x512xbf16>, vector<8x512xf32> -> vector<8x512xf32>
    %404 = arith.addf %401, %403 : vector<8x512xf32>
    %405 = vector.extract_strided_slice %404 {offsets = [0, 0], sizes = [8, 128], strides = [1, 1]} : vector<8x512xf32> to vector<8x128xf32>
    %406 = arith.negf %405 : vector<8x128xf32>
    %407 = math.exp %406 : vector<8x128xf32>
    %cst_81 = arith.constant 1.000000e+00 : f32
    %408 = vector.broadcast %cst_81 : f32 to vector<8x128xf32>
    %409 = arith.addf %408, %407 : vector<8x128xf32>
    %410 = arith.divf %408, %409 : vector<8x128xf32>
    %411 = vector.extract_strided_slice %404 {offsets = [0, 128], sizes = [8, 128], strides = [1, 1]} : vector<8x512xf32> to vector<8x128xf32>
    %412 = arith.negf %411 : vector<8x128xf32>
    %413 = math.exp %412 : vector<8x128xf32>
    %cst_82 = arith.constant 1.000000e+00 : f32
    %414 = vector.broadcast %cst_82 : f32 to vector<8x128xf32>
    %415 = arith.addf %414, %413 : vector<8x128xf32>
    %416 = arith.divf %414, %415 : vector<8x128xf32>
    %417 = vector.extract_strided_slice %404 {offsets = [0, 256], sizes = [8, 128], strides = [1, 1]} : vector<8x512xf32> to vector<8x128xf32>
    %418 = math.tanh %417 : vector<8x128xf32>
    %419 = vector.extract_strided_slice %404 {offsets = [0, 384], sizes = [8, 128], strides = [1, 1]} : vector<8x512xf32> to vector<8x128xf32>
    %420 = arith.negf %419 : vector<8x128xf32>
    %421 = math.exp %420 : vector<8x128xf32>
    %cst_83 = arith.constant 1.000000e+00 : f32
    %422 = vector.broadcast %cst_83 : f32 to vector<8x128xf32>
    %423 = arith.addf %422, %421 : vector<8x128xf32>
    %424 = arith.divf %422, %423 : vector<8x128xf32>
    %425 = arith.mulf %416, %367 : vector<8x128xf32>
    %426 = arith.mulf %410, %418 : vector<8x128xf32>
    %427 = arith.addf %425, %426 : vector<8x128xf32>
    %428 = math.tanh %427 : vector<8x128xf32>
    %429 = arith.mulf %424, %428 : vector<8x128xf32>
    %c48_84 = arith.constant 48 : index
    %c0_85 = arith.constant 0 : index
    %430 = vector.load %arg13[%c48_84, %c0_85] : memref<64x256xf32, #tpu.memory_space<vmem>>, vector<8x128xf32>
    tpu.vector_store %arg13[%c48_84, %c0_85], %400 {strides = array<i32>} : memref<64x256xf32, #tpu.memory_space<vmem>>, vector<8x128xf32>,
    %c8_86 = arith.constant 8 : index
    %c128_87 = arith.constant 128 : index
    %431 = vector.load %arg13[%c8_86, %c128_87] : memref<64x256xf32, #tpu.memory_space<vmem>>, vector<8x128xf32>
    tpu.vector_store %arg13[%c8_86, %c128_87], %429 {strides = array<i32>} : memref<64x256xf32, #tpu.memory_space<vmem>>, vector<8x128xf32>,
    %432 = vector.extract_strided_slice %8 {offsets = [56, 0], sizes = [8, 512], strides = [1, 1]} : vector<64x1024xf32> to vector<8x512xf32>
    %433 = arith.truncf %400 : vector<8x128xf32> to vector<8x128xbf16>
    %cst_88 = arith.constant dense<0.000000e+00> : vector<8x512xf32>
    %434 = tpu.matmul %433, %9, %cst_88 {dimension_numbers = #tpu.dot_dimension_numbers<[1], [0], [0], [1], [0, 0, 1, 1], [], []>} : vector<8x128xbf16>, vector<128x512xbf16>, vector<8x512xf32> -> vector<8x512xf32>
    %435 = arith.addf %432, %434 : vector<8x512xf32>
    %436 = vector.extract_strided_slice %435 {offsets = [0, 0], sizes = [8, 128], strides = [1, 1]} : vector<8x512xf32> to vector<8x128xf32>
    %437 = arith.negf %436 : vector<8x128xf32>
    %438 = math.exp %437 : vector<8x128xf32>
    %cst_89 = arith.constant 1.000000e+00 : f32
    %439 = vector.broadcast %cst_89 : f32 to vector<8x128xf32>
    %440 = arith.addf %439, %438 : vector<8x128xf32>
    %441 = arith.divf %439, %440 : vector<8x128xf32>
    %442 = vector.extract_strided_slice %435 {offsets = [0, 128], sizes = [8, 128], strides = [1, 1]} : vector<8x512xf32> to vector<8x128xf32>
    %443 = arith.negf %442 : vector<8x128xf32>
    %444 = math.exp %443 : vector<8x128xf32>
    %cst_90 = arith.constant 1.000000e+00 : f32
    %445 = vector.broadcast %cst_90 : f32 to vector<8x128xf32>
    %446 = arith.addf %445, %444 : vector<8x128xf32>
    %447 = arith.divf %445, %446 : vector<8x128xf32>
    %448 = vector.extract_strided_slice %435 {offsets = [0, 256], sizes = [8, 128], strides = [1, 1]} : vector<8x512xf32> to vector<8x128xf32>
    %449 = math.tanh %448 : vector<8x128xf32>
    %450 = vector.extract_strided_slice %435 {offsets = [0, 384], sizes = [8, 128], strides = [1, 1]} : vector<8x512xf32> to vector<8x128xf32>
    %451 = arith.negf %450 : vector<8x128xf32>
    %452 = math.exp %451 : vector<8x128xf32>
    %cst_91 = arith.constant 1.000000e+00 : f32
    %453 = vector.broadcast %cst_91 : f32 to vector<8x128xf32>
    %454 = arith.addf %453, %452 : vector<8x128xf32>
    %455 = arith.divf %453, %454 : vector<8x128xf32>
    %456 = arith.mulf %447, %398 : vector<8x128xf32>
    %457 = arith.mulf %441, %449 : vector<8x128xf32>
    %458 = arith.addf %456, %457 : vector<8x128xf32>
    %459 = math.tanh %458 : vector<8x128xf32>
    %460 = arith.mulf %455, %459 : vector<8x128xf32>
    %461 = vector.extract_strided_slice %8 {offsets = [0, 512], sizes = [8, 512], strides = [1, 1]} : vector<64x1024xf32> to vector<8x512xf32>
    %462 = arith.truncf %429 : vector<8x128xf32> to vector<8x128xbf16>
    %cst_92 = arith.constant dense<0.000000e+00> : vector<8x512xf32>
    %463 = tpu.matmul %462, %10, %cst_92 {dimension_numbers = #tpu.dot_dimension_numbers<[1], [0], [0], [1], [0, 0, 1, 1], [], []>} : vector<8x128xbf16>, vector<128x512xbf16>, vector<8x512xf32> -> vector<8x512xf32>
    %464 = arith.addf %461, %463 : vector<8x512xf32>
    %465 = vector.extract_strided_slice %464 {offsets = [0, 0], sizes = [8, 128], strides = [1, 1]} : vector<8x512xf32> to vector<8x128xf32>
    %466 = arith.negf %465 : vector<8x128xf32>
    %467 = math.exp %466 : vector<8x128xf32>
    %cst_93 = arith.constant 1.000000e+00 : f32
    %468 = vector.broadcast %cst_93 : f32 to vector<8x128xf32>
    %469 = arith.addf %468, %467 : vector<8x128xf32>
    %470 = arith.divf %468, %469 : vector<8x128xf32>
    %471 = vector.extract_strided_slice %464 {offsets = [0, 128], sizes = [8, 128], strides = [1, 1]} : vector<8x512xf32> to vector<8x128xf32>
    %472 = arith.negf %471 : vector<8x128xf32>
    %473 = math.exp %472 : vector<8x128xf32>
    %cst_94 = arith.constant 1.000000e+00 : f32
    %474 = vector.broadcast %cst_94 : f32 to vector<8x128xf32>
    %475 = arith.addf %474, %473 : vector<8x128xf32>
    %476 = arith.divf %474, %475 : vector<8x128xf32>
    %477 = vector.extract_strided_slice %464 {offsets = [0, 256], sizes = [8, 128], strides = [1, 1]} : vector<8x512xf32> to vector<8x128xf32>
    %478 = math.tanh %477 : vector<8x128xf32>
    %479 = vector.extract_strided_slice %464 {offsets = [0, 384], sizes = [8, 128], strides = [1, 1]} : vector<8x512xf32> to vector<8x128xf32>
    %480 = arith.negf %479 : vector<8x128xf32>
    %481 = math.exp %480 : vector<8x128xf32>
    %cst_95 = arith.constant 1.000000e+00 : f32
    %482 = vector.broadcast %cst_95 : f32 to vector<8x128xf32>
    %483 = arith.addf %482, %481 : vector<8x128xf32>
    %484 = arith.divf %482, %483 : vector<8x128xf32>
    %485 = arith.mulf %476, %427 : vector<8x128xf32>
    %486 = arith.mulf %470, %478 : vector<8x128xf32>
    %487 = arith.addf %485, %486 : vector<8x128xf32>
    %488 = math.tanh %487 : vector<8x128xf32>
    %489 = arith.mulf %484, %488 : vector<8x128xf32>
    %c56_96 = arith.constant 56 : index
    %c0_97 = arith.constant 0 : index
    %490 = vector.load %arg13[%c56_96, %c0_97] : memref<64x256xf32, #tpu.memory_space<vmem>>, vector<8x128xf32>
    tpu.vector_store %arg13[%c56_96, %c0_97], %460 {strides = array<i32>} : memref<64x256xf32, #tpu.memory_space<vmem>>, vector<8x128xf32>,
    %c0_98 = arith.constant 0 : index
    %c128_99 = arith.constant 128 : index
    %491 = vector.load %arg13[%c0_98, %c128_99] : memref<64x256xf32, #tpu.memory_space<vmem>>, vector<8x128xf32>
    tpu.vector_store %arg13[%c0_98, %c128_99], %489 {strides = array<i32>} : memref<64x256xf32, #tpu.memory_space<vmem>>, vector<8x128xf32>,
    %c0_100 = arith.constant 0 : index
    %c0_101 = arith.constant 0 : index
    %492 = vector.load %arg13[%c0_100, %c0_101] : memref<64x256xf32, #tpu.memory_space<vmem>>, vector<64x256xf32>
    %493 = arith.truncf %492 : vector<64x256xf32> to vector<64x256xbf16>
    %c0_102 = arith.constant 0 : index
    %c0_103 = arith.constant 0 : index
    %494 = vector.load %arg6[%c0_102, %c0_103] : memref<256x1024xbf16, #tpu.memory_space<vmem>>, vector<256x1024xbf16>
    %cst_104 = arith.constant dense<0.000000e+00> : vector<64x1024xf32>
    %495 = tpu.matmul %493, %494, %cst_104 {dimension_numbers = #tpu.dot_dimension_numbers<[1], [0], [0], [1], [0, 0, 1, 1], [], []>} : vector<64x256xbf16>, vector<256x1024xbf16>, vector<64x1024xf32> -> vector<64x1024xf32>
    %c0_105 = arith.constant 0 : index
    %c0_106 = arith.constant 0 : index
    %496 = vector.load %arg9[%c0_105, %c0_106] : memref<1x1024xf32, #tpu.memory_space<vmem>>, vector<1x1024xf32>
    %497 = vector.broadcast %496 : vector<1x1024xf32> to vector<64x1024xf32>
    %498 = arith.addf %495, %497 : vector<64x1024xf32>
    %c0_107 = arith.constant 0 : index
    %c0_108 = arith.constant 0 : index
    %499 = vector.load %arg7[%c0_107, %c0_108] : memref<128x512xbf16, #tpu.memory_space<vmem>>, vector<128x512xbf16>
    %c0_109 = arith.constant 0 : index
    %c0_110 = arith.constant 0 : index
    %500 = vector.load %arg8[%c0_109, %c0_110] : memref<128x512xbf16, #tpu.memory_space<vmem>>, vector<128x512xbf16>
    %cst_111 = arith.constant 0.000000e+00 : f32
    %501 = vector.broadcast %cst_111 : f32 to vector<8x128xf32>
    %502 = vector.extract_strided_slice %498 {offsets = [0, 0], sizes = [8, 512], strides = [1, 1]} : vector<64x1024xf32> to vector<8x512xf32>
    %503 = arith.truncf %501 : vector<8x128xf32> to vector<8x128xbf16>
    %cst_112 = arith.constant dense<0.000000e+00> : vector<8x512xf32>
    %504 = tpu.matmul %503, %499, %cst_112 {dimension_numbers = #tpu.dot_dimension_numbers<[1], [0], [0], [1], [0, 0, 1, 1], [], []>} : vector<8x128xbf16>, vector<128x512xbf16>, vector<8x512xf32> -> vector<8x512xf32>
    %505 = arith.addf %502, %504 : vector<8x512xf32>
    %506 = vector.extract_strided_slice %505 {offsets = [0, 0], sizes = [8, 128], strides = [1, 1]} : vector<8x512xf32> to vector<8x128xf32>
    %507 = arith.negf %506 : vector<8x128xf32>
    %508 = math.exp %507 : vector<8x128xf32>
    %cst_113 = arith.constant 1.000000e+00 : f32
    %509 = vector.broadcast %cst_113 : f32 to vector<8x128xf32>
    %510 = arith.addf %509, %508 : vector<8x128xf32>
    %511 = arith.divf %509, %510 : vector<8x128xf32>
    %512 = vector.extract_strided_slice %505 {offsets = [0, 128], sizes = [8, 128], strides = [1, 1]} : vector<8x512xf32> to vector<8x128xf32>
    %513 = arith.negf %512 : vector<8x128xf32>
    %514 = math.exp %513 : vector<8x128xf32>
    %cst_114 = arith.constant 1.000000e+00 : f32
    %515 = vector.broadcast %cst_114 : f32 to vector<8x128xf32>
    %516 = arith.addf %515, %514 : vector<8x128xf32>
    %517 = arith.divf %515, %516 : vector<8x128xf32>
    %518 = vector.extract_strided_slice %505 {offsets = [0, 256], sizes = [8, 128], strides = [1, 1]} : vector<8x512xf32> to vector<8x128xf32>
    %519 = math.tanh %518 : vector<8x128xf32>
    %520 = vector.extract_strided_slice %505 {offsets = [0, 384], sizes = [8, 128], strides = [1, 1]} : vector<8x512xf32> to vector<8x128xf32>
    %521 = arith.negf %520 : vector<8x128xf32>
    %522 = math.exp %521 : vector<8x128xf32>
    %cst_115 = arith.constant 1.000000e+00 : f32
    %523 = vector.broadcast %cst_115 : f32 to vector<8x128xf32>
    %524 = arith.addf %523, %522 : vector<8x128xf32>
    %525 = arith.divf %523, %524 : vector<8x128xf32>
    %526 = arith.mulf %517, %501 : vector<8x128xf32>
    %527 = arith.mulf %511, %519 : vector<8x128xf32>
    %528 = arith.addf %526, %527 : vector<8x128xf32>
    %529 = math.tanh %528 : vector<8x128xf32>
    %530 = arith.mulf %525, %529 : vector<8x128xf32>
    %531 = vector.extract_strided_slice %498 {offsets = [56, 512], sizes = [8, 512], strides = [1, 1]} : vector<64x1024xf32> to vector<8x512xf32>
    %532 = arith.truncf %501 : vector<8x128xf32> to vector<8x128xbf16>
    %cst_116 = arith.constant dense<0.000000e+00> : vector<8x512xf32>
    %533 = tpu.matmul %532, %500, %cst_116 {dimension_numbers = #tpu.dot_dimension_numbers<[1], [0], [0], [1], [0, 0, 1, 1], [], []>} : vector<8x128xbf16>, vector<128x512xbf16>, vector<8x512xf32> -> vector<8x512xf32>
    %534 = arith.addf %531, %533 : vector<8x512xf32>
    %535 = vector.extract_strided_slice %534 {offsets = [0, 0], sizes = [8, 128], strides = [1, 1]} : vector<8x512xf32> to vector<8x128xf32>
    %536 = arith.negf %535 : vector<8x128xf32>
    %537 = math.exp %536 : vector<8x128xf32>
    %cst_117 = arith.constant 1.000000e+00 : f32
    %538 = vector.broadcast %cst_117 : f32 to vector<8x128xf32>
    %539 = arith.addf %538, %537 : vector<8x128xf32>
    %540 = arith.divf %538, %539 : vector<8x128xf32>
    %541 = vector.extract_strided_slice %534 {offsets = [0, 128], sizes = [8, 128], strides = [1, 1]} : vector<8x512xf32> to vector<8x128xf32>
    %542 = arith.negf %541 : vector<8x128xf32>
    %543 = math.exp %542 : vector<8x128xf32>
    %cst_118 = arith.constant 1.000000e+00 : f32
    %544 = vector.broadcast %cst_118 : f32 to vector<8x128xf32>
    %545 = arith.addf %544, %543 : vector<8x128xf32>
    %546 = arith.divf %544, %545 : vector<8x128xf32>
    %547 = vector.extract_strided_slice %534 {offsets = [0, 256], sizes = [8, 128], strides = [1, 1]} : vector<8x512xf32> to vector<8x128xf32>
    %548 = math.tanh %547 : vector<8x128xf32>
    %549 = vector.extract_strided_slice %534 {offsets = [0, 384], sizes = [8, 128], strides = [1, 1]} : vector<8x512xf32> to vector<8x128xf32>
    %550 = arith.negf %549 : vector<8x128xf32>
    %551 = math.exp %550 : vector<8x128xf32>
    %cst_119 = arith.constant 1.000000e+00 : f32
    %552 = vector.broadcast %cst_119 : f32 to vector<8x128xf32>
    %553 = arith.addf %552, %551 : vector<8x128xf32>
    %554 = arith.divf %552, %553 : vector<8x128xf32>
    %555 = arith.mulf %546, %501 : vector<8x128xf32>
    %556 = arith.mulf %540, %548 : vector<8x128xf32>
    %557 = arith.addf %555, %556 : vector<8x128xf32>
    %558 = math.tanh %557 : vector<8x128xf32>
    %559 = arith.mulf %554, %558 : vector<8x128xf32>
    %c0_i32 = arith.constant 0 : i32
    %560 = vector.broadcast %c0_i32 : i32 to vector<8x128xi32>
    %561 = arith.cmpi eq, %2, %560 : vector<8x128xi32>
    %562 = arith.select %561, %530, %501 : vector<8x128xi1>, vector<8x128xf32>
    %c7_i32 = arith.constant 7 : i32
    %563 = vector.broadcast %c7_i32 : i32 to vector<8x128xi32>
    %564 = arith.cmpi eq, %2, %563 : vector<8x128xi32>
    %565 = arith.select %564, %559, %501 : vector<8x128xi1>, vector<8x128xf32>
    %566 = vector.extract_strided_slice %498 {offsets = [8, 0], sizes = [8, 512], strides = [1, 1]} : vector<64x1024xf32> to vector<8x512xf32>
    %567 = arith.truncf %530 : vector<8x128xf32> to vector<8x128xbf16>
    %cst_120 = arith.constant dense<0.000000e+00> : vector<8x512xf32>
    %568 = tpu.matmul %567, %499, %cst_120 {dimension_numbers = #tpu.dot_dimension_numbers<[1], [0], [0], [1], [0, 0, 1, 1], [], []>} : vector<8x128xbf16>, vector<128x512xbf16>, vector<8x512xf32> -> vector<8x512xf32>
    %569 = arith.addf %566, %568 : vector<8x512xf32>
    %570 = vector.extract_strided_slice %569 {offsets = [0, 0], sizes = [8, 128], strides = [1, 1]} : vector<8x512xf32> to vector<8x128xf32>
    %571 = arith.negf %570 : vector<8x128xf32>
    %572 = math.exp %571 : vector<8x128xf32>
    %cst_121 = arith.constant 1.000000e+00 : f32
    %573 = vector.broadcast %cst_121 : f32 to vector<8x128xf32>
    %574 = arith.addf %573, %572 : vector<8x128xf32>
    %575 = arith.divf %573, %574 : vector<8x128xf32>
    %576 = vector.extract_strided_slice %569 {offsets = [0, 128], sizes = [8, 128], strides = [1, 1]} : vector<8x512xf32> to vector<8x128xf32>
    %577 = arith.negf %576 : vector<8x128xf32>
    %578 = math.exp %577 : vector<8x128xf32>
    %cst_122 = arith.constant 1.000000e+00 : f32
    %579 = vector.broadcast %cst_122 : f32 to vector<8x128xf32>
    %580 = arith.addf %579, %578 : vector<8x128xf32>
    %581 = arith.divf %579, %580 : vector<8x128xf32>
    %582 = vector.extract_strided_slice %569 {offsets = [0, 256], sizes = [8, 128], strides = [1, 1]} : vector<8x512xf32> to vector<8x128xf32>
    %583 = math.tanh %582 : vector<8x128xf32>
    %584 = vector.extract_strided_slice %569 {offsets = [0, 384], sizes = [8, 128], strides = [1, 1]} : vector<8x512xf32> to vector<8x128xf32>
    %585 = arith.negf %584 : vector<8x128xf32>
    %586 = math.exp %585 : vector<8x128xf32>
    %cst_123 = arith.constant 1.000000e+00 : f32
    %587 = vector.broadcast %cst_123 : f32 to vector<8x128xf32>
    %588 = arith.addf %587, %586 : vector<8x128xf32>
    %589 = arith.divf %587, %588 : vector<8x128xf32>
    %590 = arith.mulf %581, %528 : vector<8x128xf32>
    %591 = arith.mulf %575, %583 : vector<8x128xf32>
    %592 = arith.addf %590, %591 : vector<8x128xf32>
    %593 = math.tanh %592 : vector<8x128xf32>
    %594 = arith.mulf %589, %593 : vector<8x128xf32>
    %595 = vector.extract_strided_slice %498 {offsets = [48, 512], sizes = [8, 512], strides = [1, 1]} : vector<64x1024xf32> to vector<8x512xf32>
    %596 = arith.truncf %559 : vector<8x128xf32> to vector<8x128xbf16>
    %cst_124 = arith.constant dense<0.000000e+00> : vector<8x512xf32>
    %597 = tpu.matmul %596, %500, %cst_124 {dimension_numbers = #tpu.dot_dimension_numbers<[1], [0], [0], [1], [0, 0, 1, 1], [], []>} : vector<8x128xbf16>, vector<128x512xbf16>, vector<8x512xf32> -> vector<8x512xf32>
    %598 = arith.addf %595, %597 : vector<8x512xf32>
    %599 = vector.extract_strided_slice %598 {offsets = [0, 0], sizes = [8, 128], strides = [1, 1]} : vector<8x512xf32> to vector<8x128xf32>
    %600 = arith.negf %599 : vector<8x128xf32>
    %601 = math.exp %600 : vector<8x128xf32>
    %cst_125 = arith.constant 1.000000e+00 : f32
    %602 = vector.broadcast %cst_125 : f32 to vector<8x128xf32>
    %603 = arith.addf %602, %601 : vector<8x128xf32>
    %604 = arith.divf %602, %603 : vector<8x128xf32>
    %605 = vector.extract_strided_slice %598 {offsets = [0, 128], sizes = [8, 128], strides = [1, 1]} : vector<8x512xf32> to vector<8x128xf32>
    %606 = arith.negf %605 : vector<8x128xf32>
    %607 = math.exp %606 : vector<8x128xf32>
    %cst_126 = arith.constant 1.000000e+00 : f32
    %608 = vector.broadcast %cst_126 : f32 to vector<8x128xf32>
    %609 = arith.addf %608, %607 : vector<8x128xf32>
    %610 = arith.divf %608, %609 : vector<8x128xf32>
    %611 = vector.extract_strided_slice %598 {offsets = [0, 256], sizes = [8, 128], strides = [1, 1]} : vector<8x512xf32> to vector<8x128xf32>
    %612 = math.tanh %611 : vector<8x128xf32>
    %613 = vector.extract_strided_slice %598 {offsets = [0, 384], sizes = [8, 128], strides = [1, 1]} : vector<8x512xf32> to vector<8x128xf32>
    %614 = arith.negf %613 : vector<8x128xf32>
    %615 = math.exp %614 : vector<8x128xf32>
    %cst_127 = arith.constant 1.000000e+00 : f32
    %616 = vector.broadcast %cst_127 : f32 to vector<8x128xf32>
    %617 = arith.addf %616, %615 : vector<8x128xf32>
    %618 = arith.divf %616, %617 : vector<8x128xf32>
    %619 = arith.mulf %610, %557 : vector<8x128xf32>
    %620 = arith.mulf %604, %612 : vector<8x128xf32>
    %621 = arith.addf %619, %620 : vector<8x128xf32>
    %622 = math.tanh %621 : vector<8x128xf32>
    %623 = arith.mulf %618, %622 : vector<8x128xf32>
    %c1_i32 = arith.constant 1 : i32
    %624 = vector.broadcast %c1_i32 : i32 to vector<8x128xi32>
    %625 = arith.cmpi eq, %2, %624 : vector<8x128xi32>
    %626 = arith.select %625, %594, %562 : vector<8x128xi1>, vector<8x128xf32>
    %c6_i32 = arith.constant 6 : i32
    %627 = vector.broadcast %c6_i32 : i32 to vector<8x128xi32>
    %628 = arith.cmpi eq, %2, %627 : vector<8x128xi32>
    %629 = arith.select %628, %623, %565 : vector<8x128xi1>, vector<8x128xf32>
    %630 = vector.extract_strided_slice %498 {offsets = [16, 0], sizes = [8, 512], strides = [1, 1]} : vector<64x1024xf32> to vector<8x512xf32>
    %631 = arith.truncf %594 : vector<8x128xf32> to vector<8x128xbf16>
    %cst_128 = arith.constant dense<0.000000e+00> : vector<8x512xf32>
    %632 = tpu.matmul %631, %499, %cst_128 {dimension_numbers = #tpu.dot_dimension_numbers<[1], [0], [0], [1], [0, 0, 1, 1], [], []>} : vector<8x128xbf16>, vector<128x512xbf16>, vector<8x512xf32> -> vector<8x512xf32>
    %633 = arith.addf %630, %632 : vector<8x512xf32>
    %634 = vector.extract_strided_slice %633 {offsets = [0, 0], sizes = [8, 128], strides = [1, 1]} : vector<8x512xf32> to vector<8x128xf32>
    %635 = arith.negf %634 : vector<8x128xf32>
    %636 = math.exp %635 : vector<8x128xf32>
    %cst_129 = arith.constant 1.000000e+00 : f32
    %637 = vector.broadcast %cst_129 : f32 to vector<8x128xf32>
    %638 = arith.addf %637, %636 : vector<8x128xf32>
    %639 = arith.divf %637, %638 : vector<8x128xf32>
    %640 = vector.extract_strided_slice %633 {offsets = [0, 128], sizes = [8, 128], strides = [1, 1]} : vector<8x512xf32> to vector<8x128xf32>
    %641 = arith.negf %640 : vector<8x128xf32>
    %642 = math.exp %641 : vector<8x128xf32>
    %cst_130 = arith.constant 1.000000e+00 : f32
    %643 = vector.broadcast %cst_130 : f32 to vector<8x128xf32>
    %644 = arith.addf %643, %642 : vector<8x128xf32>
    %645 = arith.divf %643, %644 : vector<8x128xf32>
    %646 = vector.extract_strided_slice %633 {offsets = [0, 256], sizes = [8, 128], strides = [1, 1]} : vector<8x512xf32> to vector<8x128xf32>
    %647 = math.tanh %646 : vector<8x128xf32>
    %648 = vector.extract_strided_slice %633 {offsets = [0, 384], sizes = [8, 128], strides = [1, 1]} : vector<8x512xf32> to vector<8x128xf32>
    %649 = arith.negf %648 : vector<8x128xf32>
    %650 = math.exp %649 : vector<8x128xf32>
    %cst_131 = arith.constant 1.000000e+00 : f32
    %651 = vector.broadcast %cst_131 : f32 to vector<8x128xf32>
    %652 = arith.addf %651, %650 : vector<8x128xf32>
    %653 = arith.divf %651, %652 : vector<8x128xf32>
    %654 = arith.mulf %645, %592 : vector<8x128xf32>
    %655 = arith.mulf %639, %647 : vector<8x128xf32>
    %656 = arith.addf %654, %655 : vector<8x128xf32>
    %657 = math.tanh %656 : vector<8x128xf32>
    %658 = arith.mulf %653, %657 : vector<8x128xf32>
    %659 = vector.extract_strided_slice %498 {offsets = [40, 512], sizes = [8, 512], strides = [1, 1]} : vector<64x1024xf32> to vector<8x512xf32>
    %660 = arith.truncf %623 : vector<8x128xf32> to vector<8x128xbf16>
    %cst_132 = arith.constant dense<0.000000e+00> : vector<8x512xf32>
    %661 = tpu.matmul %660, %500, %cst_132 {dimension_numbers = #tpu.dot_dimension_numbers<[1], [0], [0], [1], [0, 0, 1, 1], [], []>} : vector<8x128xbf16>, vector<128x512xbf16>, vector<8x512xf32> -> vector<8x512xf32>
    %662 = arith.addf %659, %661 : vector<8x512xf32>
    %663 = vector.extract_strided_slice %662 {offsets = [0, 0], sizes = [8, 128], strides = [1, 1]} : vector<8x512xf32> to vector<8x128xf32>
    %664 = arith.negf %663 : vector<8x128xf32>
    %665 = math.exp %664 : vector<8x128xf32>
    %cst_133 = arith.constant 1.000000e+00 : f32
    %666 = vector.broadcast %cst_133 : f32 to vector<8x128xf32>
    %667 = arith.addf %666, %665 : vector<8x128xf32>
    %668 = arith.divf %666, %667 : vector<8x128xf32>
    %669 = vector.extract_strided_slice %662 {offsets = [0, 128], sizes = [8, 128], strides = [1, 1]} : vector<8x512xf32> to vector<8x128xf32>
    %670 = arith.negf %669 : vector<8x128xf32>
    %671 = math.exp %670 : vector<8x128xf32>
    %cst_134 = arith.constant 1.000000e+00 : f32
    %672 = vector.broadcast %cst_134 : f32 to vector<8x128xf32>
    %673 = arith.addf %672, %671 : vector<8x128xf32>
    %674 = arith.divf %672, %673 : vector<8x128xf32>
    %675 = vector.extract_strided_slice %662 {offsets = [0, 256], sizes = [8, 128], strides = [1, 1]} : vector<8x512xf32> to vector<8x128xf32>
    %676 = math.tanh %675 : vector<8x128xf32>
    %677 = vector.extract_strided_slice %662 {offsets = [0, 384], sizes = [8, 128], strides = [1, 1]} : vector<8x512xf32> to vector<8x128xf32>
    %678 = arith.negf %677 : vector<8x128xf32>
    %679 = math.exp %678 : vector<8x128xf32>
    %cst_135 = arith.constant 1.000000e+00 : f32
    %680 = vector.broadcast %cst_135 : f32 to vector<8x128xf32>
    %681 = arith.addf %680, %679 : vector<8x128xf32>
    %682 = arith.divf %680, %681 : vector<8x128xf32>
    %683 = arith.mulf %674, %621 : vector<8x128xf32>
    %684 = arith.mulf %668, %676 : vector<8x128xf32>
    %685 = arith.addf %683, %684 : vector<8x128xf32>
    %686 = math.tanh %685 : vector<8x128xf32>
    %687 = arith.mulf %682, %686 : vector<8x128xf32>
    %c2_i32 = arith.constant 2 : i32
    %688 = vector.broadcast %c2_i32 : i32 to vector<8x128xi32>
    %689 = arith.cmpi eq, %2, %688 : vector<8x128xi32>
    %690 = arith.select %689, %658, %626 : vector<8x128xi1>, vector<8x128xf32>
    %c5_i32 = arith.constant 5 : i32
    %691 = vector.broadcast %c5_i32 : i32 to vector<8x128xi32>
    %692 = arith.cmpi eq, %2, %691 : vector<8x128xi32>
    %693 = arith.select %692, %687, %629 : vector<8x128xi1>, vector<8x128xf32>
    %694 = vector.extract_strided_slice %498 {offsets = [24, 0], sizes = [8, 512], strides = [1, 1]} : vector<64x1024xf32> to vector<8x512xf32>
    %695 = arith.truncf %658 : vector<8x128xf32> to vector<8x128xbf16>
    %cst_136 = arith.constant dense<0.000000e+00> : vector<8x512xf32>
    %696 = tpu.matmul %695, %499, %cst_136 {dimension_numbers = #tpu.dot_dimension_numbers<[1], [0], [0], [1], [0, 0, 1, 1], [], []>} : vector<8x128xbf16>, vector<128x512xbf16>, vector<8x512xf32> -> vector<8x512xf32>
    %697 = arith.addf %694, %696 : vector<8x512xf32>
    %698 = vector.extract_strided_slice %697 {offsets = [0, 0], sizes = [8, 128], strides = [1, 1]} : vector<8x512xf32> to vector<8x128xf32>
    %699 = arith.negf %698 : vector<8x128xf32>
    %700 = math.exp %699 : vector<8x128xf32>
    %cst_137 = arith.constant 1.000000e+00 : f32
    %701 = vector.broadcast %cst_137 : f32 to vector<8x128xf32>
    %702 = arith.addf %701, %700 : vector<8x128xf32>
    %703 = arith.divf %701, %702 : vector<8x128xf32>
    %704 = vector.extract_strided_slice %697 {offsets = [0, 128], sizes = [8, 128], strides = [1, 1]} : vector<8x512xf32> to vector<8x128xf32>
    %705 = arith.negf %704 : vector<8x128xf32>
    %706 = math.exp %705 : vector<8x128xf32>
    %cst_138 = arith.constant 1.000000e+00 : f32
    %707 = vector.broadcast %cst_138 : f32 to vector<8x128xf32>
    %708 = arith.addf %707, %706 : vector<8x128xf32>
    %709 = arith.divf %707, %708 : vector<8x128xf32>
    %710 = vector.extract_strided_slice %697 {offsets = [0, 256], sizes = [8, 128], strides = [1, 1]} : vector<8x512xf32> to vector<8x128xf32>
    %711 = math.tanh %710 : vector<8x128xf32>
    %712 = vector.extract_strided_slice %697 {offsets = [0, 384], sizes = [8, 128], strides = [1, 1]} : vector<8x512xf32> to vector<8x128xf32>
    %713 = arith.negf %712 : vector<8x128xf32>
    %714 = math.exp %713 : vector<8x128xf32>
    %cst_139 = arith.constant 1.000000e+00 : f32
    %715 = vector.broadcast %cst_139 : f32 to vector<8x128xf32>
    %716 = arith.addf %715, %714 : vector<8x128xf32>
    %717 = arith.divf %715, %716 : vector<8x128xf32>
    %718 = arith.mulf %709, %656 : vector<8x128xf32>
    %719 = arith.mulf %703, %711 : vector<8x128xf32>
    %720 = arith.addf %718, %719 : vector<8x128xf32>
    %721 = math.tanh %720 : vector<8x128xf32>
    %722 = arith.mulf %717, %721 : vector<8x128xf32>
    %723 = vector.extract_strided_slice %498 {offsets = [32, 512], sizes = [8, 512], strides = [1, 1]} : vector<64x1024xf32> to vector<8x512xf32>
    %724 = arith.truncf %687 : vector<8x128xf32> to vector<8x128xbf16>
    %cst_140 = arith.constant dense<0.000000e+00> : vector<8x512xf32>
    %725 = tpu.matmul %724, %500, %cst_140 {dimension_numbers = #tpu.dot_dimension_numbers<[1], [0], [0], [1], [0, 0, 1, 1], [], []>} : vector<8x128xbf16>, vector<128x512xbf16>, vector<8x512xf32> -> vector<8x512xf32>
    %726 = arith.addf %723, %725 : vector<8x512xf32>
    %727 = vector.extract_strided_slice %726 {offsets = [0, 0], sizes = [8, 128], strides = [1, 1]} : vector<8x512xf32> to vector<8x128xf32>
    %728 = arith.negf %727 : vector<8x128xf32>
    %729 = math.exp %728 : vector<8x128xf32>
    %cst_141 = arith.constant 1.000000e+00 : f32
    %730 = vector.broadcast %cst_141 : f32 to vector<8x128xf32>
    %731 = arith.addf %730, %729 : vector<8x128xf32>
    %732 = arith.divf %730, %731 : vector<8x128xf32>
    %733 = vector.extract_strided_slice %726 {offsets = [0, 128], sizes = [8, 128], strides = [1, 1]} : vector<8x512xf32> to vector<8x128xf32>
    %734 = arith.negf %733 : vector<8x128xf32>
    %735 = math.exp %734 : vector<8x128xf32>
    %cst_142 = arith.constant 1.000000e+00 : f32
    %736 = vector.broadcast %cst_142 : f32 to vector<8x128xf32>
    %737 = arith.addf %736, %735 : vector<8x128xf32>
    %738 = arith.divf %736, %737 : vector<8x128xf32>
    %739 = vector.extract_strided_slice %726 {offsets = [0, 256], sizes = [8, 128], strides = [1, 1]} : vector<8x512xf32> to vector<8x128xf32>
    %740 = math.tanh %739 : vector<8x128xf32>
    %741 = vector.extract_strided_slice %726 {offsets = [0, 384], sizes = [8, 128], strides = [1, 1]} : vector<8x512xf32> to vector<8x128xf32>
    %742 = arith.negf %741 : vector<8x128xf32>
    %743 = math.exp %742 : vector<8x128xf32>
    %cst_143 = arith.constant 1.000000e+00 : f32
    %744 = vector.broadcast %cst_143 : f32 to vector<8x128xf32>
    %745 = arith.addf %744, %743 : vector<8x128xf32>
    %746 = arith.divf %744, %745 : vector<8x128xf32>
    %747 = arith.mulf %738, %685 : vector<8x128xf32>
    %748 = arith.mulf %732, %740 : vector<8x128xf32>
    %749 = arith.addf %747, %748 : vector<8x128xf32>
    %750 = math.tanh %749 : vector<8x128xf32>
    %751 = arith.mulf %746, %750 : vector<8x128xf32>
    %c3_i32 = arith.constant 3 : i32
    %752 = vector.broadcast %c3_i32 : i32 to vector<8x128xi32>
    %753 = arith.cmpi eq, %2, %752 : vector<8x128xi32>
    %754 = arith.select %753, %722, %690 : vector<8x128xi1>, vector<8x128xf32>
    %c4_i32 = arith.constant 4 : i32
    %755 = vector.broadcast %c4_i32 : i32 to vector<8x128xi32>
    %756 = arith.cmpi eq, %2, %755 : vector<8x128xi32>
    %757 = arith.select %756, %751, %693 : vector<8x128xi1>, vector<8x128xf32>
    %758 = vector.extract_strided_slice %498 {offsets = [32, 0], sizes = [8, 512], strides = [1, 1]} : vector<64x1024xf32> to vector<8x512xf32>
    %759 = arith.truncf %722 : vector<8x128xf32> to vector<8x128xbf16>
    %cst_144 = arith.constant dense<0.000000e+00> : vector<8x512xf32>
    %760 = tpu.matmul %759, %499, %cst_144 {dimension_numbers = #tpu.dot_dimension_numbers<[1], [0], [0], [1], [0, 0, 1, 1], [], []>} : vector<8x128xbf16>, vector<128x512xbf16>, vector<8x512xf32> -> vector<8x512xf32>
    %761 = arith.addf %758, %760 : vector<8x512xf32>
    %762 = vector.extract_strided_slice %761 {offsets = [0, 0], sizes = [8, 128], strides = [1, 1]} : vector<8x512xf32> to vector<8x128xf32>
    %763 = arith.negf %762 : vector<8x128xf32>
    %764 = math.exp %763 : vector<8x128xf32>
    %cst_145 = arith.constant 1.000000e+00 : f32
    %765 = vector.broadcast %cst_145 : f32 to vector<8x128xf32>
    %766 = arith.addf %765, %764 : vector<8x128xf32>
    %767 = arith.divf %765, %766 : vector<8x128xf32>
    %768 = vector.extract_strided_slice %761 {offsets = [0, 128], sizes = [8, 128], strides = [1, 1]} : vector<8x512xf32> to vector<8x128xf32>
    %769 = arith.negf %768 : vector<8x128xf32>
    %770 = math.exp %769 : vector<8x128xf32>
    %cst_146 = arith.constant 1.000000e+00 : f32
    %771 = vector.broadcast %cst_146 : f32 to vector<8x128xf32>
    %772 = arith.addf %771, %770 : vector<8x128xf32>
    %773 = arith.divf %771, %772 : vector<8x128xf32>
    %774 = vector.extract_strided_slice %761 {offsets = [0, 256], sizes = [8, 128], strides = [1, 1]} : vector<8x512xf32> to vector<8x128xf32>
    %775 = math.tanh %774 : vector<8x128xf32>
    %776 = vector.extract_strided_slice %761 {offsets = [0, 384], sizes = [8, 128], strides = [1, 1]} : vector<8x512xf32> to vector<8x128xf32>
    %777 = arith.negf %776 : vector<8x128xf32>
    %778 = math.exp %777 : vector<8x128xf32>
    %cst_147 = arith.constant 1.000000e+00 : f32
    %779 = vector.broadcast %cst_147 : f32 to vector<8x128xf32>
    %780 = arith.addf %779, %778 : vector<8x128xf32>
    %781 = arith.divf %779, %780 : vector<8x128xf32>
    %782 = arith.mulf %773, %720 : vector<8x128xf32>
    %783 = arith.mulf %767, %775 : vector<8x128xf32>
    %784 = arith.addf %782, %783 : vector<8x128xf32>
    %785 = math.tanh %784 : vector<8x128xf32>
    %786 = arith.mulf %781, %785 : vector<8x128xf32>
    %787 = vector.extract_strided_slice %498 {offsets = [24, 512], sizes = [8, 512], strides = [1, 1]} : vector<64x1024xf32> to vector<8x512xf32>
    %788 = arith.truncf %751 : vector<8x128xf32> to vector<8x128xbf16>
    %cst_148 = arith.constant dense<0.000000e+00> : vector<8x512xf32>
    %789 = tpu.matmul %788, %500, %cst_148 {dimension_numbers = #tpu.dot_dimension_numbers<[1], [0], [0], [1], [0, 0, 1, 1], [], []>} : vector<8x128xbf16>, vector<128x512xbf16>, vector<8x512xf32> -> vector<8x512xf32>
    %790 = arith.addf %787, %789 : vector<8x512xf32>
    %791 = vector.extract_strided_slice %790 {offsets = [0, 0], sizes = [8, 128], strides = [1, 1]} : vector<8x512xf32> to vector<8x128xf32>
    %792 = arith.negf %791 : vector<8x128xf32>
    %793 = math.exp %792 : vector<8x128xf32>
    %cst_149 = arith.constant 1.000000e+00 : f32
    %794 = vector.broadcast %cst_149 : f32 to vector<8x128xf32>
    %795 = arith.addf %794, %793 : vector<8x128xf32>
    %796 = arith.divf %794, %795 : vector<8x128xf32>
    %797 = vector.extract_strided_slice %790 {offsets = [0, 128], sizes = [8, 128], strides = [1, 1]} : vector<8x512xf32> to vector<8x128xf32>
    %798 = arith.negf %797 : vector<8x128xf32>
    %799 = math.exp %798 : vector<8x128xf32>
    %cst_150 = arith.constant 1.000000e+00 : f32
    %800 = vector.broadcast %cst_150 : f32 to vector<8x128xf32>
    %801 = arith.addf %800, %799 : vector<8x128xf32>
    %802 = arith.divf %800, %801 : vector<8x128xf32>
    %803 = vector.extract_strided_slice %790 {offsets = [0, 256], sizes = [8, 128], strides = [1, 1]} : vector<8x512xf32> to vector<8x128xf32>
    %804 = math.tanh %803 : vector<8x128xf32>
    %805 = vector.extract_strided_slice %790 {offsets = [0, 384], sizes = [8, 128], strides = [1, 1]} : vector<8x512xf32> to vector<8x128xf32>
    %806 = arith.negf %805 : vector<8x128xf32>
    %807 = math.exp %806 : vector<8x128xf32>
    %cst_151 = arith.constant 1.000000e+00 : f32
    %808 = vector.broadcast %cst_151 : f32 to vector<8x128xf32>
    %809 = arith.addf %808, %807 : vector<8x128xf32>
    %810 = arith.divf %808, %809 : vector<8x128xf32>
    %811 = arith.mulf %802, %749 : vector<8x128xf32>
    %812 = arith.mulf %796, %804 : vector<8x128xf32>
    %813 = arith.addf %811, %812 : vector<8x128xf32>
    %814 = math.tanh %813 : vector<8x128xf32>
    %815 = arith.mulf %810, %814 : vector<8x128xf32>
    %c4_i32_152 = arith.constant 4 : i32
    %816 = vector.broadcast %c4_i32_152 : i32 to vector<8x128xi32>
    %817 = arith.cmpi eq, %2, %816 : vector<8x128xi32>
    %818 = arith.select %817, %786, %754 : vector<8x128xi1>, vector<8x128xf32>
    %c3_i32_153 = arith.constant 3 : i32
    %819 = vector.broadcast %c3_i32_153 : i32 to vector<8x128xi32>
    %820 = arith.cmpi eq, %2, %819 : vector<8x128xi32>
    %821 = arith.select %820, %815, %757 : vector<8x128xi1>, vector<8x128xf32>
    %822 = vector.extract_strided_slice %498 {offsets = [40, 0], sizes = [8, 512], strides = [1, 1]} : vector<64x1024xf32> to vector<8x512xf32>
    %823 = arith.truncf %786 : vector<8x128xf32> to vector<8x128xbf16>
    %cst_154 = arith.constant dense<0.000000e+00> : vector<8x512xf32>
    %824 = tpu.matmul %823, %499, %cst_154 {dimension_numbers = #tpu.dot_dimension_numbers<[1], [0], [0], [1], [0, 0, 1, 1], [], []>} : vector<8x128xbf16>, vector<128x512xbf16>, vector<8x512xf32> -> vector<8x512xf32>
    %825 = arith.addf %822, %824 : vector<8x512xf32>
    %826 = vector.extract_strided_slice %825 {offsets = [0, 0], sizes = [8, 128], strides = [1, 1]} : vector<8x512xf32> to vector<8x128xf32>
    %827 = arith.negf %826 : vector<8x128xf32>
    %828 = math.exp %827 : vector<8x128xf32>
    %cst_155 = arith.constant 1.000000e+00 : f32
    %829 = vector.broadcast %cst_155 : f32 to vector<8x128xf32>
    %830 = arith.addf %829, %828 : vector<8x128xf32>
    %831 = arith.divf %829, %830 : vector<8x128xf32>
    %832 = vector.extract_strided_slice %825 {offsets = [0, 128], sizes = [8, 128], strides = [1, 1]} : vector<8x512xf32> to vector<8x128xf32>
    %833 = arith.negf %832 : vector<8x128xf32>
    %834 = math.exp %833 : vector<8x128xf32>
    %cst_156 = arith.constant 1.000000e+00 : f32
    %835 = vector.broadcast %cst_156 : f32 to vector<8x128xf32>
    %836 = arith.addf %835, %834 : vector<8x128xf32>
    %837 = arith.divf %835, %836 : vector<8x128xf32>
    %838 = vector.extract_strided_slice %825 {offsets = [0, 256], sizes = [8, 128], strides = [1, 1]} : vector<8x512xf32> to vector<8x128xf32>
    %839 = math.tanh %838 : vector<8x128xf32>
    %840 = vector.extract_strided_slice %825 {offsets = [0, 384], sizes = [8, 128], strides = [1, 1]} : vector<8x512xf32> to vector<8x128xf32>
    %841 = arith.negf %840 : vector<8x128xf32>
    %842 = math.exp %841 : vector<8x128xf32>
    %cst_157 = arith.constant 1.000000e+00 : f32
    %843 = vector.broadcast %cst_157 : f32 to vector<8x128xf32>
    %844 = arith.addf %843, %842 : vector<8x128xf32>
    %845 = arith.divf %843, %844 : vector<8x128xf32>
    %846 = arith.mulf %837, %784 : vector<8x128xf32>
    %847 = arith.mulf %831, %839 : vector<8x128xf32>
    %848 = arith.addf %846, %847 : vector<8x128xf32>
    %849 = math.tanh %848 : vector<8x128xf32>
    %850 = arith.mulf %845, %849 : vector<8x128xf32>
    %851 = vector.extract_strided_slice %498 {offsets = [16, 512], sizes = [8, 512], strides = [1, 1]} : vector<64x1024xf32> to vector<8x512xf32>
    %852 = arith.truncf %815 : vector<8x128xf32> to vector<8x128xbf16>
    %cst_158 = arith.constant dense<0.000000e+00> : vector<8x512xf32>
    %853 = tpu.matmul %852, %500, %cst_158 {dimension_numbers = #tpu.dot_dimension_numbers<[1], [0], [0], [1], [0, 0, 1, 1], [], []>} : vector<8x128xbf16>, vector<128x512xbf16>, vector<8x512xf32> -> vector<8x512xf32>
    %854 = arith.addf %851, %853 : vector<8x512xf32>
    %855 = vector.extract_strided_slice %854 {offsets = [0, 0], sizes = [8, 128], strides = [1, 1]} : vector<8x512xf32> to vector<8x128xf32>
    %856 = arith.negf %855 : vector<8x128xf32>
    %857 = math.exp %856 : vector<8x128xf32>
    %cst_159 = arith.constant 1.000000e+00 : f32
    %858 = vector.broadcast %cst_159 : f32 to vector<8x128xf32>
    %859 = arith.addf %858, %857 : vector<8x128xf32>
    %860 = arith.divf %858, %859 : vector<8x128xf32>
    %861 = vector.extract_strided_slice %854 {offsets = [0, 128], sizes = [8, 128], strides = [1, 1]} : vector<8x512xf32> to vector<8x128xf32>
    %862 = arith.negf %861 : vector<8x128xf32>
    %863 = math.exp %862 : vector<8x128xf32>
    %cst_160 = arith.constant 1.000000e+00 : f32
    %864 = vector.broadcast %cst_160 : f32 to vector<8x128xf32>
    %865 = arith.addf %864, %863 : vector<8x128xf32>
    %866 = arith.divf %864, %865 : vector<8x128xf32>
    %867 = vector.extract_strided_slice %854 {offsets = [0, 256], sizes = [8, 128], strides = [1, 1]} : vector<8x512xf32> to vector<8x128xf32>
    %868 = math.tanh %867 : vector<8x128xf32>
    %869 = vector.extract_strided_slice %854 {offsets = [0, 384], sizes = [8, 128], strides = [1, 1]} : vector<8x512xf32> to vector<8x128xf32>
    %870 = arith.negf %869 : vector<8x128xf32>
    %871 = math.exp %870 : vector<8x128xf32>
    %cst_161 = arith.constant 1.000000e+00 : f32
    %872 = vector.broadcast %cst_161 : f32 to vector<8x128xf32>
    %873 = arith.addf %872, %871 : vector<8x128xf32>
    %874 = arith.divf %872, %873 : vector<8x128xf32>
    %875 = arith.mulf %866, %813 : vector<8x128xf32>
    %876 = arith.mulf %860, %868 : vector<8x128xf32>
    %877 = arith.addf %875, %876 : vector<8x128xf32>
    %878 = math.tanh %877 : vector<8x128xf32>
    %879 = arith.mulf %874, %878 : vector<8x128xf32>
    %c5_i32_162 = arith.constant 5 : i32
    %880 = vector.broadcast %c5_i32_162 : i32 to vector<8x128xi32>
    %881 = arith.cmpi eq, %2, %880 : vector<8x128xi32>
    %882 = arith.select %881, %850, %818 : vector<8x128xi1>, vector<8x128xf32>
    %c2_i32_163 = arith.constant 2 : i32
    %883 = vector.broadcast %c2_i32_163 : i32 to vector<8x128xi32>
    %884 = arith.cmpi eq, %2, %883 : vector<8x128xi32>
    %885 = arith.select %884, %879, %821 : vector<8x128xi1>, vector<8x128xf32>
    %886 = vector.extract_strided_slice %498 {offsets = [48, 0], sizes = [8, 512], strides = [1, 1]} : vector<64x1024xf32> to vector<8x512xf32>
    %887 = arith.truncf %850 : vector<8x128xf32> to vector<8x128xbf16>
    %cst_164 = arith.constant dense<0.000000e+00> : vector<8x512xf32>
    %888 = tpu.matmul %887, %499, %cst_164 {dimension_numbers = #tpu.dot_dimension_numbers<[1], [0], [0], [1], [0, 0, 1, 1], [], []>} : vector<8x128xbf16>, vector<128x512xbf16>, vector<8x512xf32> -> vector<8x512xf32>
    %889 = arith.addf %886, %888 : vector<8x512xf32>
    %890 = vector.extract_strided_slice %889 {offsets = [0, 0], sizes = [8, 128], strides = [1, 1]} : vector<8x512xf32> to vector<8x128xf32>
    %891 = arith.negf %890 : vector<8x128xf32>
    %892 = math.exp %891 : vector<8x128xf32>
    %cst_165 = arith.constant 1.000000e+00 : f32
    %893 = vector.broadcast %cst_165 : f32 to vector<8x128xf32>
    %894 = arith.addf %893, %892 : vector<8x128xf32>
    %895 = arith.divf %893, %894 : vector<8x128xf32>
    %896 = vector.extract_strided_slice %889 {offsets = [0, 128], sizes = [8, 128], strides = [1, 1]} : vector<8x512xf32> to vector<8x128xf32>
    %897 = arith.negf %896 : vector<8x128xf32>
    %898 = math.exp %897 : vector<8x128xf32>
    %cst_166 = arith.constant 1.000000e+00 : f32
    %899 = vector.broadcast %cst_166 : f32 to vector<8x128xf32>
    %900 = arith.addf %899, %898 : vector<8x128xf32>
    %901 = arith.divf %899, %900 : vector<8x128xf32>
    %902 = vector.extract_strided_slice %889 {offsets = [0, 256], sizes = [8, 128], strides = [1, 1]} : vector<8x512xf32> to vector<8x128xf32>
    %903 = math.tanh %902 : vector<8x128xf32>
    %904 = vector.extract_strided_slice %889 {offsets = [0, 384], sizes = [8, 128], strides = [1, 1]} : vector<8x512xf32> to vector<8x128xf32>
    %905 = arith.negf %904 : vector<8x128xf32>
    %906 = math.exp %905 : vector<8x128xf32>
    %cst_167 = arith.constant 1.000000e+00 : f32
    %907 = vector.broadcast %cst_167 : f32 to vector<8x128xf32>
    %908 = arith.addf %907, %906 : vector<8x128xf32>
    %909 = arith.divf %907, %908 : vector<8x128xf32>
    %910 = arith.mulf %901, %848 : vector<8x128xf32>
    %911 = arith.mulf %895, %903 : vector<8x128xf32>
    %912 = arith.addf %910, %911 : vector<8x128xf32>
    %913 = math.tanh %912 : vector<8x128xf32>
    %914 = arith.mulf %909, %913 : vector<8x128xf32>
    %915 = vector.extract_strided_slice %498 {offsets = [8, 512], sizes = [8, 512], strides = [1, 1]} : vector<64x1024xf32> to vector<8x512xf32>
    %916 = arith.truncf %879 : vector<8x128xf32> to vector<8x128xbf16>
    %cst_168 = arith.constant dense<0.000000e+00> : vector<8x512xf32>
    %917 = tpu.matmul %916, %500, %cst_168 {dimension_numbers = #tpu.dot_dimension_numbers<[1], [0], [0], [1], [0, 0, 1, 1], [], []>} : vector<8x128xbf16>, vector<128x512xbf16>, vector<8x512xf32> -> vector<8x512xf32>
    %918 = arith.addf %915, %917 : vector<8x512xf32>
    %919 = vector.extract_strided_slice %918 {offsets = [0, 0], sizes = [8, 128], strides = [1, 1]} : vector<8x512xf32> to vector<8x128xf32>
    %920 = arith.negf %919 : vector<8x128xf32>
    %921 = math.exp %920 : vector<8x128xf32>
    %cst_169 = arith.constant 1.000000e+00 : f32
    %922 = vector.broadcast %cst_169 : f32 to vector<8x128xf32>
    %923 = arith.addf %922, %921 : vector<8x128xf32>
    %924 = arith.divf %922, %923 : vector<8x128xf32>
    %925 = vector.extract_strided_slice %918 {offsets = [0, 128], sizes = [8, 128], strides = [1, 1]} : vector<8x512xf32> to vector<8x128xf32>
    %926 = arith.negf %925 : vector<8x128xf32>
    %927 = math.exp %926 : vector<8x128xf32>
    %cst_170 = arith.constant 1.000000e+00 : f32
    %928 = vector.broadcast %cst_170 : f32 to vector<8x128xf32>
    %929 = arith.addf %928, %927 : vector<8x128xf32>
    %930 = arith.divf %928, %929 : vector<8x128xf32>
    %931 = vector.extract_strided_slice %918 {offsets = [0, 256], sizes = [8, 128], strides = [1, 1]} : vector<8x512xf32> to vector<8x128xf32>
    %932 = math.tanh %931 : vector<8x128xf32>
    %933 = vector.extract_strided_slice %918 {offsets = [0, 384], sizes = [8, 128], strides = [1, 1]} : vector<8x512xf32> to vector<8x128xf32>
    %934 = arith.negf %933 : vector<8x128xf32>
    %935 = math.exp %934 : vector<8x128xf32>
    %cst_171 = arith.constant 1.000000e+00 : f32
    %936 = vector.broadcast %cst_171 : f32 to vector<8x128xf32>
    %937 = arith.addf %936, %935 : vector<8x128xf32>
    %938 = arith.divf %936, %937 : vector<8x128xf32>
    %939 = arith.mulf %930, %877 : vector<8x128xf32>
    %940 = arith.mulf %924, %932 : vector<8x128xf32>
    %941 = arith.addf %939, %940 : vector<8x128xf32>
    %942 = math.tanh %941 : vector<8x128xf32>
    %943 = arith.mulf %938, %942 : vector<8x128xf32>
    %c6_i32_172 = arith.constant 6 : i32
    %944 = vector.broadcast %c6_i32_172 : i32 to vector<8x128xi32>
    %945 = arith.cmpi eq, %2, %944 : vector<8x128xi32>
    %946 = arith.select %945, %914, %882 : vector<8x128xi1>, vector<8x128xf32>
    %c1_i32_173 = arith.constant 1 : i32
    %947 = vector.broadcast %c1_i32_173 : i32 to vector<8x128xi32>
    %948 = arith.cmpi eq, %2, %947 : vector<8x128xi32>
    %949 = arith.select %948, %943, %885 : vector<8x128xi1>, vector<8x128xf32>
    %950 = vector.extract_strided_slice %498 {offsets = [56, 0], sizes = [8, 512], strides = [1, 1]} : vector<64x1024xf32> to vector<8x512xf32>
    %951 = arith.truncf %914 : vector<8x128xf32> to vector<8x128xbf16>
    %cst_174 = arith.constant dense<0.000000e+00> : vector<8x512xf32>
    %952 = tpu.matmul %951, %499, %cst_174 {dimension_numbers = #tpu.dot_dimension_numbers<[1], [0], [0], [1], [0, 0, 1, 1], [], []>} : vector<8x128xbf16>, vector<128x512xbf16>, vector<8x512xf32> -> vector<8x512xf32>
    %953 = arith.addf %950, %952 : vector<8x512xf32>
    %954 = vector.extract_strided_slice %953 {offsets = [0, 0], sizes = [8, 128], strides = [1, 1]} : vector<8x512xf32> to vector<8x128xf32>
    %955 = arith.negf %954 : vector<8x128xf32>
    %956 = math.exp %955 : vector<8x128xf32>
    %cst_175 = arith.constant 1.000000e+00 : f32
    %957 = vector.broadcast %cst_175 : f32 to vector<8x128xf32>
    %958 = arith.addf %957, %956 : vector<8x128xf32>
    %959 = arith.divf %957, %958 : vector<8x128xf32>
    %960 = vector.extract_strided_slice %953 {offsets = [0, 128], sizes = [8, 128], strides = [1, 1]} : vector<8x512xf32> to vector<8x128xf32>
    %961 = arith.negf %960 : vector<8x128xf32>
    %962 = math.exp %961 : vector<8x128xf32>
    %cst_176 = arith.constant 1.000000e+00 : f32
    %963 = vector.broadcast %cst_176 : f32 to vector<8x128xf32>
    %964 = arith.addf %963, %962 : vector<8x128xf32>
    %965 = arith.divf %963, %964 : vector<8x128xf32>
    %966 = vector.extract_strided_slice %953 {offsets = [0, 256], sizes = [8, 128], strides = [1, 1]} : vector<8x512xf32> to vector<8x128xf32>
    %967 = math.tanh %966 : vector<8x128xf32>
    %968 = vector.extract_strided_slice %953 {offsets = [0, 384], sizes = [8, 128], strides = [1, 1]} : vector<8x512xf32> to vector<8x128xf32>
    %969 = arith.negf %968 : vector<8x128xf32>
    %970 = math.exp %969 : vector<8x128xf32>
    %cst_177 = arith.constant 1.000000e+00 : f32
    %971 = vector.broadcast %cst_177 : f32 to vector<8x128xf32>
    %972 = arith.addf %971, %970 : vector<8x128xf32>
    %973 = arith.divf %971, %972 : vector<8x128xf32>
    %974 = arith.mulf %965, %912 : vector<8x128xf32>
    %975 = arith.mulf %959, %967 : vector<8x128xf32>
    %976 = arith.addf %974, %975 : vector<8x128xf32>
    %977 = math.tanh %976 : vector<8x128xf32>
    %978 = arith.mulf %973, %977 : vector<8x128xf32>
    %979 = vector.extract_strided_slice %498 {offsets = [0, 512], sizes = [8, 512], strides = [1, 1]} : vector<64x1024xf32> to vector<8x512xf32>
    %980 = arith.truncf %943 : vector<8x128xf32> to vector<8x128xbf16>
    %cst_178 = arith.constant dense<0.000000e+00> : vector<8x512xf32>
    %981 = tpu.matmul %980, %500, %cst_178 {dimension_numbers = #tpu.dot_dimension_numbers<[1], [0], [0], [1], [0, 0, 1, 1], [], []>} : vector<8x128xbf16>, vector<128x512xbf16>, vector<8x512xf32> -> vector<8x512xf32>
    %982 = arith.addf %979, %981 : vector<8x512xf32>
    %983 = vector.extract_strided_slice %982 {offsets = [0, 0], sizes = [8, 128], strides = [1, 1]} : vector<8x512xf32> to vector<8x128xf32>
    %984 = arith.negf %983 : vector<8x128xf32>
    %985 = math.exp %984 : vector<8x128xf32>
    %cst_179 = arith.constant 1.000000e+00 : f32
    %986 = vector.broadcast %cst_179 : f32 to vector<8x128xf32>
    %987 = arith.addf %986, %985 : vector<8x128xf32>
    %988 = arith.divf %986, %987 : vector<8x128xf32>
    %989 = vector.extract_strided_slice %982 {offsets = [0, 128], sizes = [8, 128], strides = [1, 1]} : vector<8x512xf32> to vector<8x128xf32>
    %990 = arith.negf %989 : vector<8x128xf32>
    %991 = math.exp %990 : vector<8x128xf32>
    %cst_180 = arith.constant 1.000000e+00 : f32
    %992 = vector.broadcast %cst_180 : f32 to vector<8x128xf32>
    %993 = arith.addf %992, %991 : vector<8x128xf32>
    %994 = arith.divf %992, %993 : vector<8x128xf32>
    %995 = vector.extract_strided_slice %982 {offsets = [0, 256], sizes = [8, 128], strides = [1, 1]} : vector<8x512xf32> to vector<8x128xf32>
    %996 = math.tanh %995 : vector<8x128xf32>
    %997 = vector.extract_strided_slice %982 {offsets = [0, 384], sizes = [8, 128], strides = [1, 1]} : vector<8x512xf32> to vector<8x128xf32>
    %998 = arith.negf %997 : vector<8x128xf32>
    %999 = math.exp %998 : vector<8x128xf32>
    %cst_181 = arith.constant 1.000000e+00 : f32
    %1000 = vector.broadcast %cst_181 : f32 to vector<8x128xf32>
    %1001 = arith.addf %1000, %999 : vector<8x128xf32>
    %1002 = arith.divf %1000, %1001 : vector<8x128xf32>
    %1003 = arith.mulf %994, %941 : vector<8x128xf32>
    %1004 = arith.mulf %988, %996 : vector<8x128xf32>
    %1005 = arith.addf %1003, %1004 : vector<8x128xf32>
    %1006 = math.tanh %1005 : vector<8x128xf32>
    %1007 = arith.mulf %1002, %1006 : vector<8x128xf32>
    %c7_i32_182 = arith.constant 7 : i32
    %1008 = vector.broadcast %c7_i32_182 : i32 to vector<8x128xi32>
    %1009 = arith.cmpi eq, %2, %1008 : vector<8x128xi32>
    %1010 = arith.select %1009, %978, %946 : vector<8x128xi1>, vector<8x128xf32>
    %c0_i32_183 = arith.constant 0 : i32
    %1011 = vector.broadcast %c0_i32_183 : i32 to vector<8x128xi32>
    %1012 = arith.cmpi eq, %2, %1011 : vector<8x128xi32>
    %1013 = arith.select %1012, %1007, %949 : vector<8x128xi1>, vector<8x128xf32>
    %1014 = tpu.concatenate %1010, %1013 in 1 : vector<8x128xf32>, vector<8x128xf32> -> vector<8x256xf32>
    %c0_184 = arith.constant 0 : index
    %c0_185 = arith.constant 0 : index
    %1015 = vector.load %arg10[%c0_184, %c0_185] : memref<256x128xbf16, #tpu.memory_space<vmem>>, vector<256x128xbf16>
    %1016 = arith.truncf %1014 : vector<8x256xf32> to vector<8x256xbf16>
    %cst_186 = arith.constant dense<0.000000e+00> : vector<8x128xf32>
    %1017 = tpu.matmul %1016, %1015, %cst_186 {dimension_numbers = #tpu.dot_dimension_numbers<[1], [0], [0], [1], [0, 0, 1, 1], [], []>} : vector<8x256xbf16>, vector<256x128xbf16>, vector<8x128xf32> -> vector<8x128xf32>
    %c0_187 = arith.constant 0 : index
    %c0_188 = arith.constant 0 : index
    %1018 = vector.load %arg11[%c0_187, %c0_188] : memref<1x128xf32, #tpu.memory_space<vmem>>, vector<1x128xf32>
    %1019 = vector.broadcast %1018 : vector<1x128xf32> to vector<8x128xf32>
    %1020 = arith.addf %1017, %1019 : vector<8x128xf32>
    %cst_189 = arith.constant dense<0xFF800000> : vector<8xf32>
    %1021 = vector.multi_reduction <maximumf>, %1020, %cst_189 [1] : vector<8x128xf32> to vector<8xf32>
    %1022 = vector.shape_cast %1021 : vector<8xf32> to vector<8x1xf32>
    %1023 = vector.broadcast %1022 : vector<8x1xf32> to vector<8x128xf32>
    %1024 = arith.subf %1020, %1023 : vector<8x128xf32>
    %1025 = math.exp %1024 : vector<8x128xf32>
    %cst_190 = arith.constant dense<0.000000e+00> : vector<8xf32>
    %1026 = vector.multi_reduction <add>, %1025, %cst_190 [1] : vector<8x128xf32> to vector<8xf32>
    %1027 = vector.shape_cast %1026 : vector<8xf32> to vector<8x1xf32>
    %1028 = math.log %1027 : vector<8x1xf32>
    %1029 = vector.broadcast %1028 : vector<8x1xf32> to vector<8x128xf32>
    %1030 = arith.subf %1024, %1029 : vector<8x128xf32>
    %c0_191 = arith.constant 0 : index
    %c0_192 = arith.constant 0 : index
    %1031 = vector.load %arg12[%c0_191, %c0_192] : memref<8x128xf32, #tpu.memory_space<vmem>>, vector<8x128xf32>
    tpu.vector_store %arg12[%c0_191, %c0_192], %1030 {strides = array<i32>} : memref<8x128xf32, #tpu.memory_space<vmem>>, vector<8x128xf32>,
    return
  }
}

</mosaic_0001>

<llo_original>
// kernel: cause_detector_forward.1
$region0: #{cause_detector_forward.1}
  #allocation0 [shape = 'u32[]', space=smem, size = 0x4, offset = 0x4, fixed_abs, tag = 'smem constant byte address 0x4 - core index']
  #allocation1 [shape = 'u32[72,128]{1,0:T(1,128)}', space=vmem, size = 0x9000, scoped, tag = 'internal scratch']
  #allocation2 [shape = 'f32[64,256]{1,0:T(8,128)}', space=vmem, size = 0x10000, scoped, tag = 'scratch operand']
  %s0 = inlined_call_operand.vmem [shape: s32[8,1], index: 0, kind: input, shape index: {}]
  %s1 = inlined_call_operand.vmem [shape: bf16[64,128], index: 1, kind: input, shape index: {}]
  %s2 = inlined_call_operand.hbm [shape: bf16[128,1024], index: 2, kind: input, shape index: {}]
  %s3 = inlined_call_operand.hbm [shape: bf16[128,512], index: 3, kind: input, shape index: {}]
  %s4 = inlined_call_operand.hbm [shape: bf16[128,512], index: 4, kind: input, shape index: {}]
  %s5 = inlined_call_operand.vmem [shape: f32[1,1024], index: 5, kind: input, shape index: {}]
  %s6 = inlined_call_operand.hbm [shape: bf16[256,1024], index: 6, kind: input, shape index: {}]
  %s7 = inlined_call_operand.hbm [shape: bf16[128,512], index: 7, kind: input, shape index: {}]
  %s8 = inlined_call_operand.hbm [shape: bf16[128,512], index: 8, kind: input, shape index: {}]
  %s9 = inlined_call_operand.vmem [shape: f32[1,1024], index: 9, kind: input, shape index: {}]
  %s10 = inlined_call_operand.vmem [shape: bf16[256,128], index: 10, kind: input, shape index: {}]
  %s11 = inlined_call_operand.vmem [shape: f32[1,128], index: 11, kind: input, shape index: {}]
  %s12 = inlined_call_operand.vmem [shape: f32[8,128], index: 12, kind: output, shape index: {}]
  %s13 = sld [smem:[#allocation0]]
  $region82: #{cause_detector_forward.1} parent=0
    _
  %s15 = ssub.s32 1, %s13
  %s16 = scalar_select 0, %s15, %s13
  $region1: #{cause_detector_forward.1} parent=0
    #allocation3 [shape = 'u8[262144]{0}', space=vmem, size = 0x40000, scoped, tag = 'input window, operand 2, single buffered']
    #allocation4 [shape = 's32[1]{0}', space=sflag, size = 0x4, scoped, tag = 'scoped memory for cause_detector_forward.1']
    #allocation5 [shape = 'u8[131072]{0}', space=vmem, size = 0x20000, scoped, tag = 'input window, operand 3, single buffered']
    #allocation6 [shape = 's32[1]{0}', space=sflag, size = 0x4, scoped, tag = 'scoped memory for cause_detector_forward.1']
    #allocation7 [shape = 'u8[131072]{0}', space=vmem, size = 0x20000, scoped, tag = 'input window, operand 4, single buffered']
    #allocation8 [shape = 'u8[524288]{0}', space=vmem, size = 0x80000, scoped, tag = 'input window, operand 6, single buffered']
    #allocation9 [shape = 's32[1]{0}', space=sflag, size = 0x4, scoped, tag = 'scoped memory for cause_detector_forward.1']
    #allocation10 [shape = 'u8[131072]{0}', space=vmem, size = 0x20000, scoped, tag = 'input window, operand 7, single buffered']
    #allocation11 [shape = 'u8[131072]{0}', space=vmem, size = 0x20000, scoped, tag = 'input window, operand 8, single buffered']
    #allocation12 [shape = 's32[1]{0}', space=sflag, size = 0x4, scoped, tag = 'scoped memory for cause_detector_forward.1']
    %17 = vsyncpa [#allocation4], 0
    %18 = vsyncpa [#allocation6], 0
    %19 = vsyncpa [#allocation9], 0
    %20 = vsyncpa [#allocation12], 0
    // Predicated region
    $region2: #{cause_detector_forward.1} parent=1 // pred_check
      _
    $region3: #{cause_detector_forward.1} parent=1 // pred_check_branch
      %22 = sbr.rel (0) target = $region5
    $region4: #{cause_detector_forward.1} parent=1 // pred_region
      _
    $region5: #{cause_detector_forward.1} parent=1 // pred_fallthru
      _
    // Predicated region
    $region6: #{cause_detector_forward.1} parent=1 // pred_check
      _
    $region7: #{cause_detector_forward.1} parent=1 // pred_check_branch
      %24 = sbr.rel (0) target = $region9
    $region8: #{cause_detector_forward.1} parent=1 // pred_region
      _
    $region9: #{cause_detector_forward.1} parent=1 // pred_fallthru
      _
    // Predicated region
    $region10: #{cause_detector_forward.1} parent=1 // pred_check
      _
    $region11: #{cause_detector_forward.1} parent=1 // pred_check_branch
      %26 = sbr.rel (0) target = $region13
    $region12: #{cause_detector_forward.1} parent=1 // pred_region
      %28 = vsyncadd [#allocation4], 0
      %s29 = sshll.u32 %s2, 4
      %s30 = int_to_ptr.hbm [resolvable:$true] %s29
      %s31 = sshll.u32 [#allocation3], 4
      %s32 = int_to_ptr.vmem [resolvable:$true] %s31
      %37 = dma.hbm_to_vmem [thread:$0]  %s30, 8192, %s32, [#allocation4], 512, 512, 32
    $region13: #{cause_detector_forward.1} parent=1 // pred_fallthru
      _
    // Predicated region
    $region14: #{cause_detector_forward.1} parent=1 // pred_check
      _
    $region15: #{cause_detector_forward.1} parent=1 // pred_check_branch
      %39 = sbr.rel (0) target = $region17
    $region16: #{cause_detector_forward.1} parent=1 // pred_region
      %41 = vsyncadd [#allocation6], 0
      %s42 = sshll.u32 %s3, 4
      %s43 = int_to_ptr.hbm [resolvable:$true] %s42
      %s44 = sshll.u32 [#allocation5], 4
      %s45 = int_to_ptr.vmem [resolvable:$true] %s44
      %50 = dma.hbm_to_vmem [thread:$0]  %s43, 4096, %s45, [#allocation6], 256, 256, 16
    $region17: #{cause_detector_forward.1} parent=1 // pred_fallthru
      _
    // Predicated region
    $region18: #{cause_detector_forward.1} parent=1 // pred_check
      _
    $region19: #{cause_detector_forward.1} parent=1 // pred_check_branch
      %52 = sbr.rel (0) target = $region21
    $region20: #{cause_detector_forward.1} parent=1 // pred_region
      %54 = vsyncadd [#allocation6], 0
      %s55 = sshll.u32 %s4, 4
      %s56 = int_to_ptr.hbm [resolvable:$true] %s55
      %s57 = sshll.u32 [#allocation7], 4
      %s58 = int_to_ptr.vmem [resolvable:$true] %s57
      %63 = dma.hbm_to_vmem [thread:$0]  %s56, 4096, %s58, [#allocation6], 256, 256, 16
    $region21: #{cause_detector_forward.1} parent=1 // pred_fallthru
      _
    // Predicated region
    $region22: #{cause_detector_forward.1} parent=1 // pred_check
      _
    $region23: #{cause_detector_forward.1} parent=1 // pred_check_branch
      %65 = sbr.rel (0) target = $region25
    $region24: #{cause_detector_forward.1} parent=1 // pred_region
      _
    $region25: #{cause_detector_forward.1} parent=1 // pred_fallthru
      _
    // Predicated region
    $region26: #{cause_detector_forward.1} parent=1 // pred_check
      _
    $region27: #{cause_detector_forward.1} parent=1 // pred_check_branch
      %67 = sbr.rel (0) target = $region29
    $region28: #{cause_detector_forward.1} parent=1 // pred_region
      %69 = vsyncadd [#allocation9], 0
      %s70 = sshll.u32 %s6, 4
      %s71 = int_to_ptr.hbm [resolvable:$true] %s70
      %s72 = sshll.u32 [#allocation8], 4
      %s73 = int_to_ptr.vmem [resolvable:$true] %s72
      %78 = dma.hbm_to_vmem [thread:$0]  %s71, 16384, %s73, [#allocation9], 512, 512, 32
    $region29: #{cause_detector_forward.1} parent=1 // pred_fallthru
      _
    // Predicated region
    $region30: #{cause_detector_forward.1} parent=1 // pred_check
      _
    $region31: #{cause_detector_forward.1} parent=1 // pred_check_branch
      %80 = sbr.rel (0) target = $region33
    $region32: #{cause_detector_forward.1} parent=1 // pred_region
      %82 = vsyncadd [#allocation9], 0
      %s83 = sshll.u32 %s7, 4
      %s84 = int_to_ptr.hbm [resolvable:$true] %s83
      %s85 = sshll.u32 [#allocation10], 4
      %s86 = int_to_ptr.vmem [resolvable:$true] %s85
      %91 = dma.hbm_to_vmem [thread:$0]  %s84, 4096, %s86, [#allocation9], 256, 256, 16
    $region33: #{cause_detector_forward.1} parent=1 // pred_fallthru
      _
    // Predicated region
    $region34: #{cause_detector_forward.1} parent=1 // pred_check
      _
    $region35: #{cause_detector_forward.1} parent=1 // pred_check_branch
      %93 = sbr.rel (0) target = $region37
    $region36: #{cause_detector_forward.1} parent=1 // pred_region
      %95 = vsyncadd [#allocation12], 0
      %s96 = sshll.u32 %s8, 4
      %s97 = int_to_ptr.hbm [resolvable:$true] %s96
      %s98 = sshll.u32 [#allocation11], 4
      %s99 = int_to_ptr.vmem [resolvable:$true] %s98
      %104 = dma.hbm_to_vmem [thread:$0]  %s97, 4096, %s99, [#allocation12], 256, 256, 16
    $region37: #{cause_detector_forward.1} parent=1 // pred_fallthru
      _
    // Predicated region
    $region38: #{cause_detector_forward.1} parent=1 // pred_check
      _
    $region39: #{cause_detector_forward.1} parent=1 // pred_check_branch
      %106 = sbr.rel (0) target = $region41
    $region40: #{cause_detector_forward.1} parent=1 // pred_region
      _
    $region41: #{cause_detector_forward.1} parent=1 // pred_fallthru
      _
    // Predicated region
    $region42: #{cause_detector_forward.1} parent=1 // pred_check
      _
    $region43: #{cause_detector_forward.1} parent=1 // pred_check_branch
      %108 = sbr.rel (0) target = $region45
    $region44: #{cause_detector_forward.1} parent=1 // pred_region
      _
    $region45: #{cause_detector_forward.1} parent=1 // pred_fallthru
      _
    // Predicated region
    $region46: #{cause_detector_forward.1} parent=1 // pred_check
      _
    $region47: #{cause_detector_forward.1} parent=1 // pred_check_branch
      %110 = sbr.rel (0) target = $region49
    $region48: #{cause_detector_forward.1} parent=1 // pred_region
      _
    $region49: #{cause_detector_forward.1} parent=1 // pred_fallthru
      _
    // Predicated region
    $region50: #{cause_detector_forward.1} parent=1 // pred_check
      _
    $region51: #{cause_detector_forward.1} parent=1 // pred_check_branch
      %112 = sbr.rel (0) target = $region53
    $region52: #{cause_detector_forward.1} parent=1 // pred_region
      %114 = dma.done [#allocation4], 8192
    $region53: #{cause_detector_forward.1} parent=1 // pred_fallthru
      _
    // Predicated region
    $region54: #{cause_detector_forward.1} parent=1 // pred_check
      _
    $region55: #{cause_detector_forward.1} parent=1 // pred_check_branch
      %116 = sbr.rel (0) target = $region57
    $region56: #{cause_detector_forward.1} parent=1 // pred_region
      %118 = dma.done [#allocation6], 4096
    $region57: #{cause_detector_forward.1} parent=1 // pred_fallthru
      _
    // Predicated region
    $region58: #{cause_detector_forward.1} parent=1 // pred_check
      _
    $region59: #{cause_detector_forward.1} parent=1 // pred_check_branch
      %120 = sbr.rel (0) target = $region61
    $region60: #{cause_detector_forward.1} parent=1 // pred_region
      %122 = dma.done [#allocation6], 4096
    $region61: #{cause_detector_forward.1} parent=1 // pred_fallthru
      _
    // Predicated region
    $region62: #{cause_detector_forward.1} parent=1 // pred_check
      _
    $region63: #{cause_detector_forward.1} parent=1 // pred_check_branch
      %124 = sbr.rel (0) target = $region65
    $region64: #{cause_detector_forward.1} parent=1 // pred_region
      %126 = dma.done [#allocation9], 16384
    $region65: #{cause_detector_forward.1} parent=1 // pred_fallthru
      _
    // Predicated region
    $region66: #{cause_detector_forward.1} parent=1 // pred_check
      _
    $region67: #{cause_detector_forward.1} parent=1 // pred_check_branch
      %128 = sbr.rel (0) target = $region69
    $region68: #{cause_detector_forward.1} parent=1 // pred_region
      %130 = dma.done [#allocation9], 4096
    $region69: #{cause_detector_forward.1} parent=1 // pred_fallthru
      _
    // Predicated region
    $region70: #{cause_detector_forward.1} parent=1 // pred_check
      _
    $region71: #{cause_detector_forward.1} parent=1 // pred_check_branch
      %132 = sbr.rel (0) target = $region73
    $region72: #{cause_detector_forward.1} parent=1 // pred_region
      %134 = dma.done [#allocation12], 4096
    $region73: #{cause_detector_forward.1} parent=1 // pred_fallthru
      _
    %v136 = vld [vmem:[%s0] sm:$0xff]
    %137 = vset.pattern.permute.xlu0 0
    %138 = vperm.xlu0 %137, %v136
    %v139 = vpop.permute.xlu0 %138
    %v140 = vld [vmem:[%s1] sm:$0xf]
    %v141 = vld [vmem:[%s1 + $0x4] sm:$0xf]
    %v142 = vld [vmem:[%s1 + $0x8] sm:$0xf]
    %v143 = vld [vmem:[%s1 + $0xc] sm:$0xf]
    %v144 = vld [vmem:[%s1 + $0x10] sm:$0xf]
    %v145 = vld [vmem:[%s1 + $0x14] sm:$0xf]
    %v146 = vld [vmem:[%s1 + $0x18] sm:$0xf]
    %v147 = vld [vmem:[%s1 + $0x1c] sm:$0xf]
    %v148 = vld [vmem:[#allocation3] sm:$0xff]
    %v149 = vld [vmem:[#allocation3 + $0x8] sm:$0xff]
    %v150 = vld [vmem:[#allocation3 + $0x10] sm:$0xff]
    %v151 = vld [vmem:[#allocation3 + $0x18] sm:$0xff]
    %v152 = vld [vmem:[#allocation3 + $0x20] sm:$0xff]
    %v153 = vld [vmem:[#allocation3 + $0x28] sm:$0xff]
    %v154 = vld [vmem:[#allocation3 + $0x30] sm:$0xff]
    %v155 = vld [vmem:[#allocation3 + $0x38] sm:$0xff]
    %v156 = vld [vmem:[#allocation3 + $0x40] sm:$0xff]
    %v157 = vld [vmem:[#allocation3 + $0x48] sm:$0xff]
    %v158 = vld [vmem:[#allocation3 + $0x50] sm:$0xff]
    %v159 = vld [vmem:[#allocation3 + $0x58] sm:$0xff]
    %v160 = vld [vmem:[#allocation3 + $0x60] sm:$0xff]
    %v161 = vld [vmem:[#allocation3 + $0x68] sm:$0xff]
    %v162 = vld [vmem:[#allocation3 + $0x70] sm:$0xff]
    %v163 = vld [vmem:[#allocation3 + $0x78] sm:$0xff]
    %v164 = vld [vmem:[#allocation3 + $0x80] sm:$0xff]
    %v165 = vld [vmem:[#allocation3 + $0x88] sm:$0xff]
    %v166 = vld [vmem:[#allocation3 + $0x90] sm:$0xff]
    %v167 = vld [vmem:[#allocation3 + $0x98] sm:$0xff]
    %v168 = vld [vmem:[#allocation3 + $0xa0] sm:$0xff]
    %v169 = vld [vmem:[#allocation3 + $0xa8] sm:$0xff]
    %v170 = vld [vmem:[#allocation3 + $0xb0] sm:$0xff]
    %v171 = vld [vmem:[#allocation3 + $0xb8] sm:$0xff]
    %v172 = vld [vmem:[#allocation3 + $0xc0] sm:$0xff]
    %v173 = vld [vmem:[#allocation3 + $0xc8] sm:$0xff]
    %v174 = vld [vmem:[#allocation3 + $0xd0] sm:$0xff]
    %v175 = vld [vmem:[#allocation3 + $0xd8] sm:$0xff]
    %v176 = vld [vmem:[#allocation3 + $0xe0] sm:$0xff]
    %v177 = vld [vmem:[#allocation3 + $0xe8] sm:$0xff]
    %v178 = vld [vmem:[#allocation3 + $0xf0] sm:$0xff]
    %v179 = vld [vmem:[#allocation3 + $0xf8] sm:$0xff]
    %v180 = vld [vmem:[#allocation3 + $0x100] sm:$0xff]
    %v181 = vld [vmem:[#allocation3 + $0x108] sm:$0xff]
    %v182 = vld [vmem:[#allocation3 + $0x110] sm:$0xff]
    %v183 = vld [vmem:[#allocation3 + $0x118] sm:$0xff]
    %v184 = vld [vmem:[#allocation3 + $0x120] sm:$0xff]
    %v185 = vld [vmem:[#allocation3 + $0x128] sm:$0xff]
    %v186 = vld [vmem:[#allocation3 + $0x130] sm:$0xff]
    %v187 = vld [vmem:[#allocation3 + $0x138] sm:$0xff]
    %v188 = vld [vmem:[#allocation3 + $0x140] sm:$0xff]
    %v189 = vld [vmem:[#allocation3 + $0x148] sm:$0xff]
    %v190 = vld [vmem:[#allocation3 + $0x150] sm:$0xff]
    %v191 = vld [vmem:[#allocation3 + $0x158] sm:$0xff]
    %v192 = vld [vmem:[#allocation3 + $0x160] sm:$0xff]
    %v193 = vld [vmem:[#allocation3 + $0x168] sm:$0xff]
    %v194 = vld [vmem:[#allocation3 + $0x170] sm:$0xff]
    %v195 = vld [vmem:[#allocation3 + $0x178] sm:$0xff]
    %v196 = vld [vmem:[#allocation3 + $0x180] sm:$0xff]
    %v197 = vld [vmem:[#allocation3 + $0x188] sm:$0xff]
    %v198 = vld [vmem:[#allocation3 + $0x190] sm:$0xff]
    %v199 = vld [vmem:[#allocation3 + $0x198] sm:$0xff]
    %v200 = vld [vmem:[#allocation3 + $0x1a0] sm:$0xff]
    %v201 = vld [vmem:[#allocation3 + $0x1a8] sm:$0xff]
    %v202 = vld [vmem:[#allocation3 + $0x1b0] sm:$0xff]
    %v203 = vld [vmem:[#allocation3 + $0x1b8] sm:$0xff]
    %v204 = vld [vmem:[#allocation3 + $0x1c0] sm:$0xff]
    %v205 = vld [vmem:[#allocation3 + $0x1c8] sm:$0xff]
    %v206 = vld [vmem:[#allocation3 + $0x1d0] sm:$0xff]
    %v207 = vld [vmem:[#allocation3 + $0x1d8] sm:$0xff]
    %v208 = vld [vmem:[#allocation3 + $0x1e0] sm:$0xff]
    %v209 = vld [vmem:[#allocation3 + $0x1e8] sm:$0xff]
    %v210 = vld [vmem:[#allocation3 + $0x1f0] sm:$0xff]
    %v211 = vld [vmem:[#allocation3 + $0x1f8] sm:$0xff]
    %v212 = vld [vmem:[%s5] sm:$0xff]
    %v214 = vperm.slane %v212, 0
    %v215 = vperm.slane %v212, 1
    %v216 = vperm.slane %v212, 2
    %v217 = vperm.slane %v212, 3
    %v218 = vperm.slane %v212, 4
    %v219 = vperm.slane %v212, 5
    %v220 = vperm.slane %v212, 6
    %v221 = vperm.slane %v212, 7
    %v238 = vunpack.c.l.b16 %v140
    %v239 = vunpack.c.l.b16 %v141
    %v240 = vunpack.c.l.b16 %v142
    %v241 = vunpack.c.l.b16 %v143
    %v242 = vunpack.c.l.b16 %v144
    %v243 = vunpack.c.l.b16 %v145
    %v244 = vunpack.c.l.b16 %v146
    %v245 = vunpack.c.l.b16 %v147
    %v246 = vpack.c.b16 %v239, %v238
    %v247 = vpack.c.b16 %v241, %v240
    %v248 = vpack.c.b16 %v243, %v242
    %v249 = vpack.c.b16 %v245, %v244
    %v318 = vunpack.c.l.b16 %v148
    %v319 = vunpack.c.h.b16 %v148
    %v320 = vunpack.c.l.b16 %v149
    %v321 = vunpack.c.h.b16 %v149
    %v322 = vunpack.c.l.b16 %v150
    %v323 = vunpack.c.h.b16 %v150
    %v324 = vunpack.c.l.b16 %v151
    %v325 = vunpack.c.h.b16 %v151
    %v326 = vunpack.c.l.b16 %v152
    %v327 = vunpack.c.h.b16 %v152
    %v328 = vunpack.c.l.b16 %v153
    %v329 = vunpack.c.h.b16 %v153
    %v330 = vunpack.c.l.b16 %v154
    %v331 = vunpack.c.h.b16 %v154
    %v332 = vunpack.c.l.b16 %v155
    %v333 = vunpack.c.h.b16 %v155
    %v334 = vunpack.c.l.b16 %v156
    %v335 = vunpack.c.h.b16 %v156
    %v336 = vunpack.c.l.b16 %v157
    %v337 = vunpack.c.h.b16 %v157
    %v338 = vunpack.c.l.b16 %v158
    %v339 = vunpack.c.h.b16 %v158
    %v340 = vunpack.c.l.b16 %v159
    %v341 = vunpack.c.h.b16 %v159
    %v342 = vunpack.c.l.b16 %v160
    %v343 = vunpack.c.h.b16 %v160
    %v344 = vunpack.c.l.b16 %v161
    %v345 = vunpack.c.h.b16 %v161
    %v346 = vunpack.c.l.b16 %v162
    %v347 = vunpack.c.h.b16 %v162
    %v348 = vunpack.c.l.b16 %v163
    %v349 = vunpack.c.h.b16 %v163
    %v350 = vunpack.c.l.b16 %v164
    %v351 = vunpack.c.h.b16 %v164
    %v352 = vunpack.c.l.b16 %v165
    %v353 = vunpack.c.h.b16 %v165
    %v354 = vunpack.c.l.b16 %v166
    %v355 = vunpack.c.h.b16 %v166
    %v356 = vunpack.c.l.b16 %v167
    %v357 = vunpack.c.h.b16 %v167
    %v358 = vunpack.c.l.b16 %v168
    %v359 = vunpack.c.h.b16 %v168
    %v360 = vunpack.c.l.b16 %v169
    %v361 = vunpack.c.h.b16 %v169
    %v362 = vunpack.c.l.b16 %v170
    %v363 = vunpack.c.h.b16 %v170
    %v364 = vunpack.c.l.b16 %v171
    %v365 = vunpack.c.h.b16 %v171
    %v366 = vunpack.c.l.b16 %v172
    %v367 = vunpack.c.h.b16 %v172
    %v368 = vunpack.c.l.b16 %v173
    %v369 = vunpack.c.h.b16 %v173
    %v370 = vunpack.c.l.b16 %v174
    %v371 = vunpack.c.h.b16 %v174
    %v372 = vunpack.c.l.b16 %v175
    %v373 = vunpack.c.h.b16 %v175
    %v374 = vunpack.c.l.b16 %v176
    %v375 = vunpack.c.h.b16 %v176
    %v376 = vunpack.c.l.b16 %v177
    %v377 = vunpack.c.h.b16 %v177
    %v378 = vunpack.c.l.b16 %v178
    %v379 = vunpack.c.h.b16 %v178
    %v380 = vunpack.c.l.b16 %v179
    %v381 = vunpack.c.h.b16 %v179
    %v382 = vunpack.c.l.b16 %v180
    %v383 = vunpack.c.h.b16 %v180
    %v384 = vunpack.c.l.b16 %v181
    %v385 = vunpack.c.h.b16 %v181
    %v386 = vunpack.c.l.b16 %v182
    %v387 = vunpack.c.h.b16 %v182
    %v388 = vunpack.c.l.b16 %v183
    %v389 = vunpack.c.h.b16 %v183
    %v390 = vunpack.c.l.b16 %v184
    %v391 = vunpack.c.h.b16 %v184
    %v392 = vunpack.c.l.b16 %v185
    %v393 = vunpack.c.h.b16 %v185
    %v394 = vunpack.c.l.b16 %v186
    %v395 = vunpack.c.h.b16 %v186
    %v396 = vunpack.c.l.b16 %v187
    %v397 = vunpack.c.h.b16 %v187
    %v398 = vunpack.c.l.b16 %v188
    %v399 = vunpack.c.h.b16 %v188
    %v400 = vunpack.c.l.b16 %v189
    %v401 = vunpack.c.h.b16 %v189
    %v402 = vunpack.c.l.b16 %v190
    %v403 = vunpack.c.h.b16 %v190
    %v404 = vunpack.c.l.b16 %v191
    %v405 = vunpack.c.h.b16 %v191
    %v406 = vunpack.c.l.b16 %v192
    %v407 = vunpack.c.h.b16 %v192
    %v408 = vunpack.c.l.b16 %v193
    %v409 = vunpack.c.h.b16 %v193
    %v410 = vunpack.c.l.b16 %v194
    %v411 = vunpack.c.h.b16 %v194
    %v412 = vunpack.c.l.b16 %v195
    %v413 = vunpack.c.h.b16 %v195
    %v414 = vunpack.c.l.b16 %v196
    %v415 = vunpack.c.h.b16 %v196
    %v416 = vunpack.c.l.b16 %v197
    %v417 = vunpack.c.h.b16 %v197
    %v418 = vunpack.c.l.b16 %v198
    %v419 = vunpack.c.h.b16 %v198
    %v420 = vunpack.c.l.b16 %v199
    %v421 = vunpack.c.h.b16 %v199
    %v422 = vunpack.c.l.b16 %v200
    %v423 = vunpack.c.h.b16 %v200
    %v424 = vunpack.c.l.b16 %v201
    %v425 = vunpack.c.h.b16 %v201
    %v426 = vunpack.c.l.b16 %v202
    %v427 = vunpack.c.h.b16 %v202
    %v428 = vunpack.c.l.b16 %v203
    %v429 = vunpack.c.h.b16 %v203
    %v430 = vunpack.c.l.b16 %v204
    %v431 = vunpack.c.h.b16 %v204
    %v432 = vunpack.c.l.b16 %v205
    %v433 = vunpack.c.h.b16 %v205
    %v434 = vunpack.c.l.b16 %v206
    %v435 = vunpack.c.h.b16 %v206
    %v436 = vunpack.c.l.b16 %v207
    %v437 = vunpack.c.h.b16 %v207
    %v438 = vunpack.c.l.b16 %v208
    %v439 = vunpack.c.h.b16 %v208
    %v440 = vunpack.c.l.b16 %v209
    %v441 = vunpack.c.h.b16 %v209
    %v442 = vunpack.c.l.b16 %v210
    %v443 = vunpack.c.h.b16 %v210
    %v444 = vunpack.c.l.b16 %v211
    %v445 = vunpack.c.h.b16 %v211
    %v446 = vpack.c.b16 %v326, %v318
    %v447 = vpack.c.b16 %v327, %v319
    %v448 = vpack.c.b16 %v328, %v320
    %v449 = vpack.c.b16 %v329, %v321
    %v450 = vpack.c.b16 %v330, %v322
    %v451 = vpack.c.b16 %v331, %v323
    %v452 = vpack.c.b16 %v332, %v324
    %v453 = vpack.c.b16 %v333, %v325
    %v454 = vpack.c.b16 %v342, %v334
    %v455 = vpack.c.b16 %v343, %v335
    %v456 = vpack.c.b16 %v344, %v336
    %v457 = vpack.c.b16 %v345, %v337
    %v458 = vpack.c.b16 %v346, %v338
    %v459 = vpack.c.b16 %v347, %v339
    %v460 = vpack.c.b16 %v348, %v340
    %v461 = vpack.c.b16 %v349, %v341
    %v462 = vpack.c.b16 %v358, %v350
    %v463 = vpack.c.b16 %v359, %v351
    %v464 = vpack.c.b16 %v360, %v352
    %v465 = vpack.c.b16 %v361, %v353
    %v466 = vpack.c.b16 %v362, %v354
    %v467 = vpack.c.b16 %v363, %v355
    %v468 = vpack.c.b16 %v364, %v356
    %v469 = vpack.c.b16 %v365, %v357
    %v470 = vpack.c.b16 %v374, %v366
    %v471 = vpack.c.b16 %v375, %v367
    %v472 = vpack.c.b16 %v376, %v368
    %v473 = vpack.c.b16 %v377, %v369
    %v474 = vpack.c.b16 %v378, %v370
    %v475 = vpack.c.b16 %v379, %v371
    %v476 = vpack.c.b16 %v380, %v372
    %v477 = vpack.c.b16 %v381, %v373
    %v478 = vpack.c.b16 %v390, %v382
    %v479 = vpack.c.b16 %v391, %v383
    %v480 = vpack.c.b16 %v392, %v384
    %v481 = vpack.c.b16 %v393, %v385
    %v482 = vpack.c.b16 %v394, %v386
    %v483 = vpack.c.b16 %v395, %v387
    %v484 = vpack.c.b16 %v396, %v388
    %v485 = vpack.c.b16 %v397, %v389
    %v486 = vpack.c.b16 %v406, %v398
    %v487 = vpack.c.b16 %v407, %v399
    %v488 = vpack.c.b16 %v408, %v400
    %v489 = vpack.c.b16 %v409, %v401
    %v490 = vpack.c.b16 %v410, %v402
    %v491 = vpack.c.b16 %v411, %v403
    %v492 = vpack.c.b16 %v412, %v404
    %v493 = vpack.c.b16 %v413, %v405
    %v494 = vpack.c.b16 %v422, %v414
    %v495 = vpack.c.b16 %v423, %v415
    %v496 = vpack.c.b16 %v424, %v416
    %v497 = vpack.c.b16 %v425, %v417
    %v498 = vpack.c.b16 %v426, %v418
    %v499 = vpack.c.b16 %v427, %v419
    %v500 = vpack.c.b16 %v428, %v420
    %v501 = vpack.c.b16 %v429, %v421
    %v502 = vpack.c.b16 %v438, %v430
    %v503 = vpack.c.b16 %v439, %v431
    %v504 = vpack.c.b16 %v440, %v432
    %v505 = vpack.c.b16 %v441, %v433
    %v506 = vpack.c.b16 %v442, %v434
    %v507 = vpack.c.b16 %v443, %v435
    %v508 = vpack.c.b16 %v444, %v436
    %v509 = vpack.c.b16 %v445, %v437
    %574 = vmatpush.bf16.msra.mxu0 %v502
    %575 = vmatpush.bf16.msra.mxu0 %v494
    %576 = vmatpush.bf16.msra.mxu0 %v486
    %577 = vmatpush.bf16.msra.mxu0 %v478
    %578 = vmatpush.bf16.msra.mxu0 %v470
    %579 = vmatpush.bf16.msra.mxu0 %v462
    %580 = vmatpush.bf16.msra.mxu0 %v454
    %581 = vmatpush.bf16.msra.mxu0 %v446
    %582 = vmatmul.bf16.gmra.mxu0 %v246
    %v583 = vpop.f32.mrf.mxu0
    %v584 = vadd.f32 %v214, %v583
    %v585 = vpop.f32.mrf.mxu0
    %v586 = vadd.f32 %v214, %v585
    %587 = vmatmul.bf16.gmra.mxu0 %v247
    %v588 = vpop.f32.mrf.mxu0
    %v589 = vadd.f32 %v214, %v588
    %v590 = vpop.f32.mrf.mxu0
    %v591 = vadd.f32 %v214, %v590
    %592 = vmatmul.bf16.gmra.mxu0 %v248
    %v593 = vpop.f32.mrf.mxu0
    %v594 = vadd.f32 %v214, %v593
    %v595 = vpop.f32.mrf.mxu0
    %v596 = vadd.f32 %v214, %v595
    %597 = vmatmul.bf16.gmra.mxu0 %v249
    %v598 = vpop.f32.mrf.mxu0
    %v599 = vadd.f32 %v214, %v598
    %v600 = vpop.f32.mrf.mxu0
    %v601 = vadd.f32 %v214, %v600
    %602 = vdwg.mxu0
    %603 = vmatpush.bf16.msra.mxu0 %v503
    %604 = vmatpush.bf16.msra.mxu0 %v495
    %605 = vmatpush.bf16.msra.mxu0 %v487
    %606 = vmatpush.bf16.msra.mxu0 %v479
    %607 = vmatpush.bf16.msra.mxu0 %v471
    %608 = vmatpush.bf16.msra.mxu0 %v463
    %609 = vmatpush.bf16.msra.mxu0 %v455
    %610 = vmatpush.bf16.msra.mxu0 %v447
    %611 = vmatmul.bf16.gmra.mxu0 %v246
    %v612 = vpop.f32.mrf.mxu0
    %v613 = vadd.f32 %v215, %v612
    %v614 = vpop.f32.mrf.mxu0
    %v615 = vadd.f32 %v215, %v614
    %616 = vmatmul.bf16.gmra.mxu0 %v247
    %v617 = vpop.f32.mrf.mxu0
    %v618 = vadd.f32 %v215, %v617
    %v619 = vpop.f32.mrf.mxu0
    %v620 = vadd.f32 %v215, %v619
    %621 = vmatmul.bf16.gmra.mxu0 %v248
    %v622 = vpop.f32.mrf.mxu0
    %v623 = vadd.f32 %v215, %v622
    %v624 = vpop.f32.mrf.mxu0
    %v625 = vadd.f32 %v215, %v624
    %626 = vmatmul.bf16.gmra.mxu0 %v249
    %v627 = vpop.f32.mrf.mxu0
    %v628 = vadd.f32 %v215, %v627
    %v629 = vpop.f32.mrf.mxu0
    %v630 = vadd.f32 %v215, %v629
    %631 = vdwg.mxu0
    %632 = vmatpush.bf16.msra.mxu0 %v504
    %633 = vmatpush.bf16.msra.mxu0 %v496
    %634 = vmatpush.bf16.msra.mxu0 %v488
    %635 = vmatpush.bf16.msra.mxu0 %v480
    %636 = vmatpush.bf16.msra.mxu0 %v472
    %637 = vmatpush.bf16.msra.mxu0 %v464
    %638 = vmatpush.bf16.msra.mxu0 %v456
    %639 = vmatpush.bf16.msra.mxu0 %v448
    %640 = vmatmul.bf16.gmra.mxu0 %v246
    %v641 = vpop.f32.mrf.mxu0
    %v642 = vadd.f32 %v216, %v641
    %v643 = vpop.f32.mrf.mxu0
    %v644 = vadd.f32 %v216, %v643
    %645 = vmatmul.bf16.gmra.mxu0 %v247
    %v646 = vpop.f32.mrf.mxu0
    %v647 = vadd.f32 %v216, %v646
    %v648 = vpop.f32.mrf.mxu0
    %v649 = vadd.f32 %v216, %v648
    %650 = vmatmul.bf16.gmra.mxu0 %v248
    %v651 = vpop.f32.mrf.mxu0
    %v652 = vadd.f32 %v216, %v651
    %v653 = vpop.f32.mrf.mxu0
    %v654 = vadd.f32 %v216, %v653
    %655 = vmatmul.bf16.gmra.mxu0 %v249
    %v656 = vpop.f32.mrf.mxu0
    %v657 = vadd.f32 %v216, %v656
    %v658 = vpop.f32.mrf.mxu0
    %v659 = vadd.f32 %v216, %v658
    %660 = vdwg.mxu0
    %661 = vmatpush.bf16.msra.mxu0 %v505
    %662 = vmatpush.bf16.msra.mxu0 %v497
    %663 = vmatpush.bf16.msra.mxu0 %v489
    %664 = vmatpush.bf16.msra.mxu0 %v481
    %665 = vmatpush.bf16.msra.mxu0 %v473
    %666 = vmatpush.bf16.msra.mxu0 %v465
    %667 = vmatpush.bf16.msra.mxu0 %v457
    %668 = vmatpush.bf16.msra.mxu0 %v449
    %669 = vmatmul.bf16.gmra.mxu0 %v246
    %v670 = vpop.f32.mrf.mxu0
    %v671 = vadd.f32 %v217, %v670
    %v672 = vpop.f32.mrf.mxu0
    %v673 = vadd.f32 %v217, %v672
    %674 = vmatmul.bf16.gmra.mxu0 %v247
    %v675 = vpop.f32.mrf.mxu0
    %v676 = vadd.f32 %v217, %v675
    %v677 = vpop.f32.mrf.mxu0
    %v678 = vadd.f32 %v217, %v677
    %679 = vmatmul.bf16.gmra.mxu0 %v248
    %v680 = vpop.f32.mrf.mxu0
    %v681 = vadd.f32 %v217, %v680
    %v682 = vpop.f32.mrf.mxu0
    %v683 = vadd.f32 %v217, %v682
    %684 = vmatmul.bf16.gmra.mxu0 %v249
    %v685 = vpop.f32.mrf.mxu0
    %v686 = vadd.f32 %v217, %v685
    %v687 = vpop.f32.mrf.mxu0
    %v688 = vadd.f32 %v217, %v687
    %689 = vdwg.mxu0
    %690 = vmatpush.bf16.msra.mxu0 %v506
    %691 = vmatpush.bf16.msra.mxu0 %v498
    %692 = vmatpush.bf16.msra.mxu0 %v490
    %693 = vmatpush.bf16.msra.mxu0 %v482
    %694 = vmatpush.bf16.msra.mxu0 %v474
    %695 = vmatpush.bf16.msra.mxu0 %v466
    %696 = vmatpush.bf16.msra.mxu0 %v458
    %697 = vmatpush.bf16.msra.mxu0 %v450
    %698 = vmatmul.bf16.gmra.mxu0 %v246
    %v699 = vpop.f32.mrf.mxu0
    %v700 = vadd.f32 %v218, %v699
    %v701 = vpop.f32.mrf.mxu0
    %v702 = vadd.f32 %v218, %v701
    %703 = vmatmul.bf16.gmra.mxu0 %v247
    %v704 = vpop.f32.mrf.mxu0
    %v705 = vadd.f32 %v218, %v704
    %v706 = vpop.f32.mrf.mxu0
    %v707 = vadd.f32 %v218, %v706
    %708 = vmatmul.bf16.gmra.mxu0 %v248
    %v709 = vpop.f32.mrf.mxu0
    %v710 = vadd.f32 %v218, %v709
    %v711 = vpop.f32.mrf.mxu0
    %v712 = vadd.f32 %v218, %v711
    %713 = vmatmul.bf16.gmra.mxu0 %v249
    %v714 = vpop.f32.mrf.mxu0
    %v715 = vadd.f32 %v218, %v714
    %v716 = vpop.f32.mrf.mxu0
    %v717 = vadd.f32 %v218, %v716
    %718 = vdwg.mxu0
    %719 = vmatpush.bf16.msra.mxu0 %v507
    %720 = vmatpush.bf16.msra.mxu0 %v499
    %721 = vmatpush.bf16.msra.mxu0 %v491
    %722 = vmatpush.bf16.msra.mxu0 %v483
    %723 = vmatpush.bf16.msra.mxu0 %v475
    %724 = vmatpush.bf16.msra.mxu0 %v467
    %725 = vmatpush.bf16.msra.mxu0 %v459
    %726 = vmatpush.bf16.msra.mxu0 %v451
    %727 = vmatmul.bf16.gmra.mxu0 %v246
    %v728 = vpop.f32.mrf.mxu0
    %v729 = vadd.f32 %v219, %v728
    %v730 = vpop.f32.mrf.mxu0
    %v731 = vadd.f32 %v219, %v730
    %732 = vmatmul.bf16.gmra.mxu0 %v247
    %v733 = vpop.f32.mrf.mxu0
    %v734 = vadd.f32 %v219, %v733
    %v735 = vpop.f32.mrf.mxu0
    %v736 = vadd.f32 %v219, %v735
    %737 = vmatmul.bf16.gmra.mxu0 %v248
    %v738 = vpop.f32.mrf.mxu0
    %v739 = vadd.f32 %v219, %v738
    %v740 = vpop.f32.mrf.mxu0
    %v741 = vadd.f32 %v219, %v740
    %742 = vmatmul.bf16.gmra.mxu0 %v249
    %v743 = vpop.f32.mrf.mxu0
    %v744 = vadd.f32 %v219, %v743
    %v745 = vpop.f32.mrf.mxu0
    %v746 = vadd.f32 %v219, %v745
    %747 = vdwg.mxu0
    %748 = vmatpush.bf16.msra.mxu0 %v508
    %749 = vmatpush.bf16.msra.mxu0 %v500
    %750 = vmatpush.bf16.msra.mxu0 %v492
    %751 = vmatpush.bf16.msra.mxu0 %v484
    %752 = vmatpush.bf16.msra.mxu0 %v476
    %753 = vmatpush.bf16.msra.mxu0 %v468
    %754 = vmatpush.bf16.msra.mxu0 %v460
    %755 = vmatpush.bf16.msra.mxu0 %v452
    %756 = vmatmul.bf16.gmra.mxu0 %v246
    %v757 = vpop.f32.mrf.mxu0
    %v758 = vadd.f32 %v220, %v757
    %v759 = vpop.f32.mrf.mxu0
    %v760 = vadd.f32 %v220, %v759
    %761 = vmatmul.bf16.gmra.mxu0 %v247
    %v762 = vpop.f32.mrf.mxu0
    %v763 = vadd.f32 %v220, %v762
    %v764 = vpop.f32.mrf.mxu0
    %v765 = vadd.f32 %v220, %v764
    %766 = vmatmul.bf16.gmra.mxu0 %v248
    %v767 = vpop.f32.mrf.mxu0
    %v768 = vadd.f32 %v220, %v767
    %v769 = vpop.f32.mrf.mxu0
    %v770 = vadd.f32 %v220, %v769
    %771 = vmatmul.bf16.gmra.mxu0 %v249
    %v772 = vpop.f32.mrf.mxu0
    %v773 = vadd.f32 %v220, %v772
    %v774 = vpop.f32.mrf.mxu0
    %v775 = vadd.f32 %v220, %v774
    %776 = vdwg.mxu0
    %777 = vmatpush.bf16.msra.mxu0 %v509
    %778 = vmatpush.bf16.msra.mxu0 %v501
    %779 = vmatpush.bf16.msra.mxu0 %v493
    %780 = vmatpush.bf16.msra.mxu0 %v485
    %781 = vmatpush.bf16.msra.mxu0 %v477
    %782 = vmatpush.bf16.msra.mxu0 %v469
    %783 = vmatpush.bf16.msra.mxu0 %v461
    %784 = vmatpush.bf16.msra.mxu0 %v453
    %785 = vmatmul.bf16.gmra.mxu0 %v246
    %v786 = vpop.f32.mrf.mxu0
    %v787 = vadd.f32 %v221, %v786
    %v788 = vpop.f32.mrf.mxu0
    %v789 = vadd.f32 %v221, %v788
    %790 = vmatmul.bf16.gmra.mxu0 %v247
    %v791 = vpop.f32.mrf.mxu0
    %v792 = vadd.f32 %v221, %v791
    %v793 = vpop.f32.mrf.mxu0
    %v794 = vadd.f32 %v221, %v793
    %795 = vmatmul.bf16.gmra.mxu0 %v248
    %v796 = vpop.f32.mrf.mxu0
    %v797 = vadd.f32 %v221, %v796
    %v798 = vpop.f32.mrf.mxu0
    %v799 = vadd.f32 %v221, %v798
    %800 = vmatmul.bf16.gmra.mxu0 %v249
    %v801 = vpop.f32.mrf.mxu0
    %v802 = vadd.f32 %v221, %v801
    %v803 = vpop.f32.mrf.mxu0
    %v804 = vadd.f32 %v221, %v803
    %805 = vdwg.mxu0
    %v806 = vld [vmem:[#allocation5] sm:$0xff]
    %v807 = vld [vmem:[#allocation5 + $0x8] sm:$0xff]
    %v808 = vld [vmem:[#allocation5 + $0x10] sm:$0xff]
    %v809 = vld [vmem:[#allocation5 + $0x18] sm:$0xff]
    %v810 = vld [vmem:[#allocation5 + $0x20] sm:$0xff]
    %v811 = vld [vmem:[#allocation5 + $0x28] sm:$0xff]
    %v812 = vld [vmem:[#allocation5 + $0x30] sm:$0xff]
    %v813 = vld [vmem:[#allocation5 + $0x38] sm:$0xff]
    %v814 = vld [vmem:[#allocation5 + $0x40] sm:$0xff]
    %v815 = vld [vmem:[#allocation5 + $0x48] sm:$0xff]
    %v816 = vld [vmem:[#allocation5 + $0x50] sm:$0xff]
    %v817 = vld [vmem:[#allocation5 + $0x58] sm:$0xff]
    %v818 = vld [vmem:[#allocation5 + $0x60] sm:$0xff]
    %v819 = vld [vmem:[#allocation5 + $0x68] sm:$0xff]
    %v820 = vld [vmem:[#allocation5 + $0x70] sm:$0xff]
    %v821 = vld [vmem:[#allocation5 + $0x78] sm:$0xff]
    %v822 = vld [vmem:[#allocation5 + $0x80] sm:$0xff]
    %v823 = vld [vmem:[#allocation5 + $0x88] sm:$0xff]
    %v824 = vld [vmem:[#allocation5 + $0x90] sm:$0xff]
    %v825 = vld [vmem:[#allocation5 + $0x98] sm:$0xff]
    %v826 = vld [vmem:[#allocation5 + $0xa0] sm:$0xff]
    %v827 = vld [vmem:[#allocation5 + $0xa8] sm:$0xff]
    %v828 = vld [vmem:[#allocation5 + $0xb0] sm:$0xff]
    %v829 = vld [vmem:[#allocation5 + $0xb8] sm:$0xff]
    %v830 = vld [vmem:[#allocation5 + $0xc0] sm:$0xff]
    %v831 = vld [vmem:[#allocation5 + $0xc8] sm:$0xff]
    %v832 = vld [vmem:[#allocation5 + $0xd0] sm:$0xff]
    %v833 = vld [vmem:[#allocation5 + $0xd8] sm:$0xff]
    %v834 = vld [vmem:[#allocation5 + $0xe0] sm:$0xff]
    %v835 = vld [vmem:[#allocation5 + $0xe8] sm:$0xff]
    %v836 = vld [vmem:[#allocation5 + $0xf0] sm:$0xff]
    %v837 = vld [vmem:[#allocation5 + $0xf8] sm:$0xff]
    %v838 = vld [vmem:[#allocation7] sm:$0xff]
    %v839 = vld [vmem:[#allocation7 + $0x8] sm:$0xff]
    %v840 = vld [vmem:[#allocation7 + $0x10] sm:$0xff]
    %v841 = vld [vmem:[#allocation7 + $0x18] sm:$0xff]
    %v842 = vld [vmem:[#allocation7 + $0x20] sm:$0xff]
    %v843 = vld [vmem:[#allocation7 + $0x28] sm:$0xff]
    %v844 = vld [vmem:[#allocation7 + $0x30] sm:$0xff]
    %v845 = vld [vmem:[#allocation7 + $0x38] sm:$0xff]
    %v846 = vld [vmem:[#allocation7 + $0x40] sm:$0xff]
    %v847 = vld [vmem:[#allocation7 + $0x48] sm:$0xff]
    %v848 = vld [vmem:[#allocation7 + $0x50] sm:$0xff]
    %v849 = vld [vmem:[#allocation7 + $0x58] sm:$0xff]
    %v850 = vld [vmem:[#allocation7 + $0x60] sm:$0xff]
    %v851 = vld [vmem:[#allocation7 + $0x68] sm:$0xff]
    %v852 = vld [vmem:[#allocation7 + $0x70] sm:$0xff]
    %v853 = vld [vmem:[#allocation7 + $0x78] sm:$0xff]
    %v854 = vld [vmem:[#allocation7 + $0x80] sm:$0xff]
    %v855 = vld [vmem:[#allocation7 + $0x88] sm:$0xff]
    %v856 = vld [vmem:[#allocation7 + $0x90] sm:$0xff]
    %v857 = vld [vmem:[#allocation7 + $0x98] sm:$0xff]
    %v858 = vld [vmem:[#allocation7 + $0xa0] sm:$0xff]
    %v859 = vld [vmem:[#allocation7 + $0xa8] sm:$0xff]
    %v860 = vld [vmem:[#allocation7 + $0xb0] sm:$0xff]
    %v861 = vld [vmem:[#allocation7 + $0xb8] sm:$0xff]
    %v862 = vld [vmem:[#allocation7 + $0xc0] sm:$0xff]
    %v863 = vld [vmem:[#allocation7 + $0xc8] sm:$0xff]
    %v864 = vld [vmem:[#allocation7 + $0xd0] sm:$0xff]
    %v865 = vld [vmem:[#allocation7 + $0xd8] sm:$0xff]
    %v866 = vld [vmem:[#allocation7 + $0xe0] sm:$0xff]
    %v867 = vld [vmem:[#allocation7 + $0xe8] sm:$0xff]
    %v868 = vld [vmem:[#allocation7 + $0xf0] sm:$0xff]
    %v869 = vld [vmem:[#allocation7 + $0xf8] sm:$0xff]
    %v902 = vunpack.c.l.b16 %v806
    %v903 = vunpack.c.h.b16 %v806
    %v904 = vunpack.c.l.b16 %v807
    %v905 = vunpack.c.h.b16 %v807
    %v906 = vunpack.c.l.b16 %v808
    %v907 = vunpack.c.h.b16 %v808
    %v908 = vunpack.c.l.b16 %v809
    %v909 = vunpack.c.h.b16 %v809
    %v910 = vunpack.c.l.b16 %v810
    %v911 = vunpack.c.h.b16 %v810
    %v912 = vunpack.c.l.b16 %v811
    %v913 = vunpack.c.h.b16 %v811
    %v914 = vunpack.c.l.b16 %v812
    %v915 = vunpack.c.h.b16 %v812
    %v916 = vunpack.c.l.b16 %v813
    %v917 = vunpack.c.h.b16 %v813
    %v918 = vunpack.c.l.b16 %v814
    %v919 = vunpack.c.h.b16 %v814
    %v920 = vunpack.c.l.b16 %v815
    %v921 = vunpack.c.h.b16 %v815
    %v922 = vunpack.c.l.b16 %v816
    %v923 = vunpack.c.h.b16 %v816
    %v924 = vunpack.c.l.b16 %v817
    %v925 = vunpack.c.h.b16 %v817
    %v926 = vunpack.c.l.b16 %v818
    %v927 = vunpack.c.h.b16 %v818
    %v928 = vunpack.c.l.b16 %v819
    %v929 = vunpack.c.h.b16 %v819
    %v930 = vunpack.c.l.b16 %v820
    %v931 = vunpack.c.h.b16 %v820
    %v932 = vunpack.c.l.b16 %v821
    %v933 = vunpack.c.h.b16 %v821
    %v934 = vunpack.c.l.b16 %v822
    %v935 = vunpack.c.h.b16 %v822
    %v936 = vunpack.c.l.b16 %v823
    %v937 = vunpack.c.h.b16 %v823
    %v938 = vunpack.c.l.b16 %v824
    %v939 = vunpack.c.h.b16 %v824
    %v940 = vunpack.c.l.b16 %v825
    %v941 = vunpack.c.h.b16 %v825
    %v942 = vunpack.c.l.b16 %v826
    %v943 = vunpack.c.h.b16 %v826
    %v944 = vunpack.c.l.b16 %v827
    %v945 = vunpack.c.h.b16 %v827
    %v946 = vunpack.c.l.b16 %v828
    %v947 = vunpack.c.h.b16 %v828
    %v948 = vunpack.c.l.b16 %v829
    %v949 = vunpack.c.h.b16 %v829
    %v950 = vunpack.c.l.b16 %v830
    %v951 = vunpack.c.h.b16 %v830
    %v952 = vunpack.c.l.b16 %v831
    %v953 = vunpack.c.h.b16 %v831
    %v954 = vunpack.c.l.b16 %v832
    %v955 = vunpack.c.h.b16 %v832
    %v956 = vunpack.c.l.b16 %v833
    %v957 = vunpack.c.h.b16 %v833
    %v958 = vunpack.c.l.b16 %v834
    %v959 = vunpack.c.h.b16 %v834
    %v960 = vunpack.c.l.b16 %v835
    %v961 = vunpack.c.h.b16 %v835
    %v962 = vunpack.c.l.b16 %v836
    %v963 = vunpack.c.h.b16 %v836
    %v964 = vunpack.c.l.b16 %v837
    %v965 = vunpack.c.h.b16 %v837
    %v966 = vpack.c.b16 %v906, %v902
    %v967 = vpack.c.b16 %v907, %v903
    %v968 = vpack.c.b16 %v908, %v904
    %v969 = vpack.c.b16 %v909, %v905
    %v970 = vpack.c.b16 %v914, %v910
    %v971 = vpack.c.b16 %v915, %v911
    %v972 = vpack.c.b16 %v916, %v912
    %v973 = vpack.c.b16 %v917, %v913
    %v974 = vpack.c.b16 %v922, %v918
    %v975 = vpack.c.b16 %v923, %v919
    %v976 = vpack.c.b16 %v924, %v920
    %v977 = vpack.c.b16 %v925, %v921
    %v978 = vpack.c.b16 %v930, %v926
    %v979 = vpack.c.b16 %v931, %v927
    %v980 = vpack.c.b16 %v932, %v928
    %v981 = vpack.c.b16 %v933, %v929
    %v982 = vpack.c.b16 %v938, %v934
    %v983 = vpack.c.b16 %v939, %v935
    %v984 = vpack.c.b16 %v940, %v936
    %v985 = vpack.c.b16 %v941, %v937
    %v986 = vpack.c.b16 %v946, %v942
    %v987 = vpack.c.b16 %v947, %v943
    %v988 = vpack.c.b16 %v948, %v944
    %v989 = vpack.c.b16 %v949, %v945
    %v990 = vpack.c.b16 %v954, %v950
    %v991 = vpack.c.b16 %v955, %v951
    %v992 = vpack.c.b16 %v956, %v952
    %v993 = vpack.c.b16 %v957, %v953
    %v994 = vpack.c.b16 %v962, %v958
    %v995 = vpack.c.b16 %v963, %v959
    %v996 = vpack.c.b16 %v964, %v960
    %v997 = vpack.c.b16 %v965, %v961
    %1030 = vmatpush.bf16.msra.mxu0 %v994
    %1031 = vmatpush.bf16.msra.mxu0 %v990
    %1032 = vmatpush.bf16.msra.mxu0 %v986
    %1033 = vmatpush.bf16.msra.mxu0 %v982
    %1034 = vmatpush.bf16.msra.mxu0 %v978
    %1035 = vmatpush.bf16.msra.mxu0 %v974
    %1036 = vmatpush.bf16.msra.mxu0 %v970
    %1037 = vmatpush.bf16.msra.mxu0 %v966
    %1038 = vmatmul.bf16.gmra.mxu0 0
    %v1039 = vpop.f32.mrf.mxu0
    %v1040 = vadd.f32 0.0, %v1039
    %v1041 = vpop.f32.mrf.mxu0
    %1042 = vdwg.mxu0
    %1043 = vmatpush.bf16.msra.mxu0 %v995
    %1044 = vmatpush.bf16.msra.mxu0 %v991
    %1045 = vmatpush.bf16.msra.mxu0 %v987
    %1046 = vmatpush.bf16.msra.mxu0 %v983
    %1047 = vmatpush.bf16.msra.mxu0 %v979
    %1048 = vmatpush.bf16.msra.mxu0 %v975
    %1049 = vmatpush.bf16.msra.mxu0 %v971
    %1050 = vmatpush.bf16.msra.mxu0 %v967
    %1051 = vmatmul.bf16.gmra.mxu0 0
    %v1052 = vpop.f32.mrf.mxu0
    %v1053 = vadd.f32 0.0, %v1052
    %v1054 = vpop.f32.mrf.mxu0
    %1055 = vdwg.mxu0
    %1056 = vmatpush.bf16.msra.mxu0 %v996
    %1057 = vmatpush.bf16.msra.mxu0 %v992
    %1058 = vmatpush.bf16.msra.mxu0 %v988
    %1059 = vmatpush.bf16.msra.mxu0 %v984
    %1060 = vmatpush.bf16.msra.mxu0 %v980
    %1061 = vmatpush.bf16.msra.mxu0 %v976
    %1062 = vmatpush.bf16.msra.mxu0 %v972
    %1063 = vmatpush.bf16.msra.mxu0 %v968
    %1064 = vmatmul.bf16.gmra.mxu0 0
    %v1065 = vpop.f32.mrf.mxu0
    %v1066 = vadd.f32 0.0, %v1065
    %v1067 = vpop.f32.mrf.mxu0
    %1068 = vdwg.mxu0
    %1069 = vmatpush.bf16.msra.mxu0 %v997
    %1070 = vmatpush.bf16.msra.mxu0 %v993
    %1071 = vmatpush.bf16.msra.mxu0 %v989
    %1072 = vmatpush.bf16.msra.mxu0 %v985
    %1073 = vmatpush.bf16.msra.mxu0 %v981
    %1074 = vmatpush.bf16.msra.mxu0 %v977
    %1075 = vmatpush.bf16.msra.mxu0 %v973
    %1076 = vmatpush.bf16.msra.mxu0 %v969
    %1077 = vmatmul.bf16.gmra.mxu0 0
    %v1078 = vpop.f32.mrf.mxu0
    %v1079 = vadd.f32 0.0, %v1078
    %v1080 = vpop.f32.mrf.mxu0
    %1081 = vdwg.mxu0
    %v1082 = vadd.f32 %v584, %v1040
    %v1083 = vadd.f32 %v613, %v1053
    %v1084 = vadd.f32 %v642, %v1066
    %v1085 = vadd.f32 %v671, %v1079
    %v1086 = vxor.u32 %v1082, 2147483648
    %v1087 = vmul.f32 %v1086, 1.442695
    %v1088 = vpow.pop %v1087
    %v1089 = vadd.f32 %v1088, 1.0
    %v1090 = vrcp.pop %v1089
    %v1091 = vmul.f32 %v1089, %v1090
    %v1092 = vsub.f32 1.0, %v1091
    %v1093 = vmul.f32 %v1090, %v1092
    %v1094 = vadd.f32 %v1090, %v1093
    %vm1095 = vweird.f32 %v1089
    %vm1096 = vweird.f32 %v1090
    %vm1097 = vmor %vm1095, %vm1096
    %v1098 = vsel %vm1097, %v1090, %v1094
    %v1099 = vand.u32 2147483647, %v1089
    %vm1100 = vcmp.eq.f32.partialorder %v1099, 8.507059e+37
    %v1101 = vand.u32 %v1089, 2147483648
    %v1102 = vor.u32 1.1754944e-38, %v1101
    %v1103 = vsel %vm1100, %v1102, %v1098
    %v1104 = vmul.f32 1.0, %v1103
    %v1105 = vxor.u32 %v1083, 2147483648
    %v1106 = vmul.f32 %v1105, 1.442695
    %v1107 = vpow.pop %v1106
    %v1108 = vadd.f32 %v1107, 1.0
    %v1109 = vrcp.pop %v1108
    %v1110 = vmul.f32 %v1108, %v1109
    %v1111 = vsub.f32 1.0, %v1110
    %v1112 = vmul.f32 %v1109, %v1111
    %v1113 = vadd.f32 %v1109, %v1112
    %vm1114 = vweird.f32 %v1108
    %vm1115 = vweird.f32 %v1109
    %vm1116 = vmor %vm1114, %vm1115
    %v1117 = vsel %vm1116, %v1109, %v1113
    %v1118 = vand.u32 2147483647, %v1108
    %vm1119 = vcmp.eq.f32.partialorder %v1118, 8.507059e+37
    %v1120 = vand.u32 %v1108, 2147483648
    %v1121 = vor.u32 1.1754944e-38, %v1120
    %v1122 = vsel %vm1119, %v1121, %v1117
    %v1123 = vmul.f32 1.0, %v1122
    %v1124 = vtanh.pop %v1084
    %v1125 = vxor.u32 %v1085, 2147483648
    %v1126 = vmul.f32 %v1125, 1.442695
    %v1127 = vpow.pop %v1126
    %v1128 = vadd.f32 %v1127, 1.0
    %v1129 = vrcp.pop %v1128
    %v1130 = vmul.f32 %v1128, %v1129
    %v1131 = vsub.f32 1.0, %v1130
    %v1132 = vmul.f32 %v1129, %v1131
    %v1133 = vadd.f32 %v1129, %v1132
    %vm1134 = vweird.f32 %v1128
    %vm1135 = vweird.f32 %v1129
    %vm1136 = vmor %vm1134, %vm1135
    %v1137 = vsel %vm1136, %v1129, %v1133
    %v1138 = vand.u32 2147483647, %v1128
    %vm1139 = vcmp.eq.f32.partialorder %v1138, 8.507059e+37
    %v1140 = vand.u32 %v1128, 2147483648
    %v1141 = vor.u32 1.1754944e-38, %v1140
    %v1142 = vsel %vm1139, %v1141, %v1137
    %v1143 = vmul.f32 1.0, %v1142
    %v1144 = vmul.f32 %v1123, 0.0
    %v1145 = vmul.f32 %v1104, %v1124
    %v1146 = vadd.f32 %v1144, %v1145
    %v1147 = vtanh.pop %v1146
    %v1148 = vmul.f32 %v1143, %v1147
    %v1181 = vunpack.c.l.b16 %v838
    %v1182 = vunpack.c.h.b16 %v838
    %v1183 = vunpack.c.l.b16 %v839
    %v1184 = vunpack.c.h.b16 %v839
    %v1185 = vunpack.c.l.b16 %v840
    %v1186 = vunpack.c.h.b16 %v840
    %v1187 = vunpack.c.l.b16 %v841
    %v1188 = vunpack.c.h.b16 %v841
    %v1189 = vunpack.c.l.b16 %v842
    %v1190 = vunpack.c.h.b16 %v842
    %v1191 = vunpack.c.l.b16 %v843
    %v1192 = vunpack.c.h.b16 %v843
    %v1193 = vunpack.c.l.b16 %v844
    %v1194 = vunpack.c.h.b16 %v844
    %v1195 = vunpack.c.l.b16 %v845
    %v1196 = vunpack.c.h.b16 %v845
    %v1197 = vunpack.c.l.b16 %v846
    %v1198 = vunpack.c.h.b16 %v846
    %v1199 = vunpack.c.l.b16 %v847
    %v1200 = vunpack.c.h.b16 %v847
    %v1201 = vunpack.c.l.b16 %v848
    %v1202 = vunpack.c.h.b16 %v848
    %v1203 = vunpack.c.l.b16 %v849
    %v1204 = vunpack.c.h.b16 %v849
    %v1205 = vunpack.c.l.b16 %v850
    %v1206 = vunpack.c.h.b16 %v850
    %v1207 = vunpack.c.l.b16 %v851
    %v1208 = vunpack.c.h.b16 %v851
    %v1209 = vunpack.c.l.b16 %v852
    %v1210 = vunpack.c.h.b16 %v852
    %v1211 = vunpack.c.l.b16 %v853
    %v1212 = vunpack.c.h.b16 %v853
    %v1213 = vunpack.c.l.b16 %v854
    %v1214 = vunpack.c.h.b16 %v854
    %v1215 = vunpack.c.l.b16 %v855
    %v1216 = vunpack.c.h.b16 %v855
    %v1217 = vunpack.c.l.b16 %v856
    %v1218 = vunpack.c.h.b16 %v856
    %v1219 = vunpack.c.l.b16 %v857
    %v1220 = vunpack.c.h.b16 %v857
    %v1221 = vunpack.c.l.b16 %v858
    %v1222 = vunpack.c.h.b16 %v858
    %v1223 = vunpack.c.l.b16 %v859
    %v1224 = vunpack.c.h.b16 %v859
    %v1225 = vunpack.c.l.b16 %v860
    %v1226 = vunpack.c.h.b16 %v860
    %v1227 = vunpack.c.l.b16 %v861
    %v1228 = vunpack.c.h.b16 %v861
    %v1229 = vunpack.c.l.b16 %v862
    %v1230 = vunpack.c.h.b16 %v862
    %v1231 = vunpack.c.l.b16 %v863
    %v1232 = vunpack.c.h.b16 %v863
    %v1233 = vunpack.c.l.b16 %v864
    %v1234 = vunpack.c.h.b16 %v864
    %v1235 = vunpack.c.l.b16 %v865
    %v1236 = vunpack.c.h.b16 %v865
    %v1237 = vunpack.c.l.b16 %v866
    %v1238 = vunpack.c.h.b16 %v866
    %v1239 = vunpack.c.l.b16 %v867
    %v1240 = vunpack.c.h.b16 %v867
    %v1241 = vunpack.c.l.b16 %v868
    %v1242 = vunpack.c.h.b16 %v868
    %v1243 = vunpack.c.l.b16 %v869
    %v1244 = vunpack.c.h.b16 %v869
    %v1245 = vpack.c.b16 %v1185, %v1181
    %v1246 = vpack.c.b16 %v1186, %v1182
    %v1247 = vpack.c.b16 %v1187, %v1183
    %v1248 = vpack.c.b16 %v1188, %v1184
    %v1249 = vpack.c.b16 %v1193, %v1189
    %v1250 = vpack.c.b16 %v1194, %v1190
    %v1251 = vpack.c.b16 %v1195, %v1191
    %v1252 = vpack.c.b16 %v1196, %v1192
    %v1253 = vpack.c.b16 %v1201, %v1197
    %v1254 = vpack.c.b16 %v1202, %v1198
    %v1255 = vpack.c.b16 %v1203, %v1199
    %v1256 = vpack.c.b16 %v1204, %v1200
    %v1257 = vpack.c.b16 %v1209, %v1205
    %v1258 = vpack.c.b16 %v1210, %v1206
    %v1259 = vpack.c.b16 %v1211, %v1207
    %v1260 = vpack.c.b16 %v1212, %v1208
    %v1261 = vpack.c.b16 %v1217, %v1213
    %v1262 = vpack.c.b16 %v1218, %v1214
    %v1263 = vpack.c.b16 %v1219, %v1215
    %v1264 = vpack.c.b16 %v1220, %v1216
    %v1265 = vpack.c.b16 %v1225, %v1221
    %v1266 = vpack.c.b16 %v1226, %v1222
    %v1267 = vpack.c.b16 %v1227, %v1223
    %v1268 = vpack.c.b16 %v1228, %v1224
    %v1269 = vpack.c.b16 %v1233, %v1229
    %v1270 = vpack.c.b16 %v1234, %v1230
    %v1271 = vpack.c.b16 %v1235, %v1231
    %v1272 = vpack.c.b16 %v1236, %v1232
    %v1273 = vpack.c.b16 %v1241, %v1237
    %v1274 = vpack.c.b16 %v1242, %v1238
    %v1275 = vpack.c.b16 %v1243, %v1239
    %v1276 = vpack.c.b16 %v1244, %v1240
    %1309 = vmatpush.bf16.msra.mxu0 %v1273
    %1310 = vmatpush.bf16.msra.mxu0 %v1269
    %1311 = vmatpush.bf16.msra.mxu0 %v1265
    %1312 = vmatpush.bf16.msra.mxu0 %v1261
    %1313 = vmatpush.bf16.msra.mxu0 %v1257
    %1314 = vmatpush.bf16.msra.mxu0 %v1253
    %1315 = vmatpush.bf16.msra.mxu0 %v1249
    %1316 = vmatpush.bf16.msra.mxu0 %v1245
    %1317 = vmatmul.bf16.gmra.mxu0 0
    %v1318 = vpop.f32.mrf.mxu0
    %v1319 = vadd.f32 0.0, %v1318
    %v1320 = vpop.f32.mrf.mxu0
    %1321 = vdwg.mxu0
    %1322 = vmatpush.bf16.msra.mxu0 %v1274
    %1323 = vmatpush.bf16.msra.mxu0 %v1270
    %1324 = vmatpush.bf16.msra.mxu0 %v1266
    %1325 = vmatpush.bf16.msra.mxu0 %v1262
    %1326 = vmatpush.bf16.msra.mxu0 %v1258
    %1327 = vmatpush.bf16.msra.mxu0 %v1254
    %1328 = vmatpush.bf16.msra.mxu0 %v1250
    %1329 = vmatpush.bf16.msra.mxu0 %v1246
    %1330 = vmatmul.bf16.gmra.mxu0 0
    %v1331 = vpop.f32.mrf.mxu0
    %v1332 = vadd.f32 0.0, %v1331
    %v1333 = vpop.f32.mrf.mxu0
    %1334 = vdwg.mxu0
    %1335 = vmatpush.bf16.msra.mxu0 %v1275
    %1336 = vmatpush.bf16.msra.mxu0 %v1271
    %1337 = vmatpush.bf16.msra.mxu0 %v1267
    %1338 = vmatpush.bf16.msra.mxu0 %v1263
    %1339 = vmatpush.bf16.msra.mxu0 %v1259
    %1340 = vmatpush.bf16.msra.mxu0 %v1255
    %1341 = vmatpush.bf16.msra.mxu0 %v1251
    %1342 = vmatpush.bf16.msra.mxu0 %v1247
    %1343 = vmatmul.bf16.gmra.mxu0 0
    %v1344 = vpop.f32.mrf.mxu0
    %v1345 = vadd.f32 0.0, %v1344
    %v1346 = vpop.f32.mrf.mxu0
    %1347 = vdwg.mxu0
    %1348 = vmatpush.bf16.msra.mxu0 %v1276
    %1349 = vmatpush.bf16.msra.mxu0 %v1272
    %1350 = vmatpush.bf16.msra.mxu0 %v1268
    %1351 = vmatpush.bf16.msra.mxu0 %v1264
    %1352 = vmatpush.bf16.msra.mxu0 %v1260
    %1353 = vmatpush.bf16.msra.mxu0 %v1256
    %1354 = vmatpush.bf16.msra.mxu0 %v1252
    %1355 = vmatpush.bf16.msra.mxu0 %v1248
    %1356 = vmatmul.bf16.gmra.mxu0 0
    %v1357 = vpop.f32.mrf.mxu0
    %v1358 = vadd.f32 0.0, %v1357
    %v1359 = vpop.f32.mrf.mxu0
    %1360 = vdwg.mxu0
    %v1361 = vadd.f32 %v717, %v1319
    %v1362 = vadd.f32 %v746, %v1332
    %v1363 = vadd.f32 %v775, %v1345
    %v1364 = vadd.f32 %v804, %v1358
    %v1365 = vxor.u32 %v1361, 2147483648
    %v1366 = vmul.f32 %v1365, 1.442695
    %v1367 = vpow.pop %v1366
    %v1368 = vadd.f32 %v1367, 1.0
    %v1369 = vrcp.pop %v1368
    %v1370 = vmul.f32 %v1368, %v1369
    %v1371 = vsub.f32 1.0, %v1370
    %v1372 = vmul.f32 %v1369, %v1371
    %v1373 = vadd.f32 %v1369, %v1372
    %vm1374 = vweird.f32 %v1368
    %vm1375 = vweird.f32 %v1369
    %vm1376 = vmor %vm1374, %vm1375
    %v1377 = vsel %vm1376, %v1369, %v1373
    %v1378 = vand.u32 2147483647, %v1368
    %vm1379 = vcmp.eq.f32.partialorder %v1378, 8.507059e+37
    %v1380 = vand.u32 %v1368, 2147483648
    %v1381 = vor.u32 1.1754944e-38, %v1380
    %v1382 = vsel %vm1379, %v1381, %v1377
    %v1383 = vmul.f32 1.0, %v1382
    %v1384 = vxor.u32 %v1362, 2147483648
    %v1385 = vmul.f32 %v1384, 1.442695
    %v1386 = vpow.pop %v1385
    %v1387 = vadd.f32 %v1386, 1.0
    %v1388 = vrcp.pop %v1387
    %v1389 = vmul.f32 %v1387, %v1388
    %v1390 = vsub.f32 1.0, %v1389
    %v1391 = vmul.f32 %v1388, %v1390
    %v1392 = vadd.f32 %v1388, %v1391
    %vm1393 = vweird.f32 %v1387
    %vm1394 = vweird.f32 %v1388
    %vm1395 = vmor %vm1393, %vm1394
    %v1396 = vsel %vm1395, %v1388, %v1392
    %v1397 = vand.u32 2147483647, %v1387
    %vm1398 = vcmp.eq.f32.partialorder %v1397, 8.507059e+37
    %v1399 = vand.u32 %v1387, 2147483648
    %v1400 = vor.u32 1.1754944e-38, %v1399
    %v1401 = vsel %vm1398, %v1400, %v1396
    %v1402 = vmul.f32 1.0, %v1401
    %v1403 = vtanh.pop %v1363
    %v1404 = vxor.u32 %v1364, 2147483648
    %v1405 = vmul.f32 %v1404, 1.442695
    %v1406 = vpow.pop %v1405
    %v1407 = vadd.f32 %v1406, 1.0
    %v1408 = vrcp.pop %v1407
    %v1409 = vmul.f32 %v1407, %v1408
    %v1410 = vsub.f32 1.0, %v1409
    %v1411 = vmul.f32 %v1408, %v1410
    %v1412 = vadd.f32 %v1408, %v1411
    %vm1413 = vweird.f32 %v1407
    %vm1414 = vweird.f32 %v1408
    %vm1415 = vmor %vm1413, %vm1414
    %v1416 = vsel %vm1415, %v1408, %v1412
    %v1417 = vand.u32 2147483647, %v1407
    %vm1418 = vcmp.eq.f32.partialorder %v1417, 8.507059e+37
    %v1419 = vand.u32 %v1407, 2147483648
    %v1420 = vor.u32 1.1754944e-38, %v1419
    %v1421 = vsel %vm1418, %v1420, %v1416
    %v1422 = vmul.f32 1.0, %v1421
    %v1423 = vmul.f32 %v1402, 0.0
    %v1424 = vmul.f32 %v1383, %v1403
    %v1425 = vadd.f32 %v1423, %v1424
    %v1426 = vtanh.pop %v1425
    %v1427 = vmul.f32 %v1422, %v1426
    %1428 = vst [vmem:[#allocation2] sm:$0xff] %v1148
    %1429 = vst [vmem:[#allocation2 + $0x78] sm:$0xff] %v1427
    %v1430 = vpack.c.bf16 %v1148, %v1148
    %1431 = vmatpush.bf16.msra.mxu0 %v994
    %1432 = vmatpush.bf16.msra.mxu0 %v990
    %1433 = vmatpush.bf16.msra.mxu0 %v986
    %1434 = vmatpush.bf16.msra.mxu0 %v982
    %1435 = vmatpush.bf16.msra.mxu0 %v978
    %1436 = vmatpush.bf16.msra.mxu0 %v974
    %1437 = vmatpush.bf16.msra.mxu0 %v970
    %1438 = vmatpush.bf16.msra.mxu0 %v966
    %1439 = vmatmul.bf16.gmra.mxu0 %v1430
    %v1440 = vpop.f32.mrf.mxu0
    %v1441 = vadd.f32 0.0, %v1440
    %v1442 = vpop.f32.mrf.mxu0
    %1443 = vdwg.mxu0
    %1444 = vmatpush.bf16.msra.mxu0 %v995
    %1445 = vmatpush.bf16.msra.mxu0 %v991
    %1446 = vmatpush.bf16.msra.mxu0 %v987
    %1447 = vmatpush.bf16.msra.mxu0 %v983
    %1448 = vmatpush.bf16.msra.mxu0 %v979
    %1449 = vmatpush.bf16.msra.mxu0 %v975
    %1450 = vmatpush.bf16.msra.mxu0 %v971
    %1451 = vmatpush.bf16.msra.mxu0 %v967
    %1452 = vmatmul.bf16.gmra.mxu0 %v1430
    %v1453 = vpop.f32.mrf.mxu0
    %v1454 = vadd.f32 0.0, %v1453
    %v1455 = vpop.f32.mrf.mxu0
    %1456 = vdwg.mxu0
    %1457 = vmatpush.bf16.msra.mxu0 %v996
    %1458 = vmatpush.bf16.msra.mxu0 %v992
    %1459 = vmatpush.bf16.msra.mxu0 %v988
    %1460 = vmatpush.bf16.msra.mxu0 %v984
    %1461 = vmatpush.bf16.msra.mxu0 %v980
    %1462 = vmatpush.bf16.msra.mxu0 %v976
    %1463 = vmatpush.bf16.msra.mxu0 %v972
    %1464 = vmatpush.bf16.msra.mxu0 %v968
    %1465 = vmatmul.bf16.gmra.mxu0 %v1430
    %v1466 = vpop.f32.mrf.mxu0
    %v1467 = vadd.f32 0.0, %v1466
    %v1468 = vpop.f32.mrf.mxu0
    %1469 = vdwg.mxu0
    %1470 = vmatpush.bf16.msra.mxu0 %v997
    %1471 = vmatpush.bf16.msra.mxu0 %v993
    %1472 = vmatpush.bf16.msra.mxu0 %v989
    %1473 = vmatpush.bf16.msra.mxu0 %v985
    %1474 = vmatpush.bf16.msra.mxu0 %v981
    %1475 = vmatpush.bf16.msra.mxu0 %v977
    %1476 = vmatpush.bf16.msra.mxu0 %v973
    %1477 = vmatpush.bf16.msra.mxu0 %v969
    %1478 = vmatmul.bf16.gmra.mxu0 %v1430
    %v1479 = vpop.f32.mrf.mxu0
    %v1480 = vadd.f32 0.0, %v1479
    %v1481 = vpop.f32.mrf.mxu0
    %1482 = vdwg.mxu0
    %v1483 = vadd.f32 %v586, %v1441
    %v1484 = vadd.f32 %v615, %v1454
    %v1485 = vadd.f32 %v644, %v1467
    %v1486 = vadd.f32 %v673, %v1480
    %v1487 = vxor.u32 %v1483, 2147483648
    %v1488 = vmul.f32 %v1487, 1.442695
    %v1489 = vpow.pop %v1488
    %v1490 = vadd.f32 %v1489, 1.0
    %v1491 = vrcp.pop %v1490
    %v1492 = vmul.f32 %v1490, %v1491
    %v1493 = vsub.f32 1.0, %v1492
    %v1494 = vmul.f32 %v1491, %v1493
    %v1495 = vadd.f32 %v1491, %v1494
    %vm1496 = vweird.f32 %v1490
    %vm1497 = vweird.f32 %v1491
    %vm1498 = vmor %vm1496, %vm1497
    %v1499 = vsel %vm1498, %v1491, %v1495
    %v1500 = vand.u32 2147483647, %v1490
    %vm1501 = vcmp.eq.f32.partialorder %v1500, 8.507059e+37
    %v1502 = vand.u32 %v1490, 2147483648
    %v1503 = vor.u32 1.1754944e-38, %v1502
    %v1504 = vsel %vm1501, %v1503, %v1499
    %v1505 = vmul.f32 1.0, %v1504
    %v1506 = vxor.u32 %v1484, 2147483648
    %v1507 = vmul.f32 %v1506, 1.442695
    %v1508 = vpow.pop %v1507
    %v1509 = vadd.f32 %v1508, 1.0
    %v1510 = vrcp.pop %v1509
    %v1511 = vmul.f32 %v1509, %v1510
    %v1512 = vsub.f32 1.0, %v1511
    %v1513 = vmul.f32 %v1510, %v1512
    %v1514 = vadd.f32 %v1510, %v1513
    %vm1515 = vweird.f32 %v1509
    %vm1516 = vweird.f32 %v1510
    %vm1517 = vmor %vm1515, %vm1516
    %v1518 = vsel %vm1517, %v1510, %v1514
    %v1519 = vand.u32 2147483647, %v1509
    %vm1520 = vcmp.eq.f32.partialorder %v1519, 8.507059e+37
    %v1521 = vand.u32 %v1509, 2147483648
    %v1522 = vor.u32 1.1754944e-38, %v1521
    %v1523 = vsel %vm1520, %v1522, %v1518
    %v1524 = vmul.f32 1.0, %v1523
    %v1525 = vtanh.pop %v1485
    %v1526 = vxor.u32 %v1486, 2147483648
    %v1527 = vmul.f32 %v1526, 1.442695
    %v1528 = vpow.pop %v1527
    %v1529 = vadd.f32 %v1528, 1.0
    %v1530 = vrcp.pop %v1529
    %v1531 = vmul.f32 %v1529, %v1530
    %v1532 = vsub.f32 1.0, %v1531
    %v1533 = vmul.f32 %v1530, %v1532
    %v1534 = vadd.f32 %v1530, %v1533
    %vm1535 = vweird.f32 %v1529
    %vm1536 = vweird.f32 %v1530
    %vm1537 = vmor %vm1535, %vm1536
    %v1538 = vsel %vm1537, %v1530, %v1534
    %v1539 = vand.u32 2147483647, %v1529
    %vm1540 = vcmp.eq.f32.partialorder %v1539, 8.507059e+37
    %v1541 = vand.u32 %v1529, 2147483648
    %v1542 = vor.u32 1.1754944e-38, %v1541
    %v1543 = vsel %vm1540, %v1542, %v1538
    %v1544 = vmul.f32 1.0, %v1543
    %v1545 = vmul.f32 %v1524, %v1146
    %v1546 = vmul.f32 %v1505, %v1525
    %v1547 = vadd.f32 %v1545, %v1546
    %v1548 = vtanh.pop %v1547
    %v1549 = vmul.f32 %v1544, %v1548
    %v1550 = vpack.c.bf16 %v1427, %v1427
    %1551 = vmatpush.bf16.msra.mxu0 %v1273
    %1552 = vmatpush.bf16.msra.mxu0 %v1269
    %1553 = vmatpush.bf16.msra.mxu0 %v1265
    %1554 = vmatpush.bf16.msra.mxu0 %v1261
    %1555 = vmatpush.bf16.msra.mxu0 %v1257
    %1556 = vmatpush.bf16.msra.mxu0 %v1253
    %1557 = vmatpush.bf16.msra.mxu0 %v1249
    %1558 = vmatpush.bf16.msra.mxu0 %v1245
    %1559 = vmatmul.bf16.gmra.mxu0 %v1550
    %v1560 = vpop.f32.mrf.mxu0
    %v1561 = vadd.f32 0.0, %v1560
    %v1562 = vpop.f32.mrf.mxu0
    %1563 = vdwg.mxu0
    %1564 = vmatpush.bf16.msra.mxu0 %v1274
    %1565 = vmatpush.bf16.msra.mxu0 %v1270
    %1566 = vmatpush.bf16.msra.mxu0 %v1266
    %1567 = vmatpush.bf16.msra.mxu0 %v1262
    %1568 = vmatpush.bf16.msra.mxu0 %v1258
    %1569 = vmatpush.bf16.msra.mxu0 %v1254
    %1570 = vmatpush.bf16.msra.mxu0 %v1250
    %1571 = vmatpush.bf16.msra.mxu0 %v1246
    %1572 = vmatmul.bf16.gmra.mxu0 %v1550
    %v1573 = vpop.f32.mrf.mxu0
    %v1574 = vadd.f32 0.0, %v1573
    %v1575 = vpop.f32.mrf.mxu0
    %1576 = vdwg.mxu0
    %1577 = vmatpush.bf16.msra.mxu0 %v1275
    %1578 = vmatpush.bf16.msra.mxu0 %v1271
    %1579 = vmatpush.bf16.msra.mxu0 %v1267
    %1580 = vmatpush.bf16.msra.mxu0 %v1263
    %1581 = vmatpush.bf16.msra.mxu0 %v1259
    %1582 = vmatpush.bf16.msra.mxu0 %v1255
    %1583 = vmatpush.bf16.msra.mxu0 %v1251
    %1584 = vmatpush.bf16.msra.mxu0 %v1247
    %1585 = vmatmul.bf16.gmra.mxu0 %v1550
    %v1586 = vpop.f32.mrf.mxu0
    %v1587 = vadd.f32 0.0, %v1586
    %v1588 = vpop.f32.mrf.mxu0
    %1589 = vdwg.mxu0
    %1590 = vmatpush.bf16.msra.mxu0 %v1276
    %1591 = vmatpush.bf16.msra.mxu0 %v1272
    %1592 = vmatpush.bf16.msra.mxu0 %v1268
    %1593 = vmatpush.bf16.msra.mxu0 %v1264
    %1594 = vmatpush.bf16.msra.mxu0 %v1260
    %1595 = vmatpush.bf16.msra.mxu0 %v1256
    %1596 = vmatpush.bf16.msra.mxu0 %v1252
    %1597 = vmatpush.bf16.msra.mxu0 %v1248
    %1598 = vmatmul.bf16.gmra.mxu0 %v1550
    %v1599 = vpop.f32.mrf.mxu0
    %v1600 = vadd.f32 0.0, %v1599
    %v1601 = vpop.f32.mrf.mxu0
    %1602 = vdwg.mxu0
    %v1603 = vadd.f32 %v715, %v1561
    %v1604 = vadd.f32 %v744, %v1574
    %v1605 = vadd.f32 %v773, %v1587
    %v1606 = vadd.f32 %v802, %v1600
    %v1607 = vxor.u32 %v1603, 2147483648
    %v1608 = vmul.f32 %v1607, 1.442695
    %v1609 = vpow.pop %v1608
    %v1610 = vadd.f32 %v1609, 1.0
    %v1611 = vrcp.pop %v1610
    %v1612 = vmul.f32 %v1610, %v1611
    %v1613 = vsub.f32 1.0, %v1612
    %v1614 = vmul.f32 %v1611, %v1613
    %v1615 = vadd.f32 %v1611, %v1614
    %vm1616 = vweird.f32 %v1610
    %vm1617 = vweird.f32 %v1611
    %vm1618 = vmor %vm1616, %vm1617
    %v1619 = vsel %vm1618, %v1611, %v1615
    %v1620 = vand.u32 2147483647, %v1610
    %vm1621 = vcmp.eq.f32.partialorder %v1620, 8.507059e+37
    %v1622 = vand.u32 %v1610, 2147483648
    %v1623 = vor.u32 1.1754944e-38, %v1622
    %v1624 = vsel %vm1621, %v1623, %v1619
    %v1625 = vmul.f32 1.0, %v1624
    %v1626 = vxor.u32 %v1604, 2147483648
    %v1627 = vmul.f32 %v1626, 1.442695
    %v1628 = vpow.pop %v1627
    %v1629 = vadd.f32 %v1628, 1.0
    %v1630 = vrcp.pop %v1629
    %v1631 = vmul.f32 %v1629, %v1630
    %v1632 = vsub.f32 1.0, %v1631
    %v1633 = vmul.f32 %v1630, %v1632
    %v1634 = vadd.f32 %v1630, %v1633
    %vm1635 = vweird.f32 %v1629
    %vm1636 = vweird.f32 %v1630
    %vm1637 = vmor %vm1635, %vm1636
    %v1638 = vsel %vm1637, %v1630, %v1634
    %v1639 = vand.u32 2147483647, %v1629
    %vm1640 = vcmp.eq.f32.partialorder %v1639, 8.507059e+37
    %v1641 = vand.u32 %v1629, 2147483648
    %v1642 = vor.u32 1.1754944e-38, %v1641
    %v1643 = vsel %vm1640, %v1642, %v1638
    %v1644 = vmul.f32 1.0, %v1643
    %v1645 = vtanh.pop %v1605
    %v1646 = vxor.u32 %v1606, 2147483648
    %v1647 = vmul.f32 %v1646, 1.442695
    %v1648 = vpow.pop %v1647
    %v1649 = vadd.f32 %v1648, 1.0
    %v1650 = vrcp.pop %v1649
    %v1651 = vmul.f32 %v1649, %v1650
    %v1652 = vsub.f32 1.0, %v1651
    %v1653 = vmul.f32 %v1650, %v1652
    %v1654 = vadd.f32 %v1650, %v1653
    %vm1655 = vweird.f32 %v1649
    %vm1656 = vweird.f32 %v1650
    %vm1657 = vmor %vm1655, %vm1656
    %v1658 = vsel %vm1657, %v1650, %v1654
    %v1659 = vand.u32 2147483647, %v1649
    %vm1660 = vcmp.eq.f32.partialorder %v1659, 8.507059e+37
    %v1661 = vand.u32 %v1649, 2147483648
    %v1662 = vor.u32 1.1754944e-38, %v1661
    %v1663 = vsel %vm1660, %v1662, %v1658
    %v1664 = vmul.f32 1.0, %v1663
    %v1665 = vmul.f32 %v1644, %v1425
    %v1666 = vmul.f32 %v1625, %v1645
    %v1667 = vadd.f32 %v1665, %v1666
    %v1668 = vtanh.pop %v1667
    %v1669 = vmul.f32 %v1664, %v1668
    %1670 = vst [vmem:[#allocation2 + $0x10] sm:$0xff] %v1549
    %1671 = vst [vmem:[#allocation2 + $0x68] sm:$0xff] %v1669
    %v1672 = vpack.c.bf16 %v1549, %v1549
    %1673 = vmatpush.bf16.msra.mxu0 %v994
    %1674 = vmatpush.bf16.msra.mxu0 %v990
    %1675 = vmatpush.bf16.msra.mxu0 %v986
    %1676 = vmatpush.bf16.msra.mxu0 %v982
    %1677 = vmatpush.bf16.msra.mxu0 %v978
    %1678 = vmatpush.bf16.msra.mxu0 %v974
    %1679 = vmatpush.bf16.msra.mxu0 %v970
    %1680 = vmatpush.bf16.msra.mxu0 %v966
    %1681 = vmatmul.bf16.gmra.mxu0 %v1672
    %v1682 = vpop.f32.mrf.mxu0
    %v1683 = vadd.f32 0.0, %v1682
    %v1684 = vpop.f32.mrf.mxu0
    %1685 = vdwg.mxu0
    %1686 = vmatpush.bf16.msra.mxu0 %v995
    %1687 = vmatpush.bf16.msra.mxu0 %v991
    %1688 = vmatpush.bf16.msra.mxu0 %v987
    %1689 = vmatpush.bf16.msra.mxu0 %v983
    %1690 = vmatpush.bf16.msra.mxu0 %v979
    %1691 = vmatpush.bf16.msra.mxu0 %v975
    %1692 = vmatpush.bf16.msra.mxu0 %v971
    %1693 = vmatpush.bf16.msra.mxu0 %v967
    %1694 = vmatmul.bf16.gmra.mxu0 %v1672
    %v1695 = vpop.f32.mrf.mxu0
    %v1696 = vadd.f32 0.0, %v1695
    %v1697 = vpop.f32.mrf.mxu0
    %1698 = vdwg.mxu0
    %1699 = vmatpush.bf16.msra.mxu0 %v996
    %1700 = vmatpush.bf16.msra.mxu0 %v992
    %1701 = vmatpush.bf16.msra.mxu0 %v988
    %1702 = vmatpush.bf16.msra.mxu0 %v984
    %1703 = vmatpush.bf16.msra.mxu0 %v980
    %1704 = vmatpush.bf16.msra.mxu0 %v976
    %1705 = vmatpush.bf16.msra.mxu0 %v972
    %1706 = vmatpush.bf16.msra.mxu0 %v968
    %1707 = vmatmul.bf16.gmra.mxu0 %v1672
    %v1708 = vpop.f32.mrf.mxu0
    %v1709 = vadd.f32 0.0, %v1708
    %v1710 = vpop.f32.mrf.mxu0
    %1711 = vdwg.mxu0
    %1712 = vmatpush.bf16.msra.mxu0 %v997
    %1713 = vmatpush.bf16.msra.mxu0 %v993
    %1714 = vmatpush.bf16.msra.mxu0 %v989
    %1715 = vmatpush.bf16.msra.mxu0 %v985
    %1716 = vmatpush.bf16.msra.mxu0 %v981
    %1717 = vmatpush.bf16.msra.mxu0 %v977
    %1718 = vmatpush.bf16.msra.mxu0 %v973
    %1719 = vmatpush.bf16.msra.mxu0 %v969
    %1720 = vmatmul.bf16.gmra.mxu0 %v1672
    %v1721 = vpop.f32.mrf.mxu0
    %v1722 = vadd.f32 0.0, %v1721
    %v1723 = vpop.f32.mrf.mxu0
    %1724 = vdwg.mxu0
    %v1725 = vadd.f32 %v589, %v1683
    %v1726 = vadd.f32 %v618, %v1696
    %v1727 = vadd.f32 %v647, %v1709
    %v1728 = vadd.f32 %v676, %v1722
    %v1729 = vxor.u32 %v1725, 2147483648
    %v1730 = vmul.f32 %v1729, 1.442695
    %v1731 = vpow.pop %v1730
    %v1732 = vadd.f32 %v1731, 1.0
    %v1733 = vrcp.pop %v1732
    %v1734 = vmul.f32 %v1732, %v1733
    %v1735 = vsub.f32 1.0, %v1734
    %v1736 = vmul.f32 %v1733, %v1735
    %v1737 = vadd.f32 %v1733, %v1736
    %vm1738 = vweird.f32 %v1732
    %vm1739 = vweird.f32 %v1733
    %vm1740 = vmor %vm1738, %vm1739
    %v1741 = vsel %vm1740, %v1733, %v1737
    %v1742 = vand.u32 2147483647, %v1732
    %vm1743 = vcmp.eq.f32.partialorder %v1742, 8.507059e+37
    %v1744 = vand.u32 %v1732, 2147483648
    %v1745 = vor.u32 1.1754944e-38, %v1744
    %v1746 = vsel %vm1743, %v1745, %v1741
    %v1747 = vmul.f32 1.0, %v1746
    %v1748 = vxor.u32 %v1726, 2147483648
    %v1749 = vmul.f32 %v1748, 1.442695
    %v1750 = vpow.pop %v1749
    %v1751 = vadd.f32 %v1750, 1.0
    %v1752 = vrcp.pop %v1751
    %v1753 = vmul.f32 %v1751, %v1752
    %v1754 = vsub.f32 1.0, %v1753
    %v1755 = vmul.f32 %v1752, %v1754
    %v1756 = vadd.f32 %v1752, %v1755
    %vm1757 = vweird.f32 %v1751
    %vm1758 = vweird.f32 %v1752
    %vm1759 = vmor %vm1757, %vm1758
    %v1760 = vsel %vm1759, %v1752, %v1756
    %v1761 = vand.u32 2147483647, %v1751
    %vm1762 = vcmp.eq.f32.partialorder %v1761, 8.507059e+37
    %v1763 = vand.u32 %v1751, 2147483648
    %v1764 = vor.u32 1.1754944e-38, %v1763
    %v1765 = vsel %vm1762, %v1764, %v1760
    %v1766 = vmul.f32 1.0, %v1765
    %v1767 = vtanh.pop %v1727
    %v1768 = vxor.u32 %v1728, 2147483648
    %v1769 = vmul.f32 %v1768, 1.442695
    %v1770 = vpow.pop %v1769
    %v1771 = vadd.f32 %v1770, 1.0
    %v1772 = vrcp.pop %v1771
    %v1773 = vmul.f32 %v1771, %v1772
    %v1774 = vsub.f32 1.0, %v1773
    %v1775 = vmul.f32 %v1772, %v1774
    %v1776 = vadd.f32 %v1772, %v1775
    %vm1777 = vweird.f32 %v1771
    %vm1778 = vweird.f32 %v1772
    %vm1779 = vmor %vm1777, %vm1778
    %v1780 = vsel %vm1779, %v1772, %v1776
    %v1781 = vand.u32 2147483647, %v1771
    %vm1782 = vcmp.eq.f32.partialorder %v1781, 8.507059e+37
    %v1783 = vand.u32 %v1771, 2147483648
    %v1784 = vor.u32 1.1754944e-38, %v1783
    %v1785 = vsel %vm1782, %v1784, %v1780
    %v1786 = vmul.f32 1.0, %v1785
    %v1787 = vmul.f32 %v1766, %v1547
    %v1788 = vmul.f32 %v1747, %v1767
    %v1789 = vadd.f32 %v1787, %v1788
    %v1790 = vtanh.pop %v1789
    %v1791 = vmul.f32 %v1786, %v1790
    %v1792 = vpack.c.bf16 %v1669, %v1669
    %1793 = vmatpush.bf16.msra.mxu0 %v1273
    %1794 = vmatpush.bf16.msra.mxu0 %v1269
    %1795 = vmatpush.bf16.msra.mxu0 %v1265
    %1796 = vmatpush.bf16.msra.mxu0 %v1261
    %1797 = vmatpush.bf16.msra.mxu0 %v1257
    %1798 = vmatpush.bf16.msra.mxu0 %v1253
    %1799 = vmatpush.bf16.msra.mxu0 %v1249
    %1800 = vmatpush.bf16.msra.mxu0 %v1245
    %1801 = vmatmul.bf16.gmra.mxu0 %v1792
    %v1802 = vpop.f32.mrf.mxu0
    %v1803 = vadd.f32 0.0, %v1802
    %v1804 = vpop.f32.mrf.mxu0
    %1805 = vdwg.mxu0
    %1806 = vmatpush.bf16.msra.mxu0 %v1274
    %1807 = vmatpush.bf16.msra.mxu0 %v1270
    %1808 = vmatpush.bf16.msra.mxu0 %v1266
    %1809 = vmatpush.bf16.msra.mxu0 %v1262
    %1810 = vmatpush.bf16.msra.mxu0 %v1258
    %1811 = vmatpush.bf16.msra.mxu0 %v1254
    %1812 = vmatpush.bf16.msra.mxu0 %v1250
    %1813 = vmatpush.bf16.msra.mxu0 %v1246
    %1814 = vmatmul.bf16.gmra.mxu0 %v1792
    %v1815 = vpop.f32.mrf.mxu0
    %v1816 = vadd.f32 0.0, %v1815
    %v1817 = vpop.f32.mrf.mxu0
    %1818 = vdwg.mxu0
    %1819 = vmatpush.bf16.msra.mxu0 %v1275
    %1820 = vmatpush.bf16.msra.mxu0 %v1271
    %1821 = vmatpush.bf16.msra.mxu0 %v1267
    %1822 = vmatpush.bf16.msra.mxu0 %v1263
    %1823 = vmatpush.bf16.msra.mxu0 %v1259
    %1824 = vmatpush.bf16.msra.mxu0 %v1255
    %1825 = vmatpush.bf16.msra.mxu0 %v1251
    %1826 = vmatpush.bf16.msra.mxu0 %v1247
    %1827 = vmatmul.bf16.gmra.mxu0 %v1792
    %v1828 = vpop.f32.mrf.mxu0
    %v1829 = vadd.f32 0.0, %v1828
    %v1830 = vpop.f32.mrf.mxu0
    %1831 = vdwg.mxu0
    %1832 = vmatpush.bf16.msra.mxu0 %v1276
    %1833 = vmatpush.bf16.msra.mxu0 %v1272
    %1834 = vmatpush.bf16.msra.mxu0 %v1268
    %1835 = vmatpush.bf16.msra.mxu0 %v1264
    %1836 = vmatpush.bf16.msra.mxu0 %v1260
    %1837 = vmatpush.bf16.msra.mxu0 %v1256
    %1838 = vmatpush.bf16.msra.mxu0 %v1252
    %1839 = vmatpush.bf16.msra.mxu0 %v1248
    %1840 = vmatmul.bf16.gmra.mxu0 %v1792
    %v1841 = vpop.f32.mrf.mxu0
    %v1842 = vadd.f32 0.0, %v1841
    %v1843 = vpop.f32.mrf.mxu0
    %1844 = vdwg.mxu0
    %v1845 = vadd.f32 %v712, %v1803
    %v1846 = vadd.f32 %v741, %v1816
    %v1847 = vadd.f32 %v770, %v1829
    %v1848 = vadd.f32 %v799, %v1842
    %v1849 = vxor.u32 %v1845, 2147483648
    %v1850 = vmul.f32 %v1849, 1.442695
    %v1851 = vpow.pop %v1850
    %v1852 = vadd.f32 %v1851, 1.0
    %v1853 = vrcp.pop %v1852
    %v1854 = vmul.f32 %v1852, %v1853
    %v1855 = vsub.f32 1.0, %v1854
    %v1856 = vmul.f32 %v1853, %v1855
    %v1857 = vadd.f32 %v1853, %v1856
    %vm1858 = vweird.f32 %v1852
    %vm1859 = vweird.f32 %v1853
    %vm1860 = vmor %vm1858, %vm1859
    %v1861 = vsel %vm1860, %v1853, %v1857
    %v1862 = vand.u32 2147483647, %v1852
    %vm1863 = vcmp.eq.f32.partialorder %v1862, 8.507059e+37
    %v1864 = vand.u32 %v1852, 2147483648
    %v1865 = vor.u32 1.1754944e-38, %v1864
    %v1866 = vsel %vm1863, %v1865, %v1861
    %v1867 = vmul.f32 1.0, %v1866
    %v1868 = vxor.u32 %v1846, 2147483648
    %v1869 = vmul.f32 %v1868, 1.442695
    %v1870 = vpow.pop %v1869
    %v1871 = vadd.f32 %v1870, 1.0
    %v1872 = vrcp.pop %v1871
    %v1873 = vmul.f32 %v1871, %v1872
    %v1874 = vsub.f32 1.0, %v1873
    %v1875 = vmul.f32 %v1872, %v1874
    %v1876 = vadd.f32 %v1872, %v1875
    %vm1877 = vweird.f32 %v1871
    %vm1878 = vweird.f32 %v1872
    %vm1879 = vmor %vm1877, %vm1878
    %v1880 = vsel %vm1879, %v1872, %v1876
    %v1881 = vand.u32 2147483647, %v1871
    %vm1882 = vcmp.eq.f32.partialorder %v1881, 8.507059e+37
    %v1883 = vand.u32 %v1871, 2147483648
    %v1884 = vor.u32 1.1754944e-38, %v1883
    %v1885 = vsel %vm1882, %v1884, %v1880
    %v1886 = vmul.f32 1.0, %v1885
    %v1887 = vtanh.pop %v1847
    %v1888 = vxor.u32 %v1848, 2147483648
    %v1889 = vmul.f32 %v1888, 1.442695
    %v1890 = vpow.pop %v1889
    %v1891 = vadd.f32 %v1890, 1.0
    %v1892 = vrcp.pop %v1891
    %v1893 = vmul.f32 %v1891, %v1892
    %v1894 = vsub.f32 1.0, %v1893
    %v1895 = vmul.f32 %v1892, %v1894
    %v1896 = vadd.f32 %v1892, %v1895
    %vm1897 = vweird.f32 %v1891
    %vm1898 = vweird.f32 %v1892
    %vm1899 = vmor %vm1897, %vm1898
    %v1900 = vsel %vm1899, %v1892, %v1896
    %v1901 = vand.u32 2147483647, %v1891
    %vm1902 = vcmp.eq.f32.partialorder %v1901, 8.507059e+37
    %v1903 = vand.u32 %v1891, 2147483648
    %v1904 = vor.u32 1.1754944e-38, %v1903
    %v1905 = vsel %vm1902, %v1904, %v1900
    %v1906 = vmul.f32 1.0, %v1905
    %v1907 = vmul.f32 %v1886, %v1667
    %v1908 = vmul.f32 %v1867, %v1887
    %v1909 = vadd.f32 %v1907, %v1908
    %v1910 = vtanh.pop %v1909
    %v1911 = vmul.f32 %v1906, %v1910
    %1912 = vst [vmem:[#allocation2 + $0x20] sm:$0xff] %v1791
    %1913 = vst [vmem:[#allocation2 + $0x58] sm:$0xff] %v1911
    %v1914 = vpack.c.bf16 %v1791, %v1791
    %1915 = vmatpush.bf16.msra.mxu0 %v994
    %1916 = vmatpush.bf16.msra.mxu0 %v990
    %1917 = vmatpush.bf16.msra.mxu0 %v986
    %1918 = vmatpush.bf16.msra.mxu0 %v982
    %1919 = vmatpush.bf16.msra.mxu0 %v978
    %1920 = vmatpush.bf16.msra.mxu0 %v974
    %1921 = vmatpush.bf16.msra.mxu0 %v970
    %1922 = vmatpush.bf16.msra.mxu0 %v966
    %1923 = vmatmul.bf16.gmra.mxu0 %v1914
    %v1924 = vpop.f32.mrf.mxu0
    %v1925 = vadd.f32 0.0, %v1924
    %v1926 = vpop.f32.mrf.mxu0
    %1927 = vdwg.mxu0
    %1928 = vmatpush.bf16.msra.mxu0 %v995
    %1929 = vmatpush.bf16.msra.mxu0 %v991
    %1930 = vmatpush.bf16.msra.mxu0 %v987
    %1931 = vmatpush.bf16.msra.mxu0 %v983
    %1932 = vmatpush.bf16.msra.mxu0 %v979
    %1933 = vmatpush.bf16.msra.mxu0 %v975
    %1934 = vmatpush.bf16.msra.mxu0 %v971
    %1935 = vmatpush.bf16.msra.mxu0 %v967
    %1936 = vmatmul.bf16.gmra.mxu0 %v1914
    %v1937 = vpop.f32.mrf.mxu0
    %v1938 = vadd.f32 0.0, %v1937
    %v1939 = vpop.f32.mrf.mxu0
    %1940 = vdwg.mxu0
    %1941 = vmatpush.bf16.msra.mxu0 %v996
    %1942 = vmatpush.bf16.msra.mxu0 %v992
    %1943 = vmatpush.bf16.msra.mxu0 %v988
    %1944 = vmatpush.bf16.msra.mxu0 %v984
    %1945 = vmatpush.bf16.msra.mxu0 %v980
    %1946 = vmatpush.bf16.msra.mxu0 %v976
    %1947 = vmatpush.bf16.msra.mxu0 %v972
    %1948 = vmatpush.bf16.msra.mxu0 %v968
    %1949 = vmatmul.bf16.gmra.mxu0 %v1914
    %v1950 = vpop.f32.mrf.mxu0
    %v1951 = vadd.f32 0.0, %v1950
    %v1952 = vpop.f32.mrf.mxu0
    %1953 = vdwg.mxu0
    %1954 = vmatpush.bf16.msra.mxu0 %v997
    %1955 = vmatpush.bf16.msra.mxu0 %v993
    %1956 = vmatpush.bf16.msra.mxu0 %v989
    %1957 = vmatpush.bf16.msra.mxu0 %v985
    %1958 = vmatpush.bf16.msra.mxu0 %v981
    %1959 = vmatpush.bf16.msra.mxu0 %v977
    %1960 = vmatpush.bf16.msra.mxu0 %v973
    %1961 = vmatpush.bf16.msra.mxu0 %v969
    %1962 = vmatmul.bf16.gmra.mxu0 %v1914
    %v1963 = vpop.f32.mrf.mxu0
    %v1964 = vadd.f32 0.0, %v1963
    %v1965 = vpop.f32.mrf.mxu0
    %1966 = vdwg.mxu0
    %v1967 = vadd.f32 %v591, %v1925
    %v1968 = vadd.f32 %v620, %v1938
    %v1969 = vadd.f32 %v649, %v1951
    %v1970 = vadd.f32 %v678, %v1964
    %v1971 = vxor.u32 %v1967, 2147483648
    %v1972 = vmul.f32 %v1971, 1.442695
    %v1973 = vpow.pop %v1972
    %v1974 = vadd.f32 %v1973, 1.0
    %v1975 = vrcp.pop %v1974
    %v1976 = vmul.f32 %v1974, %v1975
    %v1977 = vsub.f32 1.0, %v1976
    %v1978 = vmul.f32 %v1975, %v1977
    %v1979 = vadd.f32 %v1975, %v1978
    %vm1980 = vweird.f32 %v1974
    %vm1981 = vweird.f32 %v1975
    %vm1982 = vmor %vm1980, %vm1981
    %v1983 = vsel %vm1982, %v1975, %v1979
    %v1984 = vand.u32 2147483647, %v1974
    %vm1985 = vcmp.eq.f32.partialorder %v1984, 8.507059e+37
    %v1986 = vand.u32 %v1974, 2147483648
    %v1987 = vor.u32 1.1754944e-38, %v1986
    %v1988 = vsel %vm1985, %v1987, %v1983
    %v1989 = vmul.f32 1.0, %v1988
    %v1990 = vxor.u32 %v1968, 2147483648
    %v1991 = vmul.f32 %v1990, 1.442695
    %v1992 = vpow.pop %v1991
    %v1993 = vadd.f32 %v1992, 1.0
    %v1994 = vrcp.pop %v1993
    %v1995 = vmul.f32 %v1993, %v1994
    %v1996 = vsub.f32 1.0, %v1995
    %v1997 = vmul.f32 %v1994, %v1996
    %v1998 = vadd.f32 %v1994, %v1997
    %vm1999 = vweird.f32 %v1993
    %vm2000 = vweird.f32 %v1994
    %vm2001 = vmor %vm1999, %vm2000
    %v2002 = vsel %vm2001, %v1994, %v1998
    %v2003 = vand.u32 2147483647, %v1993
    %vm2004 = vcmp.eq.f32.partialorder %v2003, 8.507059e+37
    %v2005 = vand.u32 %v1993, 2147483648
    %v2006 = vor.u32 1.1754944e-38, %v2005
    %v2007 = vsel %vm2004, %v2006, %v2002
    %v2008 = vmul.f32 1.0, %v2007
    %v2009 = vtanh.pop %v1969
    %v2010 = vxor.u32 %v1970, 2147483648
    %v2011 = vmul.f32 %v2010, 1.442695
    %v2012 = vpow.pop %v2011
    %v2013 = vadd.f32 %v2012, 1.0
    %v2014 = vrcp.pop %v2013
    %v2015 = vmul.f32 %v2013, %v2014
    %v2016 = vsub.f32 1.0, %v2015
    %v2017 = vmul.f32 %v2014, %v2016
    %v2018 = vadd.f32 %v2014, %v2017
    %vm2019 = vweird.f32 %v2013
    %vm2020 = vweird.f32 %v2014
    %vm2021 = vmor %vm2019, %vm2020
    %v2022 = vsel %vm2021, %v2014, %v2018
    %v2023 = vand.u32 2147483647, %v2013
    %vm2024 = vcmp.eq.f32.partialorder %v2023, 8.507059e+37
    %v2025 = vand.u32 %v2013, 2147483648
    %v2026 = vor.u32 1.1754944e-38, %v2025
    %v2027 = vsel %vm2024, %v2026, %v2022
    %v2028 = vmul.f32 1.0, %v2027
    %v2029 = vmul.f32 %v2008, %v1789
    %v2030 = vmul.f32 %v1989, %v2009
    %v2031 = vadd.f32 %v2029, %v2030
    %v2032 = vtanh.pop %v2031
    %v2033 = vmul.f32 %v2028, %v2032
    %v2034 = vpack.c.bf16 %v1911, %v1911
    %2035 = vmatpush.bf16.msra.mxu0 %v1273
    %2036 = vmatpush.bf16.msra.mxu0 %v1269
    %2037 = vmatpush.bf16.msra.mxu0 %v1265
    %2038 = vmatpush.bf16.msra.mxu0 %v1261
    %2039 = vmatpush.bf16.msra.mxu0 %v1257
    %2040 = vmatpush.bf16.msra.mxu0 %v1253
    %2041 = vmatpush.bf16.msra.mxu0 %v1249
    %2042 = vmatpush.bf16.msra.mxu0 %v1245
    %2043 = vmatmul.bf16.gmra.mxu0 %v2034
    %v2044 = vpop.f32.mrf.mxu0
    %v2045 = vadd.f32 0.0, %v2044
    %v2046 = vpop.f32.mrf.mxu0
    %2047 = vdwg.mxu0
    %2048 = vmatpush.bf16.msra.mxu0 %v1274
    %2049 = vmatpush.bf16.msra.mxu0 %v1270
    %2050 = vmatpush.bf16.msra.mxu0 %v1266
    %2051 = vmatpush.bf16.msra.mxu0 %v1262
    %2052 = vmatpush.bf16.msra.mxu0 %v1258
    %2053 = vmatpush.bf16.msra.mxu0 %v1254
    %2054 = vmatpush.bf16.msra.mxu0 %v1250
    %2055 = vmatpush.bf16.msra.mxu0 %v1246
    %2056 = vmatmul.bf16.gmra.mxu0 %v2034
    %v2057 = vpop.f32.mrf.mxu0
    %v2058 = vadd.f32 0.0, %v2057
    %v2059 = vpop.f32.mrf.mxu0
    %2060 = vdwg.mxu0
    %2061 = vmatpush.bf16.msra.mxu0 %v1275
    %2062 = vmatpush.bf16.msra.mxu0 %v1271
    %2063 = vmatpush.bf16.msra.mxu0 %v1267
    %2064 = vmatpush.bf16.msra.mxu0 %v1263
    %2065 = vmatpush.bf16.msra.mxu0 %v1259
    %2066 = vmatpush.bf16.msra.mxu0 %v1255
    %2067 = vmatpush.bf16.msra.mxu0 %v1251
    %2068 = vmatpush.bf16.msra.mxu0 %v1247
    %2069 = vmatmul.bf16.gmra.mxu0 %v2034
    %v2070 = vpop.f32.mrf.mxu0
    %v2071 = vadd.f32 0.0, %v2070
    %v2072 = vpop.f32.mrf.mxu0
    %2073 = vdwg.mxu0
    %2074 = vmatpush.bf16.msra.mxu0 %v1276
    %2075 = vmatpush.bf16.msra.mxu0 %v1272
    %2076 = vmatpush.bf16.msra.mxu0 %v1268
    %2077 = vmatpush.bf16.msra.mxu0 %v1264
    %2078 = vmatpush.bf16.msra.mxu0 %v1260
    %2079 = vmatpush.bf16.msra.mxu0 %v1256
    %2080 = vmatpush.bf16.msra.mxu0 %v1252
    %2081 = vmatpush.bf16.msra.mxu0 %v1248
    %2082 = vmatmul.bf16.gmra.mxu0 %v2034
    %v2083 = vpop.f32.mrf.mxu0
    %v2084 = vadd.f32 0.0, %v2083
    %v2085 = vpop.f32.mrf.mxu0
    %2086 = vdwg.mxu0
    %v2087 = vadd.f32 %v710, %v2045
    %v2088 = vadd.f32 %v739, %v2058
    %v2089 = vadd.f32 %v768, %v2071
    %v2090 = vadd.f32 %v797, %v2084
    %v2091 = vxor.u32 %v2087, 2147483648
    %v2092 = vmul.f32 %v2091, 1.442695
    %v2093 = vpow.pop %v2092
    %v2094 = vadd.f32 %v2093, 1.0
    %v2095 = vrcp.pop %v2094
    %v2096 = vmul.f32 %v2094, %v2095
    %v2097 = vsub.f32 1.0, %v2096
    %v2098 = vmul.f32 %v2095, %v2097
    %v2099 = vadd.f32 %v2095, %v2098
    %vm2100 = vweird.f32 %v2094
    %vm2101 = vweird.f32 %v2095
    %vm2102 = vmor %vm2100, %vm2101
    %v2103 = vsel %vm2102, %v2095, %v2099
    %v2104 = vand.u32 2147483647, %v2094
    %vm2105 = vcmp.eq.f32.partialorder %v2104, 8.507059e+37
    %v2106 = vand.u32 %v2094, 2147483648
    %v2107 = vor.u32 1.1754944e-38, %v2106
    %v2108 = vsel %vm2105, %v2107, %v2103
    %v2109 = vmul.f32 1.0, %v2108
    %v2110 = vxor.u32 %v2088, 2147483648
    %v2111 = vmul.f32 %v2110, 1.442695
    %v2112 = vpow.pop %v2111
    %v2113 = vadd.f32 %v2112, 1.0
    %v2114 = vrcp.pop %v2113
    %v2115 = vmul.f32 %v2113, %v2114
    %v2116 = vsub.f32 1.0, %v2115
    %v2117 = vmul.f32 %v2114, %v2116
    %v2118 = vadd.f32 %v2114, %v2117
    %vm2119 = vweird.f32 %v2113
    %vm2120 = vweird.f32 %v2114
    %vm2121 = vmor %vm2119, %vm2120
    %v2122 = vsel %vm2121, %v2114, %v2118
    %v2123 = vand.u32 2147483647, %v2113
    %vm2124 = vcmp.eq.f32.partialorder %v2123, 8.507059e+37
    %v2125 = vand.u32 %v2113, 2147483648
    %v2126 = vor.u32 1.1754944e-38, %v2125
    %v2127 = vsel %vm2124, %v2126, %v2122
    %v2128 = vmul.f32 1.0, %v2127
    %v2129 = vtanh.pop %v2089
    %v2130 = vxor.u32 %v2090, 2147483648
    %v2131 = vmul.f32 %v2130, 1.442695
    %v2132 = vpow.pop %v2131
    %v2133 = vadd.f32 %v2132, 1.0
    %v2134 = vrcp.pop %v2133
    %v2135 = vmul.f32 %v2133, %v2134
    %v2136 = vsub.f32 1.0, %v2135
    %v2137 = vmul.f32 %v2134, %v2136
    %v2138 = vadd.f32 %v2134, %v2137
    %vm2139 = vweird.f32 %v2133
    %vm2140 = vweird.f32 %v2134
    %vm2141 = vmor %vm2139, %vm2140
    %v2142 = vsel %vm2141, %v2134, %v2138
    %v2143 = vand.u32 2147483647, %v2133
    %vm2144 = vcmp.eq.f32.partialorder %v2143, 8.507059e+37
    %v2145 = vand.u32 %v2133, 2147483648
    %v2146 = vor.u32 1.1754944e-38, %v2145
    %v2147 = vsel %vm2144, %v2146, %v2142
    %v2148 = vmul.f32 1.0, %v2147
    %v2149 = vmul.f32 %v2128, %v1909
    %v2150 = vmul.f32 %v2109, %v2129
    %v2151 = vadd.f32 %v2149, %v2150
    %v2152 = vtanh.pop %v2151
    %v2153 = vmul.f32 %v2148, %v2152
    %2154 = vst [vmem:[#allocation2 + $0x30] sm:$0xff] %v2033
    %2155 = vst [vmem:[#allocation2 + $0x48] sm:$0xff] %v2153
    %v2156 = vpack.c.bf16 %v2033, %v2033
    %2157 = vmatpush.bf16.msra.mxu0 %v994
    %2158 = vmatpush.bf16.msra.mxu0 %v990
    %2159 = vmatpush.bf16.msra.mxu0 %v986
    %2160 = vmatpush.bf16.msra.mxu0 %v982
    %2161 = vmatpush.bf16.msra.mxu0 %v978
    %2162 = vmatpush.bf16.msra.mxu0 %v974
    %2163 = vmatpush.bf16.msra.mxu0 %v970
    %2164 = vmatpush.bf16.msra.mxu0 %v966
    %2165 = vmatmul.bf16.gmra.mxu0 %v2156
    %v2166 = vpop.f32.mrf.mxu0
    %v2167 = vadd.f32 0.0, %v2166
    %v2168 = vpop.f32.mrf.mxu0
    %2169 = vdwg.mxu0
    %2170 = vmatpush.bf16.msra.mxu0 %v995
    %2171 = vmatpush.bf16.msra.mxu0 %v991
    %2172 = vmatpush.bf16.msra.mxu0 %v987
    %2173 = vmatpush.bf16.msra.mxu0 %v983
    %2174 = vmatpush.bf16.msra.mxu0 %v979
    %2175 = vmatpush.bf16.msra.mxu0 %v975
    %2176 = vmatpush.bf16.msra.mxu0 %v971
    %2177 = vmatpush.bf16.msra.mxu0 %v967
    %2178 = vmatmul.bf16.gmra.mxu0 %v2156
    %v2179 = vpop.f32.mrf.mxu0
    %v2180 = vadd.f32 0.0, %v2179
    %v2181 = vpop.f32.mrf.mxu0
    %2182 = vdwg.mxu0
    %2183 = vmatpush.bf16.msra.mxu0 %v996
    %2184 = vmatpush.bf16.msra.mxu0 %v992
    %2185 = vmatpush.bf16.msra.mxu0 %v988
    %2186 = vmatpush.bf16.msra.mxu0 %v984
    %2187 = vmatpush.bf16.msra.mxu0 %v980
    %2188 = vmatpush.bf16.msra.mxu0 %v976
    %2189 = vmatpush.bf16.msra.mxu0 %v972
    %2190 = vmatpush.bf16.msra.mxu0 %v968
    %2191 = vmatmul.bf16.gmra.mxu0 %v2156
    %v2192 = vpop.f32.mrf.mxu0
    %v2193 = vadd.f32 0.0, %v2192
    %v2194 = vpop.f32.mrf.mxu0
    %2195 = vdwg.mxu0
    %2196 = vmatpush.bf16.msra.mxu0 %v997
    %2197 = vmatpush.bf16.msra.mxu0 %v993
    %2198 = vmatpush.bf16.msra.mxu0 %v989
    %2199 = vmatpush.bf16.msra.mxu0 %v985
    %2200 = vmatpush.bf16.msra.mxu0 %v981
    %2201 = vmatpush.bf16.msra.mxu0 %v977
    %2202 = vmatpush.bf16.msra.mxu0 %v973
    %2203 = vmatpush.bf16.msra.mxu0 %v969
    %2204 = vmatmul.bf16.gmra.mxu0 %v2156
    %v2205 = vpop.f32.mrf.mxu0
    %v2206 = vadd.f32 0.0, %v2205
    %v2207 = vpop.f32.mrf.mxu0
    %2208 = vdwg.mxu0
    %v2209 = vadd.f32 %v594, %v2167
    %v2210 = vadd.f32 %v623, %v2180
    %v2211 = vadd.f32 %v652, %v2193
    %v2212 = vadd.f32 %v681, %v2206
    %v2213 = vxor.u32 %v2209, 2147483648
    %v2214 = vmul.f32 %v2213, 1.442695
    %v2215 = vpow.pop %v2214
    %v2216 = vadd.f32 %v2215, 1.0
    %v2217 = vrcp.pop %v2216
    %v2218 = vmul.f32 %v2216, %v2217
    %v2219 = vsub.f32 1.0, %v2218
    %v2220 = vmul.f32 %v2217, %v2219
    %v2221 = vadd.f32 %v2217, %v2220
    %vm2222 = vweird.f32 %v2216
    %vm2223 = vweird.f32 %v2217
    %vm2224 = vmor %vm2222, %vm2223
    %v2225 = vsel %vm2224, %v2217, %v2221
    %v2226 = vand.u32 2147483647, %v2216
    %vm2227 = vcmp.eq.f32.partialorder %v2226, 8.507059e+37
    %v2228 = vand.u32 %v2216, 2147483648
    %v2229 = vor.u32 1.1754944e-38, %v2228
    %v2230 = vsel %vm2227, %v2229, %v2225
    %v2231 = vmul.f32 1.0, %v2230
    %v2232 = vxor.u32 %v2210, 2147483648
    %v2233 = vmul.f32 %v2232, 1.442695
    %v2234 = vpow.pop %v2233
    %v2235 = vadd.f32 %v2234, 1.0
    %v2236 = vrcp.pop %v2235
    %v2237 = vmul.f32 %v2235, %v2236
    %v2238 = vsub.f32 1.0, %v2237
    %v2239 = vmul.f32 %v2236, %v2238
    %v2240 = vadd.f32 %v2236, %v2239
    %vm2241 = vweird.f32 %v2235
    %vm2242 = vweird.f32 %v2236
    %vm2243 = vmor %vm2241, %vm2242
    %v2244 = vsel %vm2243, %v2236, %v2240
    %v2245 = vand.u32 2147483647, %v2235
    %vm2246 = vcmp.eq.f32.partialorder %v2245, 8.507059e+37
    %v2247 = vand.u32 %v2235, 2147483648
    %v2248 = vor.u32 1.1754944e-38, %v2247
    %v2249 = vsel %vm2246, %v2248, %v2244
    %v2250 = vmul.f32 1.0, %v2249
    %v2251 = vtanh.pop %v2211
    %v2252 = vxor.u32 %v2212, 2147483648
    %v2253 = vmul.f32 %v2252, 1.442695
    %v2254 = vpow.pop %v2253
    %v2255 = vadd.f32 %v2254, 1.0
    %v2256 = vrcp.pop %v2255
    %v2257 = vmul.f32 %v2255, %v2256
    %v2258 = vsub.f32 1.0, %v2257
    %v2259 = vmul.f32 %v2256, %v2258
    %v2260 = vadd.f32 %v2256, %v2259
    %vm2261 = vweird.f32 %v2255
    %vm2262 = vweird.f32 %v2256
    %vm2263 = vmor %vm2261, %vm2262
    %v2264 = vsel %vm2263, %v2256, %v2260
    %v2265 = vand.u32 2147483647, %v2255
    %vm2266 = vcmp.eq.f32.partialorder %v2265, 8.507059e+37
    %v2267 = vand.u32 %v2255, 2147483648
    %v2268 = vor.u32 1.1754944e-38, %v2267
    %v2269 = vsel %vm2266, %v2268, %v2264
    %v2270 = vmul.f32 1.0, %v2269
    %v2271 = vmul.f32 %v2250, %v2031
    %v2272 = vmul.f32 %v2231, %v2251
    %v2273 = vadd.f32 %v2271, %v2272
    %v2274 = vtanh.pop %v2273
    %v2275 = vmul.f32 %v2270, %v2274
    %v2276 = vpack.c.bf16 %v2153, %v2153
    %2277 = vmatpush.bf16.msra.mxu0 %v1273
    %2278 = vmatpush.bf16.msra.mxu0 %v1269
    %2279 = vmatpush.bf16.msra.mxu0 %v1265
    %2280 = vmatpush.bf16.msra.mxu0 %v1261
    %2281 = vmatpush.bf16.msra.mxu0 %v1257
    %2282 = vmatpush.bf16.msra.mxu0 %v1253
    %2283 = vmatpush.bf16.msra.mxu0 %v1249
    %2284 = vmatpush.bf16.msra.mxu0 %v1245
    %2285 = vmatmul.bf16.gmra.mxu0 %v2276
    %v2286 = vpop.f32.mrf.mxu0
    %v2287 = vadd.f32 0.0, %v2286
    %v2288 = vpop.f32.mrf.mxu0
    %2289 = vdwg.mxu0
    %2290 = vmatpush.bf16.msra.mxu0 %v1274
    %2291 = vmatpush.bf16.msra.mxu0 %v1270
    %2292 = vmatpush.bf16.msra.mxu0 %v1266
    %2293 = vmatpush.bf16.msra.mxu0 %v1262
    %2294 = vmatpush.bf16.msra.mxu0 %v1258
    %2295 = vmatpush.bf16.msra.mxu0 %v1254
    %2296 = vmatpush.bf16.msra.mxu0 %v1250
    %2297 = vmatpush.bf16.msra.mxu0 %v1246
    %2298 = vmatmul.bf16.gmra.mxu0 %v2276
    %v2299 = vpop.f32.mrf.mxu0
    %v2300 = vadd.f32 0.0, %v2299
    %v2301 = vpop.f32.mrf.mxu0
    %2302 = vdwg.mxu0
    %2303 = vmatpush.bf16.msra.mxu0 %v1275
    %2304 = vmatpush.bf16.msra.mxu0 %v1271
    %2305 = vmatpush.bf16.msra.mxu0 %v1267
    %2306 = vmatpush.bf16.msra.mxu0 %v1263
    %2307 = vmatpush.bf16.msra.mxu0 %v1259
    %2308 = vmatpush.bf16.msra.mxu0 %v1255
    %2309 = vmatpush.bf16.msra.mxu0 %v1251
    %2310 = vmatpush.bf16.msra.mxu0 %v1247
    %2311 = vmatmul.bf16.gmra.mxu0 %v2276
    %v2312 = vpop.f32.mrf.mxu0
    %v2313 = vadd.f32 0.0, %v2312
    %v2314 = vpop.f32.mrf.mxu0
    %2315 = vdwg.mxu0
    %2316 = vmatpush.bf16.msra.mxu0 %v1276
    %2317 = vmatpush.bf16.msra.mxu0 %v1272
    %2318 = vmatpush.bf16.msra.mxu0 %v1268
    %2319 = vmatpush.bf16.msra.mxu0 %v1264
    %2320 = vmatpush.bf16.msra.mxu0 %v1260
    %2321 = vmatpush.bf16.msra.mxu0 %v1256
    %2322 = vmatpush.bf16.msra.mxu0 %v1252
    %2323 = vmatpush.bf16.msra.mxu0 %v1248
    %2324 = vmatmul.bf16.gmra.mxu0 %v2276
    %v2325 = vpop.f32.mrf.mxu0
    %v2326 = vadd.f32 0.0, %v2325
    %v2327 = vpop.f32.mrf.mxu0
    %2328 = vdwg.mxu0
    %v2329 = vadd.f32 %v707, %v2287
    %v2330 = vadd.f32 %v736, %v2300
    %v2331 = vadd.f32 %v765, %v2313
    %v2332 = vadd.f32 %v794, %v2326
    %v2333 = vxor.u32 %v2329, 2147483648
    %v2334 = vmul.f32 %v2333, 1.442695
    %v2335 = vpow.pop %v2334
    %v2336 = vadd.f32 %v2335, 1.0
    %v2337 = vrcp.pop %v2336
    %v2338 = vmul.f32 %v2336, %v2337
    %v2339 = vsub.f32 1.0, %v2338
    %v2340 = vmul.f32 %v2337, %v2339
    %v2341 = vadd.f32 %v2337, %v2340
    %vm2342 = vweird.f32 %v2336
    %vm2343 = vweird.f32 %v2337
    %vm2344 = vmor %vm2342, %vm2343
    %v2345 = vsel %vm2344, %v2337, %v2341
    %v2346 = vand.u32 2147483647, %v2336
    %vm2347 = vcmp.eq.f32.partialorder %v2346, 8.507059e+37
    %v2348 = vand.u32 %v2336, 2147483648
    %v2349 = vor.u32 1.1754944e-38, %v2348
    %v2350 = vsel %vm2347, %v2349, %v2345
    %v2351 = vmul.f32 1.0, %v2350
    %v2352 = vxor.u32 %v2330, 2147483648
    %v2353 = vmul.f32 %v2352, 1.442695
    %v2354 = vpow.pop %v2353
    %v2355 = vadd.f32 %v2354, 1.0
    %v2356 = vrcp.pop %v2355
    %v2357 = vmul.f32 %v2355, %v2356
    %v2358 = vsub.f32 1.0, %v2357
    %v2359 = vmul.f32 %v2356, %v2358
    %v2360 = vadd.f32 %v2356, %v2359
    %vm2361 = vweird.f32 %v2355
    %vm2362 = vweird.f32 %v2356
    %vm2363 = vmor %vm2361, %vm2362
    %v2364 = vsel %vm2363, %v2356, %v2360
    %v2365 = vand.u32 2147483647, %v2355
    %vm2366 = vcmp.eq.f32.partialorder %v2365, 8.507059e+37
    %v2367 = vand.u32 %v2355, 2147483648
    %v2368 = vor.u32 1.1754944e-38, %v2367
    %v2369 = vsel %vm2366, %v2368, %v2364
    %v2370 = vmul.f32 1.0, %v2369
    %v2371 = vtanh.pop %v2331
    %v2372 = vxor.u32 %v2332, 2147483648
    %v2373 = vmul.f32 %v2372, 1.442695
    %v2374 = vpow.pop %v2373
    %v2375 = vadd.f32 %v2374, 1.0
    %v2376 = vrcp.pop %v2375
    %v2377 = vmul.f32 %v2375, %v2376
    %v2378 = vsub.f32 1.0, %v2377
    %v2379 = vmul.f32 %v2376, %v2378
    %v2380 = vadd.f32 %v2376, %v2379
    %vm2381 = vweird.f32 %v2375
    %vm2382 = vweird.f32 %v2376
    %vm2383 = vmor %vm2381, %vm2382
    %v2384 = vsel %vm2383, %v2376, %v2380
    %v2385 = vand.u32 2147483647, %v2375
    %vm2386 = vcmp.eq.f32.partialorder %v2385, 8.507059e+37
    %v2387 = vand.u32 %v2375, 2147483648
    %v2388 = vor.u32 1.1754944e-38, %v2387
    %v2389 = vsel %vm2386, %v2388, %v2384
    %v2390 = vmul.f32 1.0, %v2389
    %v2391 = vmul.f32 %v2370, %v2151
    %v2392 = vmul.f32 %v2351, %v2371
    %v2393 = vadd.f32 %v2391, %v2392
    %v2394 = vtanh.pop %v2393
    %v2395 = vmul.f32 %v2390, %v2394
    %2396 = vst [vmem:[#allocation2 + $0x40] sm:$0xff] %v2275
    %2397 = vst [vmem:[#allocation2 + $0x38] sm:$0xff] %v2395
    %v2398 = vpack.c.bf16 %v2275, %v2275
    %2399 = vmatpush.bf16.msra.mxu0 %v994
    %2400 = vmatpush.bf16.msra.mxu0 %v990
    %2401 = vmatpush.bf16.msra.mxu0 %v986
    %2402 = vmatpush.bf16.msra.mxu0 %v982
    %2403 = vmatpush.bf16.msra.mxu0 %v978
    %2404 = vmatpush.bf16.msra.mxu0 %v974
    %2405 = vmatpush.bf16.msra.mxu0 %v970
    %2406 = vmatpush.bf16.msra.mxu0 %v966
    %2407 = vmatmul.bf16.gmra.mxu0 %v2398
    %v2408 = vpop.f32.mrf.mxu0
    %v2409 = vadd.f32 0.0, %v2408
    %v2410 = vpop.f32.mrf.mxu0
    %2411 = vdwg.mxu0
    %2412 = vmatpush.bf16.msra.mxu0 %v995
    %2413 = vmatpush.bf16.msra.mxu0 %v991
    %2414 = vmatpush.bf16.msra.mxu0 %v987
    %2415 = vmatpush.bf16.msra.mxu0 %v983
    %2416 = vmatpush.bf16.msra.mxu0 %v979
    %2417 = vmatpush.bf16.msra.mxu0 %v975
    %2418 = vmatpush.bf16.msra.mxu0 %v971
    %2419 = vmatpush.bf16.msra.mxu0 %v967
    %2420 = vmatmul.bf16.gmra.mxu0 %v2398
    %v2421 = vpop.f32.mrf.mxu0
    %v2422 = vadd.f32 0.0, %v2421
    %v2423 = vpop.f32.mrf.mxu0
    %2424 = vdwg.mxu0
    %2425 = vmatpush.bf16.msra.mxu0 %v996
    %2426 = vmatpush.bf16.msra.mxu0 %v992
    %2427 = vmatpush.bf16.msra.mxu0 %v988
    %2428 = vmatpush.bf16.msra.mxu0 %v984
    %2429 = vmatpush.bf16.msra.mxu0 %v980
    %2430 = vmatpush.bf16.msra.mxu0 %v976
    %2431 = vmatpush.bf16.msra.mxu0 %v972
    %2432 = vmatpush.bf16.msra.mxu0 %v968
    %2433 = vmatmul.bf16.gmra.mxu0 %v2398
    %v2434 = vpop.f32.mrf.mxu0
    %v2435 = vadd.f32 0.0, %v2434
    %v2436 = vpop.f32.mrf.mxu0
    %2437 = vdwg.mxu0
    %2438 = vmatpush.bf16.msra.mxu0 %v997
    %2439 = vmatpush.bf16.msra.mxu0 %v993
    %2440 = vmatpush.bf16.msra.mxu0 %v989
    %2441 = vmatpush.bf16.msra.mxu0 %v985
    %2442 = vmatpush.bf16.msra.mxu0 %v981
    %2443 = vmatpush.bf16.msra.mxu0 %v977
    %2444 = vmatpush.bf16.msra.mxu0 %v973
    %2445 = vmatpush.bf16.msra.mxu0 %v969
    %2446 = vmatmul.bf16.gmra.mxu0 %v2398
    %v2447 = vpop.f32.mrf.mxu0
    %v2448 = vadd.f32 0.0, %v2447
    %v2449 = vpop.f32.mrf.mxu0
    %2450 = vdwg.mxu0
    %v2451 = vadd.f32 %v596, %v2409
    %v2452 = vadd.f32 %v625, %v2422
    %v2453 = vadd.f32 %v654, %v2435
    %v2454 = vadd.f32 %v683, %v2448
    %v2455 = vxor.u32 %v2451, 2147483648
    %v2456 = vmul.f32 %v2455, 1.442695
    %v2457 = vpow.pop %v2456
    %v2458 = vadd.f32 %v2457, 1.0
    %v2459 = vrcp.pop %v2458
    %v2460 = vmul.f32 %v2458, %v2459
    %v2461 = vsub.f32 1.0, %v2460
    %v2462 = vmul.f32 %v2459, %v2461
    %v2463 = vadd.f32 %v2459, %v2462
    %vm2464 = vweird.f32 %v2458
    %vm2465 = vweird.f32 %v2459
    %vm2466 = vmor %vm2464, %vm2465
    %v2467 = vsel %vm2466, %v2459, %v2463
    %v2468 = vand.u32 2147483647, %v2458
    %vm2469 = vcmp.eq.f32.partialorder %v2468, 8.507059e+37
    %v2470 = vand.u32 %v2458, 2147483648
    %v2471 = vor.u32 1.1754944e-38, %v2470
    %v2472 = vsel %vm2469, %v2471, %v2467
    %v2473 = vmul.f32 1.0, %v2472
    %v2474 = vxor.u32 %v2452, 2147483648
    %v2475 = vmul.f32 %v2474, 1.442695
    %v2476 = vpow.pop %v2475
    %v2477 = vadd.f32 %v2476, 1.0
    %v2478 = vrcp.pop %v2477
    %v2479 = vmul.f32 %v2477, %v2478
    %v2480 = vsub.f32 1.0, %v2479
    %v2481 = vmul.f32 %v2478, %v2480
    %v2482 = vadd.f32 %v2478, %v2481
    %vm2483 = vweird.f32 %v2477
    %vm2484 = vweird.f32 %v2478
    %vm2485 = vmor %vm2483, %vm2484
    %v2486 = vsel %vm2485, %v2478, %v2482
    %v2487 = vand.u32 2147483647, %v2477
    %vm2488 = vcmp.eq.f32.partialorder %v2487, 8.507059e+37
    %v2489 = vand.u32 %v2477, 2147483648
    %v2490 = vor.u32 1.1754944e-38, %v2489
    %v2491 = vsel %vm2488, %v2490, %v2486
    %v2492 = vmul.f32 1.0, %v2491
    %v2493 = vtanh.pop %v2453
    %v2494 = vxor.u32 %v2454, 2147483648
    %v2495 = vmul.f32 %v2494, 1.442695
    %v2496 = vpow.pop %v2495
    %v2497 = vadd.f32 %v2496, 1.0
    %v2498 = vrcp.pop %v2497
    %v2499 = vmul.f32 %v2497, %v2498
    %v2500 = vsub.f32 1.0, %v2499
    %v2501 = vmul.f32 %v2498, %v2500
    %v2502 = vadd.f32 %v2498, %v2501
    %vm2503 = vweird.f32 %v2497
    %vm2504 = vweird.f32 %v2498
    %vm2505 = vmor %vm2503, %vm2504
    %v2506 = vsel %vm2505, %v2498, %v2502
    %v2507 = vand.u32 2147483647, %v2497
    %vm2508 = vcmp.eq.f32.partialorder %v2507, 8.507059e+37
    %v2509 = vand.u32 %v2497, 2147483648
    %v2510 = vor.u32 1.1754944e-38, %v2509
    %v2511 = vsel %vm2508, %v2510, %v2506
    %v2512 = vmul.f32 1.0, %v2511
    %v2513 = vmul.f32 %v2492, %v2273
    %v2514 = vmul.f32 %v2473, %v2493
    %v2515 = vadd.f32 %v2513, %v2514
    %v2516 = vtanh.pop %v2515
    %v2517 = vmul.f32 %v2512, %v2516
    %v2518 = vpack.c.bf16 %v2395, %v2395
    %2519 = vmatpush.bf16.msra.mxu0 %v1273
    %2520 = vmatpush.bf16.msra.mxu0 %v1269
    %2521 = vmatpush.bf16.msra.mxu0 %v1265
    %2522 = vmatpush.bf16.msra.mxu0 %v1261
    %2523 = vmatpush.bf16.msra.mxu0 %v1257
    %2524 = vmatpush.bf16.msra.mxu0 %v1253
    %2525 = vmatpush.bf16.msra.mxu0 %v1249
    %2526 = vmatpush.bf16.msra.mxu0 %v1245
    %2527 = vmatmul.bf16.gmra.mxu0 %v2518
    %v2528 = vpop.f32.mrf.mxu0
    %v2529 = vadd.f32 0.0, %v2528
    %v2530 = vpop.f32.mrf.mxu0
    %2531 = vdwg.mxu0
    %2532 = vmatpush.bf16.msra.mxu0 %v1274
    %2533 = vmatpush.bf16.msra.mxu0 %v1270
    %2534 = vmatpush.bf16.msra.mxu0 %v1266
    %2535 = vmatpush.bf16.msra.mxu0 %v1262
    %2536 = vmatpush.bf16.msra.mxu0 %v1258
    %2537 = vmatpush.bf16.msra.mxu0 %v1254
    %2538 = vmatpush.bf16.msra.mxu0 %v1250
    %2539 = vmatpush.bf16.msra.mxu0 %v1246
    %2540 = vmatmul.bf16.gmra.mxu0 %v2518
    %v2541 = vpop.f32.mrf.mxu0
    %v2542 = vadd.f32 0.0, %v2541
    %v2543 = vpop.f32.mrf.mxu0
    %2544 = vdwg.mxu0
    %2545 = vmatpush.bf16.msra.mxu0 %v1275
    %2546 = vmatpush.bf16.msra.mxu0 %v1271
    %2547 = vmatpush.bf16.msra.mxu0 %v1267
    %2548 = vmatpush.bf16.msra.mxu0 %v1263
    %2549 = vmatpush.bf16.msra.mxu0 %v1259
    %2550 = vmatpush.bf16.msra.mxu0 %v1255
    %2551 = vmatpush.bf16.msra.mxu0 %v1251
    %2552 = vmatpush.bf16.msra.mxu0 %v1247
    %2553 = vmatmul.bf16.gmra.mxu0 %v2518
    %v2554 = vpop.f32.mrf.mxu0
    %v2555 = vadd.f32 0.0, %v2554
    %v2556 = vpop.f32.mrf.mxu0
    %2557 = vdwg.mxu0
    %2558 = vmatpush.bf16.msra.mxu0 %v1276
    %2559 = vmatpush.bf16.msra.mxu0 %v1272
    %2560 = vmatpush.bf16.msra.mxu0 %v1268
    %2561 = vmatpush.bf16.msra.mxu0 %v1264
    %2562 = vmatpush.bf16.msra.mxu0 %v1260
    %2563 = vmatpush.bf16.msra.mxu0 %v1256
    %2564 = vmatpush.bf16.msra.mxu0 %v1252
    %2565 = vmatpush.bf16.msra.mxu0 %v1248
    %2566 = vmatmul.bf16.gmra.mxu0 %v2518
    %v2567 = vpop.f32.mrf.mxu0
    %v2568 = vadd.f32 0.0, %v2567
    %v2569 = vpop.f32.mrf.mxu0
    %2570 = vdwg.mxu0
    %v2571 = vadd.f32 %v705, %v2529
    %v2572 = vadd.f32 %v734, %v2542
    %v2573 = vadd.f32 %v763, %v2555
    %v2574 = vadd.f32 %v792, %v2568
    %v2575 = vxor.u32 %v2571, 2147483648
    %v2576 = vmul.f32 %v2575, 1.442695
    %v2577 = vpow.pop %v2576
    %v2578 = vadd.f32 %v2577, 1.0
    %v2579 = vrcp.pop %v2578
    %v2580 = vmul.f32 %v2578, %v2579
    %v2581 = vsub.f32 1.0, %v2580
    %v2582 = vmul.f32 %v2579, %v2581
    %v2583 = vadd.f32 %v2579, %v2582
    %vm2584 = vweird.f32 %v2578
    %vm2585 = vweird.f32 %v2579
    %vm2586 = vmor %vm2584, %vm2585
    %v2587 = vsel %vm2586, %v2579, %v2583
    %v2588 = vand.u32 2147483647, %v2578
    %vm2589 = vcmp.eq.f32.partialorder %v2588, 8.507059e+37
    %v2590 = vand.u32 %v2578, 2147483648
    %v2591 = vor.u32 1.1754944e-38, %v2590
    %v2592 = vsel %vm2589, %v2591, %v2587
    %v2593 = vmul.f32 1.0, %v2592
    %v2594 = vxor.u32 %v2572, 2147483648
    %v2595 = vmul.f32 %v2594, 1.442695
    %v2596 = vpow.pop %v2595
    %v2597 = vadd.f32 %v2596, 1.0
    %v2598 = vrcp.pop %v2597
    %v2599 = vmul.f32 %v2597, %v2598
    %v2600 = vsub.f32 1.0, %v2599
    %v2601 = vmul.f32 %v2598, %v2600
    %v2602 = vadd.f32 %v2598, %v2601
    %vm2603 = vweird.f32 %v2597
    %vm2604 = vweird.f32 %v2598
    %vm2605 = vmor %vm2603, %vm2604
    %v2606 = vsel %vm2605, %v2598, %v2602
    %v2607 = vand.u32 2147483647, %v2597
    %vm2608 = vcmp.eq.f32.partialorder %v2607, 8.507059e+37
    %v2609 = vand.u32 %v2597, 2147483648
    %v2610 = vor.u32 1.1754944e-38, %v2609
    %v2611 = vsel %vm2608, %v2610, %v2606
    %v2612 = vmul.f32 1.0, %v2611
    %v2613 = vtanh.pop %v2573
    %v2614 = vxor.u32 %v2574, 2147483648
    %v2615 = vmul.f32 %v2614, 1.442695
    %v2616 = vpow.pop %v2615
    %v2617 = vadd.f32 %v2616, 1.0
    %v2618 = vrcp.pop %v2617
    %v2619 = vmul.f32 %v2617, %v2618
    %v2620 = vsub.f32 1.0, %v2619
    %v2621 = vmul.f32 %v2618, %v2620
    %v2622 = vadd.f32 %v2618, %v2621
    %vm2623 = vweird.f32 %v2617
    %vm2624 = vweird.f32 %v2618
    %vm2625 = vmor %vm2623, %vm2624
    %v2626 = vsel %vm2625, %v2618, %v2622
    %v2627 = vand.u32 2147483647, %v2617
    %vm2628 = vcmp.eq.f32.partialorder %v2627, 8.507059e+37
    %v2629 = vand.u32 %v2617, 2147483648
    %v2630 = vor.u32 1.1754944e-38, %v2629
    %v2631 = vsel %vm2628, %v2630, %v2626
    %v2632 = vmul.f32 1.0, %v2631
    %v2633 = vmul.f32 %v2612, %v2393
    %v2634 = vmul.f32 %v2593, %v2613
    %v2635 = vadd.f32 %v2633, %v2634
    %v2636 = vtanh.pop %v2635
    %v2637 = vmul.f32 %v2632, %v2636
    %2638 = vst [vmem:[#allocation2 + $0x50] sm:$0xff] %v2517
    %2639 = vst [vmem:[#allocation2 + $0x28] sm:$0xff] %v2637
    %v2640 = vpack.c.bf16 %v2517, %v2517
    %2641 = vmatpush.bf16.msra.mxu0 %v994
    %2642 = vmatpush.bf16.msra.mxu0 %v990
    %2643 = vmatpush.bf16.msra.mxu0 %v986
    %2644 = vmatpush.bf16.msra.mxu0 %v982
    %2645 = vmatpush.bf16.msra.mxu0 %v978
    %2646 = vmatpush.bf16.msra.mxu0 %v974
    %2647 = vmatpush.bf16.msra.mxu0 %v970
    %2648 = vmatpush.bf16.msra.mxu0 %v966
    %2649 = vmatmul.bf16.gmra.mxu0 %v2640
    %v2650 = vpop.f32.mrf.mxu0
    %v2651 = vadd.f32 0.0, %v2650
    %v2652 = vpop.f32.mrf.mxu0
    %2653 = vdwg.mxu0
    %2654 = vmatpush.bf16.msra.mxu0 %v995
    %2655 = vmatpush.bf16.msra.mxu0 %v991
    %2656 = vmatpush.bf16.msra.mxu0 %v987
    %2657 = vmatpush.bf16.msra.mxu0 %v983
    %2658 = vmatpush.bf16.msra.mxu0 %v979
    %2659 = vmatpush.bf16.msra.mxu0 %v975
    %2660 = vmatpush.bf16.msra.mxu0 %v971
    %2661 = vmatpush.bf16.msra.mxu0 %v967
    %2662 = vmatmul.bf16.gmra.mxu0 %v2640
    %v2663 = vpop.f32.mrf.mxu0
    %v2664 = vadd.f32 0.0, %v2663
    %v2665 = vpop.f32.mrf.mxu0
    %2666 = vdwg.mxu0
    %2667 = vmatpush.bf16.msra.mxu0 %v996
    %2668 = vmatpush.bf16.msra.mxu0 %v992
    %2669 = vmatpush.bf16.msra.mxu0 %v988
    %2670 = vmatpush.bf16.msra.mxu0 %v984
    %2671 = vmatpush.bf16.msra.mxu0 %v980
    %2672 = vmatpush.bf16.msra.mxu0 %v976
    %2673 = vmatpush.bf16.msra.mxu0 %v972
    %2674 = vmatpush.bf16.msra.mxu0 %v968
    %2675 = vmatmul.bf16.gmra.mxu0 %v2640
    %v2676 = vpop.f32.mrf.mxu0
    %v2677 = vadd.f32 0.0, %v2676
    %v2678 = vpop.f32.mrf.mxu0
    %2679 = vdwg.mxu0
    %2680 = vmatpush.bf16.msra.mxu0 %v997
    %2681 = vmatpush.bf16.msra.mxu0 %v993
    %2682 = vmatpush.bf16.msra.mxu0 %v989
    %2683 = vmatpush.bf16.msra.mxu0 %v985
    %2684 = vmatpush.bf16.msra.mxu0 %v981
    %2685 = vmatpush.bf16.msra.mxu0 %v977
    %2686 = vmatpush.bf16.msra.mxu0 %v973
    %2687 = vmatpush.bf16.msra.mxu0 %v969
    %2688 = vmatmul.bf16.gmra.mxu0 %v2640
    %v2689 = vpop.f32.mrf.mxu0
    %v2690 = vadd.f32 0.0, %v2689
    %v2691 = vpop.f32.mrf.mxu0
    %2692 = vdwg.mxu0
    %v2693 = vadd.f32 %v599, %v2651
    %v2694 = vadd.f32 %v628, %v2664
    %v2695 = vadd.f32 %v657, %v2677
    %v2696 = vadd.f32 %v686, %v2690
    %v2697 = vxor.u32 %v2693, 2147483648
    %v2698 = vmul.f32 %v2697, 1.442695
    %v2699 = vpow.pop %v2698
    %v2700 = vadd.f32 %v2699, 1.0
    %v2701 = vrcp.pop %v2700
    %v2702 = vmul.f32 %v2700, %v2701
    %v2703 = vsub.f32 1.0, %v2702
    %v2704 = vmul.f32 %v2701, %v2703
    %v2705 = vadd.f32 %v2701, %v2704
    %vm2706 = vweird.f32 %v2700
    %vm2707 = vweird.f32 %v2701
    %vm2708 = vmor %vm2706, %vm2707
    %v2709 = vsel %vm2708, %v2701, %v2705
    %v2710 = vand.u32 2147483647, %v2700
    %vm2711 = vcmp.eq.f32.partialorder %v2710, 8.507059e+37
    %v2712 = vand.u32 %v2700, 2147483648
    %v2713 = vor.u32 1.1754944e-38, %v2712
    %v2714 = vsel %vm2711, %v2713, %v2709
    %v2715 = vmul.f32 1.0, %v2714
    %v2716 = vxor.u32 %v2694, 2147483648
    %v2717 = vmul.f32 %v2716, 1.442695
    %v2718 = vpow.pop %v2717
    %v2719 = vadd.f32 %v2718, 1.0
    %v2720 = vrcp.pop %v2719
    %v2721 = vmul.f32 %v2719, %v2720
    %v2722 = vsub.f32 1.0, %v2721
    %v2723 = vmul.f32 %v2720, %v2722
    %v2724 = vadd.f32 %v2720, %v2723
    %vm2725 = vweird.f32 %v2719
    %vm2726 = vweird.f32 %v2720
    %vm2727 = vmor %vm2725, %vm2726
    %v2728 = vsel %vm2727, %v2720, %v2724
    %v2729 = vand.u32 2147483647, %v2719
    %vm2730 = vcmp.eq.f32.partialorder %v2729, 8.507059e+37
    %v2731 = vand.u32 %v2719, 2147483648
    %v2732 = vor.u32 1.1754944e-38, %v2731
    %v2733 = vsel %vm2730, %v2732, %v2728
    %v2734 = vmul.f32 1.0, %v2733
    %v2735 = vtanh.pop %v2695
    %v2736 = vxor.u32 %v2696, 2147483648
    %v2737 = vmul.f32 %v2736, 1.442695
    %v2738 = vpow.pop %v2737
    %v2739 = vadd.f32 %v2738, 1.0
    %v2740 = vrcp.pop %v2739
    %v2741 = vmul.f32 %v2739, %v2740
    %v2742 = vsub.f32 1.0, %v2741
    %v2743 = vmul.f32 %v2740, %v2742
    %v2744 = vadd.f32 %v2740, %v2743
    %vm2745 = vweird.f32 %v2739
    %vm2746 = vweird.f32 %v2740
    %vm2747 = vmor %vm2745, %vm2746
    %v2748 = vsel %vm2747, %v2740, %v2744
    %v2749 = vand.u32 2147483647, %v2739
    %vm2750 = vcmp.eq.f32.partialorder %v2749, 8.507059e+37
    %v2751 = vand.u32 %v2739, 2147483648
    %v2752 = vor.u32 1.1754944e-38, %v2751
    %v2753 = vsel %vm2750, %v2752, %v2748
    %v2754 = vmul.f32 1.0, %v2753
    %v2755 = vmul.f32 %v2734, %v2515
    %v2756 = vmul.f32 %v2715, %v2735
    %v2757 = vadd.f32 %v2755, %v2756
    %v2758 = vtanh.pop %v2757
    %v2759 = vmul.f32 %v2754, %v2758
    %v2760 = vpack.c.bf16 %v2637, %v2637
    %2761 = vmatpush.bf16.msra.mxu0 %v1273
    %2762 = vmatpush.bf16.msra.mxu0 %v1269
    %2763 = vmatpush.bf16.msra.mxu0 %v1265
    %2764 = vmatpush.bf16.msra.mxu0 %v1261
    %2765 = vmatpush.bf16.msra.mxu0 %v1257
    %2766 = vmatpush.bf16.msra.mxu0 %v1253
    %2767 = vmatpush.bf16.msra.mxu0 %v1249
    %2768 = vmatpush.bf16.msra.mxu0 %v1245
    %2769 = vmatmul.bf16.gmra.mxu0 %v2760
    %v2770 = vpop.f32.mrf.mxu0
    %v2771 = vadd.f32 0.0, %v2770
    %v2772 = vpop.f32.mrf.mxu0
    %2773 = vdwg.mxu0
    %2774 = vmatpush.bf16.msra.mxu0 %v1274
    %2775 = vmatpush.bf16.msra.mxu0 %v1270
    %2776 = vmatpush.bf16.msra.mxu0 %v1266
    %2777 = vmatpush.bf16.msra.mxu0 %v1262
    %2778 = vmatpush.bf16.msra.mxu0 %v1258
    %2779 = vmatpush.bf16.msra.mxu0 %v1254
    %2780 = vmatpush.bf16.msra.mxu0 %v1250
    %2781 = vmatpush.bf16.msra.mxu0 %v1246
    %2782 = vmatmul.bf16.gmra.mxu0 %v2760
    %v2783 = vpop.f32.mrf.mxu0
    %v2784 = vadd.f32 0.0, %v2783
    %v2785 = vpop.f32.mrf.mxu0
    %2786 = vdwg.mxu0
    %2787 = vmatpush.bf16.msra.mxu0 %v1275
    %2788 = vmatpush.bf16.msra.mxu0 %v1271
    %2789 = vmatpush.bf16.msra.mxu0 %v1267
    %2790 = vmatpush.bf16.msra.mxu0 %v1263
    %2791 = vmatpush.bf16.msra.mxu0 %v1259
    %2792 = vmatpush.bf16.msra.mxu0 %v1255
    %2793 = vmatpush.bf16.msra.mxu0 %v1251
    %2794 = vmatpush.bf16.msra.mxu0 %v1247
    %2795 = vmatmul.bf16.gmra.mxu0 %v2760
    %v2796 = vpop.f32.mrf.mxu0
    %v2797 = vadd.f32 0.0, %v2796
    %v2798 = vpop.f32.mrf.mxu0
    %2799 = vdwg.mxu0
    %2800 = vmatpush.bf16.msra.mxu0 %v1276
    %2801 = vmatpush.bf16.msra.mxu0 %v1272
    %2802 = vmatpush.bf16.msra.mxu0 %v1268
    %2803 = vmatpush.bf16.msra.mxu0 %v1264
    %2804 = vmatpush.bf16.msra.mxu0 %v1260
    %2805 = vmatpush.bf16.msra.mxu0 %v1256
    %2806 = vmatpush.bf16.msra.mxu0 %v1252
    %2807 = vmatpush.bf16.msra.mxu0 %v1248
    %2808 = vmatmul.bf16.gmra.mxu0 %v2760
    %v2809 = vpop.f32.mrf.mxu0
    %v2810 = vadd.f32 0.0, %v2809
    %v2811 = vpop.f32.mrf.mxu0
    %2812 = vdwg.mxu0
    %v2813 = vadd.f32 %v702, %v2771
    %v2814 = vadd.f32 %v731, %v2784
    %v2815 = vadd.f32 %v760, %v2797
    %v2816 = vadd.f32 %v789, %v2810
    %v2817 = vxor.u32 %v2813, 2147483648
    %v2818 = vmul.f32 %v2817, 1.442695
    %v2819 = vpow.pop %v2818
    %v2820 = vadd.f32 %v2819, 1.0
    %v2821 = vrcp.pop %v2820
    %v2822 = vmul.f32 %v2820, %v2821
    %v2823 = vsub.f32 1.0, %v2822
    %v2824 = vmul.f32 %v2821, %v2823
    %v2825 = vadd.f32 %v2821, %v2824
    %vm2826 = vweird.f32 %v2820
    %vm2827 = vweird.f32 %v2821
    %vm2828 = vmor %vm2826, %vm2827
    %v2829 = vsel %vm2828, %v2821, %v2825
    %v2830 = vand.u32 2147483647, %v2820
    %vm2831 = vcmp.eq.f32.partialorder %v2830, 8.507059e+37
    %v2832 = vand.u32 %v2820, 2147483648
    %v2833 = vor.u32 1.1754944e-38, %v2832
    %v2834 = vsel %vm2831, %v2833, %v2829
    %v2835 = vmul.f32 1.0, %v2834
    %v2836 = vxor.u32 %v2814, 2147483648
    %v2837 = vmul.f32 %v2836, 1.442695
    %v2838 = vpow.pop %v2837
    %v2839 = vadd.f32 %v2838, 1.0
    %v2840 = vrcp.pop %v2839
    %v2841 = vmul.f32 %v2839, %v2840
    %v2842 = vsub.f32 1.0, %v2841
    %v2843 = vmul.f32 %v2840, %v2842
    %v2844 = vadd.f32 %v2840, %v2843
    %vm2845 = vweird.f32 %v2839
    %vm2846 = vweird.f32 %v2840
    %vm2847 = vmor %vm2845, %vm2846
    %v2848 = vsel %vm2847, %v2840, %v2844
    %v2849 = vand.u32 2147483647, %v2839
    %vm2850 = vcmp.eq.f32.partialorder %v2849, 8.507059e+37
    %v2851 = vand.u32 %v2839, 2147483648
    %v2852 = vor.u32 1.1754944e-38, %v2851
    %v2853 = vsel %vm2850, %v2852, %v2848
    %v2854 = vmul.f32 1.0, %v2853
    %v2855 = vtanh.pop %v2815
    %v2856 = vxor.u32 %v2816, 2147483648
    %v2857 = vmul.f32 %v2856, 1.442695
    %v2858 = vpow.pop %v2857
    %v2859 = vadd.f32 %v2858, 1.0
    %v2860 = vrcp.pop %v2859
    %v2861 = vmul.f32 %v2859, %v2860
    %v2862 = vsub.f32 1.0, %v2861
    %v2863 = vmul.f32 %v2860, %v2862
    %v2864 = vadd.f32 %v2860, %v2863
    %vm2865 = vweird.f32 %v2859
    %vm2866 = vweird.f32 %v2860
    %vm2867 = vmor %vm2865, %vm2866
    %v2868 = vsel %vm2867, %v2860, %v2864
    %v2869 = vand.u32 2147483647, %v2859
    %vm2870 = vcmp.eq.f32.partialorder %v2869, 8.507059e+37
    %v2871 = vand.u32 %v2859, 2147483648
    %v2872 = vor.u32 1.1754944e-38, %v2871
    %v2873 = vsel %vm2870, %v2872, %v2868
    %v2874 = vmul.f32 1.0, %v2873
    %v2875 = vmul.f32 %v2854, %v2635
    %v2876 = vmul.f32 %v2835, %v2855
    %v2877 = vadd.f32 %v2875, %v2876
    %v2878 = vtanh.pop %v2877
    %v2879 = vmul.f32 %v2874, %v2878
    %2880 = vst [vmem:[#allocation2 + $0x60] sm:$0xff] %v2759
    %2881 = vst [vmem:[#allocation2 + $0x18] sm:$0xff] %v2879
    %v2882 = vpack.c.bf16 %v2759, %v2759
    %2883 = vmatpush.bf16.msra.mxu0 %v994
    %2884 = vmatpush.bf16.msra.mxu0 %v990
    %2885 = vmatpush.bf16.msra.mxu0 %v986
    %2886 = vmatpush.bf16.msra.mxu0 %v982
    %2887 = vmatpush.bf16.msra.mxu0 %v978
    %2888 = vmatpush.bf16.msra.mxu0 %v974
    %2889 = vmatpush.bf16.msra.mxu0 %v970
    %2890 = vmatpush.bf16.msra.mxu0 %v966
    %2891 = vmatmul.bf16.gmra.mxu0 %v2882
    %v2892 = vpop.f32.mrf.mxu0
    %v2893 = vadd.f32 0.0, %v2892
    %v2894 = vpop.f32.mrf.mxu0
    %2895 = vdwg.mxu0
    %2896 = vmatpush.bf16.msra.mxu0 %v995
    %2897 = vmatpush.bf16.msra.mxu0 %v991
    %2898 = vmatpush.bf16.msra.mxu0 %v987
    %2899 = vmatpush.bf16.msra.mxu0 %v983
    %2900 = vmatpush.bf16.msra.mxu0 %v979
    %2901 = vmatpush.bf16.msra.mxu0 %v975
    %2902 = vmatpush.bf16.msra.mxu0 %v971
    %2903 = vmatpush.bf16.msra.mxu0 %v967
    %2904 = vmatmul.bf16.gmra.mxu0 %v2882
    %v2905 = vpop.f32.mrf.mxu0
    %v2906 = vadd.f32 0.0, %v2905
    %v2907 = vpop.f32.mrf.mxu0
    %2908 = vdwg.mxu0
    %2909 = vmatpush.bf16.msra.mxu0 %v996
    %2910 = vmatpush.bf16.msra.mxu0 %v992
    %2911 = vmatpush.bf16.msra.mxu0 %v988
    %2912 = vmatpush.bf16.msra.mxu0 %v984
    %2913 = vmatpush.bf16.msra.mxu0 %v980
    %2914 = vmatpush.bf16.msra.mxu0 %v976
    %2915 = vmatpush.bf16.msra.mxu0 %v972
    %2916 = vmatpush.bf16.msra.mxu0 %v968
    %2917 = vmatmul.bf16.gmra.mxu0 %v2882
    %v2918 = vpop.f32.mrf.mxu0
    %v2919 = vadd.f32 0.0, %v2918
    %v2920 = vpop.f32.mrf.mxu0
    %2921 = vdwg.mxu0
    %2922 = vmatpush.bf16.msra.mxu0 %v997
    %2923 = vmatpush.bf16.msra.mxu0 %v993
    %2924 = vmatpush.bf16.msra.mxu0 %v989
    %2925 = vmatpush.bf16.msra.mxu0 %v985
    %2926 = vmatpush.bf16.msra.mxu0 %v981
    %2927 = vmatpush.bf16.msra.mxu0 %v977
    %2928 = vmatpush.bf16.msra.mxu0 %v973
    %2929 = vmatpush.bf16.msra.mxu0 %v969
    %2930 = vmatmul.bf16.gmra.mxu0 %v2882
    %v2931 = vpop.f32.mrf.mxu0
    %v2932 = vadd.f32 0.0, %v2931
    %v2933 = vpop.f32.mrf.mxu0
    %2934 = vdwg.mxu0
    %v2935 = vadd.f32 %v601, %v2893
    %v2936 = vadd.f32 %v630, %v2906
    %v2937 = vadd.f32 %v659, %v2919
    %v2938 = vadd.f32 %v688, %v2932
    %v2939 = vxor.u32 %v2935, 2147483648
    %v2940 = vmul.f32 %v2939, 1.442695
    %v2941 = vpow.pop %v2940
    %v2942 = vadd.f32 %v2941, 1.0
    %v2943 = vrcp.pop %v2942
    %v2944 = vmul.f32 %v2942, %v2943
    %v2945 = vsub.f32 1.0, %v2944
    %v2946 = vmul.f32 %v2943, %v2945
    %v2947 = vadd.f32 %v2943, %v2946
    %vm2948 = vweird.f32 %v2942
    %vm2949 = vweird.f32 %v2943
    %vm2950 = vmor %vm2948, %vm2949
    %v2951 = vsel %vm2950, %v2943, %v2947
    %v2952 = vand.u32 2147483647, %v2942
    %vm2953 = vcmp.eq.f32.partialorder %v2952, 8.507059e+37
    %v2954 = vand.u32 %v2942, 2147483648
    %v2955 = vor.u32 1.1754944e-38, %v2954
    %v2956 = vsel %vm2953, %v2955, %v2951
    %v2957 = vmul.f32 1.0, %v2956
    %v2958 = vxor.u32 %v2936, 2147483648
    %v2959 = vmul.f32 %v2958, 1.442695
    %v2960 = vpow.pop %v2959
    %v2961 = vadd.f32 %v2960, 1.0
    %v2962 = vrcp.pop %v2961
    %v2963 = vmul.f32 %v2961, %v2962
    %v2964 = vsub.f32 1.0, %v2963
    %v2965 = vmul.f32 %v2962, %v2964
    %v2966 = vadd.f32 %v2962, %v2965
    %vm2967 = vweird.f32 %v2961
    %vm2968 = vweird.f32 %v2962
    %vm2969 = vmor %vm2967, %vm2968
    %v2970 = vsel %vm2969, %v2962, %v2966
    %v2971 = vand.u32 2147483647, %v2961
    %vm2972 = vcmp.eq.f32.partialorder %v2971, 8.507059e+37
    %v2973 = vand.u32 %v2961, 2147483648
    %v2974 = vor.u32 1.1754944e-38, %v2973
    %v2975 = vsel %vm2972, %v2974, %v2970
    %v2976 = vmul.f32 1.0, %v2975
    %v2977 = vtanh.pop %v2937
    %v2978 = vxor.u32 %v2938, 2147483648
    %v2979 = vmul.f32 %v2978, 1.442695
    %v2980 = vpow.pop %v2979
    %v2981 = vadd.f32 %v2980, 1.0
    %v2982 = vrcp.pop %v2981
    %v2983 = vmul.f32 %v2981, %v2982
    %v2984 = vsub.f32 1.0, %v2983
    %v2985 = vmul.f32 %v2982, %v2984
    %v2986 = vadd.f32 %v2982, %v2985
    %vm2987 = vweird.f32 %v2981
    %vm2988 = vweird.f32 %v2982
    %vm2989 = vmor %vm2987, %vm2988
    %v2990 = vsel %vm2989, %v2982, %v2986
    %v2991 = vand.u32 2147483647, %v2981
    %vm2992 = vcmp.eq.f32.partialorder %v2991, 8.507059e+37
    %v2993 = vand.u32 %v2981, 2147483648
    %v2994 = vor.u32 1.1754944e-38, %v2993
    %v2995 = vsel %vm2992, %v2994, %v2990
    %v2996 = vmul.f32 1.0, %v2995
    %v2997 = vmul.f32 %v2976, %v2757
    %v2998 = vmul.f32 %v2957, %v2977
    %v2999 = vadd.f32 %v2997, %v2998
    %v3000 = vtanh.pop %v2999
    %v3001 = vmul.f32 %v2996, %v3000
    %v3002 = vpack.c.bf16 %v2879, %v2879
    %3003 = vmatpush.bf16.msra.mxu0 %v1273
    %3004 = vmatpush.bf16.msra.mxu0 %v1269
    %3005 = vmatpush.bf16.msra.mxu0 %v1265
    %3006 = vmatpush.bf16.msra.mxu0 %v1261
    %3007 = vmatpush.bf16.msra.mxu0 %v1257
    %3008 = vmatpush.bf16.msra.mxu0 %v1253
    %3009 = vmatpush.bf16.msra.mxu0 %v1249
    %3010 = vmatpush.bf16.msra.mxu0 %v1245
    %3011 = vmatmul.bf16.gmra.mxu0 %v3002
    %v3012 = vpop.f32.mrf.mxu0
    %v3013 = vadd.f32 0.0, %v3012
    %v3014 = vpop.f32.mrf.mxu0
    %3015 = vdwg.mxu0
    %3016 = vmatpush.bf16.msra.mxu0 %v1274
    %3017 = vmatpush.bf16.msra.mxu0 %v1270
    %3018 = vmatpush.bf16.msra.mxu0 %v1266
    %3019 = vmatpush.bf16.msra.mxu0 %v1262
    %3020 = vmatpush.bf16.msra.mxu0 %v1258
    %3021 = vmatpush.bf16.msra.mxu0 %v1254
    %3022 = vmatpush.bf16.msra.mxu0 %v1250
    %3023 = vmatpush.bf16.msra.mxu0 %v1246
    %3024 = vmatmul.bf16.gmra.mxu0 %v3002
    %v3025 = vpop.f32.mrf.mxu0
    %v3026 = vadd.f32 0.0, %v3025
    %v3027 = vpop.f32.mrf.mxu0
    %3028 = vdwg.mxu0
    %3029 = vmatpush.bf16.msra.mxu0 %v1275
    %3030 = vmatpush.bf16.msra.mxu0 %v1271
    %3031 = vmatpush.bf16.msra.mxu0 %v1267
    %3032 = vmatpush.bf16.msra.mxu0 %v1263
    %3033 = vmatpush.bf16.msra.mxu0 %v1259
    %3034 = vmatpush.bf16.msra.mxu0 %v1255
    %3035 = vmatpush.bf16.msra.mxu0 %v1251
    %3036 = vmatpush.bf16.msra.mxu0 %v1247
    %3037 = vmatmul.bf16.gmra.mxu0 %v3002
    %v3038 = vpop.f32.mrf.mxu0
    %v3039 = vadd.f32 0.0, %v3038
    %v3040 = vpop.f32.mrf.mxu0
    %3041 = vdwg.mxu0
    %3042 = vmatpush.bf16.msra.mxu0 %v1276
    %3043 = vmatpush.bf16.msra.mxu0 %v1272
    %3044 = vmatpush.bf16.msra.mxu0 %v1268
    %3045 = vmatpush.bf16.msra.mxu0 %v1264
    %3046 = vmatpush.bf16.msra.mxu0 %v1260
    %3047 = vmatpush.bf16.msra.mxu0 %v1256
    %3048 = vmatpush.bf16.msra.mxu0 %v1252
    %3049 = vmatpush.bf16.msra.mxu0 %v1248
    %3050 = vmatmul.bf16.gmra.mxu0 %v3002
    %v3051 = vpop.f32.mrf.mxu0
    %v3052 = vadd.f32 0.0, %v3051
    %v3053 = vpop.f32.mrf.mxu0
    %3054 = vdwg.mxu0
    %v3055 = vadd.f32 %v700, %v3013
    %v3056 = vadd.f32 %v729, %v3026
    %v3057 = vadd.f32 %v758, %v3039
    %v3058 = vadd.f32 %v787, %v3052
    %v3059 = vxor.u32 %v3055, 2147483648
    %v3060 = vmul.f32 %v3059, 1.442695
    %v3061 = vpow.pop %v3060
    %v3062 = vadd.f32 %v3061, 1.0
    %v3063 = vrcp.pop %v3062
    %v3064 = vmul.f32 %v3062, %v3063
    %v3065 = vsub.f32 1.0, %v3064
    %v3066 = vmul.f32 %v3063, %v3065
    %v3067 = vadd.f32 %v3063, %v3066
    %vm3068 = vweird.f32 %v3062
    %vm3069 = vweird.f32 %v3063
    %vm3070 = vmor %vm3068, %vm3069
    %v3071 = vsel %vm3070, %v3063, %v3067
    %v3072 = vand.u32 2147483647, %v3062
    %vm3073 = vcmp.eq.f32.partialorder %v3072, 8.507059e+37
    %v3074 = vand.u32 %v3062, 2147483648
    %v3075 = vor.u32 1.1754944e-38, %v3074
    %v3076 = vsel %vm3073, %v3075, %v3071
    %v3077 = vmul.f32 1.0, %v3076
    %v3078 = vxor.u32 %v3056, 2147483648
    %v3079 = vmul.f32 %v3078, 1.442695
    %v3080 = vpow.pop %v3079
    %v3081 = vadd.f32 %v3080, 1.0
    %v3082 = vrcp.pop %v3081
    %v3083 = vmul.f32 %v3081, %v3082
    %v3084 = vsub.f32 1.0, %v3083
    %v3085 = vmul.f32 %v3082, %v3084
    %v3086 = vadd.f32 %v3082, %v3085
    %vm3087 = vweird.f32 %v3081
    %vm3088 = vweird.f32 %v3082
    %vm3089 = vmor %vm3087, %vm3088
    %v3090 = vsel %vm3089, %v3082, %v3086
    %v3091 = vand.u32 2147483647, %v3081
    %vm3092 = vcmp.eq.f32.partialorder %v3091, 8.507059e+37
    %v3093 = vand.u32 %v3081, 2147483648
    %v3094 = vor.u32 1.1754944e-38, %v3093
    %v3095 = vsel %vm3092, %v3094, %v3090
    %v3096 = vmul.f32 1.0, %v3095
    %v3097 = vtanh.pop %v3057
    %v3098 = vxor.u32 %v3058, 2147483648
    %v3099 = vmul.f32 %v3098, 1.442695
    %v3100 = vpow.pop %v3099
    %v3101 = vadd.f32 %v3100, 1.0
    %v3102 = vrcp.pop %v3101
    %v3103 = vmul.f32 %v3101, %v3102
    %v3104 = vsub.f32 1.0, %v3103
    %v3105 = vmul.f32 %v3102, %v3104
    %v3106 = vadd.f32 %v3102, %v3105
    %vm3107 = vweird.f32 %v3101
    %vm3108 = vweird.f32 %v3102
    %vm3109 = vmor %vm3107, %vm3108
    %v3110 = vsel %vm3109, %v3102, %v3106
    %v3111 = vand.u32 2147483647, %v3101
    %vm3112 = vcmp.eq.f32.partialorder %v3111, 8.507059e+37
    %v3113 = vand.u32 %v3101, 2147483648
    %v3114 = vor.u32 1.1754944e-38, %v3113
    %v3115 = vsel %vm3112, %v3114, %v3110
    %v3116 = vmul.f32 1.0, %v3115
    %v3117 = vmul.f32 %v3096, %v2877
    %v3118 = vmul.f32 %v3077, %v3097
    %v3119 = vadd.f32 %v3117, %v3118
    %v3120 = vtanh.pop %v3119
    %v3121 = vmul.f32 %v3116, %v3120
    %3122 = vst [vmem:[#allocation2 + $0x70] sm:$0xff] %v3001
    %3123 = vst [vmem:[#allocation2 + $0x8] sm:$0xff] %v3121
    %v3124 = vld [vmem:[#allocation2] sm:$0xff]
    %v3125 = vld [vmem:[#allocation2 + $0x8] sm:$0xff]
    %v3126 = vld [vmem:[#allocation2 + $0x10] sm:$0xff]
    %v3127 = vld [vmem:[#allocation2 + $0x18] sm:$0xff]
    %v3128 = vld [vmem:[#allocation2 + $0x20] sm:$0xff]
    %v3129 = vld [vmem:[#allocation2 + $0x28] sm:$0xff]
    %v3130 = vld [vmem:[#allocation2 + $0x30] sm:$0xff]
    %v3131 = vld [vmem:[#allocation2 + $0x38] sm:$0xff]
    %v3132 = vld [vmem:[#allocation2 + $0x40] sm:$0xff]
    %v3133 = vld [vmem:[#allocation2 + $0x48] sm:$0xff]
    %v3134 = vld [vmem:[#allocation2 + $0x50] sm:$0xff]
    %v3135 = vld [vmem:[#allocation2 + $0x58] sm:$0xff]
    %v3136 = vld [vmem:[#allocation2 + $0x60] sm:$0xff]
    %v3137 = vld [vmem:[#allocation2 + $0x68] sm:$0xff]
    %v3138 = vld [vmem:[#allocation2 + $0x70] sm:$0xff]
    %v3139 = vld [vmem:[#allocation2 + $0x78] sm:$0xff]
    %v3140 = vpack.c.bf16 %v3126, %v3124
    %v3141 = vpack.c.bf16 %v3127, %v3125
    %v3142 = vpack.c.bf16 %v3130, %v3128
    %v3143 = vpack.c.bf16 %v3131, %v3129
    %v3144 = vpack.c.bf16 %v3134, %v3132
    %v3145 = vpack.c.bf16 %v3135, %v3133
    %v3146 = vpack.c.bf16 %v3138, %v3136
    %v3147 = vpack.c.bf16 %v3139, %v3137
    %v3148 = vld [vmem:[#allocation8] sm:$0xff]
    %v3149 = vld [vmem:[#allocation8 + $0x8] sm:$0xff]
    %v3150 = vld [vmem:[#allocation8 + $0x10] sm:$0xff]
    %v3151 = vld [vmem:[#allocation8 + $0x18] sm:$0xff]
    %v3152 = vld [vmem:[#allocation8 + $0x20] sm:$0xff]
    %v3153 = vld [vmem:[#allocation8 + $0x28] sm:$0xff]
    %v3154 = vld [vmem:[#allocation8 + $0x30] sm:$0xff]
    %v3155 = vld [vmem:[#allocation8 + $0x38] sm:$0xff]
    %v3156 = vld [vmem:[#allocation8 + $0x40] sm:$0xff]
    %v3157 = vld [vmem:[#allocation8 + $0x48] sm:$0xff]
    %v3158 = vld [vmem:[#allocation8 + $0x50] sm:$0xff]
    %v3159 = vld [vmem:[#allocation8 + $0x58] sm:$0xff]
    %v3160 = vld [vmem:[#allocation8 + $0x60] sm:$0xff]
    %v3161 = vld [vmem:[#allocation8 + $0x68] sm:$0xff]
    %v3162 = vld [vmem:[#allocation8 + $0x70] sm:$0xff]
    %v3163 = vld [vmem:[#allocation8 + $0x78] sm:$0xff]
    %v3164 = vld [vmem:[#allocation8 + $0x80] sm:$0xff]
    %v3165 = vld [vmem:[#allocation8 + $0x88] sm:$0xff]
    %v3166 = vld [vmem:[#allocation8 + $0x90] sm:$0xff]
    %v3167 = vld [vmem:[#allocation8 + $0x98] sm:$0xff]
    %v3168 = vld [vmem:[#allocation8 + $0xa0] sm:$0xff]
    %v3169 = vld [vmem:[#allocation8 + $0xa8] sm:$0xff]
    %v3170 = vld [vmem:[#allocation8 + $0xb0] sm:$0xff]
    %v3171 = vld [vmem:[#allocation8 + $0xb8] sm:$0xff]
    %v3172 = vld [vmem:[#allocation8 + $0xc0] sm:$0xff]
    %v3173 = vld [vmem:[#allocation8 + $0xc8] sm:$0xff]
    %v3174 = vld [vmem:[#allocation8 + $0xd0] sm:$0xff]
    %v3175 = vld [vmem:[#allocation8 + $0xd8] sm:$0xff]
    %v3176 = vld [vmem:[#allocation8 + $0xe0] sm:$0xff]
    %v3177 = vld [vmem:[#allocation8 + $0xe8] sm:$0xff]
    %v3178 = vld [vmem:[#allocation8 + $0xf0] sm:$0xff]
    %v3179 = vld [vmem:[#allocation8 + $0xf8] sm:$0xff]
    %v3180 = vld [vmem:[#allocation8 + $0x100] sm:$0xff]
    %v3181 = vld [vmem:[#allocation8 + $0x108] sm:$0xff]
    %v3182 = vld [vmem:[#allocation8 + $0x110] sm:$0xff]
    %v3183 = vld [vmem:[#allocation8 + $0x118] sm:$0xff]
    %v3184 = vld [vmem:[#allocation8 + $0x120] sm:$0xff]
    %v3185 = vld [vmem:[#allocation8 + $0x128] sm:$0xff]
    %v3186 = vld [vmem:[#allocation8 + $0x130] sm:$0xff]
    %v3187 = vld [vmem:[#allocation8 + $0x138] sm:$0xff]
    %v3188 = vld [vmem:[#allocation8 + $0x140] sm:$0xff]
    %v3189 = vld [vmem:[#allocation8 + $0x148] sm:$0xff]
    %v3190 = vld [vmem:[#allocation8 + $0x150] sm:$0xff]
    %v3191 = vld [vmem:[#allocation8 + $0x158] sm:$0xff]
    %v3192 = vld [vmem:[#allocation8 + $0x160] sm:$0xff]
    %v3193 = vld [vmem:[#allocation8 + $0x168] sm:$0xff]
    %v3194 = vld [vmem:[#allocation8 + $0x170] sm:$0xff]
    %v3195 = vld [vmem:[#allocation8 + $0x178] sm:$0xff]
    %v3196 = vld [vmem:[#allocation8 + $0x180] sm:$0xff]
    %v3197 = vld [vmem:[#allocation8 + $0x188] sm:$0xff]
    %v3198 = vld [vmem:[#allocation8 + $0x190] sm:$0xff]
    %v3199 = vld [vmem:[#allocation8 + $0x198] sm:$0xff]
    %v3200 = vld [vmem:[#allocation8 + $0x1a0] sm:$0xff]
    %v3201 = vld [vmem:[#allocation8 + $0x1a8] sm:$0xff]
    %v3202 = vld [vmem:[#allocation8 + $0x1b0] sm:$0xff]
    %v3203 = vld [vmem:[#allocation8 + $0x1b8] sm:$0xff]
    %v3204 = vld [vmem:[#allocation8 + $0x1c0] sm:$0xff]
    %v3205 = vld [vmem:[#allocation8 + $0x1c8] sm:$0xff]
    %v3206 = vld [vmem:[#allocation8 + $0x1d0] sm:$0xff]
    %v3207 = vld [vmem:[#allocation8 + $0x1d8] sm:$0xff]
    %v3208 = vld [vmem:[#allocation8 + $0x1e0] sm:$0xff]
    %v3209 = vld [vmem:[#allocation8 + $0x1e8] sm:$0xff]
    %v3210 = vld [vmem:[#allocation8 + $0x1f0] sm:$0xff]
    %v3211 = vld [vmem:[#allocation8 + $0x1f8] sm:$0xff]
    %v3212 = vld [vmem:[#allocation8 + $0x200] sm:$0xff]
    %v3213 = vld [vmem:[#allocation8 + $0x208] sm:$0xff]
    %v3214 = vld [vmem:[#allocation8 + $0x210] sm:$0xff]
    %v3215 = vld [vmem:[#allocation8 + $0x218] sm:$0xff]
    %v3216 = vld [vmem:[#allocation8 + $0x220] sm:$0xff]
    %v3217 = vld [vmem:[#allocation8 + $0x228] sm:$0xff]
    %v3218 = vld [vmem:[#allocation8 + $0x230] sm:$0xff]
    %v3219 = vld [vmem:[#allocation8 + $0x238] sm:$0xff]
    %v3220 = vld [vmem:[#allocation8 + $0x240] sm:$0xff]
    %v3221 = vld [vmem:[#allocation8 + $0x248] sm:$0xff]
    %v3222 = vld [vmem:[#allocation8 + $0x250] sm:$0xff]
    %v3223 = vld [vmem:[#allocation8 + $0x258] sm:$0xff]
    %v3224 = vld [vmem:[#allocation8 + $0x260] sm:$0xff]
    %v3225 = vld [vmem:[#allocation8 + $0x268] sm:$0xff]
    %v3226 = vld [vmem:[#allocation8 + $0x270] sm:$0xff]
    %v3227 = vld [vmem:[#allocation8 + $0x278] sm:$0xff]
    %v3228 = vld [vmem:[#allocation8 + $0x280] sm:$0xff]
    %v3229 = vld [vmem:[#allocation8 + $0x288] sm:$0xff]
    %v3230 = vld [vmem:[#allocation8 + $0x290] sm:$0xff]
    %v3231 = vld [vmem:[#allocation8 + $0x298] sm:$0xff]
    %v3232 = vld [vmem:[#allocation8 + $0x2a0] sm:$0xff]
    %v3233 = vld [vmem:[#allocation8 + $0x2a8] sm:$0xff]
    %v3234 = vld [vmem:[#allocation8 + $0x2b0] sm:$0xff]
    %v3235 = vld [vmem:[#allocation8 + $0x2b8] sm:$0xff]
    %v3236 = vld [vmem:[#allocation8 + $0x2c0] sm:$0xff]
    %v3237 = vld [vmem:[#allocation8 + $0x2c8] sm:$0xff]
    %v3238 = vld [vmem:[#allocation8 + $0x2d0] sm:$0xff]
    %v3239 = vld [vmem:[#allocation8 + $0x2d8] sm:$0xff]
    %v3240 = vld [vmem:[#allocation8 + $0x2e0] sm:$0xff]
    %v3241 = vld [vmem:[#allocation8 + $0x2e8] sm:$0xff]
    %v3242 = vld [vmem:[#allocation8 + $0x2f0] sm:$0xff]
    %v3243 = vld [vmem:[#allocation8 + $0x2f8] sm:$0xff]
    %v3244 = vld [vmem:[#allocation8 + $0x300] sm:$0xff]
    %v3245 = vld [vmem:[#allocation8 + $0x308] sm:$0xff]
    %v3246 = vld [vmem:[#allocation8 + $0x310] sm:$0xff]
    %v3247 = vld [vmem:[#allocation8 + $0x318] sm:$0xff]
    %v3248 = vld [vmem:[#allocation8 + $0x320] sm:$0xff]
    %v3249 = vld [vmem:[#allocation8 + $0x328] sm:$0xff]
    %v3250 = vld [vmem:[#allocation8 + $0x330] sm:$0xff]
    %v3251 = vld [vmem:[#allocation8 + $0x338] sm:$0xff]
    %v3252 = vld [vmem:[#allocation8 + $0x340] sm:$0xff]
    %v3253 = vld [vmem:[#allocation8 + $0x348] sm:$0xff]
    %v3254 = vld [vmem:[#allocation8 + $0x350] sm:$0xff]
    %v3255 = vld [vmem:[#allocation8 + $0x358] sm:$0xff]
    %v3256 = vld [vmem:[#allocation8 + $0x360] sm:$0xff]
    %v3257 = vld [vmem:[#allocation8 + $0x368] sm:$0xff]
    %v3258 = vld [vmem:[#allocation8 + $0x370] sm:$0xff]
    %v3259 = vld [vmem:[#allocation8 + $0x378] sm:$0xff]
    %v3260 = vld [vmem:[#allocation8 + $0x380] sm:$0xff]
    %v3261 = vld [vmem:[#allocation8 + $0x388] sm:$0xff]
    %v3262 = vld [vmem:[#allocation8 + $0x390] sm:$0xff]
    %v3263 = vld [vmem:[#allocation8 + $0x398] sm:$0xff]
    %v3264 = vld [vmem:[#allocation8 + $0x3a0] sm:$0xff]
    %v3265 = vld [vmem:[#allocation8 + $0x3a8] sm:$0xff]
    %v3266 = vld [vmem:[#allocation8 + $0x3b0] sm:$0xff]
    %v3267 = vld [vmem:[#allocation8 + $0x3b8] sm:$0xff]
    %v3268 = vld [vmem:[#allocation8 + $0x3c0] sm:$0xff]
    %v3269 = vld [vmem:[#allocation8 + $0x3c8] sm:$0xff]
    %v3270 = vld [vmem:[#allocation8 + $0x3d0] sm:$0xff]
    %v3271 = vld [vmem:[#allocation8 + $0x3d8] sm:$0xff]
    %v3272 = vld [vmem:[#allocation8 + $0x3e0] sm:$0xff]
    %v3273 = vld [vmem:[#allocation8 + $0x3e8] sm:$0xff]
    %v3274 = vld [vmem:[#allocation8 + $0x3f0] sm:$0xff]
    %v3275 = vld [vmem:[#allocation8 + $0x3f8] sm:$0xff]
    %v3276 = vld [vmem:[%s9] sm:$0xff]
    %v3278 = vperm.slane %v3276, 0
    %v3279 = vperm.slane %v3276, 1
    %v3280 = vperm.slane %v3276, 2
    %v3281 = vperm.slane %v3276, 3
    %v3282 = vperm.slane %v3276, 4
    %v3283 = vperm.slane %v3276, 5
    %v3284 = vperm.slane %v3276, 6
    %v3285 = vperm.slane %v3276, 7
    %v3422 = vunpack.c.l.b16 %v3148
    %v3423 = vunpack.c.h.b16 %v3148
    %v3424 = vunpack.c.l.b16 %v3149
    %v3425 = vunpack.c.h.b16 %v3149
    %v3426 = vunpack.c.l.b16 %v3150
    %v3427 = vunpack.c.h.b16 %v3150
    %v3428 = vunpack.c.l.b16 %v3151
    %v3429 = vunpack.c.h.b16 %v3151
    %v3430 = vunpack.c.l.b16 %v3152
    %v3431 = vunpack.c.h.b16 %v3152
    %v3432 = vunpack.c.l.b16 %v3153
    %v3433 = vunpack.c.h.b16 %v3153
    %v3434 = vunpack.c.l.b16 %v3154
    %v3435 = vunpack.c.h.b16 %v3154
    %v3436 = vunpack.c.l.b16 %v3155
    %v3437 = vunpack.c.h.b16 %v3155
    %v3438 = vunpack.c.l.b16 %v3156
    %v3439 = vunpack.c.h.b16 %v3156
    %v3440 = vunpack.c.l.b16 %v3157
    %v3441 = vunpack.c.h.b16 %v3157
    %v3442 = vunpack.c.l.b16 %v3158
    %v3443 = vunpack.c.h.b16 %v3158
    %v3444 = vunpack.c.l.b16 %v3159
    %v3445 = vunpack.c.h.b16 %v3159
    %v3446 = vunpack.c.l.b16 %v3160
    %v3447 = vunpack.c.h.b16 %v3160
    %v3448 = vunpack.c.l.b16 %v3161
    %v3449 = vunpack.c.h.b16 %v3161
    %v3450 = vunpack.c.l.b16 %v3162
    %v3451 = vunpack.c.h.b16 %v3162
    %v3452 = vunpack.c.l.b16 %v3163
    %v3453 = vunpack.c.h.b16 %v3163
    %v3454 = vunpack.c.l.b16 %v3164
    %v3455 = vunpack.c.h.b16 %v3164
    %v3456 = vunpack.c.l.b16 %v3165
    %v3457 = vunpack.c.h.b16 %v3165
    %v3458 = vunpack.c.l.b16 %v3166
    %v3459 = vunpack.c.h.b16 %v3166
    %v3460 = vunpack.c.l.b16 %v3167
    %v3461 = vunpack.c.h.b16 %v3167
    %v3462 = vunpack.c.l.b16 %v3168
    %v3463 = vunpack.c.h.b16 %v3168
    %v3464 = vunpack.c.l.b16 %v3169
    %v3465 = vunpack.c.h.b16 %v3169
    %v3466 = vunpack.c.l.b16 %v3170
    %v3467 = vunpack.c.h.b16 %v3170
    %v3468 = vunpack.c.l.b16 %v3171
    %v3469 = vunpack.c.h.b16 %v3171
    %v3470 = vunpack.c.l.b16 %v3172
    %v3471 = vunpack.c.h.b16 %v3172
    %v3472 = vunpack.c.l.b16 %v3173
    %v3473 = vunpack.c.h.b16 %v3173
    %v3474 = vunpack.c.l.b16 %v3174
    %v3475 = vunpack.c.h.b16 %v3174
    %v3476 = vunpack.c.l.b16 %v3175
    %v3477 = vunpack.c.h.b16 %v3175
    %v3478 = vunpack.c.l.b16 %v3176
    %v3479 = vunpack.c.h.b16 %v3176
    %v3480 = vunpack.c.l.b16 %v3177
    %v3481 = vunpack.c.h.b16 %v3177
    %v3482 = vunpack.c.l.b16 %v3178
    %v3483 = vunpack.c.h.b16 %v3178
    %v3484 = vunpack.c.l.b16 %v3179
    %v3485 = vunpack.c.h.b16 %v3179
    %v3486 = vunpack.c.l.b16 %v3180
    %v3487 = vunpack.c.h.b16 %v3180
    %v3488 = vunpack.c.l.b16 %v3181
    %v3489 = vunpack.c.h.b16 %v3181
    %v3490 = vunpack.c.l.b16 %v3182
    %v3491 = vunpack.c.h.b16 %v3182
    %v3492 = vunpack.c.l.b16 %v3183
    %v3493 = vunpack.c.h.b16 %v3183
    %v3494 = vunpack.c.l.b16 %v3184
    %v3495 = vunpack.c.h.b16 %v3184
    %v3496 = vunpack.c.l.b16 %v3185
    %v3497 = vunpack.c.h.b16 %v3185
    %v3498 = vunpack.c.l.b16 %v3186
    %v3499 = vunpack.c.h.b16 %v3186
    %v3500 = vunpack.c.l.b16 %v3187
    %v3501 = vunpack.c.h.b16 %v3187
    %v3502 = vunpack.c.l.b16 %v3188
    %v3503 = vunpack.c.h.b16 %v3188
    %v3504 = vunpack.c.l.b16 %v3189
    %v3505 = vunpack.c.h.b16 %v3189
    %v3506 = vunpack.c.l.b16 %v3190
    %v3507 = vunpack.c.h.b16 %v3190
    %v3508 = vunpack.c.l.b16 %v3191
    %v3509 = vunpack.c.h.b16 %v3191
    %v3510 = vunpack.c.l.b16 %v3192
    %v3511 = vunpack.c.h.b16 %v3192
    %v3512 = vunpack.c.l.b16 %v3193
    %v3513 = vunpack.c.h.b16 %v3193
    %v3514 = vunpack.c.l.b16 %v3194
    %v3515 = vunpack.c.h.b16 %v3194
    %v3516 = vunpack.c.l.b16 %v3195
    %v3517 = vunpack.c.h.b16 %v3195
    %v3518 = vunpack.c.l.b16 %v3196
    %v3519 = vunpack.c.h.b16 %v3196
    %v3520 = vunpack.c.l.b16 %v3197
    %v3521 = vunpack.c.h.b16 %v3197
    %v3522 = vunpack.c.l.b16 %v3198
    %v3523 = vunpack.c.h.b16 %v3198
    %v3524 = vunpack.c.l.b16 %v3199
    %v3525 = vunpack.c.h.b16 %v3199
    %v3526 = vunpack.c.l.b16 %v3200
    %v3527 = vunpack.c.h.b16 %v3200
    %v3528 = vunpack.c.l.b16 %v3201
    %v3529 = vunpack.c.h.b16 %v3201
    %v3530 = vunpack.c.l.b16 %v3202
    %v3531 = vunpack.c.h.b16 %v3202
    %v3532 = vunpack.c.l.b16 %v3203
    %v3533 = vunpack.c.h.b16 %v3203
    %v3534 = vunpack.c.l.b16 %v3204
    %v3535 = vunpack.c.h.b16 %v3204
    %v3536 = vunpack.c.l.b16 %v3205
    %v3537 = vunpack.c.h.b16 %v3205
    %v3538 = vunpack.c.l.b16 %v3206
    %v3539 = vunpack.c.h.b16 %v3206
    %v3540 = vunpack.c.l.b16 %v3207
    %v3541 = vunpack.c.h.b16 %v3207
    %v3542 = vunpack.c.l.b16 %v3208
    %v3543 = vunpack.c.h.b16 %v3208
    %v3544 = vunpack.c.l.b16 %v3209
    %v3545 = vunpack.c.h.b16 %v3209
    %v3546 = vunpack.c.l.b16 %v3210
    %v3547 = vunpack.c.h.b16 %v3210
    %v3548 = vunpack.c.l.b16 %v3211
    %v3549 = vunpack.c.h.b16 %v3211
    %v3550 = vunpack.c.l.b16 %v3212
    %v3551 = vunpack.c.h.b16 %v3212
    %v3552 = vunpack.c.l.b16 %v3213
    %v3553 = vunpack.c.h.b16 %v3213
    %v3554 = vunpack.c.l.b16 %v3214
    %v3555 = vunpack.c.h.b16 %v3214
    %v3556 = vunpack.c.l.b16 %v3215
    %v3557 = vunpack.c.h.b16 %v3215
    %v3558 = vunpack.c.l.b16 %v3216
    %v3559 = vunpack.c.h.b16 %v3216
    %v3560 = vunpack.c.l.b16 %v3217
    %v3561 = vunpack.c.h.b16 %v3217
    %v3562 = vunpack.c.l.b16 %v3218
    %v3563 = vunpack.c.h.b16 %v3218
    %v3564 = vunpack.c.l.b16 %v3219
    %v3565 = vunpack.c.h.b16 %v3219
    %v3566 = vunpack.c.l.b16 %v3220
    %v3567 = vunpack.c.h.b16 %v3220
    %v3568 = vunpack.c.l.b16 %v3221
    %v3569 = vunpack.c.h.b16 %v3221
    %v3570 = vunpack.c.l.b16 %v3222
    %v3571 = vunpack.c.h.b16 %v3222
    %v3572 = vunpack.c.l.b16 %v3223
    %v3573 = vunpack.c.h.b16 %v3223
    %v3574 = vunpack.c.l.b16 %v3224
    %v3575 = vunpack.c.h.b16 %v3224
    %v3576 = vunpack.c.l.b16 %v3225
    %v3577 = vunpack.c.h.b16 %v3225
    %v3578 = vunpack.c.l.b16 %v3226
    %v3579 = vunpack.c.h.b16 %v3226
    %v3580 = vunpack.c.l.b16 %v3227
    %v3581 = vunpack.c.h.b16 %v3227
    %v3582 = vunpack.c.l.b16 %v3228
    %v3583 = vunpack.c.h.b16 %v3228
    %v3584 = vunpack.c.l.b16 %v3229
    %v3585 = vunpack.c.h.b16 %v3229
    %v3586 = vunpack.c.l.b16 %v3230
    %v3587 = vunpack.c.h.b16 %v3230
    %v3588 = vunpack.c.l.b16 %v3231
    %v3589 = vunpack.c.h.b16 %v3231
    %v3590 = vunpack.c.l.b16 %v3232
    %v3591 = vunpack.c.h.b16 %v3232
    %v3592 = vunpack.c.l.b16 %v3233
    %v3593 = vunpack.c.h.b16 %v3233
    %v3594 = vunpack.c.l.b16 %v3234
    %v3595 = vunpack.c.h.b16 %v3234
    %v3596 = vunpack.c.l.b16 %v3235
    %v3597 = vunpack.c.h.b16 %v3235
    %v3598 = vunpack.c.l.b16 %v3236
    %v3599 = vunpack.c.h.b16 %v3236
    %v3600 = vunpack.c.l.b16 %v3237
    %v3601 = vunpack.c.h.b16 %v3237
    %v3602 = vunpack.c.l.b16 %v3238
    %v3603 = vunpack.c.h.b16 %v3238
    %v3604 = vunpack.c.l.b16 %v3239
    %v3605 = vunpack.c.h.b16 %v3239
    %v3606 = vunpack.c.l.b16 %v3240
    %v3607 = vunpack.c.h.b16 %v3240
    %v3608 = vunpack.c.l.b16 %v3241
    %v3609 = vunpack.c.h.b16 %v3241
    %v3610 = vunpack.c.l.b16 %v3242
    %v3611 = vunpack.c.h.b16 %v3242
    %v3612 = vunpack.c.l.b16 %v3243
    %v3613 = vunpack.c.h.b16 %v3243
    %v3614 = vunpack.c.l.b16 %v3244
    %v3615 = vunpack.c.h.b16 %v3244
    %v3616 = vunpack.c.l.b16 %v3245
    %v3617 = vunpack.c.h.b16 %v3245
    %v3618 = vunpack.c.l.b16 %v3246
    %v3619 = vunpack.c.h.b16 %v3246
    %v3620 = vunpack.c.l.b16 %v3247
    %v3621 = vunpack.c.h.b16 %v3247
    %v3622 = vunpack.c.l.b16 %v3248
    %v3623 = vunpack.c.h.b16 %v3248
    %v3624 = vunpack.c.l.b16 %v3249
    %v3625 = vunpack.c.h.b16 %v3249
    %v3626 = vunpack.c.l.b16 %v3250
    %v3627 = vunpack.c.h.b16 %v3250
    %v3628 = vunpack.c.l.b16 %v3251
    %v3629 = vunpack.c.h.b16 %v3251
    %v3630 = vunpack.c.l.b16 %v3252
    %v3631 = vunpack.c.h.b16 %v3252
    %v3632 = vunpack.c.l.b16 %v3253
    %v3633 = vunpack.c.h.b16 %v3253
    %v3634 = vunpack.c.l.b16 %v3254
    %v3635 = vunpack.c.h.b16 %v3254
    %v3636 = vunpack.c.l.b16 %v3255
    %v3637 = vunpack.c.h.b16 %v3255
    %v3638 = vunpack.c.l.b16 %v3256
    %v3639 = vunpack.c.h.b16 %v3256
    %v3640 = vunpack.c.l.b16 %v3257
    %v3641 = vunpack.c.h.b16 %v3257
    %v3642 = vunpack.c.l.b16 %v3258
    %v3643 = vunpack.c.h.b16 %v3258
    %v3644 = vunpack.c.l.b16 %v3259
    %v3645 = vunpack.c.h.b16 %v3259
    %v3646 = vunpack.c.l.b16 %v3260
    %v3647 = vunpack.c.h.b16 %v3260
    %v3648 = vunpack.c.l.b16 %v3261
    %v3649 = vunpack.c.h.b16 %v3261
    %v3650 = vunpack.c.l.b16 %v3262
    %v3651 = vunpack.c.h.b16 %v3262
    %v3652 = vunpack.c.l.b16 %v3263
    %v3653 = vunpack.c.h.b16 %v3263
    %v3654 = vunpack.c.l.b16 %v3264
    %v3655 = vunpack.c.h.b16 %v3264
    %v3656 = vunpack.c.l.b16 %v3265
    %v3657 = vunpack.c.h.b16 %v3265
    %v3658 = vunpack.c.l.b16 %v3266
    %v3659 = vunpack.c.h.b16 %v3266
    %v3660 = vunpack.c.l.b16 %v3267
    %v3661 = vunpack.c.h.b16 %v3267
    %v3662 = vunpack.c.l.b16 %v3268
    %v3663 = vunpack.c.h.b16 %v3268
    %v3664 = vunpack.c.l.b16 %v3269
    %v3665 = vunpack.c.h.b16 %v3269
    %v3666 = vunpack.c.l.b16 %v3270
    %v3667 = vunpack.c.h.b16 %v3270
    %v3668 = vunpack.c.l.b16 %v3271
    %v3669 = vunpack.c.h.b16 %v3271
    %v3670 = vunpack.c.l.b16 %v3272
    %v3671 = vunpack.c.h.b16 %v3272
    %v3672 = vunpack.c.l.b16 %v3273
    %v3673 = vunpack.c.h.b16 %v3273
    %v3674 = vunpack.c.l.b16 %v3274
    %v3675 = vunpack.c.h.b16 %v3274
    %v3676 = vunpack.c.l.b16 %v3275
    %v3677 = vunpack.c.h.b16 %v3275
    %v3678 = vpack.c.b16 %v3430, %v3422
    %v3679 = vpack.c.b16 %v3431, %v3423
    %v3680 = vpack.c.b16 %v3432, %v3424
    %v3681 = vpack.c.b16 %v3433, %v3425
    %v3682 = vpack.c.b16 %v3434, %v3426
    %v3683 = vpack.c.b16 %v3435, %v3427
    %v3684 = vpack.c.b16 %v3436, %v3428
    %v3685 = vpack.c.b16 %v3437, %v3429
    %v3686 = vpack.c.b16 %v3446, %v3438
    %v3687 = vpack.c.b16 %v3447, %v3439
    %v3688 = vpack.c.b16 %v3448, %v3440
    %v3689 = vpack.c.b16 %v3449, %v3441
    %v3690 = vpack.c.b16 %v3450, %v3442
    %v3691 = vpack.c.b16 %v3451, %v3443
    %v3692 = vpack.c.b16 %v3452, %v3444
    %v3693 = vpack.c.b16 %v3453, %v3445
    %v3694 = vpack.c.b16 %v3462, %v3454
    %v3695 = vpack.c.b16 %v3463, %v3455
    %v3696 = vpack.c.b16 %v3464, %v3456
    %v3697 = vpack.c.b16 %v3465, %v3457
    %v3698 = vpack.c.b16 %v3466, %v3458
    %v3699 = vpack.c.b16 %v3467, %v3459
    %v3700 = vpack.c.b16 %v3468, %v3460
    %v3701 = vpack.c.b16 %v3469, %v3461
    %v3702 = vpack.c.b16 %v3478, %v3470
    %v3703 = vpack.c.b16 %v3479, %v3471
    %v3704 = vpack.c.b16 %v3480, %v3472
    %v3705 = vpack.c.b16 %v3481, %v3473
    %v3706 = vpack.c.b16 %v3482, %v3474
    %v3707 = vpack.c.b16 %v3483, %v3475
    %v3708 = vpack.c.b16 %v3484, %v3476
    %v3709 = vpack.c.b16 %v3485, %v3477
    %v3710 = vpack.c.b16 %v3494, %v3486
    %v3711 = vpack.c.b16 %v3495, %v3487
    %v3712 = vpack.c.b16 %v3496, %v3488
    %v3713 = vpack.c.b16 %v3497, %v3489
    %v3714 = vpack.c.b16 %v3498, %v3490
    %v3715 = vpack.c.b16 %v3499, %v3491
    %v3716 = vpack.c.b16 %v3500, %v3492
    %v3717 = vpack.c.b16 %v3501, %v3493
    %v3718 = vpack.c.b16 %v3510, %v3502
    %v3719 = vpack.c.b16 %v3511, %v3503
    %v3720 = vpack.c.b16 %v3512, %v3504
    %v3721 = vpack.c.b16 %v3513, %v3505
    %v3722 = vpack.c.b16 %v3514, %v3506
    %v3723 = vpack.c.b16 %v3515, %v3507
    %v3724 = vpack.c.b16 %v3516, %v3508
    %v3725 = vpack.c.b16 %v3517, %v3509
    %v3726 = vpack.c.b16 %v3526, %v3518
    %v3727 = vpack.c.b16 %v3527, %v3519
    %v3728 = vpack.c.b16 %v3528, %v3520
    %v3729 = vpack.c.b16 %v3529, %v3521
    %v3730 = vpack.c.b16 %v3530, %v3522
    %v3731 = vpack.c.b16 %v3531, %v3523
    %v3732 = vpack.c.b16 %v3532, %v3524
    %v3733 = vpack.c.b16 %v3533, %v3525
    %v3734 = vpack.c.b16 %v3542, %v3534
    %v3735 = vpack.c.b16 %v3543, %v3535
    %v3736 = vpack.c.b16 %v3544, %v3536
    %v3737 = vpack.c.b16 %v3545, %v3537
    %v3738 = vpack.c.b16 %v3546, %v3538
    %v3739 = vpack.c.b16 %v3547, %v3539
    %v3740 = vpack.c.b16 %v3548, %v3540
    %v3741 = vpack.c.b16 %v3549, %v3541
    %v3742 = vpack.c.b16 %v3558, %v3550
    %v3743 = vpack.c.b16 %v3559, %v3551
    %v3744 = vpack.c.b16 %v3560, %v3552
    %v3745 = vpack.c.b16 %v3561, %v3553
    %v3746 = vpack.c.b16 %v3562, %v3554
    %v3747 = vpack.c.b16 %v3563, %v3555
    %v3748 = vpack.c.b16 %v3564, %v3556
    %v3749 = vpack.c.b16 %v3565, %v3557
    %v3750 = vpack.c.b16 %v3574, %v3566
    %v3751 = vpack.c.b16 %v3575, %v3567
    %v3752 = vpack.c.b16 %v3576, %v3568
    %v3753 = vpack.c.b16 %v3577, %v3569
    %v3754 = vpack.c.b16 %v3578, %v3570
    %v3755 = vpack.c.b16 %v3579, %v3571
    %v3756 = vpack.c.b16 %v3580, %v3572
    %v3757 = vpack.c.b16 %v3581, %v3573
    %v3758 = vpack.c.b16 %v3590, %v3582
    %v3759 = vpack.c.b16 %v3591, %v3583
    %v3760 = vpack.c.b16 %v3592, %v3584
    %v3761 = vpack.c.b16 %v3593, %v3585
    %v3762 = vpack.c.b16 %v3594, %v3586
    %v3763 = vpack.c.b16 %v3595, %v3587
    %v3764 = vpack.c.b16 %v3596, %v3588
    %v3765 = vpack.c.b16 %v3597, %v3589
    %v3766 = vpack.c.b16 %v3606, %v3598
    %v3767 = vpack.c.b16 %v3607, %v3599
    %v3768 = vpack.c.b16 %v3608, %v3600
    %v3769 = vpack.c.b16 %v3609, %v3601
    %v3770 = vpack.c.b16 %v3610, %v3602
    %v3771 = vpack.c.b16 %v3611, %v3603
    %v3772 = vpack.c.b16 %v3612, %v3604
    %v3773 = vpack.c.b16 %v3613, %v3605
    %v3774 = vpack.c.b16 %v3622, %v3614
    %v3775 = vpack.c.b16 %v3623, %v3615
    %v3776 = vpack.c.b16 %v3624, %v3616
    %v3777 = vpack.c.b16 %v3625, %v3617
    %v3778 = vpack.c.b16 %v3626, %v3618
    %v3779 = vpack.c.b16 %v3627, %v3619
    %v3780 = vpack.c.b16 %v3628, %v3620
    %v3781 = vpack.c.b16 %v3629, %v3621
    %v3782 = vpack.c.b16 %v3638, %v3630
    %v3783 = vpack.c.b16 %v3639, %v3631
    %v3784 = vpack.c.b16 %v3640, %v3632
    %v3785 = vpack.c.b16 %v3641, %v3633
    %v3786 = vpack.c.b16 %v3642, %v3634
    %v3787 = vpack.c.b16 %v3643, %v3635
    %v3788 = vpack.c.b16 %v3644, %v3636
    %v3789 = vpack.c.b16 %v3645, %v3637
    %v3790 = vpack.c.b16 %v3654, %v3646
    %v3791 = vpack.c.b16 %v3655, %v3647
    %v3792 = vpack.c.b16 %v3656, %v3648
    %v3793 = vpack.c.b16 %v3657, %v3649
    %v3794 = vpack.c.b16 %v3658, %v3650
    %v3795 = vpack.c.b16 %v3659, %v3651
    %v3796 = vpack.c.b16 %v3660, %v3652
    %v3797 = vpack.c.b16 %v3661, %v3653
    %v3798 = vpack.c.b16 %v3670, %v3662
    %v3799 = vpack.c.b16 %v3671, %v3663
    %v3800 = vpack.c.b16 %v3672, %v3664
    %v3801 = vpack.c.b16 %v3673, %v3665
    %v3802 = vpack.c.b16 %v3674, %v3666
    %v3803 = vpack.c.b16 %v3675, %v3667
    %v3804 = vpack.c.b16 %v3676, %v3668
    %v3805 = vpack.c.b16 %v3677, %v3669
    %3934 = vmatpush.bf16.msra.mxu0 %v3734
    %3935 = vmatpush.bf16.msra.mxu0 %v3726
    %3936 = vmatpush.bf16.msra.mxu0 %v3718
    %3937 = vmatpush.bf16.msra.mxu0 %v3710
    %3938 = vmatpush.bf16.msra.mxu0 %v3702
    %3939 = vmatpush.bf16.msra.mxu0 %v3694
    %3940 = vmatpush.bf16.msra.mxu0 %v3686
    %3941 = vmatpush.bf16.msra.mxu0 %v3678
    %3942 = vmatmul.bf16.gmra.mxu0 %v3140
    %v3943 = vpop.f32.mrf.mxu0
    %v3944 = vadd.f32 %v3278, %v3943
    %v3945 = vpop.f32.mrf.mxu0
    %v3946 = vadd.f32 %v3278, %v3945
    %3947 = vmatmul.bf16.gmra.mxu0 %v3142
    %v3948 = vpop.f32.mrf.mxu0
    %v3949 = vadd.f32 %v3278, %v3948
    %v3950 = vpop.f32.mrf.mxu0
    %v3951 = vadd.f32 %v3278, %v3950
    %3952 = vmatmul.bf16.gmra.mxu0 %v3144
    %v3953 = vpop.f32.mrf.mxu0
    %v3954 = vadd.f32 %v3278, %v3953
    %v3955 = vpop.f32.mrf.mxu0
    %v3956 = vadd.f32 %v3278, %v3955
    %3957 = vmatmul.bf16.gmra.mxu0 %v3146
    %v3958 = vpop.f32.mrf.mxu0
    %v3959 = vadd.f32 %v3278, %v3958
    %v3960 = vpop.f32.mrf.mxu0
    %v3961 = vadd.f32 %v3278, %v3960
    %3962 = vdwg.mxu0
    %3963 = vmatpush.bf16.msra.mxu0 %v3798
    %3964 = vmatpush.bf16.msra.mxu0 %v3790
    %3965 = vmatpush.bf16.msra.mxu0 %v3782
    %3966 = vmatpush.bf16.msra.mxu0 %v3774
    %3967 = vmatpush.bf16.msra.mxu0 %v3766
    %3968 = vmatpush.bf16.msra.mxu0 %v3758
    %3969 = vmatpush.bf16.msra.mxu0 %v3750
    %3970 = vmatpush.bf16.msra.mxu0 %v3742
    %3971 = vmatmul.bf16.gmra.mxu0 %v3141
    %v3972 = vpop.f32.mrf.mxu0
    %v3973 = vadd.f32 %v3944, %v3972
    %v3974 = vpop.f32.mrf.mxu0
    %v3975 = vadd.f32 %v3946, %v3974
    %3976 = vmatmul.bf16.gmra.mxu0 %v3143
    %v3977 = vpop.f32.mrf.mxu0
    %v3978 = vadd.f32 %v3949, %v3977
    %v3979 = vpop.f32.mrf.mxu0
    %v3980 = vadd.f32 %v3951, %v3979
    %3981 = vmatmul.bf16.gmra.mxu0 %v3145
    %v3982 = vpop.f32.mrf.mxu0
    %v3983 = vadd.f32 %v3954, %v3982
    %v3984 = vpop.f32.mrf.mxu0
    %v3985 = vadd.f32 %v3956, %v3984
    %3986 = vmatmul.bf16.gmra.mxu0 %v3147
    %v3987 = vpop.f32.mrf.mxu0
    %v3988 = vadd.f32 %v3959, %v3987
    %v3989 = vpop.f32.mrf.mxu0
    %v3990 = vadd.f32 %v3961, %v3989
    %3991 = vdwg.mxu0
    %3992 = vmatpush.bf16.msra.mxu0 %v3735
    %3993 = vmatpush.bf16.msra.mxu0 %v3727
    %3994 = vmatpush.bf16.msra.mxu0 %v3719
    %3995 = vmatpush.bf16.msra.mxu0 %v3711
    %3996 = vmatpush.bf16.msra.mxu0 %v3703
    %3997 = vmatpush.bf16.msra.mxu0 %v3695
    %3998 = vmatpush.bf16.msra.mxu0 %v3687
    %3999 = vmatpush.bf16.msra.mxu0 %v3679
    %4000 = vmatmul.bf16.gmra.mxu0 %v3140
    %v4001 = vpop.f32.mrf.mxu0
    %v4002 = vadd.f32 %v3279, %v4001
    %v4003 = vpop.f32.mrf.mxu0
    %v4004 = vadd.f32 %v3279, %v4003
    %4005 = vmatmul.bf16.gmra.mxu0 %v3142
    %v4006 = vpop.f32.mrf.mxu0
    %v4007 = vadd.f32 %v3279, %v4006
    %v4008 = vpop.f32.mrf.mxu0
    %v4009 = vadd.f32 %v3279, %v4008
    %4010 = vmatmul.bf16.gmra.mxu0 %v3144
    %v4011 = vpop.f32.mrf.mxu0
    %v4012 = vadd.f32 %v3279, %v4011
    %v4013 = vpop.f32.mrf.mxu0
    %v4014 = vadd.f32 %v3279, %v4013
    %4015 = vmatmul.bf16.gmra.mxu0 %v3146
    %v4016 = vpop.f32.mrf.mxu0
    %v4017 = vadd.f32 %v3279, %v4016
    %v4018 = vpop.f32.mrf.mxu0
    %v4019 = vadd.f32 %v3279, %v4018
    %4020 = vdwg.mxu0
    %4021 = vmatpush.bf16.msra.mxu0 %v3799
    %4022 = vmatpush.bf16.msra.mxu0 %v3791
    %4023 = vmatpush.bf16.msra.mxu0 %v3783
    %4024 = vmatpush.bf16.msra.mxu0 %v3775
    %4025 = vmatpush.bf16.msra.mxu0 %v3767
    %4026 = vmatpush.bf16.msra.mxu0 %v3759
    %4027 = vmatpush.bf16.msra.mxu0 %v3751
    %4028 = vmatpush.bf16.msra.mxu0 %v3743
    %4029 = vmatmul.bf16.gmra.mxu0 %v3141
    %v4030 = vpop.f32.mrf.mxu0
    %v4031 = vadd.f32 %v4002, %v4030
    %v4032 = vpop.f32.mrf.mxu0
    %v4033 = vadd.f32 %v4004, %v4032
    %4034 = vmatmul.bf16.gmra.mxu0 %v3143
    %v4035 = vpop.f32.mrf.mxu0
    %v4036 = vadd.f32 %v4007, %v4035
    %v4037 = vpop.f32.mrf.mxu0
    %v4038 = vadd.f32 %v4009, %v4037
    %4039 = vmatmul.bf16.gmra.mxu0 %v3145
    %v4040 = vpop.f32.mrf.mxu0
    %v4041 = vadd.f32 %v4012, %v4040
    %v4042 = vpop.f32.mrf.mxu0
    %v4043 = vadd.f32 %v4014, %v4042
    %4044 = vmatmul.bf16.gmra.mxu0 %v3147
    %v4045 = vpop.f32.mrf.mxu0
    %v4046 = vadd.f32 %v4017, %v4045
    %v4047 = vpop.f32.mrf.mxu0
    %v4048 = vadd.f32 %v4019, %v4047
    %4049 = vdwg.mxu0
    %4050 = vmatpush.bf16.msra.mxu0 %v3736
    %4051 = vmatpush.bf16.msra.mxu0 %v3728
    %4052 = vmatpush.bf16.msra.mxu0 %v3720
    %4053 = vmatpush.bf16.msra.mxu0 %v3712
    %4054 = vmatpush.bf16.msra.mxu0 %v3704
    %4055 = vmatpush.bf16.msra.mxu0 %v3696
    %4056 = vmatpush.bf16.msra.mxu0 %v3688
    %4057 = vmatpush.bf16.msra.mxu0 %v3680
    %4058 = vmatmul.bf16.gmra.mxu0 %v3140
    %v4059 = vpop.f32.mrf.mxu0
    %v4060 = vadd.f32 %v3280, %v4059
    %v4061 = vpop.f32.mrf.mxu0
    %v4062 = vadd.f32 %v3280, %v4061
    %4063 = vmatmul.bf16.gmra.mxu0 %v3142
    %v4064 = vpop.f32.mrf.mxu0
    %v4065 = vadd.f32 %v3280, %v4064
    %v4066 = vpop.f32.mrf.mxu0
    %v4067 = vadd.f32 %v3280, %v4066
    %4068 = vmatmul.bf16.gmra.mxu0 %v3144
    %v4069 = vpop.f32.mrf.mxu0
    %v4070 = vadd.f32 %v3280, %v4069
    %v4071 = vpop.f32.mrf.mxu0
    %v4072 = vadd.f32 %v3280, %v4071
    %4073 = vmatmul.bf16.gmra.mxu0 %v3146
    %v4074 = vpop.f32.mrf.mxu0
    %v4075 = vadd.f32 %v3280, %v4074
    %v4076 = vpop.f32.mrf.mxu0
    %v4077 = vadd.f32 %v3280, %v4076
    %4078 = vdwg.mxu0
    %4079 = vmatpush.bf16.msra.mxu0 %v3800
    %4080 = vmatpush.bf16.msra.mxu0 %v3792
    %4081 = vmatpush.bf16.msra.mxu0 %v3784
    %4082 = vmatpush.bf16.msra.mxu0 %v3776
    %4083 = vmatpush.bf16.msra.mxu0 %v3768
    %4084 = vmatpush.bf16.msra.mxu0 %v3760
    %4085 = vmatpush.bf16.msra.mxu0 %v3752
    %4086 = vmatpush.bf16.msra.mxu0 %v3744
    %4087 = vmatmul.bf16.gmra.mxu0 %v3141
    %v4088 = vpop.f32.mrf.mxu0
    %v4089 = vadd.f32 %v4060, %v4088
    %v4090 = vpop.f32.mrf.mxu0
    %v4091 = vadd.f32 %v4062, %v4090
    %4092 = vmatmul.bf16.gmra.mxu0 %v3143
    %v4093 = vpop.f32.mrf.mxu0
    %v4094 = vadd.f32 %v4065, %v4093
    %v4095 = vpop.f32.mrf.mxu0
    %v4096 = vadd.f32 %v4067, %v4095
    %4097 = vmatmul.bf16.gmra.mxu0 %v3145
    %v4098 = vpop.f32.mrf.mxu0
    %v4099 = vadd.f32 %v4070, %v4098
    %v4100 = vpop.f32.mrf.mxu0
    %v4101 = vadd.f32 %v4072, %v4100
    %4102 = vmatmul.bf16.gmra.mxu0 %v3147
    %v4103 = vpop.f32.mrf.mxu0
    %v4104 = vadd.f32 %v4075, %v4103
    %v4105 = vpop.f32.mrf.mxu0
    %v4106 = vadd.f32 %v4077, %v4105
    %4107 = vdwg.mxu0
    %4108 = vmatpush.bf16.msra.mxu0 %v3737
    %4109 = vmatpush.bf16.msra.mxu0 %v3729
    %4110 = vmatpush.bf16.msra.mxu0 %v3721
    %4111 = vmatpush.bf16.msra.mxu0 %v3713
    %4112 = vmatpush.bf16.msra.mxu0 %v3705
    %4113 = vmatpush.bf16.msra.mxu0 %v3697
    %4114 = vmatpush.bf16.msra.mxu0 %v3689
    %4115 = vmatpush.bf16.msra.mxu0 %v3681
    %4116 = vmatmul.bf16.gmra.mxu0 %v3140
    %v4117 = vpop.f32.mrf.mxu0
    %v4118 = vadd.f32 %v3281, %v4117
    %v4119 = vpop.f32.mrf.mxu0
    %v4120 = vadd.f32 %v3281, %v4119
    %4121 = vmatmul.bf16.gmra.mxu0 %v3142
    %v4122 = vpop.f32.mrf.mxu0
    %v4123 = vadd.f32 %v3281, %v4122
    %v4124 = vpop.f32.mrf.mxu0
    %v4125 = vadd.f32 %v3281, %v4124
    %4126 = vmatmul.bf16.gmra.mxu0 %v3144
    %v4127 = vpop.f32.mrf.mxu0
    %v4128 = vadd.f32 %v3281, %v4127
    %v4129 = vpop.f32.mrf.mxu0
    %v4130 = vadd.f32 %v3281, %v4129
    %4131 = vmatmul.bf16.gmra.mxu0 %v3146
    %v4132 = vpop.f32.mrf.mxu0
    %v4133 = vadd.f32 %v3281, %v4132
    %v4134 = vpop.f32.mrf.mxu0
    %v4135 = vadd.f32 %v3281, %v4134
    %4136 = vdwg.mxu0
    %4137 = vmatpush.bf16.msra.mxu0 %v3801
    %4138 = vmatpush.bf16.msra.mxu0 %v3793
    %4139 = vmatpush.bf16.msra.mxu0 %v3785
    %4140 = vmatpush.bf16.msra.mxu0 %v3777
    %4141 = vmatpush.bf16.msra.mxu0 %v3769
    %4142 = vmatpush.bf16.msra.mxu0 %v3761
    %4143 = vmatpush.bf16.msra.mxu0 %v3753
    %4144 = vmatpush.bf16.msra.mxu0 %v3745
    %4145 = vmatmul.bf16.gmra.mxu0 %v3141
    %v4146 = vpop.f32.mrf.mxu0
    %v4147 = vadd.f32 %v4118, %v4146
    %v4148 = vpop.f32.mrf.mxu0
    %v4149 = vadd.f32 %v4120, %v4148
    %4150 = vmatmul.bf16.gmra.mxu0 %v3143
    %v4151 = vpop.f32.mrf.mxu0
    %v4152 = vadd.f32 %v4123, %v4151
    %v4153 = vpop.f32.mrf.mxu0
    %v4154 = vadd.f32 %v4125, %v4153
    %4155 = vmatmul.bf16.gmra.mxu0 %v3145
    %v4156 = vpop.f32.mrf.mxu0
    %v4157 = vadd.f32 %v4128, %v4156
    %v4158 = vpop.f32.mrf.mxu0
    %v4159 = vadd.f32 %v4130, %v4158
    %4160 = vmatmul.bf16.gmra.mxu0 %v3147
    %v4161 = vpop.f32.mrf.mxu0
    %v4162 = vadd.f32 %v4133, %v4161
    %v4163 = vpop.f32.mrf.mxu0
    %v4164 = vadd.f32 %v4135, %v4163
    %4165 = vdwg.mxu0
    %4166 = vmatpush.bf16.msra.mxu0 %v3738
    %4167 = vmatpush.bf16.msra.mxu0 %v3730
    %4168 = vmatpush.bf16.msra.mxu0 %v3722
    %4169 = vmatpush.bf16.msra.mxu0 %v3714
    %4170 = vmatpush.bf16.msra.mxu0 %v3706
    %4171 = vmatpush.bf16.msra.mxu0 %v3698
    %4172 = vmatpush.bf16.msra.mxu0 %v3690
    %4173 = vmatpush.bf16.msra.mxu0 %v3682
    %4174 = vmatmul.bf16.gmra.mxu0 %v3140
    %v4175 = vpop.f32.mrf.mxu0
    %v4176 = vadd.f32 %v3282, %v4175
    %v4177 = vpop.f32.mrf.mxu0
    %v4178 = vadd.f32 %v3282, %v4177
    %4179 = vmatmul.bf16.gmra.mxu0 %v3142
    %v4180 = vpop.f32.mrf.mxu0
    %v4181 = vadd.f32 %v3282, %v4180
    %v4182 = vpop.f32.mrf.mxu0
    %v4183 = vadd.f32 %v3282, %v4182
    %4184 = vmatmul.bf16.gmra.mxu0 %v3144
    %v4185 = vpop.f32.mrf.mxu0
    %v4186 = vadd.f32 %v3282, %v4185
    %v4187 = vpop.f32.mrf.mxu0
    %v4188 = vadd.f32 %v3282, %v4187
    %4189 = vmatmul.bf16.gmra.mxu0 %v3146
    %v4190 = vpop.f32.mrf.mxu0
    %v4191 = vadd.f32 %v3282, %v4190
    %v4192 = vpop.f32.mrf.mxu0
    %v4193 = vadd.f32 %v3282, %v4192
    %4194 = vdwg.mxu0
    %4195 = vmatpush.bf16.msra.mxu0 %v3802
    %4196 = vmatpush.bf16.msra.mxu0 %v3794
    %4197 = vmatpush.bf16.msra.mxu0 %v3786
    %4198 = vmatpush.bf16.msra.mxu0 %v3778
    %4199 = vmatpush.bf16.msra.mxu0 %v3770
    %4200 = vmatpush.bf16.msra.mxu0 %v3762
    %4201 = vmatpush.bf16.msra.mxu0 %v3754
    %4202 = vmatpush.bf16.msra.mxu0 %v3746
    %4203 = vmatmul.bf16.gmra.mxu0 %v3141
    %v4204 = vpop.f32.mrf.mxu0
    %v4205 = vadd.f32 %v4176, %v4204
    %v4206 = vpop.f32.mrf.mxu0
    %v4207 = vadd.f32 %v4178, %v4206
    %4208 = vmatmul.bf16.gmra.mxu0 %v3143
    %v4209 = vpop.f32.mrf.mxu0
    %v4210 = vadd.f32 %v4181, %v4209
    %v4211 = vpop.f32.mrf.mxu0
    %v4212 = vadd.f32 %v4183, %v4211
    %4213 = vmatmul.bf16.gmra.mxu0 %v3145
    %v4214 = vpop.f32.mrf.mxu0
    %v4215 = vadd.f32 %v4186, %v4214
    %v4216 = vpop.f32.mrf.mxu0
    %v4217 = vadd.f32 %v4188, %v4216
    %4218 = vmatmul.bf16.gmra.mxu0 %v3147
    %v4219 = vpop.f32.mrf.mxu0
    %v4220 = vadd.f32 %v4191, %v4219
    %v4221 = vpop.f32.mrf.mxu0
    %v4222 = vadd.f32 %v4193, %v4221
    %4223 = vdwg.mxu0
    %4224 = vmatpush.bf16.msra.mxu0 %v3739
    %4225 = vmatpush.bf16.msra.mxu0 %v3731
    %4226 = vmatpush.bf16.msra.mxu0 %v3723
    %4227 = vmatpush.bf16.msra.mxu0 %v3715
    %4228 = vmatpush.bf16.msra.mxu0 %v3707
    %4229 = vmatpush.bf16.msra.mxu0 %v3699
    %4230 = vmatpush.bf16.msra.mxu0 %v3691
    %4231 = vmatpush.bf16.msra.mxu0 %v3683
    %4232 = vmatmul.bf16.gmra.mxu0 %v3140
    %v4233 = vpop.f32.mrf.mxu0
    %v4234 = vadd.f32 %v3283, %v4233
    %v4235 = vpop.f32.mrf.mxu0
    %v4236 = vadd.f32 %v3283, %v4235
    %4237 = vmatmul.bf16.gmra.mxu0 %v3142
    %v4238 = vpop.f32.mrf.mxu0
    %v4239 = vadd.f32 %v3283, %v4238
    %v4240 = vpop.f32.mrf.mxu0
    %v4241 = vadd.f32 %v3283, %v4240
    %4242 = vmatmul.bf16.gmra.mxu0 %v3144
    %v4243 = vpop.f32.mrf.mxu0
    %v4244 = vadd.f32 %v3283, %v4243
    %v4245 = vpop.f32.mrf.mxu0
    %v4246 = vadd.f32 %v3283, %v4245
    %4247 = vmatmul.bf16.gmra.mxu0 %v3146
    %v4248 = vpop.f32.mrf.mxu0
    %v4249 = vadd.f32 %v3283, %v4248
    %v4250 = vpop.f32.mrf.mxu0
    %v4251 = vadd.f32 %v3283, %v4250
    %4252 = vdwg.mxu0
    %4253 = vmatpush.bf16.msra.mxu0 %v3803
    %4254 = vmatpush.bf16.msra.mxu0 %v3795
    %4255 = vmatpush.bf16.msra.mxu0 %v3787
    %4256 = vmatpush.bf16.msra.mxu0 %v3779
    %4257 = vmatpush.bf16.msra.mxu0 %v3771
    %4258 = vmatpush.bf16.msra.mxu0 %v3763
    %4259 = vmatpush.bf16.msra.mxu0 %v3755
    %4260 = vmatpush.bf16.msra.mxu0 %v3747
    %4261 = vmatmul.bf16.gmra.mxu0 %v3141
    %v4262 = vpop.f32.mrf.mxu0
    %v4263 = vadd.f32 %v4234, %v4262
    %v4264 = vpop.f32.mrf.mxu0
    %v4265 = vadd.f32 %v4236, %v4264
    %4266 = vmatmul.bf16.gmra.mxu0 %v3143
    %v4267 = vpop.f32.mrf.mxu0
    %v4268 = vadd.f32 %v4239, %v4267
    %v4269 = vpop.f32.mrf.mxu0
    %v4270 = vadd.f32 %v4241, %v4269
    %4271 = vmatmul.bf16.gmra.mxu0 %v3145
    %v4272 = vpop.f32.mrf.mxu0
    %v4273 = vadd.f32 %v4244, %v4272
    %v4274 = vpop.f32.mrf.mxu0
    %v4275 = vadd.f32 %v4246, %v4274
    %4276 = vmatmul.bf16.gmra.mxu0 %v3147
    %v4277 = vpop.f32.mrf.mxu0
    %v4278 = vadd.f32 %v4249, %v4277
    %v4279 = vpop.f32.mrf.mxu0
    %v4280 = vadd.f32 %v4251, %v4279
    %4281 = vdwg.mxu0
    %4282 = vmatpush.bf16.msra.mxu0 %v3740
    %4283 = vmatpush.bf16.msra.mxu0 %v3732
    %4284 = vmatpush.bf16.msra.mxu0 %v3724
    %4285 = vmatpush.bf16.msra.mxu0 %v3716
    %4286 = vmatpush.bf16.msra.mxu0 %v3708
    %4287 = vmatpush.bf16.msra.mxu0 %v3700
    %4288 = vmatpush.bf16.msra.mxu0 %v3692
    %4289 = vmatpush.bf16.msra.mxu0 %v3684
    %4290 = vmatmul.bf16.gmra.mxu0 %v3140
    %v4291 = vpop.f32.mrf.mxu0
    %v4292 = vadd.f32 %v3284, %v4291
    %v4293 = vpop.f32.mrf.mxu0
    %v4294 = vadd.f32 %v3284, %v4293
    %4295 = vmatmul.bf16.gmra.mxu0 %v3142
    %v4296 = vpop.f32.mrf.mxu0
    %v4297 = vadd.f32 %v3284, %v4296
    %v4298 = vpop.f32.mrf.mxu0
    %v4299 = vadd.f32 %v3284, %v4298
    %4300 = vmatmul.bf16.gmra.mxu0 %v3144
    %v4301 = vpop.f32.mrf.mxu0
    %v4302 = vadd.f32 %v3284, %v4301
    %v4303 = vpop.f32.mrf.mxu0
    %v4304 = vadd.f32 %v3284, %v4303
    %4305 = vmatmul.bf16.gmra.mxu0 %v3146
    %v4306 = vpop.f32.mrf.mxu0
    %v4307 = vadd.f32 %v3284, %v4306
    %v4308 = vpop.f32.mrf.mxu0
    %v4309 = vadd.f32 %v3284, %v4308
    %4310 = vdwg.mxu0
    %4311 = vmatpush.bf16.msra.mxu0 %v3804
    %4312 = vmatpush.bf16.msra.mxu0 %v3796
    %4313 = vmatpush.bf16.msra.mxu0 %v3788
    %4314 = vmatpush.bf16.msra.mxu0 %v3780
    %4315 = vmatpush.bf16.msra.mxu0 %v3772
    %4316 = vmatpush.bf16.msra.mxu0 %v3764
    %4317 = vmatpush.bf16.msra.mxu0 %v3756
    %4318 = vmatpush.bf16.msra.mxu0 %v3748
    %4319 = vmatmul.bf16.gmra.mxu0 %v3141
    %v4320 = vpop.f32.mrf.mxu0
    %v4321 = vadd.f32 %v4292, %v4320
    %v4322 = vpop.f32.mrf.mxu0
    %v4323 = vadd.f32 %v4294, %v4322
    %4324 = vmatmul.bf16.gmra.mxu0 %v3143
    %v4325 = vpop.f32.mrf.mxu0
    %v4326 = vadd.f32 %v4297, %v4325
    %v4327 = vpop.f32.mrf.mxu0
    %v4328 = vadd.f32 %v4299, %v4327
    %4329 = vmatmul.bf16.gmra.mxu0 %v3145
    %v4330 = vpop.f32.mrf.mxu0
    %v4331 = vadd.f32 %v4302, %v4330
    %v4332 = vpop.f32.mrf.mxu0
    %v4333 = vadd.f32 %v4304, %v4332
    %4334 = vmatmul.bf16.gmra.mxu0 %v3147
    %v4335 = vpop.f32.mrf.mxu0
    %v4336 = vadd.f32 %v4307, %v4335
    %v4337 = vpop.f32.mrf.mxu0
    %v4338 = vadd.f32 %v4309, %v4337
    %4339 = vdwg.mxu0
    %4340 = vmatpush.bf16.msra.mxu0 %v3741
    %4341 = vmatpush.bf16.msra.mxu0 %v3733
    %4342 = vmatpush.bf16.msra.mxu0 %v3725
    %4343 = vmatpush.bf16.msra.mxu0 %v3717
    %4344 = vmatpush.bf16.msra.mxu0 %v3709
    %4345 = vmatpush.bf16.msra.mxu0 %v3701
    %4346 = vmatpush.bf16.msra.mxu0 %v3693
    %4347 = vmatpush.bf16.msra.mxu0 %v3685
    %4348 = vmatmul.bf16.gmra.mxu0 %v3140
    %v4349 = vpop.f32.mrf.mxu0
    %v4350 = vadd.f32 %v3285, %v4349
    %v4351 = vpop.f32.mrf.mxu0
    %v4352 = vadd.f32 %v3285, %v4351
    %4353 = vmatmul.bf16.gmra.mxu0 %v3142
    %v4354 = vpop.f32.mrf.mxu0
    %v4355 = vadd.f32 %v3285, %v4354
    %v4356 = vpop.f32.mrf.mxu0
    %v4357 = vadd.f32 %v3285, %v4356
    %4358 = vmatmul.bf16.gmra.mxu0 %v3144
    %v4359 = vpop.f32.mrf.mxu0
    %v4360 = vadd.f32 %v3285, %v4359
    %v4361 = vpop.f32.mrf.mxu0
    %v4362 = vadd.f32 %v3285, %v4361
    %4363 = vmatmul.bf16.gmra.mxu0 %v3146
    %v4364 = vpop.f32.mrf.mxu0
    %v4365 = vadd.f32 %v3285, %v4364
    %v4366 = vpop.f32.mrf.mxu0
    %v4367 = vadd.f32 %v3285, %v4366
    %4368 = vdwg.mxu0
    %4369 = vmatpush.bf16.msra.mxu0 %v3805
    %4370 = vmatpush.bf16.msra.mxu0 %v3797
    %4371 = vmatpush.bf16.msra.mxu0 %v3789
    %4372 = vmatpush.bf16.msra.mxu0 %v3781
    %4373 = vmatpush.bf16.msra.mxu0 %v3773
    %4374 = vmatpush.bf16.msra.mxu0 %v3765
    %4375 = vmatpush.bf16.msra.mxu0 %v3757
    %4376 = vmatpush.bf16.msra.mxu0 %v3749
    %4377 = vmatmul.bf16.gmra.mxu0 %v3141
    %v4378 = vpop.f32.mrf.mxu0
    %v4379 = vadd.f32 %v4350, %v4378
    %v4380 = vpop.f32.mrf.mxu0
    %v4381 = vadd.f32 %v4352, %v4380
    %4382 = vmatmul.bf16.gmra.mxu0 %v3143
    %v4383 = vpop.f32.mrf.mxu0
    %v4384 = vadd.f32 %v4355, %v4383
    %v4385 = vpop.f32.mrf.mxu0
    %v4386 = vadd.f32 %v4357, %v4385
    %4387 = vmatmul.bf16.gmra.mxu0 %v3145
    %v4388 = vpop.f32.mrf.mxu0
    %v4389 = vadd.f32 %v4360, %v4388
    %v4390 = vpop.f32.mrf.mxu0
    %v4391 = vadd.f32 %v4362, %v4390
    %4392 = vmatmul.bf16.gmra.mxu0 %v3147
    %v4393 = vpop.f32.mrf.mxu0
    %v4394 = vadd.f32 %v4365, %v4393
    %v4395 = vpop.f32.mrf.mxu0
    %v4396 = vadd.f32 %v4367, %v4395
    %4397 = vdwg.mxu0
    %v4398 = vld [vmem:[#allocation10] sm:$0xff]
    %v4399 = vld [vmem:[#allocation10 + $0x8] sm:$0xff]
    %v4400 = vld [vmem:[#allocation10 + $0x10] sm:$0xff]
    %v4401 = vld [vmem:[#allocation10 + $0x18] sm:$0xff]
    %v4402 = vld [vmem:[#allocation10 + $0x20] sm:$0xff]
    %v4403 = vld [vmem:[#allocation10 + $0x28] sm:$0xff]
    %v4404 = vld [vmem:[#allocation10 + $0x30] sm:$0xff]
    %v4405 = vld [vmem:[#allocation10 + $0x38] sm:$0xff]
    %v4406 = vld [vmem:[#allocation10 + $0x40] sm:$0xff]
    %v4407 = vld [vmem:[#allocation10 + $0x48] sm:$0xff]
    %v4408 = vld [vmem:[#allocation10 + $0x50] sm:$0xff]
    %v4409 = vld [vmem:[#allocation10 + $0x58] sm:$0xff]
    %v4410 = vld [vmem:[#allocation10 + $0x60] sm:$0xff]
    %v4411 = vld [vmem:[#allocation10 + $0x68] sm:$0xff]
    %v4412 = vld [vmem:[#allocation10 + $0x70] sm:$0xff]
    %v4413 = vld [vmem:[#allocation10 + $0x78] sm:$0xff]
    %v4414 = vld [vmem:[#allocation10 + $0x80] sm:$0xff]
    %v4415 = vld [vmem:[#allocation10 + $0x88] sm:$0xff]
    %v4416 = vld [vmem:[#allocation10 + $0x90] sm:$0xff]
    %v4417 = vld [vmem:[#allocation10 + $0x98] sm:$0xff]
    %v4418 = vld [vmem:[#allocation10 + $0xa0] sm:$0xff]
    %v4419 = vld [vmem:[#allocation10 + $0xa8] sm:$0xff]
    %v4420 = vld [vmem:[#allocation10 + $0xb0] sm:$0xff]
    %v4421 = vld [vmem:[#allocation10 + $0xb8] sm:$0xff]
    %v4422 = vld [vmem:[#allocation10 + $0xc0] sm:$0xff]
    %v4423 = vld [vmem:[#allocation10 + $0xc8] sm:$0xff]
    %v4424 = vld [vmem:[#allocation10 + $0xd0] sm:$0xff]
    %v4425 = vld [vmem:[#allocation10 + $0xd8] sm:$0xff]
    %v4426 = vld [vmem:[#allocation10 + $0xe0] sm:$0xff]
    %v4427 = vld [vmem:[#allocation10 + $0xe8] sm:$0xff]
    %v4428 = vld [vmem:[#allocation10 + $0xf0] sm:$0xff]
    %v4429 = vld [vmem:[#allocation10 + $0xf8] sm:$0xff]
    %v4430 = vld [vmem:[#allocation11] sm:$0xff]
    %v4431 = vld [vmem:[#allocation11 + $0x8] sm:$0xff]
    %v4432 = vld [vmem:[#allocation11 + $0x10] sm:$0xff]
    %v4433 = vld [vmem:[#allocation11 + $0x18] sm:$0xff]
    %v4434 = vld [vmem:[#allocation11 + $0x20] sm:$0xff]
    %v4435 = vld [vmem:[#allocation11 + $0x28] sm:$0xff]
    %v4436 = vld [vmem:[#allocation11 + $0x30] sm:$0xff]
    %v4437 = vld [vmem:[#allocation11 + $0x38] sm:$0xff]
    %v4438 = vld [vmem:[#allocation11 + $0x40] sm:$0xff]
    %v4439 = vld [vmem:[#allocation11 + $0x48] sm:$0xff]
    %v4440 = vld [vmem:[#allocation11 + $0x50] sm:$0xff]
    %v4441 = vld [vmem:[#allocation11 + $0x58] sm:$0xff]
    %v4442 = vld [vmem:[#allocation11 + $0x60] sm:$0xff]
    %v4443 = vld [vmem:[#allocation11 + $0x68] sm:$0xff]
    %v4444 = vld [vmem:[#allocation11 + $0x70] sm:$0xff]
    %v4445 = vld [vmem:[#allocation11 + $0x78] sm:$0xff]
    %v4446 = vld [vmem:[#allocation11 + $0x80] sm:$0xff]
    %v4447 = vld [vmem:[#allocation11 + $0x88] sm:$0xff]
    %v4448 = vld [vmem:[#allocation11 + $0x90] sm:$0xff]
    %v4449 = vld [vmem:[#allocation11 + $0x98] sm:$0xff]
    %v4450 = vld [vmem:[#allocation11 + $0xa0] sm:$0xff]
    %v4451 = vld [vmem:[#allocation11 + $0xa8] sm:$0xff]
    %v4452 = vld [vmem:[#allocation11 + $0xb0] sm:$0xff]
    %v4453 = vld [vmem:[#allocation11 + $0xb8] sm:$0xff]
    %v4454 = vld [vmem:[#allocation11 + $0xc0] sm:$0xff]
    %v4455 = vld [vmem:[#allocation11 + $0xc8] sm:$0xff]
    %v4456 = vld [vmem:[#allocation11 + $0xd0] sm:$0xff]
    %v4457 = vld [vmem:[#allocation11 + $0xd8] sm:$0xff]
    %v4458 = vld [vmem:[#allocation11 + $0xe0] sm:$0xff]
    %v4459 = vld [vmem:[#allocation11 + $0xe8] sm:$0xff]
    %v4460 = vld [vmem:[#allocation11 + $0xf0] sm:$0xff]
    %v4461 = vld [vmem:[#allocation11 + $0xf8] sm:$0xff]
    %v4494 = vunpack.c.l.b16 %v4398
    %v4495 = vunpack.c.h.b16 %v4398
    %v4496 = vunpack.c.l.b16 %v4399
    %v4497 = vunpack.c.h.b16 %v4399
    %v4498 = vunpack.c.l.b16 %v4400
    %v4499 = vunpack.c.h.b16 %v4400
    %v4500 = vunpack.c.l.b16 %v4401
    %v4501 = vunpack.c.h.b16 %v4401
    %v4502 = vunpack.c.l.b16 %v4402
    %v4503 = vunpack.c.h.b16 %v4402
    %v4504 = vunpack.c.l.b16 %v4403
    %v4505 = vunpack.c.h.b16 %v4403
    %v4506 = vunpack.c.l.b16 %v4404
    %v4507 = vunpack.c.h.b16 %v4404
    %v4508 = vunpack.c.l.b16 %v4405
    %v4509 = vunpack.c.h.b16 %v4405
    %v4510 = vunpack.c.l.b16 %v4406
    %v4511 = vunpack.c.h.b16 %v4406
    %v4512 = vunpack.c.l.b16 %v4407
    %v4513 = vunpack.c.h.b16 %v4407
    %v4514 = vunpack.c.l.b16 %v4408
    %v4515 = vunpack.c.h.b16 %v4408
    %v4516 = vunpack.c.l.b16 %v4409
    %v4517 = vunpack.c.h.b16 %v4409
    %v4518 = vunpack.c.l.b16 %v4410
    %v4519 = vunpack.c.h.b16 %v4410
    %v4520 = vunpack.c.l.b16 %v4411
    %v4521 = vunpack.c.h.b16 %v4411
    %v4522 = vunpack.c.l.b16 %v4412
    %v4523 = vunpack.c.h.b16 %v4412
    %v4524 = vunpack.c.l.b16 %v4413
    %v4525 = vunpack.c.h.b16 %v4413
    %v4526 = vunpack.c.l.b16 %v4414
    %v4527 = vunpack.c.h.b16 %v4414
    %v4528 = vunpack.c.l.b16 %v4415
    %v4529 = vunpack.c.h.b16 %v4415
    %v4530 = vunpack.c.l.b16 %v4416
    %v4531 = vunpack.c.h.b16 %v4416
    %v4532 = vunpack.c.l.b16 %v4417
    %v4533 = vunpack.c.h.b16 %v4417
    %v4534 = vunpack.c.l.b16 %v4418
    %v4535 = vunpack.c.h.b16 %v4418
    %v4536 = vunpack.c.l.b16 %v4419
    %v4537 = vunpack.c.h.b16 %v4419
    %v4538 = vunpack.c.l.b16 %v4420
    %v4539 = vunpack.c.h.b16 %v4420
    %v4540 = vunpack.c.l.b16 %v4421
    %v4541 = vunpack.c.h.b16 %v4421
    %v4542 = vunpack.c.l.b16 %v4422
    %v4543 = vunpack.c.h.b16 %v4422
    %v4544 = vunpack.c.l.b16 %v4423
    %v4545 = vunpack.c.h.b16 %v4423
    %v4546 = vunpack.c.l.b16 %v4424
    %v4547 = vunpack.c.h.b16 %v4424
    %v4548 = vunpack.c.l.b16 %v4425
    %v4549 = vunpack.c.h.b16 %v4425
    %v4550 = vunpack.c.l.b16 %v4426
    %v4551 = vunpack.c.h.b16 %v4426
    %v4552 = vunpack.c.l.b16 %v4427
    %v4553 = vunpack.c.h.b16 %v4427
    %v4554 = vunpack.c.l.b16 %v4428
    %v4555 = vunpack.c.h.b16 %v4428
    %v4556 = vunpack.c.l.b16 %v4429
    %v4557 = vunpack.c.h.b16 %v4429
    %v4558 = vpack.c.b16 %v4498, %v4494
    %v4559 = vpack.c.b16 %v4499, %v4495
    %v4560 = vpack.c.b16 %v4500, %v4496
    %v4561 = vpack.c.b16 %v4501, %v4497
    %v4562 = vpack.c.b16 %v4506, %v4502
    %v4563 = vpack.c.b16 %v4507, %v4503
    %v4564 = vpack.c.b16 %v4508, %v4504
    %v4565 = vpack.c.b16 %v4509, %v4505
    %v4566 = vpack.c.b16 %v4514, %v4510
    %v4567 = vpack.c.b16 %v4515, %v4511
    %v4568 = vpack.c.b16 %v4516, %v4512
    %v4569 = vpack.c.b16 %v4517, %v4513
    %v4570 = vpack.c.b16 %v4522, %v4518
    %v4571 = vpack.c.b16 %v4523, %v4519
    %v4572 = vpack.c.b16 %v4524, %v4520
    %v4573 = vpack.c.b16 %v4525, %v4521
    %v4574 = vpack.c.b16 %v4530, %v4526
    %v4575 = vpack.c.b16 %v4531, %v4527
    %v4576 = vpack.c.b16 %v4532, %v4528
    %v4577 = vpack.c.b16 %v4533, %v4529
    %v4578 = vpack.c.b16 %v4538, %v4534
    %v4579 = vpack.c.b16 %v4539, %v4535
    %v4580 = vpack.c.b16 %v4540, %v4536
    %v4581 = vpack.c.b16 %v4541, %v4537
    %v4582 = vpack.c.b16 %v4546, %v4542
    %v4583 = vpack.c.b16 %v4547, %v4543
    %v4584 = vpack.c.b16 %v4548, %v4544
    %v4585 = vpack.c.b16 %v4549, %v4545
    %v4586 = vpack.c.b16 %v4554, %v4550
    %v4587 = vpack.c.b16 %v4555, %v4551
    %v4588 = vpack.c.b16 %v4556, %v4552
    %v4589 = vpack.c.b16 %v4557, %v4553
    %4622 = vmatpush.bf16.msra.mxu0 %v4586
    %4623 = vmatpush.bf16.msra.mxu0 %v4582
    %4624 = vmatpush.bf16.msra.mxu0 %v4578
    %4625 = vmatpush.bf16.msra.mxu0 %v4574
    %4626 = vmatpush.bf16.msra.mxu0 %v4570
    %4627 = vmatpush.bf16.msra.mxu0 %v4566
    %4628 = vmatpush.bf16.msra.mxu0 %v4562
    %4629 = vmatpush.bf16.msra.mxu0 %v4558
    %4630 = vmatmul.bf16.gmra.mxu0 0
    %v4631 = vpop.f32.mrf.mxu0
    %v4632 = vadd.f32 0.0, %v4631
    %v4633 = vpop.f32.mrf.mxu0
    %4634 = vdwg.mxu0
    %4635 = vmatpush.bf16.msra.mxu0 %v4587
    %4636 = vmatpush.bf16.msra.mxu0 %v4583
    %4637 = vmatpush.bf16.msra.mxu0 %v4579
    %4638 = vmatpush.bf16.msra.mxu0 %v4575
    %4639 = vmatpush.bf16.msra.mxu0 %v4571
    %4640 = vmatpush.bf16.msra.mxu0 %v4567
    %4641 = vmatpush.bf16.msra.mxu0 %v4563
    %4642 = vmatpush.bf16.msra.mxu0 %v4559
    %4643 = vmatmul.bf16.gmra.mxu0 0
    %v4644 = vpop.f32.mrf.mxu0
    %v4645 = vadd.f32 0.0, %v4644
    %v4646 = vpop.f32.mrf.mxu0
    %4647 = vdwg.mxu0
    %4648 = vmatpush.bf16.msra.mxu0 %v4588
    %4649 = vmatpush.bf16.msra.mxu0 %v4584
    %4650 = vmatpush.bf16.msra.mxu0 %v4580
    %4651 = vmatpush.bf16.msra.mxu0 %v4576
    %4652 = vmatpush.bf16.msra.mxu0 %v4572
    %4653 = vmatpush.bf16.msra.mxu0 %v4568
    %4654 = vmatpush.bf16.msra.mxu0 %v4564
    %4655 = vmatpush.bf16.msra.mxu0 %v4560
    %4656 = vmatmul.bf16.gmra.mxu0 0
    %v4657 = vpop.f32.mrf.mxu0
    %v4658 = vadd.f32 0.0, %v4657
    %v4659 = vpop.f32.mrf.mxu0
    %4660 = vdwg.mxu0
    %4661 = vmatpush.bf16.msra.mxu0 %v4589
    %4662 = vmatpush.bf16.msra.mxu0 %v4585
    %4663 = vmatpush.bf16.msra.mxu0 %v4581
    %4664 = vmatpush.bf16.msra.mxu0 %v4577
    %4665 = vmatpush.bf16.msra.mxu0 %v4573
    %4666 = vmatpush.bf16.msra.mxu0 %v4569
    %4667 = vmatpush.bf16.msra.mxu0 %v4565
    %4668 = vmatpush.bf16.msra.mxu0 %v4561
    %4669 = vmatmul.bf16.gmra.mxu0 0
    %v4670 = vpop.f32.mrf.mxu0
    %v4671 = vadd.f32 0.0, %v4670
    %v4672 = vpop.f32.mrf.mxu0
    %4673 = vdwg.mxu0
    %v4674 = vadd.f32 %v3973, %v4632
    %v4675 = vadd.f32 %v4031, %v4645
    %v4676 = vadd.f32 %v4089, %v4658
    %v4677 = vadd.f32 %v4147, %v4671
    %v4678 = vxor.u32 %v4674, 2147483648
    %v4679 = vmul.f32 %v4678, 1.442695
    %v4680 = vpow.pop %v4679
    %v4681 = vadd.f32 %v4680, 1.0
    %v4682 = vrcp.pop %v4681
    %v4683 = vmul.f32 %v4681, %v4682
    %v4684 = vsub.f32 1.0, %v4683
    %v4685 = vmul.f32 %v4682, %v4684
    %v4686 = vadd.f32 %v4682, %v4685
    %vm4687 = vweird.f32 %v4681
    %vm4688 = vweird.f32 %v4682
    %vm4689 = vmor %vm4687, %vm4688
    %v4690 = vsel %vm4689, %v4682, %v4686
    %v4691 = vand.u32 2147483647, %v4681
    %vm4692 = vcmp.eq.f32.partialorder %v4691, 8.507059e+37
    %v4693 = vand.u32 %v4681, 2147483648
    %v4694 = vor.u32 1.1754944e-38, %v4693
    %v4695 = vsel %vm4692, %v4694, %v4690
    %v4696 = vmul.f32 1.0, %v4695
    %v4697 = vxor.u32 %v4675, 2147483648
    %v4698 = vmul.f32 %v4697, 1.442695
    %v4699 = vpow.pop %v4698
    %v4700 = vadd.f32 %v4699, 1.0
    %v4701 = vrcp.pop %v4700
    %v4702 = vmul.f32 %v4700, %v4701
    %v4703 = vsub.f32 1.0, %v4702
    %v4704 = vmul.f32 %v4701, %v4703
    %v4705 = vadd.f32 %v4701, %v4704
    %vm4706 = vweird.f32 %v4700
    %vm4707 = vweird.f32 %v4701
    %vm4708 = vmor %vm4706, %vm4707
    %v4709 = vsel %vm4708, %v4701, %v4705
    %v4710 = vand.u32 2147483647, %v4700
    %vm4711 = vcmp.eq.f32.partialorder %v4710, 8.507059e+37
    %v4712 = vand.u32 %v4700, 2147483648
    %v4713 = vor.u32 1.1754944e-38, %v4712
    %v4714 = vsel %vm4711, %v4713, %v4709
    %v4715 = vmul.f32 1.0, %v4714
    %v4716 = vtanh.pop %v4676
    %v4717 = vxor.u32 %v4677, 2147483648
    %v4718 = vmul.f32 %v4717, 1.442695
    %v4719 = vpow.pop %v4718
    %v4720 = vadd.f32 %v4719, 1.0
    %v4721 = vrcp.pop %v4720
    %v4722 = vmul.f32 %v4720, %v4721
    %v4723 = vsub.f32 1.0, %v4722
    %v4724 = vmul.f32 %v4721, %v4723
    %v4725 = vadd.f32 %v4721, %v4724
    %vm4726 = vweird.f32 %v4720
    %vm4727 = vweird.f32 %v4721
    %vm4728 = vmor %vm4726, %vm4727
    %v4729 = vsel %vm4728, %v4721, %v4725
    %v4730 = vand.u32 2147483647, %v4720
    %vm4731 = vcmp.eq.f32.partialorder %v4730, 8.507059e+37
    %v4732 = vand.u32 %v4720, 2147483648
    %v4733 = vor.u32 1.1754944e-38, %v4732
    %v4734 = vsel %vm4731, %v4733, %v4729
    %v4735 = vmul.f32 1.0, %v4734
    %v4736 = vmul.f32 %v4715, 0.0
    %v4737 = vmul.f32 %v4696, %v4716
    %v4738 = vadd.f32 %v4736, %v4737
    %v4739 = vtanh.pop %v4738
    %v4740 = vmul.f32 %v4735, %v4739
    %v4773 = vunpack.c.l.b16 %v4430
    %v4774 = vunpack.c.h.b16 %v4430
    %v4775 = vunpack.c.l.b16 %v4431
    %v4776 = vunpack.c.h.b16 %v4431
    %v4777 = vunpack.c.l.b16 %v4432
    %v4778 = vunpack.c.h.b16 %v4432
    %v4779 = vunpack.c.l.b16 %v4433
    %v4780 = vunpack.c.h.b16 %v4433
    %v4781 = vunpack.c.l.b16 %v4434
    %v4782 = vunpack.c.h.b16 %v4434
    %v4783 = vunpack.c.l.b16 %v4435
    %v4784 = vunpack.c.h.b16 %v4435
    %v4785 = vunpack.c.l.b16 %v4436
    %v4786 = vunpack.c.h.b16 %v4436
    %v4787 = vunpack.c.l.b16 %v4437
    %v4788 = vunpack.c.h.b16 %v4437
    %v4789 = vunpack.c.l.b16 %v4438
    %v4790 = vunpack.c.h.b16 %v4438
    %v4791 = vunpack.c.l.b16 %v4439
    %v4792 = vunpack.c.h.b16 %v4439
    %v4793 = vunpack.c.l.b16 %v4440
    %v4794 = vunpack.c.h.b16 %v4440
    %v4795 = vunpack.c.l.b16 %v4441
    %v4796 = vunpack.c.h.b16 %v4441
    %v4797 = vunpack.c.l.b16 %v4442
    %v4798 = vunpack.c.h.b16 %v4442
    %v4799 = vunpack.c.l.b16 %v4443
    %v4800 = vunpack.c.h.b16 %v4443
    %v4801 = vunpack.c.l.b16 %v4444
    %v4802 = vunpack.c.h.b16 %v4444
    %v4803 = vunpack.c.l.b16 %v4445
    %v4804 = vunpack.c.h.b16 %v4445
    %v4805 = vunpack.c.l.b16 %v4446
    %v4806 = vunpack.c.h.b16 %v4446
    %v4807 = vunpack.c.l.b16 %v4447
    %v4808 = vunpack.c.h.b16 %v4447
    %v4809 = vunpack.c.l.b16 %v4448
    %v4810 = vunpack.c.h.b16 %v4448
    %v4811 = vunpack.c.l.b16 %v4449
    %v4812 = vunpack.c.h.b16 %v4449
    %v4813 = vunpack.c.l.b16 %v4450
    %v4814 = vunpack.c.h.b16 %v4450
    %v4815 = vunpack.c.l.b16 %v4451
    %v4816 = vunpack.c.h.b16 %v4451
    %v4817 = vunpack.c.l.b16 %v4452
    %v4818 = vunpack.c.h.b16 %v4452
    %v4819 = vunpack.c.l.b16 %v4453
    %v4820 = vunpack.c.h.b16 %v4453
    %v4821 = vunpack.c.l.b16 %v4454
    %v4822 = vunpack.c.h.b16 %v4454
    %v4823 = vunpack.c.l.b16 %v4455
    %v4824 = vunpack.c.h.b16 %v4455
    %v4825 = vunpack.c.l.b16 %v4456
    %v4826 = vunpack.c.h.b16 %v4456
    %v4827 = vunpack.c.l.b16 %v4457
    %v4828 = vunpack.c.h.b16 %v4457
    %v4829 = vunpack.c.l.b16 %v4458
    %v4830 = vunpack.c.h.b16 %v4458
    %v4831 = vunpack.c.l.b16 %v4459
    %v4832 = vunpack.c.h.b16 %v4459
    %v4833 = vunpack.c.l.b16 %v4460
    %v4834 = vunpack.c.h.b16 %v4460
    %v4835 = vunpack.c.l.b16 %v4461
    %v4836 = vunpack.c.h.b16 %v4461
    %v4837 = vpack.c.b16 %v4777, %v4773
    %v4838 = vpack.c.b16 %v4778, %v4774
    %v4839 = vpack.c.b16 %v4779, %v4775
    %v4840 = vpack.c.b16 %v4780, %v4776
    %v4841 = vpack.c.b16 %v4785, %v4781
    %v4842 = vpack.c.b16 %v4786, %v4782
    %v4843 = vpack.c.b16 %v4787, %v4783
    %v4844 = vpack.c.b16 %v4788, %v4784
    %v4845 = vpack.c.b16 %v4793, %v4789
    %v4846 = vpack.c.b16 %v4794, %v4790
    %v4847 = vpack.c.b16 %v4795, %v4791
    %v4848 = vpack.c.b16 %v4796, %v4792
    %v4849 = vpack.c.b16 %v4801, %v4797
    %v4850 = vpack.c.b16 %v4802, %v4798
    %v4851 = vpack.c.b16 %v4803, %v4799
    %v4852 = vpack.c.b16 %v4804, %v4800
    %v4853 = vpack.c.b16 %v4809, %v4805
    %v4854 = vpack.c.b16 %v4810, %v4806
    %v4855 = vpack.c.b16 %v4811, %v4807
    %v4856 = vpack.c.b16 %v4812, %v4808
    %v4857 = vpack.c.b16 %v4817, %v4813
    %v4858 = vpack.c.b16 %v4818, %v4814
    %v4859 = vpack.c.b16 %v4819, %v4815
    %v4860 = vpack.c.b16 %v4820, %v4816
    %v4861 = vpack.c.b16 %v4825, %v4821
    %v4862 = vpack.c.b16 %v4826, %v4822
    %v4863 = vpack.c.b16 %v4827, %v4823
    %v4864 = vpack.c.b16 %v4828, %v4824
    %v4865 = vpack.c.b16 %v4833, %v4829
    %v4866 = vpack.c.b16 %v4834, %v4830
    %v4867 = vpack.c.b16 %v4835, %v4831
    %v4868 = vpack.c.b16 %v4836, %v4832
    %4901 = vmatpush.bf16.msra.mxu0 %v4865
    %4902 = vmatpush.bf16.msra.mxu0 %v4861
    %4903 = vmatpush.bf16.msra.mxu0 %v4857
    %4904 = vmatpush.bf16.msra.mxu0 %v4853
    %4905 = vmatpush.bf16.msra.mxu0 %v4849
    %4906 = vmatpush.bf16.msra.mxu0 %v4845
    %4907 = vmatpush.bf16.msra.mxu0 %v4841
    %4908 = vmatpush.bf16.msra.mxu0 %v4837
    %4909 = vmatmul.bf16.gmra.mxu0 0
    %v4910 = vpop.f32.mrf.mxu0
    %v4911 = vadd.f32 0.0, %v4910
    %v4912 = vpop.f32.mrf.mxu0
    %4913 = vdwg.mxu0
    %4914 = vmatpush.bf16.msra.mxu0 %v4866
    %4915 = vmatpush.bf16.msra.mxu0 %v4862
    %4916 = vmatpush.bf16.msra.mxu0 %v4858
    %4917 = vmatpush.bf16.msra.mxu0 %v4854
    %4918 = vmatpush.bf16.msra.mxu0 %v4850
    %4919 = vmatpush.bf16.msra.mxu0 %v4846
    %4920 = vmatpush.bf16.msra.mxu0 %v4842
    %4921 = vmatpush.bf16.msra.mxu0 %v4838
    %4922 = vmatmul.bf16.gmra.mxu0 0
    %v4923 = vpop.f32.mrf.mxu0
    %v4924 = vadd.f32 0.0, %v4923
    %v4925 = vpop.f32.mrf.mxu0
    %4926 = vdwg.mxu0
    %4927 = vmatpush.bf16.msra.mxu0 %v4867
    %4928 = vmatpush.bf16.msra.mxu0 %v4863
    %4929 = vmatpush.bf16.msra.mxu0 %v4859
    %4930 = vmatpush.bf16.msra.mxu0 %v4855
    %4931 = vmatpush.bf16.msra.mxu0 %v4851
    %4932 = vmatpush.bf16.msra.mxu0 %v4847
    %4933 = vmatpush.bf16.msra.mxu0 %v4843
    %4934 = vmatpush.bf16.msra.mxu0 %v4839
    %4935 = vmatmul.bf16.gmra.mxu0 0
    %v4936 = vpop.f32.mrf.mxu0
    %v4937 = vadd.f32 0.0, %v4936
    %v4938 = vpop.f32.mrf.mxu0
    %4939 = vdwg.mxu0
    %4940 = vmatpush.bf16.msra.mxu0 %v4868
    %4941 = vmatpush.bf16.msra.mxu0 %v4864
    %4942 = vmatpush.bf16.msra.mxu0 %v4860
    %4943 = vmatpush.bf16.msra.mxu0 %v4856
    %4944 = vmatpush.bf16.msra.mxu0 %v4852
    %4945 = vmatpush.bf16.msra.mxu0 %v4848
    %4946 = vmatpush.bf16.msra.mxu0 %v4844
    %4947 = vmatpush.bf16.msra.mxu0 %v4840
    %4948 = vmatmul.bf16.gmra.mxu0 0
    %v4949 = vpop.f32.mrf.mxu0
    %v4950 = vadd.f32 0.0, %v4949
    %v4951 = vpop.f32.mrf.mxu0
    %4952 = vdwg.mxu0
    %v4953 = vadd.f32 %v4222, %v4911
    %v4954 = vadd.f32 %v4280, %v4924
    %v4955 = vadd.f32 %v4338, %v4937
    %v4956 = vadd.f32 %v4396, %v4950
    %v4957 = vxor.u32 %v4953, 2147483648
    %v4958 = vmul.f32 %v4957, 1.442695
    %v4959 = vpow.pop %v4958
    %v4960 = vadd.f32 %v4959, 1.0
    %v4961 = vrcp.pop %v4960
    %v4962 = vmul.f32 %v4960, %v4961
    %v4963 = vsub.f32 1.0, %v4962
    %v4964 = vmul.f32 %v4961, %v4963
    %v4965 = vadd.f32 %v4961, %v4964
    %vm4966 = vweird.f32 %v4960
    %vm4967 = vweird.f32 %v4961
    %vm4968 = vmor %vm4966, %vm4967
    %v4969 = vsel %vm4968, %v4961, %v4965
    %v4970 = vand.u32 2147483647, %v4960
    %vm4971 = vcmp.eq.f32.partialorder %v4970, 8.507059e+37
    %v4972 = vand.u32 %v4960, 2147483648
    %v4973 = vor.u32 1.1754944e-38, %v4972
    %v4974 = vsel %vm4971, %v4973, %v4969
    %v4975 = vmul.f32 1.0, %v4974
    %v4976 = vxor.u32 %v4954, 2147483648
    %v4977 = vmul.f32 %v4976, 1.442695
    %v4978 = vpow.pop %v4977
    %v4979 = vadd.f32 %v4978, 1.0
    %v4980 = vrcp.pop %v4979
    %v4981 = vmul.f32 %v4979, %v4980
    %v4982 = vsub.f32 1.0, %v4981
    %v4983 = vmul.f32 %v4980, %v4982
    %v4984 = vadd.f32 %v4980, %v4983
    %vm4985 = vweird.f32 %v4979
    %vm4986 = vweird.f32 %v4980
    %vm4987 = vmor %vm4985, %vm4986
    %v4988 = vsel %vm4987, %v4980, %v4984
    %v4989 = vand.u32 2147483647, %v4979
    %vm4990 = vcmp.eq.f32.partialorder %v4989, 8.507059e+37
    %v4991 = vand.u32 %v4979, 2147483648
    %v4992 = vor.u32 1.1754944e-38, %v4991
    %v4993 = vsel %vm4990, %v4992, %v4988
    %v4994 = vmul.f32 1.0, %v4993
    %v4995 = vtanh.pop %v4955
    %v4996 = vxor.u32 %v4956, 2147483648
    %v4997 = vmul.f32 %v4996, 1.442695
    %v4998 = vpow.pop %v4997
    %v4999 = vadd.f32 %v4998, 1.0
    %v5000 = vrcp.pop %v4999
    %v5001 = vmul.f32 %v4999, %v5000
    %v5002 = vsub.f32 1.0, %v5001
    %v5003 = vmul.f32 %v5000, %v5002
    %v5004 = vadd.f32 %v5000, %v5003
    %vm5005 = vweird.f32 %v4999
    %vm5006 = vweird.f32 %v5000
    %vm5007 = vmor %vm5005, %vm5006
    %v5008 = vsel %vm5007, %v5000, %v5004
    %v5009 = vand.u32 2147483647, %v4999
    %vm5010 = vcmp.eq.f32.partialorder %v5009, 8.507059e+37
    %v5011 = vand.u32 %v4999, 2147483648
    %v5012 = vor.u32 1.1754944e-38, %v5011
    %v5013 = vsel %vm5010, %v5012, %v5008
    %v5014 = vmul.f32 1.0, %v5013
    %v5015 = vmul.f32 %v4994, 0.0
    %v5016 = vmul.f32 %v4975, %v4995
    %v5017 = vadd.f32 %v5015, %v5016
    %v5018 = vtanh.pop %v5017
    %v5019 = vmul.f32 %v5014, %v5018
    %vm5020 = vcmp.eq.s32.totalorder %v139, 0
    %v5021 = vsel %vm5020, %v4740, 0.0
    %vm5022 = vcmp.eq.s32.totalorder %v139, 7
    %v5023 = vsel %vm5022, %v5019, 0.0
    %v5024 = vpack.c.bf16 %v4740, %v4740
    %5025 = vmatpush.bf16.msra.mxu0 %v4586
    %5026 = vmatpush.bf16.msra.mxu0 %v4582
    %5027 = vmatpush.bf16.msra.mxu0 %v4578
    %5028 = vmatpush.bf16.msra.mxu0 %v4574
    %5029 = vmatpush.bf16.msra.mxu0 %v4570
    %5030 = vmatpush.bf16.msra.mxu0 %v4566
    %5031 = vmatpush.bf16.msra.mxu0 %v4562
    %5032 = vmatpush.bf16.msra.mxu0 %v4558
    %5033 = vmatmul.bf16.gmra.mxu0 %v5024
    %v5034 = vpop.f32.mrf.mxu0
    %v5035 = vadd.f32 0.0, %v5034
    %v5036 = vpop.f32.mrf.mxu0
    %5037 = vdwg.mxu0
    %5038 = vmatpush.bf16.msra.mxu0 %v4587
    %5039 = vmatpush.bf16.msra.mxu0 %v4583
    %5040 = vmatpush.bf16.msra.mxu0 %v4579
    %5041 = vmatpush.bf16.msra.mxu0 %v4575
    %5042 = vmatpush.bf16.msra.mxu0 %v4571
    %5043 = vmatpush.bf16.msra.mxu0 %v4567
    %5044 = vmatpush.bf16.msra.mxu0 %v4563
    %5045 = vmatpush.bf16.msra.mxu0 %v4559
    %5046 = vmatmul.bf16.gmra.mxu0 %v5024
    %v5047 = vpop.f32.mrf.mxu0
    %v5048 = vadd.f32 0.0, %v5047
    %v5049 = vpop.f32.mrf.mxu0
    %5050 = vdwg.mxu0
    %5051 = vmatpush.bf16.msra.mxu0 %v4588
    %5052 = vmatpush.bf16.msra.mxu0 %v4584
    %5053 = vmatpush.bf16.msra.mxu0 %v4580
    %5054 = vmatpush.bf16.msra.mxu0 %v4576
    %5055 = vmatpush.bf16.msra.mxu0 %v4572
    %5056 = vmatpush.bf16.msra.mxu0 %v4568
    %5057 = vmatpush.bf16.msra.mxu0 %v4564
    %5058 = vmatpush.bf16.msra.mxu0 %v4560
    %5059 = vmatmul.bf16.gmra.mxu0 %v5024
    %v5060 = vpop.f32.mrf.mxu0
    %v5061 = vadd.f32 0.0, %v5060
    %v5062 = vpop.f32.mrf.mxu0
    %5063 = vdwg.mxu0
    %5064 = vmatpush.bf16.msra.mxu0 %v4589
    %5065 = vmatpush.bf16.msra.mxu0 %v4585
    %5066 = vmatpush.bf16.msra.mxu0 %v4581
    %5067 = vmatpush.bf16.msra.mxu0 %v4577
    %5068 = vmatpush.bf16.msra.mxu0 %v4573
    %5069 = vmatpush.bf16.msra.mxu0 %v4569
    %5070 = vmatpush.bf16.msra.mxu0 %v4565
    %5071 = vmatpush.bf16.msra.mxu0 %v4561
    %5072 = vmatmul.bf16.gmra.mxu0 %v5024
    %v5073 = vpop.f32.mrf.mxu0
    %v5074 = vadd.f32 0.0, %v5073
    %v5075 = vpop.f32.mrf.mxu0
    %5076 = vdwg.mxu0
    %v5077 = vadd.f32 %v3975, %v5035
    %v5078 = vadd.f32 %v4033, %v5048
    %v5079 = vadd.f32 %v4091, %v5061
    %v5080 = vadd.f32 %v4149, %v5074
    %v5081 = vxor.u32 %v5077, 2147483648
    %v5082 = vmul.f32 %v5081, 1.442695
    %v5083 = vpow.pop %v5082
    %v5084 = vadd.f32 %v5083, 1.0
    %v5085 = vrcp.pop %v5084
    %v5086 = vmul.f32 %v5084, %v5085
    %v5087 = vsub.f32 1.0, %v5086
    %v5088 = vmul.f32 %v5085, %v5087
    %v5089 = vadd.f32 %v5085, %v5088
    %vm5090 = vweird.f32 %v5084
    %vm5091 = vweird.f32 %v5085
    %vm5092 = vmor %vm5090, %vm5091
    %v5093 = vsel %vm5092, %v5085, %v5089
    %v5094 = vand.u32 2147483647, %v5084
    %vm5095 = vcmp.eq.f32.partialorder %v5094, 8.507059e+37
    %v5096 = vand.u32 %v5084, 2147483648
    %v5097 = vor.u32 1.1754944e-38, %v5096
    %v5098 = vsel %vm5095, %v5097, %v5093
    %v5099 = vmul.f32 1.0, %v5098
    %v5100 = vxor.u32 %v5078, 2147483648
    %v5101 = vmul.f32 %v5100, 1.442695
    %v5102 = vpow.pop %v5101
    %v5103 = vadd.f32 %v5102, 1.0
    %v5104 = vrcp.pop %v5103
    %v5105 = vmul.f32 %v5103, %v5104
    %v5106 = vsub.f32 1.0, %v5105
    %v5107 = vmul.f32 %v5104, %v5106
    %v5108 = vadd.f32 %v5104, %v5107
    %vm5109 = vweird.f32 %v5103
    %vm5110 = vweird.f32 %v5104
    %vm5111 = vmor %vm5109, %vm5110
    %v5112 = vsel %vm5111, %v5104, %v5108
    %v5113 = vand.u32 2147483647, %v5103
    %vm5114 = vcmp.eq.f32.partialorder %v5113, 8.507059e+37
    %v5115 = vand.u32 %v5103, 2147483648
    %v5116 = vor.u32 1.1754944e-38, %v5115
    %v5117 = vsel %vm5114, %v5116, %v5112
    %v5118 = vmul.f32 1.0, %v5117
    %v5119 = vtanh.pop %v5079
    %v5120 = vxor.u32 %v5080, 2147483648
    %v5121 = vmul.f32 %v5120, 1.442695
    %v5122 = vpow.pop %v5121
    %v5123 = vadd.f32 %v5122, 1.0
    %v5124 = vrcp.pop %v5123
    %v5125 = vmul.f32 %v5123, %v5124
    %v5126 = vsub.f32 1.0, %v5125
    %v5127 = vmul.f32 %v5124, %v5126
    %v5128 = vadd.f32 %v5124, %v5127
    %vm5129 = vweird.f32 %v5123
    %vm5130 = vweird.f32 %v5124
    %vm5131 = vmor %vm5129, %vm5130
    %v5132 = vsel %vm5131, %v5124, %v5128
    %v5133 = vand.u32 2147483647, %v5123
    %vm5134 = vcmp.eq.f32.partialorder %v5133, 8.507059e+37
    %v5135 = vand.u32 %v5123, 2147483648
    %v5136 = vor.u32 1.1754944e-38, %v5135
    %v5137 = vsel %vm5134, %v5136, %v5132
    %v5138 = vmul.f32 1.0, %v5137
    %v5139 = vmul.f32 %v5118, %v4738
    %v5140 = vmul.f32 %v5099, %v5119
    %v5141 = vadd.f32 %v5139, %v5140
    %v5142 = vtanh.pop %v5141
    %v5143 = vmul.f32 %v5138, %v5142
    %v5144 = vpack.c.bf16 %v5019, %v5019
    %5145 = vmatpush.bf16.msra.mxu0 %v4865
    %5146 = vmatpush.bf16.msra.mxu0 %v4861
    %5147 = vmatpush.bf16.msra.mxu0 %v4857
    %5148 = vmatpush.bf16.msra.mxu0 %v4853
    %5149 = vmatpush.bf16.msra.mxu0 %v4849
    %5150 = vmatpush.bf16.msra.mxu0 %v4845
    %5151 = vmatpush.bf16.msra.mxu0 %v4841
    %5152 = vmatpush.bf16.msra.mxu0 %v4837
    %5153 = vmatmul.bf16.gmra.mxu0 %v5144
    %v5154 = vpop.f32.mrf.mxu0
    %v5155 = vadd.f32 0.0, %v5154
    %v5156 = vpop.f32.mrf.mxu0
    %5157 = vdwg.mxu0
    %5158 = vmatpush.bf16.msra.mxu0 %v4866
    %5159 = vmatpush.bf16.msra.mxu0 %v4862
    %5160 = vmatpush.bf16.msra.mxu0 %v4858
    %5161 = vmatpush.bf16.msra.mxu0 %v4854
    %5162 = vmatpush.bf16.msra.mxu0 %v4850
    %5163 = vmatpush.bf16.msra.mxu0 %v4846
    %5164 = vmatpush.bf16.msra.mxu0 %v4842
    %5165 = vmatpush.bf16.msra.mxu0 %v4838
    %5166 = vmatmul.bf16.gmra.mxu0 %v5144
    %v5167 = vpop.f32.mrf.mxu0
    %v5168 = vadd.f32 0.0, %v5167
    %v5169 = vpop.f32.mrf.mxu0
    %5170 = vdwg.mxu0
    %5171 = vmatpush.bf16.msra.mxu0 %v4867
    %5172 = vmatpush.bf16.msra.mxu0 %v4863
    %5173 = vmatpush.bf16.msra.mxu0 %v4859
    %5174 = vmatpush.bf16.msra.mxu0 %v4855
    %5175 = vmatpush.bf16.msra.mxu0 %v4851
    %5176 = vmatpush.bf16.msra.mxu0 %v4847
    %5177 = vmatpush.bf16.msra.mxu0 %v4843
    %5178 = vmatpush.bf16.msra.mxu0 %v4839
    %5179 = vmatmul.bf16.gmra.mxu0 %v5144
    %v5180 = vpop.f32.mrf.mxu0
    %v5181 = vadd.f32 0.0, %v5180
    %v5182 = vpop.f32.mrf.mxu0
    %5183 = vdwg.mxu0
    %5184 = vmatpush.bf16.msra.mxu0 %v4868
    %5185 = vmatpush.bf16.msra.mxu0 %v4864
    %5186 = vmatpush.bf16.msra.mxu0 %v4860
    %5187 = vmatpush.bf16.msra.mxu0 %v4856
    %5188 = vmatpush.bf16.msra.mxu0 %v4852
    %5189 = vmatpush.bf16.msra.mxu0 %v4848
    %5190 = vmatpush.bf16.msra.mxu0 %v4844
    %5191 = vmatpush.bf16.msra.mxu0 %v4840
    %5192 = vmatmul.bf16.gmra.mxu0 %v5144
    %v5193 = vpop.f32.mrf.mxu0
    %v5194 = vadd.f32 0.0, %v5193
    %v5195 = vpop.f32.mrf.mxu0
    %5196 = vdwg.mxu0
    %v5197 = vadd.f32 %v4220, %v5155
    %v5198 = vadd.f32 %v4278, %v5168
    %v5199 = vadd.f32 %v4336, %v5181
    %v5200 = vadd.f32 %v4394, %v5194
    %v5201 = vxor.u32 %v5197, 2147483648
    %v5202 = vmul.f32 %v5201, 1.442695
    %v5203 = vpow.pop %v5202
    %v5204 = vadd.f32 %v5203, 1.0
    %v5205 = vrcp.pop %v5204
    %v5206 = vmul.f32 %v5204, %v5205
    %v5207 = vsub.f32 1.0, %v5206
    %v5208 = vmul.f32 %v5205, %v5207
    %v5209 = vadd.f32 %v5205, %v5208
    %vm5210 = vweird.f32 %v5204
    %vm5211 = vweird.f32 %v5205
    %vm5212 = vmor %vm5210, %vm5211
    %v5213 = vsel %vm5212, %v5205, %v5209
    %v5214 = vand.u32 2147483647, %v5204
    %vm5215 = vcmp.eq.f32.partialorder %v5214, 8.507059e+37
    %v5216 = vand.u32 %v5204, 2147483648
    %v5217 = vor.u32 1.1754944e-38, %v5216
    %v5218 = vsel %vm5215, %v5217, %v5213
    %v5219 = vmul.f32 1.0, %v5218
    %v5220 = vxor.u32 %v5198, 2147483648
    %v5221 = vmul.f32 %v5220, 1.442695
    %v5222 = vpow.pop %v5221
    %v5223 = vadd.f32 %v5222, 1.0
    %v5224 = vrcp.pop %v5223
    %v5225 = vmul.f32 %v5223, %v5224
    %v5226 = vsub.f32 1.0, %v5225
    %v5227 = vmul.f32 %v5224, %v5226
    %v5228 = vadd.f32 %v5224, %v5227
    %vm5229 = vweird.f32 %v5223
    %vm5230 = vweird.f32 %v5224
    %vm5231 = vmor %vm5229, %vm5230
    %v5232 = vsel %vm5231, %v5224, %v5228
    %v5233 = vand.u32 2147483647, %v5223
    %vm5234 = vcmp.eq.f32.partialorder %v5233, 8.507059e+37
    %v5235 = vand.u32 %v5223, 2147483648
    %v5236 = vor.u32 1.1754944e-38, %v5235
    %v5237 = vsel %vm5234, %v5236, %v5232
    %v5238 = vmul.f32 1.0, %v5237
    %v5239 = vtanh.pop %v5199
    %v5240 = vxor.u32 %v5200, 2147483648
    %v5241 = vmul.f32 %v5240, 1.442695
    %v5242 = vpow.pop %v5241
    %v5243 = vadd.f32 %v5242, 1.0
    %v5244 = vrcp.pop %v5243
    %v5245 = vmul.f32 %v5243, %v5244
    %v5246 = vsub.f32 1.0, %v5245
    %v5247 = vmul.f32 %v5244, %v5246
    %v5248 = vadd.f32 %v5244, %v5247
    %vm5249 = vweird.f32 %v5243
    %vm5250 = vweird.f32 %v5244
    %vm5251 = vmor %vm5249, %vm5250
    %v5252 = vsel %vm5251, %v5244, %v5248
    %v5253 = vand.u32 2147483647, %v5243
    %vm5254 = vcmp.eq.f32.partialorder %v5253, 8.507059e+37
    %v5255 = vand.u32 %v5243, 2147483648
    %v5256 = vor.u32 1.1754944e-38, %v5255
    %v5257 = vsel %vm5254, %v5256, %v5252
    %v5258 = vmul.f32 1.0, %v5257
    %v5259 = vmul.f32 %v5238, %v5017
    %v5260 = vmul.f32 %v5219, %v5239
    %v5261 = vadd.f32 %v5259, %v5260
    %v5262 = vtanh.pop %v5261
    %v5263 = vmul.f32 %v5258, %v5262
    %vm5264 = vcmp.eq.s32.totalorder %v139, 1
    %v5265 = vsel %vm5264, %v5143, %v5021
    %vm5266 = vcmp.eq.s32.totalorder %v139, 6
    %v5267 = vsel %vm5266, %v5263, %v5023
    %v5268 = vpack.c.bf16 %v5143, %v5143
    %5269 = vmatpush.bf16.msra.mxu0 %v4586
    %5270 = vmatpush.bf16.msra.mxu0 %v4582
    %5271 = vmatpush.bf16.msra.mxu0 %v4578
    %5272 = vmatpush.bf16.msra.mxu0 %v4574
    %5273 = vmatpush.bf16.msra.mxu0 %v4570
    %5274 = vmatpush.bf16.msra.mxu0 %v4566
    %5275 = vmatpush.bf16.msra.mxu0 %v4562
    %5276 = vmatpush.bf16.msra.mxu0 %v4558
    %5277 = vmatmul.bf16.gmra.mxu0 %v5268
    %v5278 = vpop.f32.mrf.mxu0
    %v5279 = vadd.f32 0.0, %v5278
    %v5280 = vpop.f32.mrf.mxu0
    %5281 = vdwg.mxu0
    %5282 = vmatpush.bf16.msra.mxu0 %v4587
    %5283 = vmatpush.bf16.msra.mxu0 %v4583
    %5284 = vmatpush.bf16.msra.mxu0 %v4579
    %5285 = vmatpush.bf16.msra.mxu0 %v4575
    %5286 = vmatpush.bf16.msra.mxu0 %v4571
    %5287 = vmatpush.bf16.msra.mxu0 %v4567
    %5288 = vmatpush.bf16.msra.mxu0 %v4563
    %5289 = vmatpush.bf16.msra.mxu0 %v4559
    %5290 = vmatmul.bf16.gmra.mxu0 %v5268
    %v5291 = vpop.f32.mrf.mxu0
    %v5292 = vadd.f32 0.0, %v5291
    %v5293 = vpop.f32.mrf.mxu0
    %5294 = vdwg.mxu0
    %5295 = vmatpush.bf16.msra.mxu0 %v4588
    %5296 = vmatpush.bf16.msra.mxu0 %v4584
    %5297 = vmatpush.bf16.msra.mxu0 %v4580
    %5298 = vmatpush.bf16.msra.mxu0 %v4576
    %5299 = vmatpush.bf16.msra.mxu0 %v4572
    %5300 = vmatpush.bf16.msra.mxu0 %v4568
    %5301 = vmatpush.bf16.msra.mxu0 %v4564
    %5302 = vmatpush.bf16.msra.mxu0 %v4560
    %5303 = vmatmul.bf16.gmra.mxu0 %v5268
    %v5304 = vpop.f32.mrf.mxu0
    %v5305 = vadd.f32 0.0, %v5304
    %v5306 = vpop.f32.mrf.mxu0
    %5307 = vdwg.mxu0
    %5308 = vmatpush.bf16.msra.mxu0 %v4589
    %5309 = vmatpush.bf16.msra.mxu0 %v4585
    %5310 = vmatpush.bf16.msra.mxu0 %v4581
    %5311 = vmatpush.bf16.msra.mxu0 %v4577
    %5312 = vmatpush.bf16.msra.mxu0 %v4573
    %5313 = vmatpush.bf16.msra.mxu0 %v4569
    %5314 = vmatpush.bf16.msra.mxu0 %v4565
    %5315 = vmatpush.bf16.msra.mxu0 %v4561
    %5316 = vmatmul.bf16.gmra.mxu0 %v5268
    %v5317 = vpop.f32.mrf.mxu0
    %v5318 = vadd.f32 0.0, %v5317
    %v5319 = vpop.f32.mrf.mxu0
    %5320 = vdwg.mxu0
    %v5321 = vadd.f32 %v3978, %v5279
    %v5322 = vadd.f32 %v4036, %v5292
    %v5323 = vadd.f32 %v4094, %v5305
    %v5324 = vadd.f32 %v4152, %v5318
    %v5325 = vxor.u32 %v5321, 2147483648
    %v5326 = vmul.f32 %v5325, 1.442695
    %v5327 = vpow.pop %v5326
    %v5328 = vadd.f32 %v5327, 1.0
    %v5329 = vrcp.pop %v5328
    %v5330 = vmul.f32 %v5328, %v5329
    %v5331 = vsub.f32 1.0, %v5330
    %v5332 = vmul.f32 %v5329, %v5331
    %v5333 = vadd.f32 %v5329, %v5332
    %vm5334 = vweird.f32 %v5328
    %vm5335 = vweird.f32 %v5329
    %vm5336 = vmor %vm5334, %vm5335
    %v5337 = vsel %vm5336, %v5329, %v5333
    %v5338 = vand.u32 2147483647, %v5328
    %vm5339 = vcmp.eq.f32.partialorder %v5338, 8.507059e+37
    %v5340 = vand.u32 %v5328, 2147483648
    %v5341 = vor.u32 1.1754944e-38, %v5340
    %v5342 = vsel %vm5339, %v5341, %v5337
    %v5343 = vmul.f32 1.0, %v5342
    %v5344 = vxor.u32 %v5322, 2147483648
    %v5345 = vmul.f32 %v5344, 1.442695
    %v5346 = vpow.pop %v5345
    %v5347 = vadd.f32 %v5346, 1.0
    %v5348 = vrcp.pop %v5347
    %v5349 = vmul.f32 %v5347, %v5348
    %v5350 = vsub.f32 1.0, %v5349
    %v5351 = vmul.f32 %v5348, %v5350
    %v5352 = vadd.f32 %v5348, %v5351
    %vm5353 = vweird.f32 %v5347
    %vm5354 = vweird.f32 %v5348
    %vm5355 = vmor %vm5353, %vm5354
    %v5356 = vsel %vm5355, %v5348, %v5352
    %v5357 = vand.u32 2147483647, %v5347
    %vm5358 = vcmp.eq.f32.partialorder %v5357, 8.507059e+37
    %v5359 = vand.u32 %v5347, 2147483648
    %v5360 = vor.u32 1.1754944e-38, %v5359
    %v5361 = vsel %vm5358, %v5360, %v5356
    %v5362 = vmul.f32 1.0, %v5361
    %v5363 = vtanh.pop %v5323
    %v5364 = vxor.u32 %v5324, 2147483648
    %v5365 = vmul.f32 %v5364, 1.442695
    %v5366 = vpow.pop %v5365
    %v5367 = vadd.f32 %v5366, 1.0
    %v5368 = vrcp.pop %v5367
    %v5369 = vmul.f32 %v5367, %v5368
    %v5370 = vsub.f32 1.0, %v5369
    %v5371 = vmul.f32 %v5368, %v5370
    %v5372 = vadd.f32 %v5368, %v5371
    %vm5373 = vweird.f32 %v5367
    %vm5374 = vweird.f32 %v5368
    %vm5375 = vmor %vm5373, %vm5374
    %v5376 = vsel %vm5375, %v5368, %v5372
    %v5377 = vand.u32 2147483647, %v5367
    %vm5378 = vcmp.eq.f32.partialorder %v5377, 8.507059e+37
    %v5379 = vand.u32 %v5367, 2147483648
    %v5380 = vor.u32 1.1754944e-38, %v5379
    %v5381 = vsel %vm5378, %v5380, %v5376
    %v5382 = vmul.f32 1.0, %v5381
    %v5383 = vmul.f32 %v5362, %v5141
    %v5384 = vmul.f32 %v5343, %v5363
    %v5385 = vadd.f32 %v5383, %v5384
    %v5386 = vtanh.pop %v5385
    %v5387 = vmul.f32 %v5382, %v5386
    %v5388 = vpack.c.bf16 %v5263, %v5263
    %5389 = vmatpush.bf16.msra.mxu0 %v4865
    %5390 = vmatpush.bf16.msra.mxu0 %v4861
    %5391 = vmatpush.bf16.msra.mxu0 %v4857
    %5392 = vmatpush.bf16.msra.mxu0 %v4853
    %5393 = vmatpush.bf16.msra.mxu0 %v4849
    %5394 = vmatpush.bf16.msra.mxu0 %v4845
    %5395 = vmatpush.bf16.msra.mxu0 %v4841
    %5396 = vmatpush.bf16.msra.mxu0 %v4837
    %5397 = vmatmul.bf16.gmra.mxu0 %v5388
    %v5398 = vpop.f32.mrf.mxu0
    %v5399 = vadd.f32 0.0, %v5398
    %v5400 = vpop.f32.mrf.mxu0
    %5401 = vdwg.mxu0
    %5402 = vmatpush.bf16.msra.mxu0 %v4866
    %5403 = vmatpush.bf16.msra.mxu0 %v4862
    %5404 = vmatpush.bf16.msra.mxu0 %v4858
    %5405 = vmatpush.bf16.msra.mxu0 %v4854
    %5406 = vmatpush.bf16.msra.mxu0 %v4850
    %5407 = vmatpush.bf16.msra.mxu0 %v4846
    %5408 = vmatpush.bf16.msra.mxu0 %v4842
    %5409 = vmatpush.bf16.msra.mxu0 %v4838
    %5410 = vmatmul.bf16.gmra.mxu0 %v5388
    %v5411 = vpop.f32.mrf.mxu0
    %v5412 = vadd.f32 0.0, %v5411
    %v5413 = vpop.f32.mrf.mxu0
    %5414 = vdwg.mxu0
    %5415 = vmatpush.bf16.msra.mxu0 %v4867
    %5416 = vmatpush.bf16.msra.mxu0 %v4863
    %5417 = vmatpush.bf16.msra.mxu0 %v4859
    %5418 = vmatpush.bf16.msra.mxu0 %v4855
    %5419 = vmatpush.bf16.msra.mxu0 %v4851
    %5420 = vmatpush.bf16.msra.mxu0 %v4847
    %5421 = vmatpush.bf16.msra.mxu0 %v4843
    %5422 = vmatpush.bf16.msra.mxu0 %v4839
    %5423 = vmatmul.bf16.gmra.mxu0 %v5388
    %v5424 = vpop.f32.mrf.mxu0
    %v5425 = vadd.f32 0.0, %v5424
    %v5426 = vpop.f32.mrf.mxu0
    %5427 = vdwg.mxu0
    %5428 = vmatpush.bf16.msra.mxu0 %v4868
    %5429 = vmatpush.bf16.msra.mxu0 %v4864
    %5430 = vmatpush.bf16.msra.mxu0 %v4860
    %5431 = vmatpush.bf16.msra.mxu0 %v4856
    %5432 = vmatpush.bf16.msra.mxu0 %v4852
    %5433 = vmatpush.bf16.msra.mxu0 %v4848
    %5434 = vmatpush.bf16.msra.mxu0 %v4844
    %5435 = vmatpush.bf16.msra.mxu0 %v4840
    %5436 = vmatmul.bf16.gmra.mxu0 %v5388
    %v5437 = vpop.f32.mrf.mxu0
    %v5438 = vadd.f32 0.0, %v5437
    %v5439 = vpop.f32.mrf.mxu0
    %5440 = vdwg.mxu0
    %v5441 = vadd.f32 %v4217, %v5399
    %v5442 = vadd.f32 %v4275, %v5412
    %v5443 = vadd.f32 %v4333, %v5425
    %v5444 = vadd.f32 %v4391, %v5438
    %v5445 = vxor.u32 %v5441, 2147483648
    %v5446 = vmul.f32 %v5445, 1.442695
    %v5447 = vpow.pop %v5446
    %v5448 = vadd.f32 %v5447, 1.0
    %v5449 = vrcp.pop %v5448
    %v5450 = vmul.f32 %v5448, %v5449
    %v5451 = vsub.f32 1.0, %v5450
    %v5452 = vmul.f32 %v5449, %v5451
    %v5453 = vadd.f32 %v5449, %v5452
    %vm5454 = vweird.f32 %v5448
    %vm5455 = vweird.f32 %v5449
    %vm5456 = vmor %vm5454, %vm5455
    %v5457 = vsel %vm5456, %v5449, %v5453
    %v5458 = vand.u32 2147483647, %v5448
    %vm5459 = vcmp.eq.f32.partialorder %v5458, 8.507059e+37
    %v5460 = vand.u32 %v5448, 2147483648
    %v5461 = vor.u32 1.1754944e-38, %v5460
    %v5462 = vsel %vm5459, %v5461, %v5457
    %v5463 = vmul.f32 1.0, %v5462
    %v5464 = vxor.u32 %v5442, 2147483648
    %v5465 = vmul.f32 %v5464, 1.442695
    %v5466 = vpow.pop %v5465
    %v5467 = vadd.f32 %v5466, 1.0
    %v5468 = vrcp.pop %v5467
    %v5469 = vmul.f32 %v5467, %v5468
    %v5470 = vsub.f32 1.0, %v5469
    %v5471 = vmul.f32 %v5468, %v5470
    %v5472 = vadd.f32 %v5468, %v5471
    %vm5473 = vweird.f32 %v5467
    %vm5474 = vweird.f32 %v5468
    %vm5475 = vmor %vm5473, %vm5474
    %v5476 = vsel %vm5475, %v5468, %v5472
    %v5477 = vand.u32 2147483647, %v5467
    %vm5478 = vcmp.eq.f32.partialorder %v5477, 8.507059e+37
    %v5479 = vand.u32 %v5467, 2147483648
    %v5480 = vor.u32 1.1754944e-38, %v5479
    %v5481 = vsel %vm5478, %v5480, %v5476
    %v5482 = vmul.f32 1.0, %v5481
    %v5483 = vtanh.pop %v5443
    %v5484 = vxor.u32 %v5444, 2147483648
    %v5485 = vmul.f32 %v5484, 1.442695
    %v5486 = vpow.pop %v5485
    %v5487 = vadd.f32 %v5486, 1.0
    %v5488 = vrcp.pop %v5487
    %v5489 = vmul.f32 %v5487, %v5488
    %v5490 = vsub.f32 1.0, %v5489
    %v5491 = vmul.f32 %v5488, %v5490
    %v5492 = vadd.f32 %v5488, %v5491
    %vm5493 = vweird.f32 %v5487
    %vm5494 = vweird.f32 %v5488
    %vm5495 = vmor %vm5493, %vm5494
    %v5496 = vsel %vm5495, %v5488, %v5492
    %v5497 = vand.u32 2147483647, %v5487
    %vm5498 = vcmp.eq.f32.partialorder %v5497, 8.507059e+37
    %v5499 = vand.u32 %v5487, 2147483648
    %v5500 = vor.u32 1.1754944e-38, %v5499
    %v5501 = vsel %vm5498, %v5500, %v5496
    %v5502 = vmul.f32 1.0, %v5501
    %v5503 = vmul.f32 %v5482, %v5261
    %v5504 = vmul.f32 %v5463, %v5483
    %v5505 = vadd.f32 %v5503, %v5504
    %v5506 = vtanh.pop %v5505
    %v5507 = vmul.f32 %v5502, %v5506
    %vm5508 = vcmp.eq.s32.totalorder %v139, 2
    %v5509 = vsel %vm5508, %v5387, %v5265
    %vm5510 = vcmp.eq.s32.totalorder %v139, 5
    %v5511 = vsel %vm5510, %v5507, %v5267
    %v5512 = vpack.c.bf16 %v5387, %v5387
    %5513 = vmatpush.bf16.msra.mxu0 %v4586
    %5514 = vmatpush.bf16.msra.mxu0 %v4582
    %5515 = vmatpush.bf16.msra.mxu0 %v4578
    %5516 = vmatpush.bf16.msra.mxu0 %v4574
    %5517 = vmatpush.bf16.msra.mxu0 %v4570
    %5518 = vmatpush.bf16.msra.mxu0 %v4566
    %5519 = vmatpush.bf16.msra.mxu0 %v4562
    %5520 = vmatpush.bf16.msra.mxu0 %v4558
    %5521 = vmatmul.bf16.gmra.mxu0 %v5512
    %v5522 = vpop.f32.mrf.mxu0
    %v5523 = vadd.f32 0.0, %v5522
    %v5524 = vpop.f32.mrf.mxu0
    %5525 = vdwg.mxu0
    %5526 = vmatpush.bf16.msra.mxu0 %v4587
    %5527 = vmatpush.bf16.msra.mxu0 %v4583
    %5528 = vmatpush.bf16.msra.mxu0 %v4579
    %5529 = vmatpush.bf16.msra.mxu0 %v4575
    %5530 = vmatpush.bf16.msra.mxu0 %v4571
    %5531 = vmatpush.bf16.msra.mxu0 %v4567
    %5532 = vmatpush.bf16.msra.mxu0 %v4563
    %5533 = vmatpush.bf16.msra.mxu0 %v4559
    %5534 = vmatmul.bf16.gmra.mxu0 %v5512
    %v5535 = vpop.f32.mrf.mxu0
    %v5536 = vadd.f32 0.0, %v5535
    %v5537 = vpop.f32.mrf.mxu0
    %5538 = vdwg.mxu0
    %5539 = vmatpush.bf16.msra.mxu0 %v4588
    %5540 = vmatpush.bf16.msra.mxu0 %v4584
    %5541 = vmatpush.bf16.msra.mxu0 %v4580
    %5542 = vmatpush.bf16.msra.mxu0 %v4576
    %5543 = vmatpush.bf16.msra.mxu0 %v4572
    %5544 = vmatpush.bf16.msra.mxu0 %v4568
    %5545 = vmatpush.bf16.msra.mxu0 %v4564
    %5546 = vmatpush.bf16.msra.mxu0 %v4560
    %5547 = vmatmul.bf16.gmra.mxu0 %v5512
    %v5548 = vpop.f32.mrf.mxu0
    %v5549 = vadd.f32 0.0, %v5548
    %v5550 = vpop.f32.mrf.mxu0
    %5551 = vdwg.mxu0
    %5552 = vmatpush.bf16.msra.mxu0 %v4589
    %5553 = vmatpush.bf16.msra.mxu0 %v4585
    %5554 = vmatpush.bf16.msra.mxu0 %v4581
    %5555 = vmatpush.bf16.msra.mxu0 %v4577
    %5556 = vmatpush.bf16.msra.mxu0 %v4573
    %5557 = vmatpush.bf16.msra.mxu0 %v4569
    %5558 = vmatpush.bf16.msra.mxu0 %v4565
    %5559 = vmatpush.bf16.msra.mxu0 %v4561
    %5560 = vmatmul.bf16.gmra.mxu0 %v5512
    %v5561 = vpop.f32.mrf.mxu0
    %v5562 = vadd.f32 0.0, %v5561
    %v5563 = vpop.f32.mrf.mxu0
    %5564 = vdwg.mxu0
    %v5565 = vadd.f32 %v3980, %v5523
    %v5566 = vadd.f32 %v4038, %v5536
    %v5567 = vadd.f32 %v4096, %v5549
    %v5568 = vadd.f32 %v4154, %v5562
    %v5569 = vxor.u32 %v5565, 2147483648
    %v5570 = vmul.f32 %v5569, 1.442695
    %v5571 = vpow.pop %v5570
    %v5572 = vadd.f32 %v5571, 1.0
    %v5573 = vrcp.pop %v5572
    %v5574 = vmul.f32 %v5572, %v5573
    %v5575 = vsub.f32 1.0, %v5574
    %v5576 = vmul.f32 %v5573, %v5575
    %v5577 = vadd.f32 %v5573, %v5576
    %vm5578 = vweird.f32 %v5572
    %vm5579 = vweird.f32 %v5573
    %vm5580 = vmor %vm5578, %vm5579
    %v5581 = vsel %vm5580, %v5573, %v5577
    %v5582 = vand.u32 2147483647, %v5572
    %vm5583 = vcmp.eq.f32.partialorder %v5582, 8.507059e+37
    %v5584 = vand.u32 %v5572, 2147483648
    %v5585 = vor.u32 1.1754944e-38, %v5584
    %v5586 = vsel %vm5583, %v5585, %v5581
    %v5587 = vmul.f32 1.0, %v5586
    %v5588 = vxor.u32 %v5566, 2147483648
    %v5589 = vmul.f32 %v5588, 1.442695
    %v5590 = vpow.pop %v5589
    %v5591 = vadd.f32 %v5590, 1.0
    %v5592 = vrcp.pop %v5591
    %v5593 = vmul.f32 %v5591, %v5592
    %v5594 = vsub.f32 1.0, %v5593
    %v5595 = vmul.f32 %v5592, %v5594
    %v5596 = vadd.f32 %v5592, %v5595
    %vm5597 = vweird.f32 %v5591
    %vm5598 = vweird.f32 %v5592
    %vm5599 = vmor %vm5597, %vm5598
    %v5600 = vsel %vm5599, %v5592, %v5596
    %v5601 = vand.u32 2147483647, %v5591
    %vm5602 = vcmp.eq.f32.partialorder %v5601, 8.507059e+37
    %v5603 = vand.u32 %v5591, 2147483648
    %v5604 = vor.u32 1.1754944e-38, %v5603
    %v5605 = vsel %vm5602, %v5604, %v5600
    %v5606 = vmul.f32 1.0, %v5605
    %v5607 = vtanh.pop %v5567
    %v5608 = vxor.u32 %v5568, 2147483648
    %v5609 = vmul.f32 %v5608, 1.442695
    %v5610 = vpow.pop %v5609
    %v5611 = vadd.f32 %v5610, 1.0
    %v5612 = vrcp.pop %v5611
    %v5613 = vmul.f32 %v5611, %v5612
    %v5614 = vsub.f32 1.0, %v5613
    %v5615 = vmul.f32 %v5612, %v5614
    %v5616 = vadd.f32 %v5612, %v5615
    %vm5617 = vweird.f32 %v5611
    %vm5618 = vweird.f32 %v5612
    %vm5619 = vmor %vm5617, %vm5618
    %v5620 = vsel %vm5619, %v5612, %v5616
    %v5621 = vand.u32 2147483647, %v5611
    %vm5622 = vcmp.eq.f32.partialorder %v5621, 8.507059e+37
    %v5623 = vand.u32 %v5611, 2147483648
    %v5624 = vor.u32 1.1754944e-38, %v5623
    %v5625 = vsel %vm5622, %v5624, %v5620
    %v5626 = vmul.f32 1.0, %v5625
    %v5627 = vmul.f32 %v5606, %v5385
    %v5628 = vmul.f32 %v5587, %v5607
    %v5629 = vadd.f32 %v5627, %v5628
    %v5630 = vtanh.pop %v5629
    %v5631 = vmul.f32 %v5626, %v5630
    %v5632 = vpack.c.bf16 %v5507, %v5507
    %5633 = vmatpush.bf16.msra.mxu0 %v4865
    %5634 = vmatpush.bf16.msra.mxu0 %v4861
    %5635 = vmatpush.bf16.msra.mxu0 %v4857
    %5636 = vmatpush.bf16.msra.mxu0 %v4853
    %5637 = vmatpush.bf16.msra.mxu0 %v4849
    %5638 = vmatpush.bf16.msra.mxu0 %v4845
    %5639 = vmatpush.bf16.msra.mxu0 %v4841
    %5640 = vmatpush.bf16.msra.mxu0 %v4837
    %5641 = vmatmul.bf16.gmra.mxu0 %v5632
    %v5642 = vpop.f32.mrf.mxu0
    %v5643 = vadd.f32 0.0, %v5642
    %v5644 = vpop.f32.mrf.mxu0
    %5645 = vdwg.mxu0
    %5646 = vmatpush.bf16.msra.mxu0 %v4866
    %5647 = vmatpush.bf16.msra.mxu0 %v4862
    %5648 = vmatpush.bf16.msra.mxu0 %v4858
    %5649 = vmatpush.bf16.msra.mxu0 %v4854
    %5650 = vmatpush.bf16.msra.mxu0 %v4850
    %5651 = vmatpush.bf16.msra.mxu0 %v4846
    %5652 = vmatpush.bf16.msra.mxu0 %v4842
    %5653 = vmatpush.bf16.msra.mxu0 %v4838
    %5654 = vmatmul.bf16.gmra.mxu0 %v5632
    %v5655 = vpop.f32.mrf.mxu0
    %v5656 = vadd.f32 0.0, %v5655
    %v5657 = vpop.f32.mrf.mxu0
    %5658 = vdwg.mxu0
    %5659 = vmatpush.bf16.msra.mxu0 %v4867
    %5660 = vmatpush.bf16.msra.mxu0 %v4863
    %5661 = vmatpush.bf16.msra.mxu0 %v4859
    %5662 = vmatpush.bf16.msra.mxu0 %v4855
    %5663 = vmatpush.bf16.msra.mxu0 %v4851
    %5664 = vmatpush.bf16.msra.mxu0 %v4847
    %5665 = vmatpush.bf16.msra.mxu0 %v4843
    %5666 = vmatpush.bf16.msra.mxu0 %v4839
    %5667 = vmatmul.bf16.gmra.mxu0 %v5632
    %v5668 = vpop.f32.mrf.mxu0
    %v5669 = vadd.f32 0.0, %v5668
    %v5670 = vpop.f32.mrf.mxu0
    %5671 = vdwg.mxu0
    %5672 = vmatpush.bf16.msra.mxu0 %v4868
    %5673 = vmatpush.bf16.msra.mxu0 %v4864
    %5674 = vmatpush.bf16.msra.mxu0 %v4860
    %5675 = vmatpush.bf16.msra.mxu0 %v4856
    %5676 = vmatpush.bf16.msra.mxu0 %v4852
    %5677 = vmatpush.bf16.msra.mxu0 %v4848
    %5678 = vmatpush.bf16.msra.mxu0 %v4844
    %5679 = vmatpush.bf16.msra.mxu0 %v4840
    %5680 = vmatmul.bf16.gmra.mxu0 %v5632
    %v5681 = vpop.f32.mrf.mxu0
    %v5682 = vadd.f32 0.0, %v5681
    %v5683 = vpop.f32.mrf.mxu0
    %5684 = vdwg.mxu0
    %v5685 = vadd.f32 %v4215, %v5643
    %v5686 = vadd.f32 %v4273, %v5656
    %v5687 = vadd.f32 %v4331, %v5669
    %v5688 = vadd.f32 %v4389, %v5682
    %v5689 = vxor.u32 %v5685, 2147483648
    %v5690 = vmul.f32 %v5689, 1.442695
    %v5691 = vpow.pop %v5690
    %v5692 = vadd.f32 %v5691, 1.0
    %v5693 = vrcp.pop %v5692
    %v5694 = vmul.f32 %v5692, %v5693
    %v5695 = vsub.f32 1.0, %v5694
    %v5696 = vmul.f32 %v5693, %v5695
    %v5697 = vadd.f32 %v5693, %v5696
    %vm5698 = vweird.f32 %v5692
    %vm5699 = vweird.f32 %v5693
    %vm5700 = vmor %vm5698, %vm5699
    %v5701 = vsel %vm5700, %v5693, %v5697
    %v5702 = vand.u32 2147483647, %v5692
    %vm5703 = vcmp.eq.f32.partialorder %v5702, 8.507059e+37
    %v5704 = vand.u32 %v5692, 2147483648
    %v5705 = vor.u32 1.1754944e-38, %v5704
    %v5706 = vsel %vm5703, %v5705, %v5701
    %v5707 = vmul.f32 1.0, %v5706
    %v5708 = vxor.u32 %v5686, 2147483648
    %v5709 = vmul.f32 %v5708, 1.442695
    %v5710 = vpow.pop %v5709
    %v5711 = vadd.f32 %v5710, 1.0
    %v5712 = vrcp.pop %v5711
    %v5713 = vmul.f32 %v5711, %v5712
    %v5714 = vsub.f32 1.0, %v5713
    %v5715 = vmul.f32 %v5712, %v5714
    %v5716 = vadd.f32 %v5712, %v5715
    %vm5717 = vweird.f32 %v5711
    %vm5718 = vweird.f32 %v5712
    %vm5719 = vmor %vm5717, %vm5718
    %v5720 = vsel %vm5719, %v5712, %v5716
    %v5721 = vand.u32 2147483647, %v5711
    %vm5722 = vcmp.eq.f32.partialorder %v5721, 8.507059e+37
    %v5723 = vand.u32 %v5711, 2147483648
    %v5724 = vor.u32 1.1754944e-38, %v5723
    %v5725 = vsel %vm5722, %v5724, %v5720
    %v5726 = vmul.f32 1.0, %v5725
    %v5727 = vtanh.pop %v5687
    %v5728 = vxor.u32 %v5688, 2147483648
    %v5729 = vmul.f32 %v5728, 1.442695
    %v5730 = vpow.pop %v5729
    %v5731 = vadd.f32 %v5730, 1.0
    %v5732 = vrcp.pop %v5731
    %v5733 = vmul.f32 %v5731, %v5732
    %v5734 = vsub.f32 1.0, %v5733
    %v5735 = vmul.f32 %v5732, %v5734
    %v5736 = vadd.f32 %v5732, %v5735
    %vm5737 = vweird.f32 %v5731
    %vm5738 = vweird.f32 %v5732
    %vm5739 = vmor %vm5737, %vm5738
    %v5740 = vsel %vm5739, %v5732, %v5736
    %v5741 = vand.u32 2147483647, %v5731
    %vm5742 = vcmp.eq.f32.partialorder %v5741, 8.507059e+37
    %v5743 = vand.u32 %v5731, 2147483648
    %v5744 = vor.u32 1.1754944e-38, %v5743
    %v5745 = vsel %vm5742, %v5744, %v5740
    %v5746 = vmul.f32 1.0, %v5745
    %v5747 = vmul.f32 %v5726, %v5505
    %v5748 = vmul.f32 %v5707, %v5727
    %v5749 = vadd.f32 %v5747, %v5748
    %v5750 = vtanh.pop %v5749
    %v5751 = vmul.f32 %v5746, %v5750
    %vm5752 = vcmp.eq.s32.totalorder %v139, 3
    %v5753 = vsel %vm5752, %v5631, %v5509
    %vm5754 = vcmp.eq.s32.totalorder %v139, 4
    %v5755 = vsel %vm5754, %v5751, %v5511
    %v5756 = vpack.c.bf16 %v5631, %v5631
    %5757 = vmatpush.bf16.msra.mxu0 %v4586
    %5758 = vmatpush.bf16.msra.mxu0 %v4582
    %5759 = vmatpush.bf16.msra.mxu0 %v4578
    %5760 = vmatpush.bf16.msra.mxu0 %v4574
    %5761 = vmatpush.bf16.msra.mxu0 %v4570
    %5762 = vmatpush.bf16.msra.mxu0 %v4566
    %5763 = vmatpush.bf16.msra.mxu0 %v4562
    %5764 = vmatpush.bf16.msra.mxu0 %v4558
    %5765 = vmatmul.bf16.gmra.mxu0 %v5756
    %v5766 = vpop.f32.mrf.mxu0
    %v5767 = vadd.f32 0.0, %v5766
    %v5768 = vpop.f32.mrf.mxu0
    %5769 = vdwg.mxu0
    %5770 = vmatpush.bf16.msra.mxu0 %v4587
    %5771 = vmatpush.bf16.msra.mxu0 %v4583
    %5772 = vmatpush.bf16.msra.mxu0 %v4579
    %5773 = vmatpush.bf16.msra.mxu0 %v4575
    %5774 = vmatpush.bf16.msra.mxu0 %v4571
    %5775 = vmatpush.bf16.msra.mxu0 %v4567
    %5776 = vmatpush.bf16.msra.mxu0 %v4563
    %5777 = vmatpush.bf16.msra.mxu0 %v4559
    %5778 = vmatmul.bf16.gmra.mxu0 %v5756
    %v5779 = vpop.f32.mrf.mxu0
    %v5780 = vadd.f32 0.0, %v5779
    %v5781 = vpop.f32.mrf.mxu0
    %5782 = vdwg.mxu0
    %5783 = vmatpush.bf16.msra.mxu0 %v4588
    %5784 = vmatpush.bf16.msra.mxu0 %v4584
    %5785 = vmatpush.bf16.msra.mxu0 %v4580
    %5786 = vmatpush.bf16.msra.mxu0 %v4576
    %5787 = vmatpush.bf16.msra.mxu0 %v4572
    %5788 = vmatpush.bf16.msra.mxu0 %v4568
    %5789 = vmatpush.bf16.msra.mxu0 %v4564
    %5790 = vmatpush.bf16.msra.mxu0 %v4560
    %5791 = vmatmul.bf16.gmra.mxu0 %v5756
    %v5792 = vpop.f32.mrf.mxu0
    %v5793 = vadd.f32 0.0, %v5792
    %v5794 = vpop.f32.mrf.mxu0
    %5795 = vdwg.mxu0
    %5796 = vmatpush.bf16.msra.mxu0 %v4589
    %5797 = vmatpush.bf16.msra.mxu0 %v4585
    %5798 = vmatpush.bf16.msra.mxu0 %v4581
    %5799 = vmatpush.bf16.msra.mxu0 %v4577
    %5800 = vmatpush.bf16.msra.mxu0 %v4573
    %5801 = vmatpush.bf16.msra.mxu0 %v4569
    %5802 = vmatpush.bf16.msra.mxu0 %v4565
    %5803 = vmatpush.bf16.msra.mxu0 %v4561
    %5804 = vmatmul.bf16.gmra.mxu0 %v5756
    %v5805 = vpop.f32.mrf.mxu0
    %v5806 = vadd.f32 0.0, %v5805
    %v5807 = vpop.f32.mrf.mxu0
    %5808 = vdwg.mxu0
    %v5809 = vadd.f32 %v3983, %v5767
    %v5810 = vadd.f32 %v4041, %v5780
    %v5811 = vadd.f32 %v4099, %v5793
    %v5812 = vadd.f32 %v4157, %v5806
    %v5813 = vxor.u32 %v5809, 2147483648
    %v5814 = vmul.f32 %v5813, 1.442695
    %v5815 = vpow.pop %v5814
    %v5816 = vadd.f32 %v5815, 1.0
    %v5817 = vrcp.pop %v5816
    %v5818 = vmul.f32 %v5816, %v5817
    %v5819 = vsub.f32 1.0, %v5818
    %v5820 = vmul.f32 %v5817, %v5819
    %v5821 = vadd.f32 %v5817, %v5820
    %vm5822 = vweird.f32 %v5816
    %vm5823 = vweird.f32 %v5817
    %vm5824 = vmor %vm5822, %vm5823
    %v5825 = vsel %vm5824, %v5817, %v5821
    %v5826 = vand.u32 2147483647, %v5816
    %vm5827 = vcmp.eq.f32.partialorder %v5826, 8.507059e+37
    %v5828 = vand.u32 %v5816, 2147483648
    %v5829 = vor.u32 1.1754944e-38, %v5828
    %v5830 = vsel %vm5827, %v5829, %v5825
    %v5831 = vmul.f32 1.0, %v5830
    %v5832 = vxor.u32 %v5810, 2147483648
    %v5833 = vmul.f32 %v5832, 1.442695
    %v5834 = vpow.pop %v5833
    %v5835 = vadd.f32 %v5834, 1.0
    %v5836 = vrcp.pop %v5835
    %v5837 = vmul.f32 %v5835, %v5836
    %v5838 = vsub.f32 1.0, %v5837
    %v5839 = vmul.f32 %v5836, %v5838
    %v5840 = vadd.f32 %v5836, %v5839
    %vm5841 = vweird.f32 %v5835
    %vm5842 = vweird.f32 %v5836
    %vm5843 = vmor %vm5841, %vm5842
    %v5844 = vsel %vm5843, %v5836, %v5840
    %v5845 = vand.u32 2147483647, %v5835
    %vm5846 = vcmp.eq.f32.partialorder %v5845, 8.507059e+37
    %v5847 = vand.u32 %v5835, 2147483648
    %v5848 = vor.u32 1.1754944e-38, %v5847
    %v5849 = vsel %vm5846, %v5848, %v5844
    %v5850 = vmul.f32 1.0, %v5849
    %v5851 = vtanh.pop %v5811
    %v5852 = vxor.u32 %v5812, 2147483648
    %v5853 = vmul.f32 %v5852, 1.442695
    %v5854 = vpow.pop %v5853
    %v5855 = vadd.f32 %v5854, 1.0
    %v5856 = vrcp.pop %v5855
    %v5857 = vmul.f32 %v5855, %v5856
    %v5858 = vsub.f32 1.0, %v5857
    %v5859 = vmul.f32 %v5856, %v5858
    %v5860 = vadd.f32 %v5856, %v5859
    %vm5861 = vweird.f32 %v5855
    %vm5862 = vweird.f32 %v5856
    %vm5863 = vmor %vm5861, %vm5862
    %v5864 = vsel %vm5863, %v5856, %v5860
    %v5865 = vand.u32 2147483647, %v5855
    %vm5866 = vcmp.eq.f32.partialorder %v5865, 8.507059e+37
    %v5867 = vand.u32 %v5855, 2147483648
    %v5868 = vor.u32 1.1754944e-38, %v5867
    %v5869 = vsel %vm5866, %v5868, %v5864
    %v5870 = vmul.f32 1.0, %v5869
    %v5871 = vmul.f32 %v5850, %v5629
    %v5872 = vmul.f32 %v5831, %v5851
    %v5873 = vadd.f32 %v5871, %v5872
    %v5874 = vtanh.pop %v5873
    %v5875 = vmul.f32 %v5870, %v5874
    %v5876 = vpack.c.bf16 %v5751, %v5751
    %5877 = vmatpush.bf16.msra.mxu0 %v4865
    %5878 = vmatpush.bf16.msra.mxu0 %v4861
    %5879 = vmatpush.bf16.msra.mxu0 %v4857
    %5880 = vmatpush.bf16.msra.mxu0 %v4853
    %5881 = vmatpush.bf16.msra.mxu0 %v4849
    %5882 = vmatpush.bf16.msra.mxu0 %v4845
    %5883 = vmatpush.bf16.msra.mxu0 %v4841
    %5884 = vmatpush.bf16.msra.mxu0 %v4837
    %5885 = vmatmul.bf16.gmra.mxu0 %v5876
    %v5886 = vpop.f32.mrf.mxu0
    %v5887 = vadd.f32 0.0, %v5886
    %v5888 = vpop.f32.mrf.mxu0
    %5889 = vdwg.mxu0
    %5890 = vmatpush.bf16.msra.mxu0 %v4866
    %5891 = vmatpush.bf16.msra.mxu0 %v4862
    %5892 = vmatpush.bf16.msra.mxu0 %v4858
    %5893 = vmatpush.bf16.msra.mxu0 %v4854
    %5894 = vmatpush.bf16.msra.mxu0 %v4850
    %5895 = vmatpush.bf16.msra.mxu0 %v4846
    %5896 = vmatpush.bf16.msra.mxu0 %v4842
    %5897 = vmatpush.bf16.msra.mxu0 %v4838
    %5898 = vmatmul.bf16.gmra.mxu0 %v5876
    %v5899 = vpop.f32.mrf.mxu0
    %v5900 = vadd.f32 0.0, %v5899
    %v5901 = vpop.f32.mrf.mxu0
    %5902 = vdwg.mxu0
    %5903 = vmatpush.bf16.msra.mxu0 %v4867
    %5904 = vmatpush.bf16.msra.mxu0 %v4863
    %5905 = vmatpush.bf16.msra.mxu0 %v4859
    %5906 = vmatpush.bf16.msra.mxu0 %v4855
    %5907 = vmatpush.bf16.msra.mxu0 %v4851
    %5908 = vmatpush.bf16.msra.mxu0 %v4847
    %5909 = vmatpush.bf16.msra.mxu0 %v4843
    %5910 = vmatpush.bf16.msra.mxu0 %v4839
    %5911 = vmatmul.bf16.gmra.mxu0 %v5876
    %v5912 = vpop.f32.mrf.mxu0
    %v5913 = vadd.f32 0.0, %v5912
    %v5914 = vpop.f32.mrf.mxu0
    %5915 = vdwg.mxu0
    %5916 = vmatpush.bf16.msra.mxu0 %v4868
    %5917 = vmatpush.bf16.msra.mxu0 %v4864
    %5918 = vmatpush.bf16.msra.mxu0 %v4860
    %5919 = vmatpush.bf16.msra.mxu0 %v4856
    %5920 = vmatpush.bf16.msra.mxu0 %v4852
    %5921 = vmatpush.bf16.msra.mxu0 %v4848
    %5922 = vmatpush.bf16.msra.mxu0 %v4844
    %5923 = vmatpush.bf16.msra.mxu0 %v4840
    %5924 = vmatmul.bf16.gmra.mxu0 %v5876
    %v5925 = vpop.f32.mrf.mxu0
    %v5926 = vadd.f32 0.0, %v5925
    %v5927 = vpop.f32.mrf.mxu0
    %5928 = vdwg.mxu0
    %v5929 = vadd.f32 %v4212, %v5887
    %v5930 = vadd.f32 %v4270, %v5900
    %v5931 = vadd.f32 %v4328, %v5913
    %v5932 = vadd.f32 %v4386, %v5926
    %v5933 = vxor.u32 %v5929, 2147483648
    %v5934 = vmul.f32 %v5933, 1.442695
    %v5935 = vpow.pop %v5934
    %v5936 = vadd.f32 %v5935, 1.0
    %v5937 = vrcp.pop %v5936
    %v5938 = vmul.f32 %v5936, %v5937
    %v5939 = vsub.f32 1.0, %v5938
    %v5940 = vmul.f32 %v5937, %v5939
    %v5941 = vadd.f32 %v5937, %v5940
    %vm5942 = vweird.f32 %v5936
    %vm5943 = vweird.f32 %v5937
    %vm5944 = vmor %vm5942, %vm5943
    %v5945 = vsel %vm5944, %v5937, %v5941
    %v5946 = vand.u32 2147483647, %v5936
    %vm5947 = vcmp.eq.f32.partialorder %v5946, 8.507059e+37
    %v5948 = vand.u32 %v5936, 2147483648
    %v5949 = vor.u32 1.1754944e-38, %v5948
    %v5950 = vsel %vm5947, %v5949, %v5945
    %v5951 = vmul.f32 1.0, %v5950
    %v5952 = vxor.u32 %v5930, 2147483648
    %v5953 = vmul.f32 %v5952, 1.442695
    %v5954 = vpow.pop %v5953
    %v5955 = vadd.f32 %v5954, 1.0
    %v5956 = vrcp.pop %v5955
    %v5957 = vmul.f32 %v5955, %v5956
    %v5958 = vsub.f32 1.0, %v5957
    %v5959 = vmul.f32 %v5956, %v5958
    %v5960 = vadd.f32 %v5956, %v5959
    %vm5961 = vweird.f32 %v5955
    %vm5962 = vweird.f32 %v5956
    %vm5963 = vmor %vm5961, %vm5962
    %v5964 = vsel %vm5963, %v5956, %v5960
    %v5965 = vand.u32 2147483647, %v5955
    %vm5966 = vcmp.eq.f32.partialorder %v5965, 8.507059e+37
    %v5967 = vand.u32 %v5955, 2147483648
    %v5968 = vor.u32 1.1754944e-38, %v5967
    %v5969 = vsel %vm5966, %v5968, %v5964
    %v5970 = vmul.f32 1.0, %v5969
    %v5971 = vtanh.pop %v5931
    %v5972 = vxor.u32 %v5932, 2147483648
    %v5973 = vmul.f32 %v5972, 1.442695
    %v5974 = vpow.pop %v5973
    %v5975 = vadd.f32 %v5974, 1.0
    %v5976 = vrcp.pop %v5975
    %v5977 = vmul.f32 %v5975, %v5976
    %v5978 = vsub.f32 1.0, %v5977
    %v5979 = vmul.f32 %v5976, %v5978
    %v5980 = vadd.f32 %v5976, %v5979
    %vm5981 = vweird.f32 %v5975
    %vm5982 = vweird.f32 %v5976
    %vm5983 = vmor %vm5981, %vm5982
    %v5984 = vsel %vm5983, %v5976, %v5980
    %v5985 = vand.u32 2147483647, %v5975
    %vm5986 = vcmp.eq.f32.partialorder %v5985, 8.507059e+37
    %v5987 = vand.u32 %v5975, 2147483648
    %v5988 = vor.u32 1.1754944e-38, %v5987
    %v5989 = vsel %vm5986, %v5988, %v5984
    %v5990 = vmul.f32 1.0, %v5989
    %v5991 = vmul.f32 %v5970, %v5749
    %v5992 = vmul.f32 %v5951, %v5971
    %v5993 = vadd.f32 %v5991, %v5992
    %v5994 = vtanh.pop %v5993
    %v5995 = vmul.f32 %v5990, %v5994
    %v5996 = vsel %vm5754, %v5875, %v5753
    %v5997 = vsel %vm5752, %v5995, %v5755
    %v5998 = vpack.c.bf16 %v5875, %v5875
    %5999 = vmatpush.bf16.msra.mxu0 %v4586
    %6000 = vmatpush.bf16.msra.mxu0 %v4582
    %6001 = vmatpush.bf16.msra.mxu0 %v4578
    %6002 = vmatpush.bf16.msra.mxu0 %v4574
    %6003 = vmatpush.bf16.msra.mxu0 %v4570
    %6004 = vmatpush.bf16.msra.mxu0 %v4566
    %6005 = vmatpush.bf16.msra.mxu0 %v4562
    %6006 = vmatpush.bf16.msra.mxu0 %v4558
    %6007 = vmatmul.bf16.gmra.mxu0 %v5998
    %v6008 = vpop.f32.mrf.mxu0
    %v6009 = vadd.f32 0.0, %v6008
    %v6010 = vpop.f32.mrf.mxu0
    %6011 = vdwg.mxu0
    %6012 = vmatpush.bf16.msra.mxu0 %v4587
    %6013 = vmatpush.bf16.msra.mxu0 %v4583
    %6014 = vmatpush.bf16.msra.mxu0 %v4579
    %6015 = vmatpush.bf16.msra.mxu0 %v4575
    %6016 = vmatpush.bf16.msra.mxu0 %v4571
    %6017 = vmatpush.bf16.msra.mxu0 %v4567
    %6018 = vmatpush.bf16.msra.mxu0 %v4563
    %6019 = vmatpush.bf16.msra.mxu0 %v4559
    %6020 = vmatmul.bf16.gmra.mxu0 %v5998
    %v6021 = vpop.f32.mrf.mxu0
    %v6022 = vadd.f32 0.0, %v6021
    %v6023 = vpop.f32.mrf.mxu0
    %6024 = vdwg.mxu0
    %6025 = vmatpush.bf16.msra.mxu0 %v4588
    %6026 = vmatpush.bf16.msra.mxu0 %v4584
    %6027 = vmatpush.bf16.msra.mxu0 %v4580
    %6028 = vmatpush.bf16.msra.mxu0 %v4576
    %6029 = vmatpush.bf16.msra.mxu0 %v4572
    %6030 = vmatpush.bf16.msra.mxu0 %v4568
    %6031 = vmatpush.bf16.msra.mxu0 %v4564
    %6032 = vmatpush.bf16.msra.mxu0 %v4560
    %6033 = vmatmul.bf16.gmra.mxu0 %v5998
    %v6034 = vpop.f32.mrf.mxu0
    %v6035 = vadd.f32 0.0, %v6034
    %v6036 = vpop.f32.mrf.mxu0
    %6037 = vdwg.mxu0
    %6038 = vmatpush.bf16.msra.mxu0 %v4589
    %6039 = vmatpush.bf16.msra.mxu0 %v4585
    %6040 = vmatpush.bf16.msra.mxu0 %v4581
    %6041 = vmatpush.bf16.msra.mxu0 %v4577
    %6042 = vmatpush.bf16.msra.mxu0 %v4573
    %6043 = vmatpush.bf16.msra.mxu0 %v4569
    %6044 = vmatpush.bf16.msra.mxu0 %v4565
    %6045 = vmatpush.bf16.msra.mxu0 %v4561
    %6046 = vmatmul.bf16.gmra.mxu0 %v5998
    %v6047 = vpop.f32.mrf.mxu0
    %v6048 = vadd.f32 0.0, %v6047
    %v6049 = vpop.f32.mrf.mxu0
    %6050 = vdwg.mxu0
    %v6051 = vadd.f32 %v3985, %v6009
    %v6052 = vadd.f32 %v4043, %v6022
    %v6053 = vadd.f32 %v4101, %v6035
    %v6054 = vadd.f32 %v4159, %v6048
    %v6055 = vxor.u32 %v6051, 2147483648
    %v6056 = vmul.f32 %v6055, 1.442695
    %v6057 = vpow.pop %v6056
    %v6058 = vadd.f32 %v6057, 1.0
    %v6059 = vrcp.pop %v6058
    %v6060 = vmul.f32 %v6058, %v6059
    %v6061 = vsub.f32 1.0, %v6060
    %v6062 = vmul.f32 %v6059, %v6061
    %v6063 = vadd.f32 %v6059, %v6062
    %vm6064 = vweird.f32 %v6058
    %vm6065 = vweird.f32 %v6059
    %vm6066 = vmor %vm6064, %vm6065
    %v6067 = vsel %vm6066, %v6059, %v6063
    %v6068 = vand.u32 2147483647, %v6058
    %vm6069 = vcmp.eq.f32.partialorder %v6068, 8.507059e+37
    %v6070 = vand.u32 %v6058, 2147483648
    %v6071 = vor.u32 1.1754944e-38, %v6070
    %v6072 = vsel %vm6069, %v6071, %v6067
    %v6073 = vmul.f32 1.0, %v6072
    %v6074 = vxor.u32 %v6052, 2147483648
    %v6075 = vmul.f32 %v6074, 1.442695
    %v6076 = vpow.pop %v6075
    %v6077 = vadd.f32 %v6076, 1.0
    %v6078 = vrcp.pop %v6077
    %v6079 = vmul.f32 %v6077, %v6078
    %v6080 = vsub.f32 1.0, %v6079
    %v6081 = vmul.f32 %v6078, %v6080
    %v6082 = vadd.f32 %v6078, %v6081
    %vm6083 = vweird.f32 %v6077
    %vm6084 = vweird.f32 %v6078
    %vm6085 = vmor %vm6083, %vm6084
    %v6086 = vsel %vm6085, %v6078, %v6082
    %v6087 = vand.u32 2147483647, %v6077
    %vm6088 = vcmp.eq.f32.partialorder %v6087, 8.507059e+37
    %v6089 = vand.u32 %v6077, 2147483648
    %v6090 = vor.u32 1.1754944e-38, %v6089
    %v6091 = vsel %vm6088, %v6090, %v6086
    %v6092 = vmul.f32 1.0, %v6091
    %v6093 = vtanh.pop %v6053
    %v6094 = vxor.u32 %v6054, 2147483648
    %v6095 = vmul.f32 %v6094, 1.442695
    %v6096 = vpow.pop %v6095
    %v6097 = vadd.f32 %v6096, 1.0
    %v6098 = vrcp.pop %v6097
    %v6099 = vmul.f32 %v6097, %v6098
    %v6100 = vsub.f32 1.0, %v6099
    %v6101 = vmul.f32 %v6098, %v6100
    %v6102 = vadd.f32 %v6098, %v6101
    %vm6103 = vweird.f32 %v6097
    %vm6104 = vweird.f32 %v6098
    %vm6105 = vmor %vm6103, %vm6104
    %v6106 = vsel %vm6105, %v6098, %v6102
    %v6107 = vand.u32 2147483647, %v6097
    %vm6108 = vcmp.eq.f32.partialorder %v6107, 8.507059e+37
    %v6109 = vand.u32 %v6097, 2147483648
    %v6110 = vor.u32 1.1754944e-38, %v6109
    %v6111 = vsel %vm6108, %v6110, %v6106
    %v6112 = vmul.f32 1.0, %v6111
    %v6113 = vmul.f32 %v6092, %v5873
    %v6114 = vmul.f32 %v6073, %v6093
    %v6115 = vadd.f32 %v6113, %v6114
    %v6116 = vtanh.pop %v6115
    %v6117 = vmul.f32 %v6112, %v6116
    %v6118 = vpack.c.bf16 %v5995, %v5995
    %6119 = vmatpush.bf16.msra.mxu0 %v4865
    %6120 = vmatpush.bf16.msra.mxu0 %v4861
    %6121 = vmatpush.bf16.msra.mxu0 %v4857
    %6122 = vmatpush.bf16.msra.mxu0 %v4853
    %6123 = vmatpush.bf16.msra.mxu0 %v4849
    %6124 = vmatpush.bf16.msra.mxu0 %v4845
    %6125 = vmatpush.bf16.msra.mxu0 %v4841
    %6126 = vmatpush.bf16.msra.mxu0 %v4837
    %6127 = vmatmul.bf16.gmra.mxu0 %v6118
    %v6128 = vpop.f32.mrf.mxu0
    %v6129 = vadd.f32 0.0, %v6128
    %v6130 = vpop.f32.mrf.mxu0
    %6131 = vdwg.mxu0
    %6132 = vmatpush.bf16.msra.mxu0 %v4866
    %6133 = vmatpush.bf16.msra.mxu0 %v4862
    %6134 = vmatpush.bf16.msra.mxu0 %v4858
    %6135 = vmatpush.bf16.msra.mxu0 %v4854
    %6136 = vmatpush.bf16.msra.mxu0 %v4850
    %6137 = vmatpush.bf16.msra.mxu0 %v4846
    %6138 = vmatpush.bf16.msra.mxu0 %v4842
    %6139 = vmatpush.bf16.msra.mxu0 %v4838
    %6140 = vmatmul.bf16.gmra.mxu0 %v6118
    %v6141 = vpop.f32.mrf.mxu0
    %v6142 = vadd.f32 0.0, %v6141
    %v6143 = vpop.f32.mrf.mxu0
    %6144 = vdwg.mxu0
    %6145 = vmatpush.bf16.msra.mxu0 %v4867
    %6146 = vmatpush.bf16.msra.mxu0 %v4863
    %6147 = vmatpush.bf16.msra.mxu0 %v4859
    %6148 = vmatpush.bf16.msra.mxu0 %v4855
    %6149 = vmatpush.bf16.msra.mxu0 %v4851
    %6150 = vmatpush.bf16.msra.mxu0 %v4847
    %6151 = vmatpush.bf16.msra.mxu0 %v4843
    %6152 = vmatpush.bf16.msra.mxu0 %v4839
    %6153 = vmatmul.bf16.gmra.mxu0 %v6118
    %v6154 = vpop.f32.mrf.mxu0
    %v6155 = vadd.f32 0.0, %v6154
    %v6156 = vpop.f32.mrf.mxu0
    %6157 = vdwg.mxu0
    %6158 = vmatpush.bf16.msra.mxu0 %v4868
    %6159 = vmatpush.bf16.msra.mxu0 %v4864
    %6160 = vmatpush.bf16.msra.mxu0 %v4860
    %6161 = vmatpush.bf16.msra.mxu0 %v4856
    %6162 = vmatpush.bf16.msra.mxu0 %v4852
    %6163 = vmatpush.bf16.msra.mxu0 %v4848
    %6164 = vmatpush.bf16.msra.mxu0 %v4844
    %6165 = vmatpush.bf16.msra.mxu0 %v4840
    %6166 = vmatmul.bf16.gmra.mxu0 %v6118
    %v6167 = vpop.f32.mrf.mxu0
    %v6168 = vadd.f32 0.0, %v6167
    %v6169 = vpop.f32.mrf.mxu0
    %6170 = vdwg.mxu0
    %v6171 = vadd.f32 %v4210, %v6129
    %v6172 = vadd.f32 %v4268, %v6142
    %v6173 = vadd.f32 %v4326, %v6155
    %v6174 = vadd.f32 %v4384, %v6168
    %v6175 = vxor.u32 %v6171, 2147483648
    %v6176 = vmul.f32 %v6175, 1.442695
    %v6177 = vpow.pop %v6176
    %v6178 = vadd.f32 %v6177, 1.0
    %v6179 = vrcp.pop %v6178
    %v6180 = vmul.f32 %v6178, %v6179
    %v6181 = vsub.f32 1.0, %v6180
    %v6182 = vmul.f32 %v6179, %v6181
    %v6183 = vadd.f32 %v6179, %v6182
    %vm6184 = vweird.f32 %v6178
    %vm6185 = vweird.f32 %v6179
    %vm6186 = vmor %vm6184, %vm6185
    %v6187 = vsel %vm6186, %v6179, %v6183
    %v6188 = vand.u32 2147483647, %v6178
    %vm6189 = vcmp.eq.f32.partialorder %v6188, 8.507059e+37
    %v6190 = vand.u32 %v6178, 2147483648
    %v6191 = vor.u32 1.1754944e-38, %v6190
    %v6192 = vsel %vm6189, %v6191, %v6187
    %v6193 = vmul.f32 1.0, %v6192
    %v6194 = vxor.u32 %v6172, 2147483648
    %v6195 = vmul.f32 %v6194, 1.442695
    %v6196 = vpow.pop %v6195
    %v6197 = vadd.f32 %v6196, 1.0
    %v6198 = vrcp.pop %v6197
    %v6199 = vmul.f32 %v6197, %v6198
    %v6200 = vsub.f32 1.0, %v6199
    %v6201 = vmul.f32 %v6198, %v6200
    %v6202 = vadd.f32 %v6198, %v6201
    %vm6203 = vweird.f32 %v6197
    %vm6204 = vweird.f32 %v6198
    %vm6205 = vmor %vm6203, %vm6204
    %v6206 = vsel %vm6205, %v6198, %v6202
    %v6207 = vand.u32 2147483647, %v6197
    %vm6208 = vcmp.eq.f32.partialorder %v6207, 8.507059e+37
    %v6209 = vand.u32 %v6197, 2147483648
    %v6210 = vor.u32 1.1754944e-38, %v6209
    %v6211 = vsel %vm6208, %v6210, %v6206
    %v6212 = vmul.f32 1.0, %v6211
    %v6213 = vtanh.pop %v6173
    %v6214 = vxor.u32 %v6174, 2147483648
    %v6215 = vmul.f32 %v6214, 1.442695
    %v6216 = vpow.pop %v6215
    %v6217 = vadd.f32 %v6216, 1.0
    %v6218 = vrcp.pop %v6217
    %v6219 = vmul.f32 %v6217, %v6218
    %v6220 = vsub.f32 1.0, %v6219
    %v6221 = vmul.f32 %v6218, %v6220
    %v6222 = vadd.f32 %v6218, %v6221
    %vm6223 = vweird.f32 %v6217
    %vm6224 = vweird.f32 %v6218
    %vm6225 = vmor %vm6223, %vm6224
    %v6226 = vsel %vm6225, %v6218, %v6222
    %v6227 = vand.u32 2147483647, %v6217
    %vm6228 = vcmp.eq.f32.partialorder %v6227, 8.507059e+37
    %v6229 = vand.u32 %v6217, 2147483648
    %v6230 = vor.u32 1.1754944e-38, %v6229
    %v6231 = vsel %vm6228, %v6230, %v6226
    %v6232 = vmul.f32 1.0, %v6231
    %v6233 = vmul.f32 %v6212, %v5993
    %v6234 = vmul.f32 %v6193, %v6213
    %v6235 = vadd.f32 %v6233, %v6234
    %v6236 = vtanh.pop %v6235
    %v6237 = vmul.f32 %v6232, %v6236
    %v6238 = vsel %vm5510, %v6117, %v5996
    %v6239 = vsel %vm5508, %v6237, %v5997
    %v6240 = vpack.c.bf16 %v6117, %v6117
    %6241 = vmatpush.bf16.msra.mxu0 %v4586
    %6242 = vmatpush.bf16.msra.mxu0 %v4582
    %6243 = vmatpush.bf16.msra.mxu0 %v4578
    %6244 = vmatpush.bf16.msra.mxu0 %v4574
    %6245 = vmatpush.bf16.msra.mxu0 %v4570
    %6246 = vmatpush.bf16.msra.mxu0 %v4566
    %6247 = vmatpush.bf16.msra.mxu0 %v4562
    %6248 = vmatpush.bf16.msra.mxu0 %v4558
    %6249 = vmatmul.bf16.gmra.mxu0 %v6240
    %v6250 = vpop.f32.mrf.mxu0
    %v6251 = vadd.f32 0.0, %v6250
    %v6252 = vpop.f32.mrf.mxu0
    %6253 = vdwg.mxu0
    %6254 = vmatpush.bf16.msra.mxu0 %v4587
    %6255 = vmatpush.bf16.msra.mxu0 %v4583
    %6256 = vmatpush.bf16.msra.mxu0 %v4579
    %6257 = vmatpush.bf16.msra.mxu0 %v4575
    %6258 = vmatpush.bf16.msra.mxu0 %v4571
    %6259 = vmatpush.bf16.msra.mxu0 %v4567
    %6260 = vmatpush.bf16.msra.mxu0 %v4563
    %6261 = vmatpush.bf16.msra.mxu0 %v4559
    %6262 = vmatmul.bf16.gmra.mxu0 %v6240
    %v6263 = vpop.f32.mrf.mxu0
    %v6264 = vadd.f32 0.0, %v6263
    %v6265 = vpop.f32.mrf.mxu0
    %6266 = vdwg.mxu0
    %6267 = vmatpush.bf16.msra.mxu0 %v4588
    %6268 = vmatpush.bf16.msra.mxu0 %v4584
    %6269 = vmatpush.bf16.msra.mxu0 %v4580
    %6270 = vmatpush.bf16.msra.mxu0 %v4576
    %6271 = vmatpush.bf16.msra.mxu0 %v4572
    %6272 = vmatpush.bf16.msra.mxu0 %v4568
    %6273 = vmatpush.bf16.msra.mxu0 %v4564
    %6274 = vmatpush.bf16.msra.mxu0 %v4560
    %6275 = vmatmul.bf16.gmra.mxu0 %v6240
    %v6276 = vpop.f32.mrf.mxu0
    %v6277 = vadd.f32 0.0, %v6276
    %v6278 = vpop.f32.mrf.mxu0
    %6279 = vdwg.mxu0
    %6280 = vmatpush.bf16.msra.mxu0 %v4589
    %6281 = vmatpush.bf16.msra.mxu0 %v4585
    %6282 = vmatpush.bf16.msra.mxu0 %v4581
    %6283 = vmatpush.bf16.msra.mxu0 %v4577
    %6284 = vmatpush.bf16.msra.mxu0 %v4573
    %6285 = vmatpush.bf16.msra.mxu0 %v4569
    %6286 = vmatpush.bf16.msra.mxu0 %v4565
    %6287 = vmatpush.bf16.msra.mxu0 %v4561
    %6288 = vmatmul.bf16.gmra.mxu0 %v6240
    %v6289 = vpop.f32.mrf.mxu0
    %v6290 = vadd.f32 0.0, %v6289
    %v6291 = vpop.f32.mrf.mxu0
    %6292 = vdwg.mxu0
    %v6293 = vadd.f32 %v3988, %v6251
    %v6294 = vadd.f32 %v4046, %v6264
    %v6295 = vadd.f32 %v4104, %v6277
    %v6296 = vadd.f32 %v4162, %v6290
    %v6297 = vxor.u32 %v6293, 2147483648
    %v6298 = vmul.f32 %v6297, 1.442695
    %v6299 = vpow.pop %v6298
    %v6300 = vadd.f32 %v6299, 1.0
    %v6301 = vrcp.pop %v6300
    %v6302 = vmul.f32 %v6300, %v6301
    %v6303 = vsub.f32 1.0, %v6302
    %v6304 = vmul.f32 %v6301, %v6303
    %v6305 = vadd.f32 %v6301, %v6304
    %vm6306 = vweird.f32 %v6300
    %vm6307 = vweird.f32 %v6301
    %vm6308 = vmor %vm6306, %vm6307
    %v6309 = vsel %vm6308, %v6301, %v6305
    %v6310 = vand.u32 2147483647, %v6300
    %vm6311 = vcmp.eq.f32.partialorder %v6310, 8.507059e+37
    %v6312 = vand.u32 %v6300, 2147483648
    %v6313 = vor.u32 1.1754944e-38, %v6312
    %v6314 = vsel %vm6311, %v6313, %v6309
    %v6315 = vmul.f32 1.0, %v6314
    %v6316 = vxor.u32 %v6294, 2147483648
    %v6317 = vmul.f32 %v6316, 1.442695
    %v6318 = vpow.pop %v6317
    %v6319 = vadd.f32 %v6318, 1.0
    %v6320 = vrcp.pop %v6319
    %v6321 = vmul.f32 %v6319, %v6320
    %v6322 = vsub.f32 1.0, %v6321
    %v6323 = vmul.f32 %v6320, %v6322
    %v6324 = vadd.f32 %v6320, %v6323
    %vm6325 = vweird.f32 %v6319
    %vm6326 = vweird.f32 %v6320
    %vm6327 = vmor %vm6325, %vm6326
    %v6328 = vsel %vm6327, %v6320, %v6324
    %v6329 = vand.u32 2147483647, %v6319
    %vm6330 = vcmp.eq.f32.partialorder %v6329, 8.507059e+37
    %v6331 = vand.u32 %v6319, 2147483648
    %v6332 = vor.u32 1.1754944e-38, %v6331
    %v6333 = vsel %vm6330, %v6332, %v6328
    %v6334 = vmul.f32 1.0, %v6333
    %v6335 = vtanh.pop %v6295
    %v6336 = vxor.u32 %v6296, 2147483648
    %v6337 = vmul.f32 %v6336, 1.442695
    %v6338 = vpow.pop %v6337
    %v6339 = vadd.f32 %v6338, 1.0
    %v6340 = vrcp.pop %v6339
    %v6341 = vmul.f32 %v6339, %v6340
    %v6342 = vsub.f32 1.0, %v6341
    %v6343 = vmul.f32 %v6340, %v6342
    %v6344 = vadd.f32 %v6340, %v6343
    %vm6345 = vweird.f32 %v6339
    %vm6346 = vweird.f32 %v6340
    %vm6347 = vmor %vm6345, %vm6346
    %v6348 = vsel %vm6347, %v6340, %v6344
    %v6349 = vand.u32 2147483647, %v6339
    %vm6350 = vcmp.eq.f32.partialorder %v6349, 8.507059e+37
    %v6351 = vand.u32 %v6339, 2147483648
    %v6352 = vor.u32 1.1754944e-38, %v6351
    %v6353 = vsel %vm6350, %v6352, %v6348
    %v6354 = vmul.f32 1.0, %v6353
    %v6355 = vmul.f32 %v6334, %v6115
    %v6356 = vmul.f32 %v6315, %v6335
    %v6357 = vadd.f32 %v6355, %v6356
    %v6358 = vtanh.pop %v6357
    %v6359 = vmul.f32 %v6354, %v6358
    %v6360 = vpack.c.bf16 %v6237, %v6237
    %6361 = vmatpush.bf16.msra.mxu0 %v4865
    %6362 = vmatpush.bf16.msra.mxu0 %v4861
    %6363 = vmatpush.bf16.msra.mxu0 %v4857
    %6364 = vmatpush.bf16.msra.mxu0 %v4853
    %6365 = vmatpush.bf16.msra.mxu0 %v4849
    %6366 = vmatpush.bf16.msra.mxu0 %v4845
    %6367 = vmatpush.bf16.msra.mxu0 %v4841
    %6368 = vmatpush.bf16.msra.mxu0 %v4837
    %6369 = vmatmul.bf16.gmra.mxu0 %v6360
    %v6370 = vpop.f32.mrf.mxu0
    %v6371 = vadd.f32 0.0, %v6370
    %v6372 = vpop.f32.mrf.mxu0
    %6373 = vdwg.mxu0
    %6374 = vmatpush.bf16.msra.mxu0 %v4866
    %6375 = vmatpush.bf16.msra.mxu0 %v4862
    %6376 = vmatpush.bf16.msra.mxu0 %v4858
    %6377 = vmatpush.bf16.msra.mxu0 %v4854
    %6378 = vmatpush.bf16.msra.mxu0 %v4850
    %6379 = vmatpush.bf16.msra.mxu0 %v4846
    %6380 = vmatpush.bf16.msra.mxu0 %v4842
    %6381 = vmatpush.bf16.msra.mxu0 %v4838
    %6382 = vmatmul.bf16.gmra.mxu0 %v6360
    %v6383 = vpop.f32.mrf.mxu0
    %v6384 = vadd.f32 0.0, %v6383
    %v6385 = vpop.f32.mrf.mxu0
    %6386 = vdwg.mxu0
    %6387 = vmatpush.bf16.msra.mxu0 %v4867
    %6388 = vmatpush.bf16.msra.mxu0 %v4863
    %6389 = vmatpush.bf16.msra.mxu0 %v4859
    %6390 = vmatpush.bf16.msra.mxu0 %v4855
    %6391 = vmatpush.bf16.msra.mxu0 %v4851
    %6392 = vmatpush.bf16.msra.mxu0 %v4847
    %6393 = vmatpush.bf16.msra.mxu0 %v4843
    %6394 = vmatpush.bf16.msra.mxu0 %v4839
    %6395 = vmatmul.bf16.gmra.mxu0 %v6360
    %v6396 = vpop.f32.mrf.mxu0
    %v6397 = vadd.f32 0.0, %v6396
    %v6398 = vpop.f32.mrf.mxu0
    %6399 = vdwg.mxu0
    %6400 = vmatpush.bf16.msra.mxu0 %v4868
    %6401 = vmatpush.bf16.msra.mxu0 %v4864
    %6402 = vmatpush.bf16.msra.mxu0 %v4860
    %6403 = vmatpush.bf16.msra.mxu0 %v4856
    %6404 = vmatpush.bf16.msra.mxu0 %v4852
    %6405 = vmatpush.bf16.msra.mxu0 %v4848
    %6406 = vmatpush.bf16.msra.mxu0 %v4844
    %6407 = vmatpush.bf16.msra.mxu0 %v4840
    %6408 = vmatmul.bf16.gmra.mxu0 %v6360
    %v6409 = vpop.f32.mrf.mxu0
    %v6410 = vadd.f32 0.0, %v6409
    %v6411 = vpop.f32.mrf.mxu0
    %6412 = vdwg.mxu0
    %v6413 = vadd.f32 %v4207, %v6371
    %v6414 = vadd.f32 %v4265, %v6384
    %v6415 = vadd.f32 %v4323, %v6397
    %v6416 = vadd.f32 %v4381, %v6410
    %v6417 = vxor.u32 %v6413, 2147483648
    %v6418 = vmul.f32 %v6417, 1.442695
    %v6419 = vpow.pop %v6418
    %v6420 = vadd.f32 %v6419, 1.0
    %v6421 = vrcp.pop %v6420
    %v6422 = vmul.f32 %v6420, %v6421
    %v6423 = vsub.f32 1.0, %v6422
    %v6424 = vmul.f32 %v6421, %v6423
    %v6425 = vadd.f32 %v6421, %v6424
    %vm6426 = vweird.f32 %v6420
    %vm6427 = vweird.f32 %v6421
    %vm6428 = vmor %vm6426, %vm6427
    %v6429 = vsel %vm6428, %v6421, %v6425
    %v6430 = vand.u32 2147483647, %v6420
    %vm6431 = vcmp.eq.f32.partialorder %v6430, 8.507059e+37
    %v6432 = vand.u32 %v6420, 2147483648
    %v6433 = vor.u32 1.1754944e-38, %v6432
    %v6434 = vsel %vm6431, %v6433, %v6429
    %v6435 = vmul.f32 1.0, %v6434
    %v6436 = vxor.u32 %v6414, 2147483648
    %v6437 = vmul.f32 %v6436, 1.442695
    %v6438 = vpow.pop %v6437
    %v6439 = vadd.f32 %v6438, 1.0
    %v6440 = vrcp.pop %v6439
    %v6441 = vmul.f32 %v6439, %v6440
    %v6442 = vsub.f32 1.0, %v6441
    %v6443 = vmul.f32 %v6440, %v6442
    %v6444 = vadd.f32 %v6440, %v6443
    %vm6445 = vweird.f32 %v6439
    %vm6446 = vweird.f32 %v6440
    %vm6447 = vmor %vm6445, %vm6446
    %v6448 = vsel %vm6447, %v6440, %v6444
    %v6449 = vand.u32 2147483647, %v6439
    %vm6450 = vcmp.eq.f32.partialorder %v6449, 8.507059e+37
    %v6451 = vand.u32 %v6439, 2147483648
    %v6452 = vor.u32 1.1754944e-38, %v6451
    %v6453 = vsel %vm6450, %v6452, %v6448
    %v6454 = vmul.f32 1.0, %v6453
    %v6455 = vtanh.pop %v6415
    %v6456 = vxor.u32 %v6416, 2147483648
    %v6457 = vmul.f32 %v6456, 1.442695
    %v6458 = vpow.pop %v6457
    %v6459 = vadd.f32 %v6458, 1.0
    %v6460 = vrcp.pop %v6459
    %v6461 = vmul.f32 %v6459, %v6460
    %v6462 = vsub.f32 1.0, %v6461
    %v6463 = vmul.f32 %v6460, %v6462
    %v6464 = vadd.f32 %v6460, %v6463
    %vm6465 = vweird.f32 %v6459
    %vm6466 = vweird.f32 %v6460
    %vm6467 = vmor %vm6465, %vm6466
    %v6468 = vsel %vm6467, %v6460, %v6464
    %v6469 = vand.u32 2147483647, %v6459
    %vm6470 = vcmp.eq.f32.partialorder %v6469, 8.507059e+37
    %v6471 = vand.u32 %v6459, 2147483648
    %v6472 = vor.u32 1.1754944e-38, %v6471
    %v6473 = vsel %vm6470, %v6472, %v6468
    %v6474 = vmul.f32 1.0, %v6473
    %v6475 = vmul.f32 %v6454, %v6235
    %v6476 = vmul.f32 %v6435, %v6455
    %v6477 = vadd.f32 %v6475, %v6476
    %v6478 = vtanh.pop %v6477
    %v6479 = vmul.f32 %v6474, %v6478
    %v6480 = vsel %vm5266, %v6359, %v6238
    %v6481 = vsel %vm5264, %v6479, %v6239
    %v6482 = vpack.c.bf16 %v6359, %v6359
    %6483 = vmatpush.bf16.msra.mxu0 %v4586
    %6484 = vmatpush.bf16.msra.mxu0 %v4582
    %6485 = vmatpush.bf16.msra.mxu0 %v4578
    %6486 = vmatpush.bf16.msra.mxu0 %v4574
    %6487 = vmatpush.bf16.msra.mxu0 %v4570
    %6488 = vmatpush.bf16.msra.mxu0 %v4566
    %6489 = vmatpush.bf16.msra.mxu0 %v4562
    %6490 = vmatpush.bf16.msra.mxu0 %v4558
    %6491 = vmatmul.bf16.gmra.mxu0 %v6482
    %v6492 = vpop.f32.mrf.mxu0
    %v6493 = vadd.f32 0.0, %v6492
    %v6494 = vpop.f32.mrf.mxu0
    %6495 = vdwg.mxu0
    %6496 = vmatpush.bf16.msra.mxu0 %v4587
    %6497 = vmatpush.bf16.msra.mxu0 %v4583
    %6498 = vmatpush.bf16.msra.mxu0 %v4579
    %6499 = vmatpush.bf16.msra.mxu0 %v4575
    %6500 = vmatpush.bf16.msra.mxu0 %v4571
    %6501 = vmatpush.bf16.msra.mxu0 %v4567
    %6502 = vmatpush.bf16.msra.mxu0 %v4563
    %6503 = vmatpush.bf16.msra.mxu0 %v4559
    %6504 = vmatmul.bf16.gmra.mxu0 %v6482
    %v6505 = vpop.f32.mrf.mxu0
    %v6506 = vadd.f32 0.0, %v6505
    %v6507 = vpop.f32.mrf.mxu0
    %6508 = vdwg.mxu0
    %6509 = vmatpush.bf16.msra.mxu0 %v4588
    %6510 = vmatpush.bf16.msra.mxu0 %v4584
    %6511 = vmatpush.bf16.msra.mxu0 %v4580
    %6512 = vmatpush.bf16.msra.mxu0 %v4576
    %6513 = vmatpush.bf16.msra.mxu0 %v4572
    %6514 = vmatpush.bf16.msra.mxu0 %v4568
    %6515 = vmatpush.bf16.msra.mxu0 %v4564
    %6516 = vmatpush.bf16.msra.mxu0 %v4560
    %6517 = vmatmul.bf16.gmra.mxu0 %v6482
    %v6518 = vpop.f32.mrf.mxu0
    %v6519 = vadd.f32 0.0, %v6518
    %v6520 = vpop.f32.mrf.mxu0
    %6521 = vdwg.mxu0
    %6522 = vmatpush.bf16.msra.mxu0 %v4589
    %6523 = vmatpush.bf16.msra.mxu0 %v4585
    %6524 = vmatpush.bf16.msra.mxu0 %v4581
    %6525 = vmatpush.bf16.msra.mxu0 %v4577
    %6526 = vmatpush.bf16.msra.mxu0 %v4573
    %6527 = vmatpush.bf16.msra.mxu0 %v4569
    %6528 = vmatpush.bf16.msra.mxu0 %v4565
    %6529 = vmatpush.bf16.msra.mxu0 %v4561
    %6530 = vmatmul.bf16.gmra.mxu0 %v6482
    %v6531 = vpop.f32.mrf.mxu0
    %v6532 = vadd.f32 0.0, %v6531
    %v6533 = vpop.f32.mrf.mxu0
    %6534 = vdwg.mxu0
    %v6535 = vadd.f32 %v3990, %v6493
    %v6536 = vadd.f32 %v4048, %v6506
    %v6537 = vadd.f32 %v4106, %v6519
    %v6538 = vadd.f32 %v4164, %v6532
    %v6539 = vxor.u32 %v6535, 2147483648
    %v6540 = vmul.f32 %v6539, 1.442695
    %v6541 = vpow.pop %v6540
    %v6542 = vadd.f32 %v6541, 1.0
    %v6543 = vrcp.pop %v6542
    %v6544 = vmul.f32 %v6542, %v6543
    %v6545 = vsub.f32 1.0, %v6544
    %v6546 = vmul.f32 %v6543, %v6545
    %v6547 = vadd.f32 %v6543, %v6546
    %vm6548 = vweird.f32 %v6542
    %vm6549 = vweird.f32 %v6543
    %vm6550 = vmor %vm6548, %vm6549
    %v6551 = vsel %vm6550, %v6543, %v6547
    %v6552 = vand.u32 2147483647, %v6542
    %vm6553 = vcmp.eq.f32.partialorder %v6552, 8.507059e+37
    %v6554 = vand.u32 %v6542, 2147483648
    %v6555 = vor.u32 1.1754944e-38, %v6554
    %v6556 = vsel %vm6553, %v6555, %v6551
    %v6557 = vmul.f32 1.0, %v6556
    %v6558 = vxor.u32 %v6536, 2147483648
    %v6559 = vmul.f32 %v6558, 1.442695
    %v6560 = vpow.pop %v6559
    %v6561 = vadd.f32 %v6560, 1.0
    %v6562 = vrcp.pop %v6561
    %v6563 = vmul.f32 %v6561, %v6562
    %v6564 = vsub.f32 1.0, %v6563
    %v6565 = vmul.f32 %v6562, %v6564
    %v6566 = vadd.f32 %v6562, %v6565
    %vm6567 = vweird.f32 %v6561
    %vm6568 = vweird.f32 %v6562
    %vm6569 = vmor %vm6567, %vm6568
    %v6570 = vsel %vm6569, %v6562, %v6566
    %v6571 = vand.u32 2147483647, %v6561
    %vm6572 = vcmp.eq.f32.partialorder %v6571, 8.507059e+37
    %v6573 = vand.u32 %v6561, 2147483648
    %v6574 = vor.u32 1.1754944e-38, %v6573
    %v6575 = vsel %vm6572, %v6574, %v6570
    %v6576 = vmul.f32 1.0, %v6575
    %v6577 = vtanh.pop %v6537
    %v6578 = vxor.u32 %v6538, 2147483648
    %v6579 = vmul.f32 %v6578, 1.442695
    %v6580 = vpow.pop %v6579
    %v6581 = vadd.f32 %v6580, 1.0
    %v6582 = vrcp.pop %v6581
    %v6583 = vmul.f32 %v6581, %v6582
    %v6584 = vsub.f32 1.0, %v6583
    %v6585 = vmul.f32 %v6582, %v6584
    %v6586 = vadd.f32 %v6582, %v6585
    %vm6587 = vweird.f32 %v6581
    %vm6588 = vweird.f32 %v6582
    %vm6589 = vmor %vm6587, %vm6588
    %v6590 = vsel %vm6589, %v6582, %v6586
    %v6591 = vand.u32 2147483647, %v6581
    %vm6592 = vcmp.eq.f32.partialorder %v6591, 8.507059e+37
    %v6593 = vand.u32 %v6581, 2147483648
    %v6594 = vor.u32 1.1754944e-38, %v6593
    %v6595 = vsel %vm6592, %v6594, %v6590
    %v6596 = vmul.f32 1.0, %v6595
    %v6597 = vmul.f32 %v6576, %v6357
    %v6598 = vmul.f32 %v6557, %v6577
    %v6599 = vadd.f32 %v6597, %v6598
    %v6600 = vtanh.pop %v6599
    %v6601 = vmul.f32 %v6596, %v6600
    %v6602 = vpack.c.bf16 %v6479, %v6479
    %6603 = vmatpush.bf16.msra.mxu0 %v4865
    %6604 = vmatpush.bf16.msra.mxu0 %v4861
    %6605 = vmatpush.bf16.msra.mxu0 %v4857
    %6606 = vmatpush.bf16.msra.mxu0 %v4853
    %6607 = vmatpush.bf16.msra.mxu0 %v4849
    %6608 = vmatpush.bf16.msra.mxu0 %v4845
    %6609 = vmatpush.bf16.msra.mxu0 %v4841
    %6610 = vmatpush.bf16.msra.mxu0 %v4837
    %6611 = vmatmul.bf16.gmra.mxu0 %v6602
    %v6612 = vpop.f32.mrf.mxu0
    %v6613 = vadd.f32 0.0, %v6612
    %v6614 = vpop.f32.mrf.mxu0
    %6615 = vdwg.mxu0
    %6616 = vmatpush.bf16.msra.mxu0 %v4866
    %6617 = vmatpush.bf16.msra.mxu0 %v4862
    %6618 = vmatpush.bf16.msra.mxu0 %v4858
    %6619 = vmatpush.bf16.msra.mxu0 %v4854
    %6620 = vmatpush.bf16.msra.mxu0 %v4850
    %6621 = vmatpush.bf16.msra.mxu0 %v4846
    %6622 = vmatpush.bf16.msra.mxu0 %v4842
    %6623 = vmatpush.bf16.msra.mxu0 %v4838
    %6624 = vmatmul.bf16.gmra.mxu0 %v6602
    %v6625 = vpop.f32.mrf.mxu0
    %v6626 = vadd.f32 0.0, %v6625
    %v6627 = vpop.f32.mrf.mxu0
    %6628 = vdwg.mxu0
    %6629 = vmatpush.bf16.msra.mxu0 %v4867
    %6630 = vmatpush.bf16.msra.mxu0 %v4863
    %6631 = vmatpush.bf16.msra.mxu0 %v4859
    %6632 = vmatpush.bf16.msra.mxu0 %v4855
    %6633 = vmatpush.bf16.msra.mxu0 %v4851
    %6634 = vmatpush.bf16.msra.mxu0 %v4847
    %6635 = vmatpush.bf16.msra.mxu0 %v4843
    %6636 = vmatpush.bf16.msra.mxu0 %v4839
    %6637 = vmatmul.bf16.gmra.mxu0 %v6602
    %v6638 = vpop.f32.mrf.mxu0
    %v6639 = vadd.f32 0.0, %v6638
    %v6640 = vpop.f32.mrf.mxu0
    %6641 = vdwg.mxu0
    %6642 = vmatpush.bf16.msra.mxu0 %v4868
    %6643 = vmatpush.bf16.msra.mxu0 %v4864
    %6644 = vmatpush.bf16.msra.mxu0 %v4860
    %6645 = vmatpush.bf16.msra.mxu0 %v4856
    %6646 = vmatpush.bf16.msra.mxu0 %v4852
    %6647 = vmatpush.bf16.msra.mxu0 %v4848
    %6648 = vmatpush.bf16.msra.mxu0 %v4844
    %6649 = vmatpush.bf16.msra.mxu0 %v4840
    %6650 = vmatmul.bf16.gmra.mxu0 %v6602
    %v6651 = vpop.f32.mrf.mxu0
    %v6652 = vadd.f32 0.0, %v6651
    %v6653 = vpop.f32.mrf.mxu0
    %6654 = vdwg.mxu0
    %v6655 = vadd.f32 %v4205, %v6613
    %v6656 = vadd.f32 %v4263, %v6626
    %v6657 = vadd.f32 %v4321, %v6639
    %v6658 = vadd.f32 %v4379, %v6652
    %v6659 = vxor.u32 %v6655, 2147483648
    %v6660 = vmul.f32 %v6659, 1.442695
    %v6661 = vpow.pop %v6660
    %v6662 = vadd.f32 %v6661, 1.0
    %v6663 = vrcp.pop %v6662
    %v6664 = vmul.f32 %v6662, %v6663
    %v6665 = vsub.f32 1.0, %v6664
    %v6666 = vmul.f32 %v6663, %v6665
    %v6667 = vadd.f32 %v6663, %v6666
    %vm6668 = vweird.f32 %v6662
    %vm6669 = vweird.f32 %v6663
    %vm6670 = vmor %vm6668, %vm6669
    %v6671 = vsel %vm6670, %v6663, %v6667
    %v6672 = vand.u32 2147483647, %v6662
    %vm6673 = vcmp.eq.f32.partialorder %v6672, 8.507059e+37
    %v6674 = vand.u32 %v6662, 2147483648
    %v6675 = vor.u32 1.1754944e-38, %v6674
    %v6676 = vsel %vm6673, %v6675, %v6671
    %v6677 = vmul.f32 1.0, %v6676
    %v6678 = vxor.u32 %v6656, 2147483648
    %v6679 = vmul.f32 %v6678, 1.442695
    %v6680 = vpow.pop %v6679
    %v6681 = vadd.f32 %v6680, 1.0
    %v6682 = vrcp.pop %v6681
    %v6683 = vmul.f32 %v6681, %v6682
    %v6684 = vsub.f32 1.0, %v6683
    %v6685 = vmul.f32 %v6682, %v6684
    %v6686 = vadd.f32 %v6682, %v6685
    %vm6687 = vweird.f32 %v6681
    %vm6688 = vweird.f32 %v6682
    %vm6689 = vmor %vm6687, %vm6688
    %v6690 = vsel %vm6689, %v6682, %v6686
    %v6691 = vand.u32 2147483647, %v6681
    %vm6692 = vcmp.eq.f32.partialorder %v6691, 8.507059e+37
    %v6693 = vand.u32 %v6681, 2147483648
    %v6694 = vor.u32 1.1754944e-38, %v6693
    %v6695 = vsel %vm6692, %v6694, %v6690
    %v6696 = vmul.f32 1.0, %v6695
    %v6697 = vtanh.pop %v6657
    %v6698 = vxor.u32 %v6658, 2147483648
    %v6699 = vmul.f32 %v6698, 1.442695
    %v6700 = vpow.pop %v6699
    %v6701 = vadd.f32 %v6700, 1.0
    %v6702 = vrcp.pop %v6701
    %v6703 = vmul.f32 %v6701, %v6702
    %v6704 = vsub.f32 1.0, %v6703
    %v6705 = vmul.f32 %v6702, %v6704
    %v6706 = vadd.f32 %v6702, %v6705
    %vm6707 = vweird.f32 %v6701
    %vm6708 = vweird.f32 %v6702
    %vm6709 = vmor %vm6707, %vm6708
    %v6710 = vsel %vm6709, %v6702, %v6706
    %v6711 = vand.u32 2147483647, %v6701
    %vm6712 = vcmp.eq.f32.partialorder %v6711, 8.507059e+37
    %v6713 = vand.u32 %v6701, 2147483648
    %v6714 = vor.u32 1.1754944e-38, %v6713
    %v6715 = vsel %vm6712, %v6714, %v6710
    %v6716 = vmul.f32 1.0, %v6715
    %v6717 = vmul.f32 %v6696, %v6477
    %v6718 = vmul.f32 %v6677, %v6697
    %v6719 = vadd.f32 %v6717, %v6718
    %v6720 = vtanh.pop %v6719
    %v6721 = vmul.f32 %v6716, %v6720
    %v6722 = vsel %vm5022, %v6601, %v6480
    %v6723 = vsel %vm5020, %v6721, %v6481
    %v6724 = vld [vmem:[%s10] sm:$0xf]
    %v6725 = vld [vmem:[%s10 + $0x4] sm:$0xf]
    %v6726 = vld [vmem:[%s10 + $0x8] sm:$0xf]
    %v6727 = vld [vmem:[%s10 + $0xc] sm:$0xf]
    %v6728 = vld [vmem:[%s10 + $0x10] sm:$0xf]
    %v6729 = vld [vmem:[%s10 + $0x14] sm:$0xf]
    %v6730 = vld [vmem:[%s10 + $0x18] sm:$0xf]
    %v6731 = vld [vmem:[%s10 + $0x1c] sm:$0xf]
    %v6732 = vld [vmem:[%s10 + $0x20] sm:$0xf]
    %v6733 = vld [vmem:[%s10 + $0x24] sm:$0xf]
    %v6734 = vld [vmem:[%s10 + $0x28] sm:$0xf]
    %v6735 = vld [vmem:[%s10 + $0x2c] sm:$0xf]
    %v6736 = vld [vmem:[%s10 + $0x30] sm:$0xf]
    %v6737 = vld [vmem:[%s10 + $0x34] sm:$0xf]
    %v6738 = vld [vmem:[%s10 + $0x38] sm:$0xf]
    %v6739 = vld [vmem:[%s10 + $0x3c] sm:$0xf]
    %v6740 = vld [vmem:[%s10 + $0x40] sm:$0xf]
    %v6741 = vld [vmem:[%s10 + $0x44] sm:$0xf]
    %v6742 = vld [vmem:[%s10 + $0x48] sm:$0xf]
    %v6743 = vld [vmem:[%s10 + $0x4c] sm:$0xf]
    %v6744 = vld [vmem:[%s10 + $0x50] sm:$0xf]
    %v6745 = vld [vmem:[%s10 + $0x54] sm:$0xf]
    %v6746 = vld [vmem:[%s10 + $0x58] sm:$0xf]
    %v6747 = vld [vmem:[%s10 + $0x5c] sm:$0xf]
    %v6748 = vld [vmem:[%s10 + $0x60] sm:$0xf]
    %v6749 = vld [vmem:[%s10 + $0x64] sm:$0xf]
    %v6750 = vld [vmem:[%s10 + $0x68] sm:$0xf]
    %v6751 = vld [vmem:[%s10 + $0x6c] sm:$0xf]
    %v6752 = vld [vmem:[%s10 + $0x70] sm:$0xf]
    %v6753 = vld [vmem:[%s10 + $0x74] sm:$0xf]
    %v6754 = vld [vmem:[%s10 + $0x78] sm:$0xf]
    %v6755 = vld [vmem:[%s10 + $0x7c] sm:$0xf]
    %v6756 = vpack.c.bf16 %v6722, %v6722
    %v6757 = vpack.c.bf16 %v6723, %v6723
    %v6758 = vld [vmem:[%s11] sm:$0x1]
    %v6760 = vperm.slane %v6758, 0
    %v6794 = vunpack.c.l.b16 %v6724
    %v6795 = vunpack.c.l.b16 %v6725
    %v6796 = vunpack.c.l.b16 %v6726
    %v6797 = vunpack.c.l.b16 %v6727
    %v6798 = vunpack.c.l.b16 %v6728
    %v6799 = vunpack.c.l.b16 %v6729
    %v6800 = vunpack.c.l.b16 %v6730
    %v6801 = vunpack.c.l.b16 %v6731
    %v6802 = vunpack.c.l.b16 %v6732
    %v6803 = vunpack.c.l.b16 %v6733
    %v6804 = vunpack.c.l.b16 %v6734
    %v6805 = vunpack.c.l.b16 %v6735
    %v6806 = vunpack.c.l.b16 %v6736
    %v6807 = vunpack.c.l.b16 %v6737
    %v6808 = vunpack.c.l.b16 %v6738
    %v6809 = vunpack.c.l.b16 %v6739
    %v6810 = vunpack.c.l.b16 %v6740
    %v6811 = vunpack.c.l.b16 %v6741
    %v6812 = vunpack.c.l.b16 %v6742
    %v6813 = vunpack.c.l.b16 %v6743
    %v6814 = vunpack.c.l.b16 %v6744
    %v6815 = vunpack.c.l.b16 %v6745
    %v6816 = vunpack.c.l.b16 %v6746
    %v6817 = vunpack.c.l.b16 %v6747
    %v6818 = vunpack.c.l.b16 %v6748
    %v6819 = vunpack.c.l.b16 %v6749
    %v6820 = vunpack.c.l.b16 %v6750
    %v6821 = vunpack.c.l.b16 %v6751
    %v6822 = vunpack.c.l.b16 %v6752
    %v6823 = vunpack.c.l.b16 %v6753
    %v6824 = vunpack.c.l.b16 %v6754
    %v6825 = vunpack.c.l.b16 %v6755
    %v6826 = vpack.c.b16 %v6795, %v6794
    %v6827 = vpack.c.b16 %v6797, %v6796
    %v6828 = vpack.c.b16 %v6799, %v6798
    %v6829 = vpack.c.b16 %v6801, %v6800
    %v6830 = vpack.c.b16 %v6803, %v6802
    %v6831 = vpack.c.b16 %v6805, %v6804
    %v6832 = vpack.c.b16 %v6807, %v6806
    %v6833 = vpack.c.b16 %v6809, %v6808
    %v6834 = vpack.c.b16 %v6811, %v6810
    %v6835 = vpack.c.b16 %v6813, %v6812
    %v6836 = vpack.c.b16 %v6815, %v6814
    %v6837 = vpack.c.b16 %v6817, %v6816
    %v6838 = vpack.c.b16 %v6819, %v6818
    %v6839 = vpack.c.b16 %v6821, %v6820
    %v6840 = vpack.c.b16 %v6823, %v6822
    %v6841 = vpack.c.b16 %v6825, %v6824
    %6858 = vmatpush.bf16.msra.mxu0 %v6833
    %6859 = vmatpush.bf16.msra.mxu0 %v6832
    %6860 = vmatpush.bf16.msra.mxu0 %v6831
    %6861 = vmatpush.bf16.msra.mxu0 %v6830
    %6862 = vmatpush.bf16.msra.mxu0 %v6829
    %6863 = vmatpush.bf16.msra.mxu0 %v6828
    %6864 = vmatpush.bf16.msra.mxu0 %v6827
    %6865 = vmatpush.bf16.msra.mxu0 %v6826
    %6866 = vmatmul.bf16.gmra.mxu0 %v6756
    %v6867 = vpop.f32.mrf.mxu0
    %v6868 = vadd.f32 %v6760, %v6867
    %v6869 = vpop.f32.mrf.mxu0
    %6870 = vdwg.mxu0
    %6871 = vmatpush.bf16.msra.mxu0 %v6841
    %6872 = vmatpush.bf16.msra.mxu0 %v6840
    %6873 = vmatpush.bf16.msra.mxu0 %v6839
    %6874 = vmatpush.bf16.msra.mxu0 %v6838
    %6875 = vmatpush.bf16.msra.mxu0 %v6837
    %6876 = vmatpush.bf16.msra.mxu0 %v6836
    %6877 = vmatpush.bf16.msra.mxu0 %v6835
    %6878 = vmatpush.bf16.msra.mxu0 %v6834
    %6879 = vmatmul.bf16.gmra.mxu0 %v6757
    %v6880 = vpop.f32.mrf.mxu0
    %v6881 = vadd.f32 %v6868, %v6880
    %v6882 = vpop.f32.mrf.mxu0
    %6883 = vdwg.mxu0
    %6884 = vmax.xlane.f32.xlu0 %v6881
    %v6885 = vpop.xlane.xlu0 %6884
    %v6886 = vsub.f32 %v6881, %v6885
    %v6887 = vmul.f32 %v6886, 1.442695
    %v6888 = vpow.pop %v6887
    %6889 = vadd.xlane.f32.xlu0 %v6888
    %v6890 = vpop.xlane.xlu0 %6889
    %v6891 = vlog2.pop %v6890
    %v6892 = vmul.f32 %v6891, 0.6931472
    %v6893 = vsub.f32 %v6886, %v6892
    %6894 = vst [vmem:[%s12] sm:$0xff] %v6893
    // Predicated region
    $region74: #{cause_detector_forward.1} parent=1 // pred_check
      _
    $region75: #{cause_detector_forward.1} parent=1 // pred_check_branch
      %6896 = sbr.rel (0) target = $region77
    $region76: #{cause_detector_forward.1} parent=1 // pred_region
      _
    $region77: #{cause_detector_forward.1} parent=1 // pred_fallthru
      _
    // Predicated region
    $region78: #{cause_detector_forward.1} parent=1 // pred_check
      _
    $region79: #{cause_detector_forward.1} parent=1 // pred_check_branch
      %6898 = sbr.rel (0) target = $region81
    $region80: #{cause_detector_forward.1} parent=1 // pred_region
      _
    $region81: #{cause_detector_forward.1} parent=1 // pred_fallthru
      _
    %6899 = vsyncpa [#allocation4], 1
    %6900 = vsyncpa [#allocation6], 1
    %6901 = vsyncpa [#allocation9], 1
    %6902 = vsyncpa [#allocation12], 1

</llo_original>
